<compile_context>
chip_gen: v7x
topology: tpu7x:2x2x1
jax: 0.10.0
libtpu: 0.0.40
codegen_flags: <defaults>
</compile_context>

<pallas_src>
import functools

import jax
import jax.numpy as jnp
from jax.experimental import pallas as pl
from jax.experimental.pallas import tpu as pltpu


# ----------------------------------------------------------------------------
# small helpers
# ----------------------------------------------------------------------------

def _round_up(x, m):
    return (x + m - 1) // m * m


def _pick_tm(M, cap=256, target_steps=4, align=16):
    # Row-tile size + padded row count: >= target_steps pipeline steps,
    # bf16-friendly (multiple of 16) tiles, prefer an exact divisor (no pad).
    best = 0
    for d in range(align, min(M, cap) + 1, align):
        if M % d == 0 and M // d >= target_steps:
            best = d
    if best:
        return best, M
    tm = max(align, min(cap, _round_up(pl.cdiv(M, target_steps), align)))
    return tm, _round_up(M, tm)


def _pick_tn(dout, target=2048):
    # Largest multiple-of-128 divisor of dout that is <= target.
    best = dout
    for tn in range(128, min(dout, target) + 1, 128):
        if dout % tn == 0:
            best = tn
    return best


# ----------------------------------------------------------------------------
# Pallas kernels
# ----------------------------------------------------------------------------

def _linear_bn_relu_kernel(x_ref, w_ref, g_ref, b_ref, o_ref):
    # Fused Linear -> BatchNorm1d (training-mode batch stats) -> ReLU for one
    # Dout tile.  BN stats are per-column, so tiling over Dout is exact.
    # Linear bias is omitted: it cancels exactly under BN mean subtraction.
    y = jnp.dot(x_ref[...], w_ref[...], preferred_element_type=jnp.float32)
    mean = jnp.mean(y, axis=0, keepdims=True)
    var = jnp.mean(jnp.square(y - mean), axis=0, keepdims=True)  # biased var
    z = (y - mean) * jax.lax.rsqrt(var + 1e-5)
    z = z * g_ref[...] + b_ref[...]
    o_ref[...] = jnp.maximum(z, 0.0).astype(o_ref.dtype)


def linear_bn_relu(x, w, gamma, beta):
    B, Din = x.shape
    Dout = w.shape[1]
    tn = _pick_tn(Dout)
    return pl.pallas_call(
        _linear_bn_relu_kernel,
        out_shape=jax.ShapeDtypeStruct((B, Dout), jnp.bfloat16),
        grid_spec=pltpu.PrefetchScalarGridSpec(
            num_scalar_prefetch=0,
            grid=(Dout // tn,),
            in_specs=[
                pl.BlockSpec((B, Din), lambda j: (0, 0)),
                pl.BlockSpec((Din, tn), lambda j: (0, j)),
                pl.BlockSpec((1, tn), lambda j: (0, j)),
                pl.BlockSpec((1, tn), lambda j: (0, j)),
            ],
            out_specs=pl.BlockSpec((B, tn), lambda j: (0, j)),
        ),
        compiler_params=pltpu.CompilerParams(
            dimension_semantics=("parallel",)),
    )(x.astype(jnp.bfloat16), w.astype(jnp.bfloat16),
      gamma.reshape(1, Dout).astype(jnp.float32),
      beta.reshape(1, Dout).astype(jnp.float32))


def _conv_mm_kernel(p_ref, w_ref, y_ref, stats_ref):
    # im2col matmul for one M-tile + per-tile partial sum / sum-of-squares
    # (row 0 / row 1 of an (8, N) stats block).  Disjoint per-tile stats keep
    # the grid axis "parallel"; the tiny cross-tile reduction happens in JAX.
    y = jnp.dot(p_ref[...], w_ref[...], preferred_element_type=jnp.float32)
    y_ref[...] = y.astype(y_ref.dtype)
    s = jnp.sum(y, axis=0, keepdims=True)          # (1, N) f32
    ss = jnp.sum(y * y, axis=0, keepdims=True)     # (1, N) f32
    row = jax.lax.broadcasted_iota(jnp.int32, (8, y.shape[1]), 0)
    stats_ref[...] = jnp.where(row == 0, s, 0.0) + jnp.where(row == 1, ss, 0.0)


def conv_matmul(patches, w_mat, tm):
    # patches: (M, K) bf16, M % tm == 0 (zero-padded rows allowed).
    # w_mat:   (K, N) bf16, N % 128 == 0 (lane-dense output).
    M, K = patches.shape
    N = w_mat.shape[1]
    assert M % tm == 0 and N % 128 == 0
    G = M // tm
    y, stats = pl.pallas_call(
        _conv_mm_kernel,
        out_shape=(
            jax.ShapeDtypeStruct((M, N), jnp.bfloat16),
            jax.ShapeDtypeStruct((G * 8, N), jnp.float32),
        ),
        grid_spec=pltpu.PrefetchScalarGridSpec(
            num_scalar_prefetch=0,
            grid=(G,),
            in_specs=[
                pl.BlockSpec((tm, K), lambda i: (i, 0)),
                pl.BlockSpec((K, N), lambda i: (0, 0)),
            ],
            out_specs=(
                pl.BlockSpec((tm, N), lambda i: (i, 0)),
                pl.BlockSpec((8, N), lambda i: (i, 0)),
            ),
        ),
        compiler_params=pltpu.CompilerParams(
            dimension_semantics=("parallel",)),
    )(patches, w_mat)
    stats = stats.reshape(G, 8, N)
    return y, jnp.sum(stats[:, 0, :], axis=0), jnp.sum(stats[:, 1, :], axis=0)


def _affine_act_kernel(y_ref, sc_ref, sh_ref, o_ref, *, act):
    z = y_ref[...].astype(jnp.float32) * sc_ref[...] + sh_ref[...]
    if act == "relu":
        z = jnp.maximum(z, 0.0)
    elif act == "tanh":
        z = jnp.tanh(z)
    o_ref[...] = z.astype(o_ref.dtype)


def affine_act(y, scale, shift, act, tm):
    M, N = y.shape
    return pl.pallas_call(
        functools.partial(_affine_act_kernel, act=act),
        out_shape=jax.ShapeDtypeStruct((M, N), jnp.bfloat16),
        grid_spec=pltpu.PrefetchScalarGridSpec(
            num_scalar_prefetch=0,
            grid=(M // tm,),
            in_specs=[
                pl.BlockSpec((tm, N), lambda i: (i, 0)),
                pl.BlockSpec((1, N), lambda i: (0, 0)),
                pl.BlockSpec((1, N), lambda i: (0, 0)),
            ],
            out_specs=pl.BlockSpec((tm, N), lambda i: (i, 0)),
        ),
        compiler_params=pltpu.CompilerParams(
            dimension_semantics=("parallel",)),
    )(y, scale.reshape(1, N).astype(jnp.float32),
      shift.reshape(1, N).astype(jnp.float32))


# ----------------------------------------------------------------------------
# JAX glue: im2col, weight rearrangement, layer wrappers
# ----------------------------------------------------------------------------

def im2col_3x3(x):
    # x: (B, Hp, Wp, C) padded NHWC; stride-1 3x3 windows.
    # Returns ((B*Ho*Wo, 9*C), Ho, Wo) with tap order (dr, dc, c).
    B, Hp, Wp, C = x.shape
    Ho, Wo = Hp - 2, Wp - 2
    cols = []
    for dr in range(3):
        for dc in range(3):
            cols.append(x[:, dr:dr + Ho, dc:dc + Wo, :])
    p = jnp.stack(cols, axis=3)                        # (B, Ho, Wo, 9, C)
    return p.reshape(B * Ho * Wo, 9 * C), Ho, Wo
# TODO(synk): stream the 9 taps inside the matmul kernel (shifted-window DMAs
# accumulated in a VMEM scratch) instead of materializing 9x-expanded patches
# in HBM; at these shapes (B=2) the expansion is only a few hundred KB.


def convT_s2_phase_weight(w_t):
    # ConvTranspose2d(k=4, s=2, p=1) weight (Cin, Cout, 4, 4) rewritten as the
    # weight of the equivalent 4-phase stride-1 conv over the 1-padded input,
    # expressed against a shared 3x3 im2col:
    #   out[2m+a, 2n+b] = sum_{r,c in {0,1}} xpad[m+a+r, n+b+c] @ w[:,:,3-a-2r,3-b-2c]
    # Result: (9*Cin, 4*Cout), phase-major output columns (p = 2a + b).
    Cin, Cout = w_t.shape[0], w_t.shape[1]
    W = jnp.zeros((3, 3, Cin, 4, Cout), jnp.float32)
    for a in range(2):
        for b in range(2):
            p = 2 * a + b
            for r in range(2):
                for c in range(2):
                    W = W.at[a + r, b + c, :, p, :].set(
                        w_t[:, :, 3 - a - 2 * r, 3 - b - 2 * c])
    return W.reshape(9 * Cin, 4 * Cout)


def convT_s1_weight_padded(w_t, n_lanes):
    # ConvTranspose2d(k=3, s=1, p=1) == conv of the 1-padded input with the
    # spatially flipped kernel; output channels zero-padded to n_lanes.
    w = jnp.transpose(jnp.flip(w_t, axis=(2, 3)), (2, 3, 0, 1))   # (3,3,Cin,Cout)
    kh, kw, Cin, Cout = w.shape
    w = w.reshape(kh * kw * Cin, Cout)
    return jnp.pad(w, ((0, 0), (0, n_lanes - Cout)))


def conv_transpose_s2_bn_relu(x, w_t, gamma, beta):
    # ConvTranspose2d(k=4,s=2,p=1) -> BatchNorm2d (batch stats) -> ReLU, NHWC.
    # (ConvTranspose bias omitted: exactly cancelled by BN mean subtraction.)
    B, H, W, Cin = x.shape
    Cout = w_t.shape[1]
    xp = jnp.pad(x, ((0, 0), (1, 1), (1, 1), (0, 0)))
    patches, Ho, Wo = im2col_3x3(xp)                   # Ho=H, Wo=W
    M = patches.shape[0]                               # true rows = B*H*W
    tm, Mp = _pick_tm(M)
    patches = jnp.pad(patches, ((0, Mp - M), (0, 0))).astype(jnp.bfloat16)
    w_mat = convT_s2_phase_weight(w_t).astype(jnp.bfloat16)      # (9Cin, 4Cout)

    y, ysum, yssq = conv_matmul(patches, w_mat, tm)    # pad rows contribute 0
    count = B * (2 * H) * (2 * W)                      # output pixels / channel
    csum = jnp.sum(ysum.reshape(4, Cout), axis=0)
    cssq = jnp.sum(yssq.reshape(4, Cout), axis=0)
    mean = csum / count
    var = jnp.maximum(cssq / count - mean * mean, 0.0)  # clamp cancellation
    scale = gamma * jax.lax.rsqrt(var + 1e-5)
    shift = beta - mean * scale

    z = affine_act(y, jnp.tile(scale, 4), jnp.tile(shift, 4), "relu", tm)
    z = z[:M].reshape(B, H, W, 2, 2, Cout)             # (..., a, b, c)
    z = jnp.transpose(z, (0, 1, 3, 2, 4, 5)).reshape(B, 2 * H, 2 * W, Cout)
    return z


def conv_transpose_s1_tanh(x, w_t, bias):
    # ConvTranspose2d(k=3,s=1,p=1) -> Tanh, NHWC; Cout zero-padded to 128
    # lanes so stores stay dense, padding sliced off afterwards.
    B, H, W, Cin = x.shape
    Cout = w_t.shape[1]
    N = _round_up(Cout, 128)
    xp = jnp.pad(x, ((0, 0), (1, 1), (1, 1), (0, 0)))
    patches, Ho, Wo = im2col_3x3(xp)
    M = patches.shape[0]
    tm, Mp = _pick_tm(M)
    patches = jnp.pad(patches, ((0, Mp - M), (0, 0))).astype(jnp.bfloat16)
    w_mat = convT_s1_weight_padded(w_t, N).astype(jnp.bfloat16)

    y, _, _ = conv_matmul(patches, w_mat, tm)          # stats unused (no BN)
    scale = jnp.ones((N,), jnp.float32)
    shift = jnp.pad(bias.astype(jnp.float32), (0, N - Cout))   # fold conv bias
    z = affine_act(y, scale, shift, "tanh", tm)
    return z[:M, :Cout].reshape(B, Ho, Wo, Cout)


# ----------------------------------------------------------------------------
# Generator forward
# ----------------------------------------------------------------------------

def generator_forward(params, noise, labels):
    # Embedding lookup (tiny gather) + concat kept as JAX glue.
    emb = params["embedding"][labels]                          # (B, num_classes)
    gen_in = jnp.concatenate([noise, emb], axis=1)             # (B, noise+classes)

    h = linear_bn_relu(gen_in, params["fc_w"],
                       params["bn1_g"], params["bn1_b"])       # (B, 256*7*7) bf16

    B = noise.shape[0]
    x = h.reshape(B, 256, 7, 7)                                # torch Unflatten (NCHW)
    x = jnp.transpose(x, (0, 2, 3, 1))                         # -> NHWC

    x = conv_transpose_s2_bn_relu(x, params["ct1_w"],
                                  params["bn2_g"], params["bn2_b"])  # 14x14x128
    x = conv_transpose_s2_bn_relu(x, params["ct2_w"],
                                  params["bn3_g"], params["bn3_b"])  # 28x28x64
    x = conv_transpose_s1_tanh(x, params["ct3_w"], params["ct3_b"])  # 28x28x1

    return jnp.transpose(x, (0, 3, 1, 2)).astype(jnp.float32)  # NCHW (B,1,28,28)


def init_params(key, noise_dim, num_classes):
    keys = jax.random.split(key, 9)
    d_in = noise_dim + num_classes
    d_hid = 256 * 7 * 7

    def nrm(k, shape, scale=0.05):
        return scale * jax.random.normal(k, shape, jnp.float32)

    # fc_b / ct1_b / ct2_b are kept for parameter fidelity with the PyTorch
    # module but are mathematically cancelled by the training-mode BatchNorm
    # that follows them, so the kernels never read them.
    return dict(
        embedding=nrm(keys[0], (num_classes, num_classes), 1.0),
        fc_w=nrm(keys[1], (d_in, d_hid)),
        fc_b=nrm(keys[2], (d_hid,)),
        bn1_g=jnp.ones((d_hid,), jnp.float32),
        bn1_b=jnp.zeros((d_hid,), jnp.float32),
        ct1_w=nrm(keys[3], (256, 128, 4, 4)),     # ConvTranspose2d weight layout
        ct1_b=nrm(keys[4], (128,)),
        bn2_g=jnp.ones((128,), jnp.float32),
        bn2_b=jnp.zeros((128,), jnp.float32),
        ct2_w=nrm(keys[5], (128, 64, 4, 4)),
        ct2_b=nrm(keys[6], (64,)),
        bn3_g=jnp.ones((64,), jnp.float32),
        bn3_b=jnp.zeros((64,), jnp.float32),
        ct3_w=nrm(keys[7], (64, 1, 3, 3)),
        ct3_b=nrm(keys[8], (1,)),
    )


if __name__ == "__main__":
    noise_dim, num_classes, img_size = 32, 10, 28
    B = 2

    key = jax.random.PRNGKey(0)
    kp, kn, kl = jax.random.split(key, 3)
    params = init_params(kp, noise_dim, num_classes)
    noise = jax.random.normal(kn, (B, noise_dim), jnp.float32)
    labels = jax.random.randint(kl, (B,), 0, num_classes)

    img = jax.jit(generator_forward)(params, noise, labels)
    jax.block_until_ready(img)
    assert img.shape == (B, 1, 28, 28), img.shape
    assert bool(jnp.all(jnp.isfinite(img)))
    print("KERNEL_OK")
</pallas_src>

<mosaic_0001>
module attributes {stable_mosaic.version = 11 : i64} {
  func.func @_linear_bn_relu_kernel(%arg0: i32, %arg1: memref<2x42xbf16, #tpu.memory_space<vmem>>, %arg2: memref<42x1792xbf16, #tpu.memory_space<vmem>>, %arg3: memref<1x1792xf32, #tpu.memory_space<vmem>>, %arg4: memref<1x1792xf32, #tpu.memory_space<vmem>>, %arg5: memref<2x1792xbf16, #tpu.memory_space<vmem>>) attributes {dimension_semantics = [#tpu.dimension_semantics<parallel>], iteration_bounds = array<i64: 7>, scalar_prefetch = 0 : i64, scratch_operands = 0 : i64, tpu.core_type = #tpu.core_type<tc>, window_params = [{pipeline_mode = #tpu.pipeline_mode<synchronous>, transform_indices = @transform_0, window_bounds = array<i64: 2, 42>}, {transform_indices = @transform_1, window_bounds = array<i64: 42, 1792>}, {transform_indices = @transform_2, window_bounds = array<i64: 1, 1792>}, {transform_indices = @transform_3, window_bounds = array<i64: 1, 1792>}, {transform_indices = @transform_4, window_bounds = array<i64: 2, 1792>}]} {
    %c0 = arith.constant 0 : index
    %c0_0 = arith.constant 0 : index
    %0 = vector.load %arg1[%c0, %c0_0] : memref<2x42xbf16, #tpu.memory_space<vmem>>, vector<2x42xbf16>
    %c0_1 = arith.constant 0 : index
    %c0_2 = arith.constant 0 : index
    %1 = vector.load %arg2[%c0_1, %c0_2] : memref<42x1792xbf16, #tpu.memory_space<vmem>>, vector<42x1792xbf16>
    %cst = arith.constant dense<0.000000e+00> : vector<2x1792xf32>
    %2 = tpu.matmul %0, %1, %cst {dimension_numbers = #tpu.dot_dimension_numbers<[1], [0], [0], [1], [0, 0, 1, 1], [], []>} : vector<2x42xbf16>, vector<42x1792xbf16>, vector<2x1792xf32> -> vector<2x1792xf32>
    %cst_3 = arith.constant dense<0.000000e+00> : vector<1792xf32>
    %3 = vector.multi_reduction <add>, %2, %cst_3 [0] : vector<2x1792xf32> to vector<1792xf32>
    %4 = vector.shape_cast %3 : vector<1792xf32> to vector<1x1792xf32>
    %cst_4 = arith.constant 2.000000e+00 : f32
    %5 = vector.broadcast %cst_4 : f32 to vector<1x1792xf32>
    %6 = arith.divf %4, %5 : vector<1x1792xf32>
    %7 = vector.broadcast %6 : vector<1x1792xf32> to vector<2x1792xf32>
    %8 = arith.subf %2, %7 : vector<2x1792xf32>
    %9 = arith.mulf %8, %8 : vector<2x1792xf32>
    %cst_5 = arith.constant dense<0.000000e+00> : vector<1792xf32>
    %10 = vector.multi_reduction <add>, %9, %cst_5 [0] : vector<2x1792xf32> to vector<1792xf32>
    %11 = vector.shape_cast %10 : vector<1792xf32> to vector<1x1792xf32>
    %cst_6 = arith.constant 2.000000e+00 : f32
    %12 = vector.broadcast %cst_6 : f32 to vector<1x1792xf32>
    %13 = arith.divf %11, %12 : vector<1x1792xf32>
    %14 = vector.broadcast %6 : vector<1x1792xf32> to vector<2x1792xf32>
    %15 = arith.subf %2, %14 : vector<2x1792xf32>
    %cst_7 = arith.constant 9.99999974E-6 : f32
    %16 = vector.broadcast %cst_7 : f32 to vector<1x1792xf32>
    %17 = arith.addf %13, %16 : vector<1x1792xf32>
    %18 = math.rsqrt %17 : vector<1x1792xf32>
    %19 = vector.broadcast %18 : vector<1x1792xf32> to vector<2x1792xf32>
    %20 = arith.mulf %15, %19 : vector<2x1792xf32>
    %c0_8 = arith.constant 0 : index
    %c0_9 = arith.constant 0 : index
    %21 = vector.load %arg3[%c0_8, %c0_9] : memref<1x1792xf32, #tpu.memory_space<vmem>>, vector<1x1792xf32>
    %22 = vector.broadcast %21 : vector<1x1792xf32> to vector<2x1792xf32>
    %23 = arith.mulf %20, %22 : vector<2x1792xf32>
    %c0_10 = arith.constant 0 : index
    %c0_11 = arith.constant 0 : index
    %24 = vector.load %arg4[%c0_10, %c0_11] : memref<1x1792xf32, #tpu.memory_space<vmem>>, vector<1x1792xf32>
    %25 = vector.broadcast %24 : vector<1x1792xf32> to vector<2x1792xf32>
    %26 = arith.addf %23, %25 : vector<2x1792xf32>
    %cst_12 = arith.constant 0.000000e+00 : f32
    %27 = vector.broadcast %cst_12 : f32 to vector<2x1792xf32>
    %28 = arith.maximumf %26, %27 : vector<2x1792xf32>
    %29 = arith.truncf %28 : vector<2x1792xf32> to vector<2x1792xbf16>
    %c0_13 = arith.constant 0 : index
    %c0_14 = arith.constant 0 : index
    %30 = vector.load %arg5[%c0_13, %c0_14] : memref<2x1792xbf16, #tpu.memory_space<vmem>>, vector<2x1792xbf16>
    tpu.vector_store %arg5[%c0_13, %c0_14], %29 {strides = array<i32>} : memref<2x1792xbf16, #tpu.memory_space<vmem>>, vector<2x1792xbf16>,
    return
  }
  func.func @transform_0(%arg0: i32) -> (i32, i32) {
    %c0_i32 = arith.constant 0 : i32
    %c0_i32_0 = arith.constant 0 : i32
    %c0_i32_1 = arith.constant 0 : i32
    return %c0_i32, %c0_i32_0 : i32, i32
  }
  func.func @transform_1(%arg0: i32) -> (i32, i32) {
    %c0_i32 = arith.constant 0 : i32
    %c0_i32_0 = arith.constant 0 : i32
    return %c0_i32, %arg0 : i32, i32
  }
  func.func @transform_2(%arg0: i32) -> (i32, i32) {
    %c0_i32 = arith.constant 0 : i32
    %c0_i32_0 = arith.constant 0 : i32
    return %c0_i32, %arg0 : i32, i32
  }
  func.func @transform_3(%arg0: i32) -> (i32, i32) {
    %c0_i32 = arith.constant 0 : i32
    %c0_i32_0 = arith.constant 0 : i32
    return %c0_i32, %arg0 : i32, i32
  }
  func.func @transform_4(%arg0: i32) -> (i32, i32) {
    %c0_i32 = arith.constant 0 : i32
    %c0_i32_0 = arith.constant 0 : i32
    return %c0_i32, %arg0 : i32, i32
  }
}

module attributes {stable_mosaic.version = 11 : i64} {
  func.func @_conv_mm_kernel(%arg0: i32, %arg1: memref<32x2304xbf16, #tpu.memory_space<vmem>>, %arg2: memref<2304x512xbf16, #tpu.memory_space<vmem>>, %arg3: memref<32x512xbf16, #tpu.memory_space<vmem>>, %arg4: memref<8x512xf32, #tpu.memory_space<vmem>>) attributes {dimension_semantics = [#tpu.dimension_semantics<parallel>], iteration_bounds = array<i64: 4>, scalar_prefetch = 0 : i64, scratch_operands = 0 : i64, tpu.core_type = #tpu.core_type<tc>, window_params = [{transform_indices = @transform_0, window_bounds = array<i64: 32, 2304>}, {pipeline_mode = #tpu.pipeline_mode<synchronous>, transform_indices = @transform_1, window_bounds = array<i64: 2304, 512>}, {transform_indices = @transform_2, window_bounds = array<i64: 32, 512>}, {transform_indices = @transform_3, window_bounds = array<i64: 8, 512>}]} {
    %c0 = arith.constant 0 : index
    %c0_0 = arith.constant 0 : index
    %0 = vector.load %arg1[%c0, %c0_0] : memref<32x2304xbf16, #tpu.memory_space<vmem>>, vector<32x2304xbf16>
    %c0_1 = arith.constant 0 : index
    %c0_2 = arith.constant 0 : index
    %1 = vector.load %arg2[%c0_1, %c0_2] : memref<2304x512xbf16, #tpu.memory_space<vmem>>, vector<2304x512xbf16>
    %cst = arith.constant dense<0.000000e+00> : vector<32x512xf32>
    %2 = tpu.matmul %0, %1, %cst {dimension_numbers = #tpu.dot_dimension_numbers<[1], [0], [0], [1], [0, 0, 1, 1], [], []>} : vector<32x2304xbf16>, vector<2304x512xbf16>, vector<32x512xf32> -> vector<32x512xf32>
    %3 = arith.truncf %2 : vector<32x512xf32> to vector<32x512xbf16>
    %c0_3 = arith.constant 0 : index
    %c0_4 = arith.constant 0 : index
    %4 = vector.load %arg3[%c0_3, %c0_4] : memref<32x512xbf16, #tpu.memory_space<vmem>>, vector<32x512xbf16>
    tpu.vector_store %arg3[%c0_3, %c0_4], %3 {strides = array<i32>} : memref<32x512xbf16, #tpu.memory_space<vmem>>, vector<32x512xbf16>,
    %cst_5 = arith.constant dense<0.000000e+00> : vector<512xf32>
    %5 = vector.multi_reduction <add>, %2, %cst_5 [0] : vector<32x512xf32> to vector<512xf32>
    %6 = vector.shape_cast %5 : vector<512xf32> to vector<1x512xf32>
    %7 = arith.mulf %2, %2 : vector<32x512xf32>
    %cst_6 = arith.constant dense<0.000000e+00> : vector<512xf32>
    %8 = vector.multi_reduction <add>, %7, %cst_6 [0] : vector<32x512xf32> to vector<512xf32>
    %9 = vector.shape_cast %8 : vector<512xf32> to vector<1x512xf32>
    %10 = tpu.iota {dimensions = array<i32: 0>} : vector<8x512xi32>
    %c0_i32 = arith.constant 0 : i32
    %11 = vector.broadcast %c0_i32 : i32 to vector<8x512xi32>
    %12 = arith.cmpi eq, %10, %11 : vector<8x512xi32>
    %cst_7 = arith.constant 0.000000e+00 : f32
    %13 = vector.shape_cast %6 : vector<1x512xf32> to vector<1x512xf32>
    %14 = vector.broadcast %13 : vector<1x512xf32> to vector<8x512xf32>
    %15 = vector.broadcast %cst_7 : f32 to vector<8x512xf32>
    %16 = arith.select %12, %14, %15 : vector<8x512xi1>, vector<8x512xf32>
    %c1_i32 = arith.constant 1 : i32
    %17 = vector.broadcast %c1_i32 : i32 to vector<8x512xi32>
    %18 = arith.cmpi eq, %10, %17 : vector<8x512xi32>
    %cst_8 = arith.constant 0.000000e+00 : f32
    %19 = vector.shape_cast %9 : vector<1x512xf32> to vector<1x512xf32>
    %20 = vector.broadcast %19 : vector<1x512xf32> to vector<8x512xf32>
    %21 = vector.broadcast %cst_8 : f32 to vector<8x512xf32>
    %22 = arith.select %18, %20, %21 : vector<8x512xi1>, vector<8x512xf32>
    %23 = arith.addf %16, %22 : vector<8x512xf32>
    %c0_9 = arith.constant 0 : index
    %c0_10 = arith.constant 0 : index
    %24 = vector.load %arg4[%c0_9, %c0_10] : memref<8x512xf32, #tpu.memory_space<vmem>>, vector<8x512xf32>
    tpu.vector_store %arg4[%c0_9, %c0_10], %23 {strides = array<i32>} : memref<8x512xf32, #tpu.memory_space<vmem>>, vector<8x512xf32>,
    return
  }
  func.func @transform_0(%arg0: i32) -> (i32, i32) {
    %c0_i32 = arith.constant 0 : i32
    %c0_i32_0 = arith.constant 0 : i32
    return %arg0, %c0_i32 : i32, i32
  }
  func.func @transform_1(%arg0: i32) -> (i32, i32) {
    %c0_i32 = arith.constant 0 : i32
    %c0_i32_0 = arith.constant 0 : i32
    %c0_i32_1 = arith.constant 0 : i32
    return %c0_i32, %c0_i32_0 : i32, i32
  }
  func.func @transform_2(%arg0: i32) -> (i32, i32) {
    %c0_i32 = arith.constant 0 : i32
    %c0_i32_0 = arith.constant 0 : i32
    return %arg0, %c0_i32 : i32, i32
  }
  func.func @transform_3(%arg0: i32) -> (i32, i32) {
    %c0_i32 = arith.constant 0 : i32
    %c0_i32_0 = arith.constant 0 : i32
    return %arg0, %c0_i32 : i32, i32
  }
}

module attributes {stable_mosaic.version = 11 : i64} {
  func.func @_affine_act_kernel(%arg0: i32, %arg1: memref<32x512xbf16, #tpu.memory_space<vmem>>, %arg2: memref<1x512xf32, #tpu.memory_space<vmem>>, %arg3: memref<1x512xf32, #tpu.memory_space<vmem>>, %arg4: memref<32x512xbf16, #tpu.memory_space<vmem>>) attributes {dimension_semantics = [#tpu.dimension_semantics<parallel>], iteration_bounds = array<i64: 4>, scalar_prefetch = 0 : i64, scratch_operands = 0 : i64, tpu.core_type = #tpu.core_type<tc>, window_params = [{transform_indices = @transform_0, window_bounds = array<i64: 32, 512>}, {pipeline_mode = #tpu.pipeline_mode<synchronous>, transform_indices = @transform_1, window_bounds = array<i64: 1, 512>}, {pipeline_mode = #tpu.pipeline_mode<synchronous>, transform_indices = @transform_2, window_bounds = array<i64: 1, 512>}, {transform_indices = @transform_3, window_bounds = array<i64: 32, 512>}]} {
    %c0 = arith.constant 0 : index
    %c0_0 = arith.constant 0 : index
    %0 = vector.load %arg1[%c0, %c0_0] : memref<32x512xbf16, #tpu.memory_space<vmem>>, vector<32x512xbf16>
    %1 = arith.extf %0 : vector<32x512xbf16> to vector<32x512xf32>
    %c0_1 = arith.constant 0 : index
    %c0_2 = arith.constant 0 : index
    %2 = vector.load %arg2[%c0_1, %c0_2] : memref<1x512xf32, #tpu.memory_space<vmem>>, vector<1x512xf32>
    %3 = vector.broadcast %2 : vector<1x512xf32> to vector<32x512xf32>
    %4 = arith.mulf %1, %3 : vector<32x512xf32>
    %c0_3 = arith.constant 0 : index
    %c0_4 = arith.constant 0 : index
    %5 = vector.load %arg3[%c0_3, %c0_4] : memref<1x512xf32, #tpu.memory_space<vmem>>, vector<1x512xf32>
    %6 = vector.broadcast %5 : vector<1x512xf32> to vector<32x512xf32>
    %7 = arith.addf %4, %6 : vector<32x512xf32>
    %cst = arith.constant 0.000000e+00 : f32
    %8 = vector.broadcast %cst : f32 to vector<32x512xf32>
    %9 = arith.maximumf %7, %8 : vector<32x512xf32>
    %10 = arith.truncf %9 : vector<32x512xf32> to vector<32x512xbf16>
    %c0_5 = arith.constant 0 : index
    %c0_6 = arith.constant 0 : index
    %11 = vector.load %arg4[%c0_5, %c0_6] : memref<32x512xbf16, #tpu.memory_space<vmem>>, vector<32x512xbf16>
    tpu.vector_store %arg4[%c0_5, %c0_6], %10 {strides = array<i32>} : memref<32x512xbf16, #tpu.memory_space<vmem>>, vector<32x512xbf16>,
    return
  }
  func.func @transform_0(%arg0: i32) -> (i32, i32) {
    %c0_i32 = arith.constant 0 : i32
    %c0_i32_0 = arith.constant 0 : i32
    return %arg0, %c0_i32 : i32, i32
  }
  func.func @transform_1(%arg0: i32) -> (i32, i32) {
    %c0_i32 = arith.constant 0 : i32
    %c0_i32_0 = arith.constant 0 : i32
    %c0_i32_1 = arith.constant 0 : i32
    return %c0_i32, %c0_i32_0 : i32, i32
  }
  func.func @transform_2(%arg0: i32) -> (i32, i32) {
    %c0_i32 = arith.constant 0 : i32
    %c0_i32_0 = arith.constant 0 : i32
    %c0_i32_1 = arith.constant 0 : i32
    return %c0_i32, %c0_i32_0 : i32, i32
  }
  func.func @transform_3(%arg0: i32) -> (i32, i32) {
    %c0_i32 = arith.constant 0 : i32
    %c0_i32_0 = arith.constant 0 : i32
    return %arg0, %c0_i32 : i32, i32
  }
}

module attributes {stable_mosaic.version = 11 : i64} {
  func.func @_conv_mm_kernel(%arg0: i32, %arg1: memref<112x1152xbf16, #tpu.memory_space<vmem>>, %arg2: memref<1152x256xbf16, #tpu.memory_space<vmem>>, %arg3: memref<112x256xbf16, #tpu.memory_space<vmem>>, %arg4: memref<8x256xf32, #tpu.memory_space<vmem>>) attributes {dimension_semantics = [#tpu.dimension_semantics<parallel>], iteration_bounds = array<i64: 4>, scalar_prefetch = 0 : i64, scratch_operands = 0 : i64, tpu.core_type = #tpu.core_type<tc>, window_params = [{transform_indices = @transform_0, window_bounds = array<i64: 112, 1152>}, {pipeline_mode = #tpu.pipeline_mode<synchronous>, transform_indices = @transform_1, window_bounds = array<i64: 1152, 256>}, {transform_indices = @transform_2, window_bounds = array<i64: 112, 256>}, {transform_indices = @transform_3, window_bounds = array<i64: 8, 256>}]} {
    %c0 = arith.constant 0 : index
    %c0_0 = arith.constant 0 : index
    %0 = vector.load %arg1[%c0, %c0_0] : memref<112x1152xbf16, #tpu.memory_space<vmem>>, vector<112x1152xbf16>
    %c0_1 = arith.constant 0 : index
    %c0_2 = arith.constant 0 : index
    %1 = vector.load %arg2[%c0_1, %c0_2] : memref<1152x256xbf16, #tpu.memory_space<vmem>>, vector<1152x256xbf16>
    %cst = arith.constant dense<0.000000e+00> : vector<112x256xf32>
    %2 = tpu.matmul %0, %1, %cst {dimension_numbers = #tpu.dot_dimension_numbers<[1], [0], [0], [1], [0, 0, 1, 1], [], []>} : vector<112x1152xbf16>, vector<1152x256xbf16>, vector<112x256xf32> -> vector<112x256xf32>
    %3 = arith.truncf %2 : vector<112x256xf32> to vector<112x256xbf16>
    %c0_3 = arith.constant 0 : index
    %c0_4 = arith.constant 0 : index
    %4 = vector.load %arg3[%c0_3, %c0_4] : memref<112x256xbf16, #tpu.memory_space<vmem>>, vector<112x256xbf16>
    tpu.vector_store %arg3[%c0_3, %c0_4], %3 {strides = array<i32>} : memref<112x256xbf16, #tpu.memory_space<vmem>>, vector<112x256xbf16>,
    %cst_5 = arith.constant dense<0.000000e+00> : vector<256xf32>
    %5 = vector.multi_reduction <add>, %2, %cst_5 [0] : vector<112x256xf32> to vector<256xf32>
    %6 = vector.shape_cast %5 : vector<256xf32> to vector<1x256xf32>
    %7 = arith.mulf %2, %2 : vector<112x256xf32>
    %cst_6 = arith.constant dense<0.000000e+00> : vector<256xf32>
    %8 = vector.multi_reduction <add>, %7, %cst_6 [0] : vector<112x256xf32> to vector<256xf32>
    %9 = vector.shape_cast %8 : vector<256xf32> to vector<1x256xf32>
    %10 = tpu.iota {dimensions = array<i32: 0>} : vector<8x256xi32>
    %c0_i32 = arith.constant 0 : i32
    %11 = vector.broadcast %c0_i32 : i32 to vector<8x256xi32>
    %12 = arith.cmpi eq, %10, %11 : vector<8x256xi32>
    %cst_7 = arith.constant 0.000000e+00 : f32
    %13 = vector.shape_cast %6 : vector<1x256xf32> to vector<1x256xf32>
    %14 = vector.broadcast %13 : vector<1x256xf32> to vector<8x256xf32>
    %15 = vector.broadcast %cst_7 : f32 to vector<8x256xf32>
    %16 = arith.select %12, %14, %15 : vector<8x256xi1>, vector<8x256xf32>
    %c1_i32 = arith.constant 1 : i32
    %17 = vector.broadcast %c1_i32 : i32 to vector<8x256xi32>
    %18 = arith.cmpi eq, %10, %17 : vector<8x256xi32>
    %cst_8 = arith.constant 0.000000e+00 : f32
    %19 = vector.shape_cast %9 : vector<1x256xf32> to vector<1x256xf32>
    %20 = vector.broadcast %19 : vector<1x256xf32> to vector<8x256xf32>
    %21 = vector.broadcast %cst_8 : f32 to vector<8x256xf32>
    %22 = arith.select %18, %20, %21 : vector<8x256xi1>, vector<8x256xf32>
    %23 = arith.addf %16, %22 : vector<8x256xf32>
    %c0_9 = arith.constant 0 : index
    %c0_10 = arith.constant 0 : index
    %24 = vector.load %arg4[%c0_9, %c0_10] : memref<8x256xf32, #tpu.memory_space<vmem>>, vector<8x256xf32>
    tpu.vector_store %arg4[%c0_9, %c0_10], %23 {strides = array<i32>} : memref<8x256xf32, #tpu.memory_space<vmem>>, vector<8x256xf32>,
    return
  }
  func.func @transform_0(%arg0: i32) -> (i32, i32) {
    %c0_i32 = arith.constant 0 : i32
    %c0_i32_0 = arith.constant 0 : i32
    return %arg0, %c0_i32 : i32, i32
  }
  func.func @transform_1(%arg0: i32) -> (i32, i32) {
    %c0_i32 = arith.constant 0 : i32
    %c0_i32_0 = arith.constant 0 : i32
    %c0_i32_1 = arith.constant 0 : i32
    return %c0_i32, %c0_i32_0 : i32, i32
  }
  func.func @transform_2(%arg0: i32) -> (i32, i32) {
    %c0_i32 = arith.constant 0 : i32
    %c0_i32_0 = arith.constant 0 : i32
    return %arg0, %c0_i32 : i32, i32
  }
  func.func @transform_3(%arg0: i32) -> (i32, i32) {
    %c0_i32 = arith.constant 0 : i32
    %c0_i32_0 = arith.constant 0 : i32
    return %arg0, %c0_i32 : i32, i32
  }
}

module attributes {stable_mosaic.version = 11 : i64} {
  func.func @_affine_act_kernel(%arg0: i32, %arg1: memref<112x256xbf16, #tpu.memory_space<vmem>>, %arg2: memref<1x256xf32, #tpu.memory_space<vmem>>, %arg3: memref<1x256xf32, #tpu.memory_space<vmem>>, %arg4: memref<112x256xbf16, #tpu.memory_space<vmem>>) attributes {dimension_semantics = [#tpu.dimension_semantics<parallel>], iteration_bounds = array<i64: 4>, scalar_prefetch = 0 : i64, scratch_operands = 0 : i64, tpu.core_type = #tpu.core_type<tc>, window_params = [{transform_indices = @transform_0, window_bounds = array<i64: 112, 256>}, {pipeline_mode = #tpu.pipeline_mode<synchronous>, transform_indices = @transform_1, window_bounds = array<i64: 1, 256>}, {pipeline_mode = #tpu.pipeline_mode<synchronous>, transform_indices = @transform_2, window_bounds = array<i64: 1, 256>}, {transform_indices = @transform_3, window_bounds = array<i64: 112, 256>}]} {
    %c0 = arith.constant 0 : index
    %c0_0 = arith.constant 0 : index
    %0 = vector.load %arg1[%c0, %c0_0] : memref<112x256xbf16, #tpu.memory_space<vmem>>, vector<112x256xbf16>
    %1 = arith.extf %0 : vector<112x256xbf16> to vector<112x256xf32>
    %c0_1 = arith.constant 0 : index
    %c0_2 = arith.constant 0 : index
    %2 = vector.load %arg2[%c0_1, %c0_2] : memref<1x256xf32, #tpu.memory_space<vmem>>, vector<1x256xf32>
    %3 = vector.broadcast %2 : vector<1x256xf32> to vector<112x256xf32>
    %4 = arith.mulf %1, %3 : vector<112x256xf32>
    %c0_3 = arith.constant 0 : index
    %c0_4 = arith.constant 0 : index
    %5 = vector.load %arg3[%c0_3, %c0_4] : memref<1x256xf32, #tpu.memory_space<vmem>>, vector<1x256xf32>
    %6 = vector.broadcast %5 : vector<1x256xf32> to vector<112x256xf32>
    %7 = arith.addf %4, %6 : vector<112x256xf32>
    %cst = arith.constant 0.000000e+00 : f32
    %8 = vector.broadcast %cst : f32 to vector<112x256xf32>
    %9 = arith.maximumf %7, %8 : vector<112x256xf32>
    %10 = arith.truncf %9 : vector<112x256xf32> to vector<112x256xbf16>
    %c0_5 = arith.constant 0 : index
    %c0_6 = arith.constant 0 : index
    %11 = vector.load %arg4[%c0_5, %c0_6] : memref<112x256xbf16, #tpu.memory_space<vmem>>, vector<112x256xbf16>
    tpu.vector_store %arg4[%c0_5, %c0_6], %10 {strides = array<i32>} : memref<112x256xbf16, #tpu.memory_space<vmem>>, vector<112x256xbf16>,
    return
  }
  func.func @transform_0(%arg0: i32) -> (i32, i32) {
    %c0_i32 = arith.constant 0 : i32
    %c0_i32_0 = arith.constant 0 : i32
    return %arg0, %c0_i32 : i32, i32
  }
  func.func @transform_1(%arg0: i32) -> (i32, i32) {
    %c0_i32 = arith.constant 0 : i32
    %c0_i32_0 = arith.constant 0 : i32
    %c0_i32_1 = arith.constant 0 : i32
    return %c0_i32, %c0_i32_0 : i32, i32
  }
  func.func @transform_2(%arg0: i32) -> (i32, i32) {
    %c0_i32 = arith.constant 0 : i32
    %c0_i32_0 = arith.constant 0 : i32
    %c0_i32_1 = arith.constant 0 : i32
    return %c0_i32, %c0_i32_0 : i32, i32
  }
  func.func @transform_3(%arg0: i32) -> (i32, i32) {
    %c0_i32 = arith.constant 0 : i32
    %c0_i32_0 = arith.constant 0 : i32
    return %arg0, %c0_i32 : i32, i32
  }
}

module attributes {stable_mosaic.version = 11 : i64} {
  func.func @_conv_mm_kernel(%arg0: i32, %arg1: memref<224x576xbf16, #tpu.memory_space<vmem>>, %arg2: memref<576x128xbf16, #tpu.memory_space<vmem>>, %arg3: memref<224x128xbf16, #tpu.memory_space<vmem>>, %arg4: memref<8x128xf32, #tpu.memory_space<vmem>>) attributes {dimension_semantics = [#tpu.dimension_semantics<parallel>], iteration_bounds = array<i64: 7>, scalar_prefetch = 0 : i64, scratch_operands = 0 : i64, tpu.core_type = #tpu.core_type<tc>, window_params = [{transform_indices = @transform_0, window_bounds = array<i64: 224, 576>}, {pipeline_mode = #tpu.pipeline_mode<synchronous>, transform_indices = @transform_1, window_bounds = array<i64: 576, 128>}, {transform_indices = @transform_2, window_bounds = array<i64: 224, 128>}, {transform_indices = @transform_3, window_bounds = array<i64: 8, 128>}]} {
    %c0 = arith.constant 0 : index
    %c0_0 = arith.constant 0 : index
    %0 = vector.load %arg1[%c0, %c0_0] : memref<224x576xbf16, #tpu.memory_space<vmem>>, vector<224x576xbf16>
    %c0_1 = arith.constant 0 : index
    %c0_2 = arith.constant 0 : index
    %1 = vector.load %arg2[%c0_1, %c0_2] : memref<576x128xbf16, #tpu.memory_space<vmem>>, vector<576x128xbf16>
    %cst = arith.constant dense<0.000000e+00> : vector<224x128xf32>
    %2 = tpu.matmul %0, %1, %cst {dimension_numbers = #tpu.dot_dimension_numbers<[1], [0], [0], [1], [0, 0, 1, 1], [], []>} : vector<224x576xbf16>, vector<576x128xbf16>, vector<224x128xf32> -> vector<224x128xf32>
    %3 = arith.truncf %2 : vector<224x128xf32> to vector<224x128xbf16>
    %c0_3 = arith.constant 0 : index
    %c0_4 = arith.constant 0 : index
    %4 = vector.load %arg3[%c0_3, %c0_4] : memref<224x128xbf16, #tpu.memory_space<vmem>>, vector<224x128xbf16>
    tpu.vector_store %arg3[%c0_3, %c0_4], %3 {strides = array<i32>} : memref<224x128xbf16, #tpu.memory_space<vmem>>, vector<224x128xbf16>,
    %cst_5 = arith.constant dense<0.000000e+00> : vector<128xf32>
    %5 = vector.multi_reduction <add>, %2, %cst_5 [0] : vector<224x128xf32> to vector<128xf32>
    %6 = vector.shape_cast %5 : vector<128xf32> to vector<1x128xf32>
    %7 = arith.mulf %2, %2 : vector<224x128xf32>
    %cst_6 = arith.constant dense<0.000000e+00> : vector<128xf32>
    %8 = vector.multi_reduction <add>, %7, %cst_6 [0] : vector<224x128xf32> to vector<128xf32>
    %9 = vector.shape_cast %8 : vector<128xf32> to vector<1x128xf32>
    %10 = tpu.iota {dimensions = array<i32: 0>} : vector<8x128xi32>
    %c0_i32 = arith.constant 0 : i32
    %11 = vector.broadcast %c0_i32 : i32 to vector<8x128xi32>
    %12 = arith.cmpi eq, %10, %11 : vector<8x128xi32>
    %cst_7 = arith.constant 0.000000e+00 : f32
    %13 = vector.shape_cast %6 : vector<1x128xf32> to vector<1x128xf32>
    %14 = vector.broadcast %13 : vector<1x128xf32> to vector<8x128xf32>
    %15 = vector.broadcast %cst_7 : f32 to vector<8x128xf32>
    %16 = arith.select %12, %14, %15 : vector<8x128xi1>, vector<8x128xf32>
    %c1_i32 = arith.constant 1 : i32
    %17 = vector.broadcast %c1_i32 : i32 to vector<8x128xi32>
    %18 = arith.cmpi eq, %10, %17 : vector<8x128xi32>
    %cst_8 = arith.constant 0.000000e+00 : f32
    %19 = vector.shape_cast %9 : vector<1x128xf32> to vector<1x128xf32>
    %20 = vector.broadcast %19 : vector<1x128xf32> to vector<8x128xf32>
    %21 = vector.broadcast %cst_8 : f32 to vector<8x128xf32>
    %22 = arith.select %18, %20, %21 : vector<8x128xi1>, vector<8x128xf32>
    %23 = arith.addf %16, %22 : vector<8x128xf32>
    %c0_9 = arith.constant 0 : index
    %c0_10 = arith.constant 0 : index
    %24 = vector.load %arg4[%c0_9, %c0_10] : memref<8x128xf32, #tpu.memory_space<vmem>>, vector<8x128xf32>
    tpu.vector_store %arg4[%c0_9, %c0_10], %23 {strides = array<i32>} : memref<8x128xf32, #tpu.memory_space<vmem>>, vector<8x128xf32>,
    return
  }
  func.func @transform_0(%arg0: i32) -> (i32, i32) {
    %c0_i32 = arith.constant 0 : i32
    %c0_i32_0 = arith.constant 0 : i32
    return %arg0, %c0_i32 : i32, i32
  }
  func.func @transform_1(%arg0: i32) -> (i32, i32) {
    %c0_i32 = arith.constant 0 : i32
    %c0_i32_0 = arith.constant 0 : i32
    %c0_i32_1 = arith.constant 0 : i32
    return %c0_i32, %c0_i32_0 : i32, i32
  }
  func.func @transform_2(%arg0: i32) -> (i32, i32) {
    %c0_i32 = arith.constant 0 : i32
    %c0_i32_0 = arith.constant 0 : i32
    return %arg0, %c0_i32 : i32, i32
  }
  func.func @transform_3(%arg0: i32) -> (i32, i32) {
    %c0_i32 = arith.constant 0 : i32
    %c0_i32_0 = arith.constant 0 : i32
    return %arg0, %c0_i32 : i32, i32
  }
}

module attributes {stable_mosaic.version = 11 : i64} {
  func.func @_affine_act_kernel(%arg0: i32, %arg1: memref<224x128xbf16, #tpu.memory_space<vmem>>, %arg2: memref<1x128xf32, #tpu.memory_space<vmem>>, %arg3: memref<1x128xf32, #tpu.memory_space<vmem>>, %arg4: memref<224x128xbf16, #tpu.memory_space<vmem>>) attributes {dimension_semantics = [#tpu.dimension_semantics<parallel>], iteration_bounds = array<i64: 7>, scalar_prefetch = 0 : i64, scratch_operands = 0 : i64, tpu.core_type = #tpu.core_type<tc>, window_params = [{transform_indices = @transform_0, window_bounds = array<i64: 224, 128>}, {pipeline_mode = #tpu.pipeline_mode<synchronous>, transform_indices = @transform_1, window_bounds = array<i64: 1, 128>}, {pipeline_mode = #tpu.pipeline_mode<synchronous>, transform_indices = @transform_2, window_bounds = array<i64: 1, 128>}, {transform_indices = @transform_3, window_bounds = array<i64: 224, 128>}]} {
    %c0 = arith.constant 0 : index
    %c0_0 = arith.constant 0 : index
    %0 = vector.load %arg1[%c0, %c0_0] : memref<224x128xbf16, #tpu.memory_space<vmem>>, vector<224x128xbf16>
    %1 = arith.extf %0 : vector<224x128xbf16> to vector<224x128xf32>
    %c0_1 = arith.constant 0 : index
    %c0_2 = arith.constant 0 : index
    %2 = vector.load %arg2[%c0_1, %c0_2] : memref<1x128xf32, #tpu.memory_space<vmem>>, vector<1x128xf32>
    %3 = vector.broadcast %2 : vector<1x128xf32> to vector<224x128xf32>
    %4 = arith.mulf %1, %3 : vector<224x128xf32>
    %c0_3 = arith.constant 0 : index
    %c0_4 = arith.constant 0 : index
    %5 = vector.load %arg3[%c0_3, %c0_4] : memref<1x128xf32, #tpu.memory_space<vmem>>, vector<1x128xf32>
    %6 = vector.broadcast %5 : vector<1x128xf32> to vector<224x128xf32>
    %7 = arith.addf %4, %6 : vector<224x128xf32>
    %8 = math.tanh %7 : vector<224x128xf32>
    %9 = arith.truncf %8 : vector<224x128xf32> to vector<224x128xbf16>
    %c0_5 = arith.constant 0 : index
    %c0_6 = arith.constant 0 : index
    %10 = vector.load %arg4[%c0_5, %c0_6] : memref<224x128xbf16, #tpu.memory_space<vmem>>, vector<224x128xbf16>
    tpu.vector_store %arg4[%c0_5, %c0_6], %9 {strides = array<i32>} : memref<224x128xbf16, #tpu.memory_space<vmem>>, vector<224x128xbf16>,
    return
  }
  func.func @transform_0(%arg0: i32) -> (i32, i32) {
    %c0_i32 = arith.constant 0 : i32
    %c0_i32_0 = arith.constant 0 : i32
    return %arg0, %c0_i32 : i32, i32
  }
  func.func @transform_1(%arg0: i32) -> (i32, i32) {
    %c0_i32 = arith.constant 0 : i32
    %c0_i32_0 = arith.constant 0 : i32
    %c0_i32_1 = arith.constant 0 : i32
    return %c0_i32, %c0_i32_0 : i32, i32
  }
  func.func @transform_2(%arg0: i32) -> (i32, i32) {
    %c0_i32 = arith.constant 0 : i32
    %c0_i32_0 = arith.constant 0 : i32
    %c0_i32_1 = arith.constant 0 : i32
    return %c0_i32, %c0_i32_0 : i32, i32
  }
  func.func @transform_3(%arg0: i32) -> (i32, i32) {
    %c0_i32 = arith.constant 0 : i32
    %c0_i32_0 = arith.constant 0 : i32
    return %arg0, %c0_i32 : i32, i32
  }
}

</mosaic_0001>

<llo_original>
// kernel: generator_forward.7
$region0: #{generator_forward.7}
  #allocation0 [shape = 'u32[]', space=smem, size = 0x4, offset = 0x4, fixed_abs, tag = 'smem constant byte address 0x4 - core index']
  #allocation1 [shape = 'u32[144,128]{1,0:T(1,128)}', space=vmem, size = 0x12000, scoped, tag = 'internal scratch']
  %s0 = inlined_call_operand.vmem [shape: bf16[2,42], index: 0, kind: input, shape index: {}]
  %s1 = inlined_call_operand.vmem [shape: bf16[42,12544], index: 1, kind: input, shape index: {}]
  %s2 = inlined_call_operand.vmem [shape: f32[1,12544], index: 2, kind: input, shape index: {}]
  %s3 = inlined_call_operand.vmem [shape: f32[1,12544], index: 3, kind: input, shape index: {}]
  %s4 = inlined_call_operand.vmem [shape: bf16[2,12544], index: 4, kind: output, shape index: {}]
  %s5 = sld [smem:[#allocation0]]
  $region72: #{generator_forward.7} parent=0
    _
  %s7 = ssub.s32 1, %s5
  %s8 = scalar_select 0, %s7, %s5
  $region1: #{generator_forward.7} parent=0
    #allocation2 [shape = 'u8[344064]{0}', space=vmem, size = 0x54000, scoped, tag = 'input window, operand 1']
    loop: start=0, step=1, limit=9
    $region2: #{generator_forward.7} parent=1 // loop_pre_header
      _
    $region3: #{generator_forward.7} parent=1 // loop_header
      %s10 = sphi 0, %s14
      %p11 = scmp.ge.s32.totalorder %s10, 9
      %s18 = sphi 0, %s18
      %s20 = sphi 0, %s18
      %s21 = sphi 0, %s20
      %s35 = sphi 0, %s21
      %s41 = sphi 0, %s43
      %s44 = sphi 0, %s41
      %s45 = sphi 0, %s44
      %s61 = sphi 0, %s45
      %s67 = sphi 0, %s69
      %s70 = sphi 0, %s67
      %s71 = sphi 0, %s70
      %s87 = sphi 0, %s71
      %s93 = sphi 0, %s95
      %s96 = sphi 0, %s93
      %s97 = sphi 0, %s96
      %s113 = sphi 0, %s97
      %s119 = sphi 0, %s121
      %s122 = sphi 0, %s119
      %s123 = sphi 0, %s122
      %s139 = sphi 0, %s123
    $region4: #{generator_forward.7} parent=1 // loop_header_branch
      %13 = sbr.rel (%p11) target = $region8
    $region5: #{generator_forward.7} parent=1 // loop_body
      %s15 = ssub.s32 %s10, 1
      %s16 = ssub.s32 %s10, 2
      %s17 = sadd.s32 %s10, 1
      %s19 = sadd.s32 %s18, 1
      %p22 = scmp.eq.s32.totalorder %s10, 6
      %p23 = scmp.ne.s32.totalorder %s18, %s20
      %p24 = scmp.eq.s32.totalorder %s10, 0
      %p25 = por %p23, %p24
      %p26 = scmp.ne.s32.totalorder %s18, %s20
      %p27 = scmp.eq.s32.totalorder %s15, 6
      %p28 = por %p26, %p27
      %p29 = scmp.ne.s32.totalorder %s20, %s21
      %p30 = scmp.eq.s32.totalorder %s15, 0
      %p31 = por %p29, %p30
      %p32 = scmp.ne.s32.totalorder %s20, %s21
      %p33 = scmp.eq.s32.totalorder %s16, 6
      %p34 = por %p32, %p33
      %p36 = scmp.ne.s32.totalorder %s21, %s35
      %p37 = scmp.eq.s32.totalorder %s16, 0
      %p38 = por %p36, %p37
      %s39 = ssub.s32 %s10, %s17
      %p40 = scmp.eq.s32.totalorder %s39, 0
      %s42 = sadd.s32 %s41, 1
      %s43 = scalar_select %p40, %s41, %s42
      %p46 = pneg %p40
      %p47 = scmp.eq.s32.totalorder %s10, 6
      %p48 = por %p46, %p47
      %p49 = scmp.ne.s32.totalorder %s41, %s44
      %p50 = scmp.eq.s32.totalorder %s10, 0
      %p51 = por %p49, %p50
      %p52 = scmp.ne.s32.totalorder %s41, %s44
      %p53 = scmp.eq.s32.totalorder %s15, 6
      %p54 = por %p52, %p53
      %p55 = scmp.ne.s32.totalorder %s44, %s45
      %p56 = scmp.eq.s32.totalorder %s15, 0
      %p57 = por %p55, %p56
      %p58 = scmp.ne.s32.totalorder %s44, %s45
      %p59 = scmp.eq.s32.totalorder %s16, 6
      %p60 = por %p58, %p59
      %p62 = scmp.ne.s32.totalorder %s45, %s61
      %p63 = scmp.eq.s32.totalorder %s16, 0
      %p64 = por %p62, %p63
      %s65 = ssub.s32 %s10, %s17
      %p66 = scmp.eq.s32.totalorder %s65, 0
      %s68 = sadd.s32 %s67, 1
      %s69 = scalar_select %p66, %s67, %s68
      %p72 = pneg %p66
      %p73 = scmp.eq.s32.totalorder %s10, 6
      %p74 = por %p72, %p73
      %p75 = scmp.ne.s32.totalorder %s67, %s70
      %p76 = scmp.eq.s32.totalorder %s10, 0
      %p77 = por %p75, %p76
      %p78 = scmp.ne.s32.totalorder %s67, %s70
      %p79 = scmp.eq.s32.totalorder %s15, 6
      %p80 = por %p78, %p79
      %p81 = scmp.ne.s32.totalorder %s70, %s71
      %p82 = scmp.eq.s32.totalorder %s15, 0
      %p83 = por %p81, %p82
      %p84 = scmp.ne.s32.totalorder %s70, %s71
      %p85 = scmp.eq.s32.totalorder %s16, 6
      %p86 = por %p84, %p85
      %p88 = scmp.ne.s32.totalorder %s71, %s87
      %p89 = scmp.eq.s32.totalorder %s16, 0
      %p90 = por %p88, %p89
      %s91 = ssub.s32 %s10, %s17
      %p92 = scmp.eq.s32.totalorder %s91, 0
      %s94 = sadd.s32 %s93, 1
      %s95 = scalar_select %p92, %s93, %s94
      %p98 = pneg %p92
      %p99 = scmp.eq.s32.totalorder %s10, 6
      %p100 = por %p98, %p99
      %p101 = scmp.ne.s32.totalorder %s93, %s96
      %p102 = scmp.eq.s32.totalorder %s10, 0
      %p103 = por %p101, %p102
      %p104 = scmp.ne.s32.totalorder %s93, %s96
      %p105 = scmp.eq.s32.totalorder %s15, 6
      %p106 = por %p104, %p105
      %p107 = scmp.ne.s32.totalorder %s96, %s97
      %p108 = scmp.eq.s32.totalorder %s15, 0
      %p109 = por %p107, %p108
      %p110 = scmp.ne.s32.totalorder %s96, %s97
      %p111 = scmp.eq.s32.totalorder %s16, 6
      %p112 = por %p110, %p111
      %p114 = scmp.ne.s32.totalorder %s97, %s113
      %p115 = scmp.eq.s32.totalorder %s16, 0
      %p116 = por %p114, %p115
      %s117 = ssub.s32 %s10, %s17
      %p118 = scmp.eq.s32.totalorder %s117, 0
      %s120 = sadd.s32 %s119, 1
      %s121 = scalar_select %p118, %s119, %s120
      %p124 = pneg %p118
      %p125 = scmp.eq.s32.totalorder %s10, 6
      %p126 = por %p124, %p125
      %p127 = scmp.ne.s32.totalorder %s119, %s122
      %p128 = scmp.eq.s32.totalorder %s10, 0
      %p129 = por %p127, %p128
      %p130 = scmp.ne.s32.totalorder %s119, %s122
      %p131 = scmp.eq.s32.totalorder %s15, 6
      %p132 = por %p130, %p131
      %p133 = scmp.ne.s32.totalorder %s122, %s123
      %p134 = scmp.eq.s32.totalorder %s15, 0
      %p135 = por %p133, %p134
      %p136 = scmp.ne.s32.totalorder %s122, %s123
      %p137 = scmp.eq.s32.totalorder %s16, 6
      %p138 = por %p136, %p137
      %p140 = scmp.ne.s32.totalorder %s123, %s139
      %p141 = scmp.eq.s32.totalorder %s16, 0
      %p142 = por %p140, %p141
      %p143 = scmp.le.s32.totalorder 1, %s10
      %p144 = scmp.lt.s32.totalorder %s10, 8
      %p145 = pnand %p143, %p144
      %p146 = pneg %p145
      // Predicated region
      $region9: #{generator_forward.7} parent=5 // pred_check
        _
      $region10: #{generator_forward.7} parent=5 // pred_check_branch
        %148 = sbr.rel (%p145) target = $region12
      $region11: #{generator_forward.7} parent=5 // pred_region
        %s149 = ssub.s32 %s10, 1
        // Predicated region
        $region13: #{generator_forward.7} parent=11 // pred_check
          %p150 = pneg %p31
        $region14: #{generator_forward.7} parent=11 // pred_check_branch
          %152 = sbr.rel (%p150) target = $region16
        $region15: #{generator_forward.7} parent=11 // pred_region
          _
        $region16: #{generator_forward.7} parent=11 // pred_fallthru
          _
      $region12: #{generator_forward.7} parent=5 // pred_fallthru
        _
      %p153 = scmp.lt.s32.totalorder %s10, 7
      // Predicated region
      $region17: #{generator_forward.7} parent=5 // pred_check
        %p154 = pneg %p153
      $region18: #{generator_forward.7} parent=5 // pred_check_branch
        %156 = sbr.rel (%p154) target = $region20
      $region19: #{generator_forward.7} parent=5 // pred_region
        // Predicated region
        $region21: #{generator_forward.7} parent=19 // pred_check
          %p157 = pneg %p51
        $region22: #{generator_forward.7} parent=19 // pred_check_branch
          %159 = sbr.rel (%p157) target = $region24
        $region23: #{generator_forward.7} parent=19 // pred_region
          %s160 = sand.u32 %s41, 1
          %s161 = sand.u32 %s41, 1
          %s162 = smul.addr %s161, 336
          %s163 = scalar_lea.vmem [#allocation2], %s162
          %s164 = smul.u32 14, %s10
          %s165 = smul.addr %s164, 4
          %s166 = scalar_lea.vmem %s1, %s165
          // Predicated region
          $region25: #{generator_forward.7} parent=23 // pred_check
            _
          $region26: #{generator_forward.7} parent=23 // pred_check_branch
            %168 = sbr.rel (0) target = $region28
          $region27: #{generator_forward.7} parent=23 // pred_region
            // Predicated region
            $region29: #{generator_forward.7} parent=27 // pred_check
              _
            $region30: #{generator_forward.7} parent=27 // pred_check_branch
              %170 = sbr.rel (0) target = $region32
            $region31: #{generator_forward.7} parent=27 // pred_region
              loop: start=0, step=1, limit=1
              $region33: #{generator_forward.7} parent=31 // loop_pre_header
                _
              $region34: #{generator_forward.7} parent=31 // loop_header
                %s172 = sphi 0, %s176
                %p173 = scmp.ge.s32.totalorder %s172, 1
                %s177 = sphi %s166, %s166
                %s178 = sphi %s163, %s163
              $region35: #{generator_forward.7} parent=31 // loop_header_branch
                %175 = sbr.rel (%p173) target = $region39
              $region36: #{generator_forward.7} parent=31 // loop_body
                %v179 = vld [vmem:[%s177] sm:$0xff]
                %180 = vst [vmem:[%s178] sm:$0xff] %v179
                %v181 = vld [vmem:[%s177 + $0x8] sm:$0xff]
                %182 = vst [vmem:[%s178 + $0x8] sm:$0xff] %v181
                %v183 = vld [vmem:[%s177 + $0x10] sm:$0xff]
                %184 = vst [vmem:[%s178 + $0x10] sm:$0xff] %v183
                %v185 = vld [vmem:[%s177 + $0x18] sm:$0xff]
                %186 = vst [vmem:[%s178 + $0x18] sm:$0xff] %v185
                %v187 = vld [vmem:[%s177 + $0x20] sm:$0xff]
                %188 = vst [vmem:[%s178 + $0x20] sm:$0xff] %v187
                %v189 = vld [vmem:[%s177 + $0x28] sm:$0xff]
                %190 = vst [vmem:[%s178 + $0x28] sm:$0xff] %v189
                %v191 = vld [vmem:[%s177 + $0x30] sm:$0xff]
                %192 = vst [vmem:[%s178 + $0x30] sm:$0xff] %v191
                %v193 = vld [vmem:[%s177 + $0x188] sm:$0xff]
                %194 = vst [vmem:[%s178 + $0x38] sm:$0xff] %v193
                %v195 = vld [vmem:[%s177 + $0x190] sm:$0xff]
                %196 = vst [vmem:[%s178 + $0x40] sm:$0xff] %v195
                %v197 = vld [vmem:[%s177 + $0x198] sm:$0xff]
                %198 = vst [vmem:[%s178 + $0x48] sm:$0xff] %v197
                %v199 = vld [vmem:[%s177 + $0x1a0] sm:$0xff]
                %200 = vst [vmem:[%s178 + $0x50] sm:$0xff] %v199
                %v201 = vld [vmem:[%s177 + $0x1a8] sm:$0xff]
                %202 = vst [vmem:[%s178 + $0x58] sm:$0xff] %v201
                %v203 = vld [vmem:[%s177 + $0x1b0] sm:$0xff]
                %204 = vst [vmem:[%s178 + $0x60] sm:$0xff] %v203
                %v205 = vld [vmem:[%s177 + $0x1b8] sm:$0xff]
                %206 = vst [vmem:[%s178 + $0x68] sm:$0xff] %v205
                %v207 = vld [vmem:[%s177 + $0x310] sm:$0xff]
                %208 = vst [vmem:[%s178 + $0x70] sm:$0xff] %v207
                %v209 = vld [vmem:[%s177 + $0x318] sm:$0xff]
                %210 = vst [vmem:[%s178 + $0x78] sm:$0xff] %v209
                %v211 = vld [vmem:[%s177 + $0x320] sm:$0xff]
                %212 = vst [vmem:[%s178 + $0x80] sm:$0xff] %v211
                %v213 = vld [vmem:[%s177 + $0x328] sm:$0xff]
                %214 = vst [vmem:[%s178 + $0x88] sm:$0xff] %v213
                %v215 = vld [vmem:[%s177 + $0x330] sm:$0xff]
                %216 = vst [vmem:[%s178 + $0x90] sm:$0xff] %v215
                %v217 = vld [vmem:[%s177 + $0x338] sm:$0xff]
                %218 = vst [vmem:[%s178 + $0x98] sm:$0xff] %v217
                %v219 = vld [vmem:[%s177 + $0x340] sm:$0xff]
                %220 = vst [vmem:[%s178 + $0xa0] sm:$0xff] %v219
                %v221 = vld [vmem:[%s177 + $0x498] sm:$0xff]
                %222 = vst [vmem:[%s178 + $0xa8] sm:$0xff] %v221
                %v223 = vld [vmem:[%s177 + $0x4a0] sm:$0xff]
                %224 = vst [vmem:[%s178 + $0xb0] sm:$0xff] %v223
                %v225 = vld [vmem:[%s177 + $0x4a8] sm:$0xff]
                %226 = vst [vmem:[%s178 + $0xb8] sm:$0xff] %v225
                %v227 = vld [vmem:[%s177 + $0x4b0] sm:$0xff]
                %228 = vst [vmem:[%s178 + $0xc0] sm:$0xff] %v227
                %v229 = vld [vmem:[%s177 + $0x4b8] sm:$0xff]
                %230 = vst [vmem:[%s178 + $0xc8] sm:$0xff] %v229
                %v231 = vld [vmem:[%s177 + $0x4c0] sm:$0xff]
                %232 = vst [vmem:[%s178 + $0xd0] sm:$0xff] %v231
                %v233 = vld [vmem:[%s177 + $0x4c8] sm:$0xff]
                %234 = vst [vmem:[%s178 + $0xd8] sm:$0xff] %v233
                %v235 = vld [vmem:[%s177 + $0x620] sm:$0xff]
                %236 = vst [vmem:[%s178 + $0xe0] sm:$0xff] %v235
                %v237 = vld [vmem:[%s177 + $0x628] sm:$0xff]
                %238 = vst [vmem:[%s178 + $0xe8] sm:$0xff] %v237
                %v239 = vld [vmem:[%s177 + $0x630] sm:$0xff]
                %240 = vst [vmem:[%s178 + $0xf0] sm:$0xff] %v239
                %v241 = vld [vmem:[%s177 + $0x638] sm:$0xff]
                %242 = vst [vmem:[%s178 + $0xf8] sm:$0xff] %v241
                %v243 = vld [vmem:[%s177 + $0x640] sm:$0xff]
                %244 = vst [vmem:[%s178 + $0x100] sm:$0xff] %v243
                %v245 = vld [vmem:[%s177 + $0x648] sm:$0xff]
                %246 = vst [vmem:[%s178 + $0x108] sm:$0xff] %v245
                %v247 = vld [vmem:[%s177 + $0x650] sm:$0xff]
                %248 = vst [vmem:[%s178 + $0x110] sm:$0xff] %v247
                %v249 = vld [vmem:[%s177 + $0x7a8] sm:$0xff]
                %250 = vst [vmem:[%s178 + $0x118] sm:$0xff] %v249
                %v251 = vld [vmem:[%s177 + $0x7b0] sm:$0xff]
                %252 = vst [vmem:[%s178 + $0x120] sm:$0xff] %v251
                %v253 = vld [vmem:[%s177 + $0x7b8] sm:$0xff]
                %254 = vst [vmem:[%s178 + $0x128] sm:$0xff] %v253
                %v255 = vld [vmem:[%s177 + $0x7c0] sm:$0xff]
                %256 = vst [vmem:[%s178 + $0x130] sm:$0xff] %v255
                %v257 = vld [vmem:[%s177 + $0x7c8] sm:$0xff]
                %258 = vst [vmem:[%s178 + $0x138] sm:$0xff] %v257
                %v259 = vld [vmem:[%s177 + $0x7d0] sm:$0xff]
                %260 = vst [vmem:[%s178 + $0x140] sm:$0xff] %v259
                %v261 = vld [vmem:[%s177 + $0x7d8] sm:$0xff]
                %262 = vst [vmem:[%s178 + $0x148] sm:$0xff] %v261
              $region37: #{generator_forward.7} parent=31 // loop_footer
                %s176 = sadd.s32 1, %s172
              $region38: #{generator_forward.7} parent=31 // loop_footer_branch
                %171 = sbr.rel target = $region34
              $region39: #{generator_forward.7} parent=31 // loop_exit
                _
            $region32: #{generator_forward.7} parent=27 // pred_fallthru
              _
            // Predicated region
            $region40: #{generator_forward.7} parent=27 // pred_check
              _
            $region41: #{generator_forward.7} parent=27 // pred_check_branch
              %264 = sbr.rel target = $region43
            $region42: #{generator_forward.7} parent=27 // pred_region
              _
            $region43: #{generator_forward.7} parent=27 // pred_fallthru
              _
          $region28: #{generator_forward.7} parent=23 // pred_fallthru
            _
          %265 = vnop
        $region24: #{generator_forward.7} parent=19 // pred_fallthru
          _
        // Predicated region
        $region44: #{generator_forward.7} parent=19 // pred_check
          %p266 = pneg %p77
        $region45: #{generator_forward.7} parent=19 // pred_check_branch
          %268 = sbr.rel (%p266) target = $region47
        $region46: #{generator_forward.7} parent=19 // pred_region
          %s269 = smul.u32 14, %s10
          %p270 = scmp.lt.s32.totalorder %s269, 97
          %s271 = scalar_select %p270, %s269, 97
          %s272 = scalar_lea.vmem %s2, %s271
          %s273 = smul.u32 14, %s10
        $region47: #{generator_forward.7} parent=19 // pred_fallthru
          _
        // Predicated region
        $region48: #{generator_forward.7} parent=19 // pred_check
          %p274 = pneg %p103
        $region49: #{generator_forward.7} parent=19 // pred_check_branch
          %276 = sbr.rel (%p274) target = $region51
        $region50: #{generator_forward.7} parent=19 // pred_region
          %s277 = smul.u32 14, %s10
          %p278 = scmp.lt.s32.totalorder %s277, 97
          %s279 = scalar_select %p278, %s277, 97
          %s280 = scalar_lea.vmem %s3, %s279
          %s281 = smul.u32 14, %s10
        $region51: #{generator_forward.7} parent=19 // pred_fallthru
          _
      $region20: #{generator_forward.7} parent=5 // pred_fallthru
        _
      %p282 = scmp.le.s32.totalorder 1, %s10
      %p283 = scmp.lt.s32.totalorder %s10, 8
      %p284 = pnand %p282, %p283
      %p285 = pneg %p284
      // Predicated region
      $region52: #{generator_forward.7} parent=5 // pred_check
        _
      $region53: #{generator_forward.7} parent=5 // pred_check_branch
        %287 = sbr.rel (%p284) target = $region55
      $region54: #{generator_forward.7} parent=5 // pred_region
        %s288 = ssub.s32 %s10, 1
        %s289 = sand.u32 %s44, 1
        %s290 = sand.u32 %s44, 1
        %s291 = smul.addr %s290, 336
        %s292 = scalar_lea.vmem [#allocation2], %s291
        // Predicated region
        $region56: #{generator_forward.7} parent=54 // pred_check
          %p293 = pneg %p57
        $region57: #{generator_forward.7} parent=54 // pred_check_branch
          %295 = sbr.rel (%p293) target = $region59
        $region58: #{generator_forward.7} parent=54 // pred_region
          _
        $region59: #{generator_forward.7} parent=54 // pred_fallthru
          _
        %p296 = pneg %p31
        %p297 = pneg %p28
        %s298 = sand.u32 %s44, 1
        %s299 = sand.u32 %s44, 1
        %s300 = smul.addr %s299, 336
        %s301 = scalar_lea.vmem [#allocation2], %s300
        %p302 = pneg %p57
        %p303 = pneg %p54
        %s304 = smul.u32 14, %s15
        %p305 = scmp.lt.s32.totalorder %s304, 97
        %s306 = scalar_select %p305, %s304, 97
        %s307 = scalar_lea.vmem %s2, %s306
        %p308 = pneg %p83
        %p309 = pneg %p80
        %s310 = smul.u32 14, %s15
        %p311 = scmp.lt.s32.totalorder %s310, 97
        %s312 = scalar_select %p311, %s310, 97
        %s313 = scalar_lea.vmem %s3, %s312
        %p314 = pneg %p109
        %p315 = pneg %p106
        %p316 = pneg %p135
        %p317 = pneg %p132
        %s318 = smul.u32 14, %s15
        %p319 = scmp.lt.s32.totalorder %s318, 97
        %s320 = scalar_select %p319, %s318, 97
        %s321 = scalar_lea.vmem %s4, %s320
        %s322 = smul.u32 14, %s15
        %s323 = smul.u32 14, %s15
        %p324 = scmp.lt.s32.totalorder %s323, 97
        %s325 = scalar_select %p324, %s323, 97
        %s326 = scalar_lea.vmem %s2, %s325
        %s327 = smul.u32 14, %s15
        %s328 = smul.u32 14, %s15
        %p329 = scmp.lt.s32.totalorder %s328, 97
        %s330 = scalar_select %p329, %s328, 97
        %s331 = scalar_lea.vmem %s3, %s330
        %s332 = smul.u32 14, %s15
        %s333 = smul.u32 14, %s15
        %p334 = scmp.lt.s32.totalorder %s333, 97
        %s335 = scalar_select %p334, %s333, 97
        %s336 = scalar_lea.vmem %s4, %s335
        %s337 = smul.u32 14, %s15
        %v339 = vld [vmem:[%s0] sm:$0x1]
        %v340 = vld [vmem:[%s292] sm:$0xff]
        %v341 = vld [vmem:[%s292 + $0x8] sm:$0xff]
        %v342 = vld [vmem:[%s292 + $0x10] sm:$0xff]
        %v343 = vld [vmem:[%s292 + $0x18] sm:$0xff]
        %v344 = vld [vmem:[%s292 + $0x20] sm:$0xff]
        %v345 = vld [vmem:[%s292 + $0x28] sm:$0xff]
        %v346 = vld [vmem:[%s292 + $0x30] sm:$0xff]
        %v347 = vld [vmem:[%s292 + $0x38] sm:$0xff]
        %v348 = vld [vmem:[%s292 + $0x40] sm:$0xff]
        %v349 = vld [vmem:[%s292 + $0x48] sm:$0xff]
        %v350 = vld [vmem:[%s292 + $0x50] sm:$0xff]
        %v351 = vld [vmem:[%s292 + $0x58] sm:$0xff]
        %v352 = vld [vmem:[%s292 + $0x60] sm:$0xff]
        %v353 = vld [vmem:[%s292 + $0x68] sm:$0xff]
        %v354 = vld [vmem:[%s292 + $0x70] sm:$0xff]
        %v355 = vld [vmem:[%s292 + $0x78] sm:$0xff]
        %v356 = vld [vmem:[%s292 + $0x80] sm:$0xff]
        %v357 = vld [vmem:[%s292 + $0x88] sm:$0xff]
        %v358 = vld [vmem:[%s292 + $0x90] sm:$0xff]
        %v359 = vld [vmem:[%s292 + $0x98] sm:$0xff]
        %v360 = vld [vmem:[%s292 + $0xa0] sm:$0xff]
        %v361 = vld [vmem:[%s292 + $0xa8] sm:$0xff]
        %v362 = vld [vmem:[%s292 + $0xb0] sm:$0xff]
        %v363 = vld [vmem:[%s292 + $0xb8] sm:$0xff]
        %v364 = vld [vmem:[%s292 + $0xc0] sm:$0xff]
        %v365 = vld [vmem:[%s292 + $0xc8] sm:$0xff]
        %v366 = vld [vmem:[%s292 + $0xd0] sm:$0xff]
        %v367 = vld [vmem:[%s292 + $0xd8] sm:$0xff]
        %v368 = vld [vmem:[%s292 + $0xe0] sm:$0xff]
        %v369 = vld [vmem:[%s292 + $0xe8] sm:$0xff]
        %v370 = vld [vmem:[%s292 + $0xf0] sm:$0xff]
        %v371 = vld [vmem:[%s292 + $0xf8] sm:$0xff]
        %v372 = vld [vmem:[%s292 + $0x100] sm:$0xff]
        %v373 = vld [vmem:[%s292 + $0x108] sm:$0xff]
        %v374 = vld [vmem:[%s292 + $0x110] sm:$0xff]
        %v375 = vld [vmem:[%s292 + $0x118] sm:$0x11]
        %v376 = vld [vmem:[%s292 + $0x120] sm:$0x11]
        %v377 = vld [vmem:[%s292 + $0x128] sm:$0x11]
        %v378 = vld [vmem:[%s292 + $0x130] sm:$0x11]
        %v379 = vld [vmem:[%s292 + $0x138] sm:$0x11]
        %v380 = vld [vmem:[%s292 + $0x140] sm:$0x11]
        %v381 = vld [vmem:[%s292 + $0x148] sm:$0x11]
        %v424 = vunpack.c.l.b16 %v340
        %v425 = vunpack.c.h.b16 %v340
        %v426 = vunpack.c.l.b16 %v341
        %v427 = vunpack.c.h.b16 %v341
        %v428 = vunpack.c.l.b16 %v342
        %v429 = vunpack.c.h.b16 %v342
        %v430 = vunpack.c.l.b16 %v343
        %v431 = vunpack.c.h.b16 %v343
        %v432 = vunpack.c.l.b16 %v344
        %v433 = vunpack.c.h.b16 %v344
        %v434 = vunpack.c.l.b16 %v345
        %v435 = vunpack.c.h.b16 %v345
        %v436 = vunpack.c.l.b16 %v346
        %v437 = vunpack.c.h.b16 %v346
        %v438 = vunpack.c.l.b16 %v347
        %v439 = vunpack.c.h.b16 %v347
        %v440 = vunpack.c.l.b16 %v348
        %v441 = vunpack.c.h.b16 %v348
        %v442 = vunpack.c.l.b16 %v349
        %v443 = vunpack.c.h.b16 %v349
        %v444 = vunpack.c.l.b16 %v350
        %v445 = vunpack.c.h.b16 %v350
        %v446 = vunpack.c.l.b16 %v351
        %v447 = vunpack.c.h.b16 %v351
        %v448 = vunpack.c.l.b16 %v352
        %v449 = vunpack.c.h.b16 %v352
        %v450 = vunpack.c.l.b16 %v353
        %v451 = vunpack.c.h.b16 %v353
        %v452 = vunpack.c.l.b16 %v354
        %v453 = vunpack.c.h.b16 %v354
        %v454 = vunpack.c.l.b16 %v355
        %v455 = vunpack.c.h.b16 %v355
        %v456 = vunpack.c.l.b16 %v356
        %v457 = vunpack.c.h.b16 %v356
        %v458 = vunpack.c.l.b16 %v357
        %v459 = vunpack.c.h.b16 %v357
        %v460 = vunpack.c.l.b16 %v358
        %v461 = vunpack.c.h.b16 %v358
        %v462 = vunpack.c.l.b16 %v359
        %v463 = vunpack.c.h.b16 %v359
        %v464 = vunpack.c.l.b16 %v360
        %v465 = vunpack.c.h.b16 %v360
        %v466 = vunpack.c.l.b16 %v361
        %v467 = vunpack.c.h.b16 %v361
        %v468 = vunpack.c.l.b16 %v362
        %v469 = vunpack.c.h.b16 %v362
        %v470 = vunpack.c.l.b16 %v363
        %v471 = vunpack.c.h.b16 %v363
        %v472 = vunpack.c.l.b16 %v364
        %v473 = vunpack.c.h.b16 %v364
        %v474 = vunpack.c.l.b16 %v365
        %v475 = vunpack.c.h.b16 %v365
        %v476 = vunpack.c.l.b16 %v366
        %v477 = vunpack.c.h.b16 %v366
        %v478 = vunpack.c.l.b16 %v367
        %v479 = vunpack.c.h.b16 %v367
        %v480 = vunpack.c.l.b16 %v368
        %v481 = vunpack.c.h.b16 %v368
        %v482 = vunpack.c.l.b16 %v369
        %v483 = vunpack.c.h.b16 %v369
        %v484 = vunpack.c.l.b16 %v370
        %v485 = vunpack.c.h.b16 %v370
        %v486 = vunpack.c.l.b16 %v371
        %v487 = vunpack.c.h.b16 %v371
        %v488 = vunpack.c.l.b16 %v372
        %v489 = vunpack.c.h.b16 %v372
        %v490 = vunpack.c.l.b16 %v373
        %v491 = vunpack.c.h.b16 %v373
        %v492 = vunpack.c.l.b16 %v374
        %v493 = vunpack.c.h.b16 %v374
        %v494 = vunpack.c.l.b16 %v375
        %v495 = vunpack.c.h.b16 %v375
        %v496 = vunpack.c.l.b16 %v376
        %v497 = vunpack.c.h.b16 %v376
        %v498 = vunpack.c.l.b16 %v377
        %v499 = vunpack.c.h.b16 %v377
        %v500 = vunpack.c.l.b16 %v378
        %v501 = vunpack.c.h.b16 %v378
        %v502 = vunpack.c.l.b16 %v379
        %v503 = vunpack.c.h.b16 %v379
        %v504 = vunpack.c.l.b16 %v380
        %v505 = vunpack.c.h.b16 %v380
        %v506 = vunpack.c.l.b16 %v381
        %v507 = vunpack.c.h.b16 %v381
        %v508 = vpack.c.b16 %v438, %v424
        %v509 = vpack.c.b16 %v439, %v425
        %v510 = vpack.c.b16 %v440, %v426
        %v511 = vpack.c.b16 %v441, %v427
        %v512 = vpack.c.b16 %v442, %v428
        %v513 = vpack.c.b16 %v443, %v429
        %v514 = vpack.c.b16 %v444, %v430
        %v515 = vpack.c.b16 %v445, %v431
        %v516 = vpack.c.b16 %v446, %v432
        %v517 = vpack.c.b16 %v447, %v433
        %v518 = vpack.c.b16 %v448, %v434
        %v519 = vpack.c.b16 %v449, %v435
        %v520 = vpack.c.b16 %v450, %v436
        %v521 = vpack.c.b16 %v451, %v437
        %v522 = vpack.c.b16 %v466, %v452
        %v523 = vpack.c.b16 %v467, %v453
        %v524 = vpack.c.b16 %v468, %v454
        %v525 = vpack.c.b16 %v469, %v455
        %v526 = vpack.c.b16 %v470, %v456
        %v527 = vpack.c.b16 %v471, %v457
        %v528 = vpack.c.b16 %v472, %v458
        %v529 = vpack.c.b16 %v473, %v459
        %v530 = vpack.c.b16 %v474, %v460
        %v531 = vpack.c.b16 %v475, %v461
        %v532 = vpack.c.b16 %v476, %v462
        %v533 = vpack.c.b16 %v477, %v463
        %v534 = vpack.c.b16 %v478, %v464
        %v535 = vpack.c.b16 %v479, %v465
        %v536 = vpack.c.b16 %v494, %v480
        %v537 = vpack.c.b16 %v495, %v481
        %v538 = vpack.c.b16 %v496, %v482
        %v539 = vpack.c.b16 %v497, %v483
        %v540 = vpack.c.b16 %v498, %v484
        %v541 = vpack.c.b16 %v499, %v485
        %v542 = vpack.c.b16 %v500, %v486
        %v543 = vpack.c.b16 %v501, %v487
        %v544 = vpack.c.b16 %v502, %v488
        %v545 = vpack.c.b16 %v503, %v489
        %v546 = vpack.c.b16 %v504, %v490
        %v547 = vpack.c.b16 %v505, %v491
        %v548 = vpack.c.b16 %v506, %v492
        %v549 = vpack.c.b16 %v507, %v493
        %vm578 = vcmask 343040
        %v580 = vsel %vm578, %v339, 0
        %vm582 = vcmask 1044480
        %v584 = vsel %vm582, %v536, 0
        %v587 = vsel %vm582, %v537, 0
        %v590 = vsel %vm582, %v538, 0
        %v593 = vsel %vm582, %v539, 0
        %v596 = vsel %vm582, %v540, 0
        %v599 = vsel %vm582, %v541, 0
        %v602 = vsel %vm582, %v542, 0
        %v605 = vsel %vm582, %v543, 0
        %v608 = vsel %vm582, %v544, 0
        %v611 = vsel %vm582, %v545, 0
        %v614 = vsel %vm582, %v546, 0
        %v617 = vsel %vm582, %v547, 0
        %v620 = vsel %vm582, %v548, 0
        %v623 = vsel %vm582, %v549, 0
        %625 = vmatprep.subr.bf16.mxu0 %v509
        %626 = vmatpush1.bf16.msra.mxu0 %v508
        %627 = vmatprep.subr.bf16.mxu0 %v523
        %628 = vmatpush1.bf16.msra.mxu0 %v522
        %629 = vmatprep.subr.bf16.mxu0 %v587
        %630 = vmatpush1.bf16.msra.mxu0 %v584
        %631 = vmatprep.subr.bf16.mxu0 0
        %632 = vmatpush1.bf16.msra.mxu0 0
        %633 = vmatprep.subr.bf16.mxu0 0
        %634 = vmatpush1.bf16.msra.mxu0 0
        %635 = vmatprep.subr.bf16.mxu0 0
        %636 = vmatpush1.bf16.msra.mxu0 0
        %637 = vmatprep.subr.bf16.mxu0 0
        %638 = vmatpush1.bf16.msra.mxu0 0
        %639 = vmatprep.subr.bf16.mxu0 0
        %640 = vmatpush1.bf16.msra.mxu0 0
        %641 = vmatprep.subr.bf16.mxu0 0
        %642 = vmatpush1.bf16.msra.mxu0 0
        %643 = vmatprep.subr.bf16.mxu0 0
        %644 = vmatpush1.bf16.msra.mxu0 0
        %645 = vmatprep.subr.bf16.mxu0 0
        %646 = vmatpush1.bf16.msra.mxu0 0
        %647 = vmatprep.subr.bf16.mxu0 0
        %648 = vmatpush1.bf16.msra.mxu0 0
        %649 = vmatprep.subr.bf16.mxu0 0
        %650 = vmatpush1.bf16.msra.mxu0 0
        %651 = vmatprep.subr.bf16.mxu0 0
        %652 = vmatpush1.bf16.msra.mxu0 0
        %653 = vmatprep.subr.bf16.mxu0 0
        %654 = vmatpush1.bf16.msra.mxu0 0
        %655 = vmatprep.subr.bf16.mxu0 0
        %656 = vmatpush1.bf16.msra.mxu0 0
        %657 = vmatprep.mubr.bf16.mxu0 0
        %658 = vmatmul.mubr.bf16.gmra.mrb[0].mxu0 %v580
        %v659 = vpop.f32.mrb[0].mxu0
        %v660 = vadd.f32 0.0, %v659
        %v661 = vpop.f32.mrb[0].mxu0
        %v662 = vadd.f32 0.0, %v661
        %v663 = vpop.f32.mrb[0].mxu0
        %v664 = vpop.f32.mrb[0].mxu0
        %665 = vdwg.mxu0
        %666 = vmatprep.subr.bf16.mxu0 %v511
        %667 = vmatpush1.bf16.msra.mxu0 %v510
        %668 = vmatprep.subr.bf16.mxu0 %v525
        %669 = vmatpush1.bf16.msra.mxu0 %v524
        %670 = vmatprep.subr.bf16.mxu0 %v593
        %671 = vmatpush1.bf16.msra.mxu0 %v590
        %672 = vmatprep.subr.bf16.mxu0 0
        %673 = vmatpush1.bf16.msra.mxu0 0
        %674 = vmatprep.subr.bf16.mxu0 0
        %675 = vmatpush1.bf16.msra.mxu0 0
        %676 = vmatprep.subr.bf16.mxu0 0
        %677 = vmatpush1.bf16.msra.mxu0 0
        %678 = vmatprep.subr.bf16.mxu0 0
        %679 = vmatpush1.bf16.msra.mxu0 0
        %680 = vmatprep.subr.bf16.mxu0 0
        %681 = vmatpush1.bf16.msra.mxu0 0
        %682 = vmatprep.subr.bf16.mxu0 0
        %683 = vmatpush1.bf16.msra.mxu0 0
        %684 = vmatprep.subr.bf16.mxu0 0
        %685 = vmatpush1.bf16.msra.mxu0 0
        %686 = vmatprep.subr.bf16.mxu0 0
        %687 = vmatpush1.bf16.msra.mxu0 0
        %688 = vmatprep.subr.bf16.mxu0 0
        %689 = vmatpush1.bf16.msra.mxu0 0
        %690 = vmatprep.subr.bf16.mxu0 0
        %691 = vmatpush1.bf16.msra.mxu0 0
        %692 = vmatprep.subr.bf16.mxu0 0
        %693 = vmatpush1.bf16.msra.mxu0 0
        %694 = vmatprep.subr.bf16.mxu0 0
        %695 = vmatpush1.bf16.msra.mxu0 0
        %696 = vmatprep.subr.bf16.mxu0 0
        %697 = vmatpush1.bf16.msra.mxu0 0
        %698 = vmatprep.mubr.bf16.mxu0 0
        %699 = vmatmul.mubr.bf16.gmra.mrb[0].mxu0 %v580
        %v700 = vpop.f32.mrb[0].mxu0
        %v701 = vadd.f32 0.0, %v700
        %v702 = vpop.f32.mrb[0].mxu0
        %v703 = vadd.f32 0.0, %v702
        %v704 = vpop.f32.mrb[0].mxu0
        %v705 = vpop.f32.mrb[0].mxu0
        %706 = vdwg.mxu0
        %707 = vmatprep.subr.bf16.mxu0 %v513
        %708 = vmatpush1.bf16.msra.mxu0 %v512
        %709 = vmatprep.subr.bf16.mxu0 %v527
        %710 = vmatpush1.bf16.msra.mxu0 %v526
        %711 = vmatprep.subr.bf16.mxu0 %v599
        %712 = vmatpush1.bf16.msra.mxu0 %v596
        %713 = vmatprep.subr.bf16.mxu0 0
        %714 = vmatpush1.bf16.msra.mxu0 0
        %715 = vmatprep.subr.bf16.mxu0 0
        %716 = vmatpush1.bf16.msra.mxu0 0
        %717 = vmatprep.subr.bf16.mxu0 0
        %718 = vmatpush1.bf16.msra.mxu0 0
        %719 = vmatprep.subr.bf16.mxu0 0
        %720 = vmatpush1.bf16.msra.mxu0 0
        %721 = vmatprep.subr.bf16.mxu0 0
        %722 = vmatpush1.bf16.msra.mxu0 0
        %723 = vmatprep.subr.bf16.mxu0 0
        %724 = vmatpush1.bf16.msra.mxu0 0
        %725 = vmatprep.subr.bf16.mxu0 0
        %726 = vmatpush1.bf16.msra.mxu0 0
        %727 = vmatprep.subr.bf16.mxu0 0
        %728 = vmatpush1.bf16.msra.mxu0 0
        %729 = vmatprep.subr.bf16.mxu0 0
        %730 = vmatpush1.bf16.msra.mxu0 0
        %731 = vmatprep.subr.bf16.mxu0 0
        %732 = vmatpush1.bf16.msra.mxu0 0
        %733 = vmatprep.subr.bf16.mxu0 0
        %734 = vmatpush1.bf16.msra.mxu0 0
        %735 = vmatprep.subr.bf16.mxu0 0
        %736 = vmatpush1.bf16.msra.mxu0 0
        %737 = vmatprep.subr.bf16.mxu0 0
        %738 = vmatpush1.bf16.msra.mxu0 0
        %739 = vmatprep.mubr.bf16.mxu0 0
        %740 = vmatmul.mubr.bf16.gmra.mrb[0].mxu0 %v580
        %v741 = vpop.f32.mrb[0].mxu0
        %v742 = vadd.f32 0.0, %v741
        %v743 = vpop.f32.mrb[0].mxu0
        %v744 = vadd.f32 0.0, %v743
        %v745 = vpop.f32.mrb[0].mxu0
        %v746 = vpop.f32.mrb[0].mxu0
        %747 = vdwg.mxu0
        %748 = vmatprep.subr.bf16.mxu0 %v515
        %749 = vmatpush1.bf16.msra.mxu0 %v514
        %750 = vmatprep.subr.bf16.mxu0 %v529
        %751 = vmatpush1.bf16.msra.mxu0 %v528
        %752 = vmatprep.subr.bf16.mxu0 %v605
        %753 = vmatpush1.bf16.msra.mxu0 %v602
        %754 = vmatprep.subr.bf16.mxu0 0
        %755 = vmatpush1.bf16.msra.mxu0 0
        %756 = vmatprep.subr.bf16.mxu0 0
        %757 = vmatpush1.bf16.msra.mxu0 0
        %758 = vmatprep.subr.bf16.mxu0 0
        %759 = vmatpush1.bf16.msra.mxu0 0
        %760 = vmatprep.subr.bf16.mxu0 0
        %761 = vmatpush1.bf16.msra.mxu0 0
        %762 = vmatprep.subr.bf16.mxu0 0
        %763 = vmatpush1.bf16.msra.mxu0 0
        %764 = vmatprep.subr.bf16.mxu0 0
        %765 = vmatpush1.bf16.msra.mxu0 0
        %766 = vmatprep.subr.bf16.mxu0 0
        %767 = vmatpush1.bf16.msra.mxu0 0
        %768 = vmatprep.subr.bf16.mxu0 0
        %769 = vmatpush1.bf16.msra.mxu0 0
        %770 = vmatprep.subr.bf16.mxu0 0
        %771 = vmatpush1.bf16.msra.mxu0 0
        %772 = vmatprep.subr.bf16.mxu0 0
        %773 = vmatpush1.bf16.msra.mxu0 0
        %774 = vmatprep.subr.bf16.mxu0 0
        %775 = vmatpush1.bf16.msra.mxu0 0
        %776 = vmatprep.subr.bf16.mxu0 0
        %777 = vmatpush1.bf16.msra.mxu0 0
        %778 = vmatprep.subr.bf16.mxu0 0
        %779 = vmatpush1.bf16.msra.mxu0 0
        %780 = vmatprep.mubr.bf16.mxu0 0
        %781 = vmatmul.mubr.bf16.gmra.mrb[0].mxu0 %v580
        %v782 = vpop.f32.mrb[0].mxu0
        %v783 = vadd.f32 0.0, %v782
        %v784 = vpop.f32.mrb[0].mxu0
        %v785 = vadd.f32 0.0, %v784
        %v786 = vpop.f32.mrb[0].mxu0
        %v787 = vpop.f32.mrb[0].mxu0
        %788 = vdwg.mxu0
        %789 = vmatprep.subr.bf16.mxu0 %v517
        %790 = vmatpush1.bf16.msra.mxu0 %v516
        %791 = vmatprep.subr.bf16.mxu0 %v531
        %792 = vmatpush1.bf16.msra.mxu0 %v530
        %793 = vmatprep.subr.bf16.mxu0 %v611
        %794 = vmatpush1.bf16.msra.mxu0 %v608
        %795 = vmatprep.subr.bf16.mxu0 0
        %796 = vmatpush1.bf16.msra.mxu0 0
        %797 = vmatprep.subr.bf16.mxu0 0
        %798 = vmatpush1.bf16.msra.mxu0 0
        %799 = vmatprep.subr.bf16.mxu0 0
        %800 = vmatpush1.bf16.msra.mxu0 0
        %801 = vmatprep.subr.bf16.mxu0 0
        %802 = vmatpush1.bf16.msra.mxu0 0
        %803 = vmatprep.subr.bf16.mxu0 0
        %804 = vmatpush1.bf16.msra.mxu0 0
        %805 = vmatprep.subr.bf16.mxu0 0
        %806 = vmatpush1.bf16.msra.mxu0 0
        %807 = vmatprep.subr.bf16.mxu0 0
        %808 = vmatpush1.bf16.msra.mxu0 0
        %809 = vmatprep.subr.bf16.mxu0 0
        %810 = vmatpush1.bf16.msra.mxu0 0
        %811 = vmatprep.subr.bf16.mxu0 0
        %812 = vmatpush1.bf16.msra.mxu0 0
        %813 = vmatprep.subr.bf16.mxu0 0
        %814 = vmatpush1.bf16.msra.mxu0 0
        %815 = vmatprep.subr.bf16.mxu0 0
        %816 = vmatpush1.bf16.msra.mxu0 0
        %817 = vmatprep.subr.bf16.mxu0 0
        %818 = vmatpush1.bf16.msra.mxu0 0
        %819 = vmatprep.subr.bf16.mxu0 0
        %820 = vmatpush1.bf16.msra.mxu0 0
        %821 = vmatprep.mubr.bf16.mxu0 0
        %822 = vmatmul.mubr.bf16.gmra.mrb[0].mxu0 %v580
        %v823 = vpop.f32.mrb[0].mxu0
        %v824 = vadd.f32 0.0, %v823
        %v825 = vpop.f32.mrb[0].mxu0
        %v826 = vadd.f32 0.0, %v825
        %v827 = vpop.f32.mrb[0].mxu0
        %v828 = vpop.f32.mrb[0].mxu0
        %829 = vdwg.mxu0
        %830 = vmatprep.subr.bf16.mxu0 %v519
        %831 = vmatpush1.bf16.msra.mxu0 %v518
        %832 = vmatprep.subr.bf16.mxu0 %v533
        %833 = vmatpush1.bf16.msra.mxu0 %v532
        %834 = vmatprep.subr.bf16.mxu0 %v617
        %835 = vmatpush1.bf16.msra.mxu0 %v614
        %836 = vmatprep.subr.bf16.mxu0 0
        %837 = vmatpush1.bf16.msra.mxu0 0
        %838 = vmatprep.subr.bf16.mxu0 0
        %839 = vmatpush1.bf16.msra.mxu0 0
        %840 = vmatprep.subr.bf16.mxu0 0
        %841 = vmatpush1.bf16.msra.mxu0 0
        %842 = vmatprep.subr.bf16.mxu0 0
        %843 = vmatpush1.bf16.msra.mxu0 0
        %844 = vmatprep.subr.bf16.mxu0 0
        %845 = vmatpush1.bf16.msra.mxu0 0
        %846 = vmatprep.subr.bf16.mxu0 0
        %847 = vmatpush1.bf16.msra.mxu0 0
        %848 = vmatprep.subr.bf16.mxu0 0
        %849 = vmatpush1.bf16.msra.mxu0 0
        %850 = vmatprep.subr.bf16.mxu0 0
        %851 = vmatpush1.bf16.msra.mxu0 0
        %852 = vmatprep.subr.bf16.mxu0 0
        %853 = vmatpush1.bf16.msra.mxu0 0
        %854 = vmatprep.subr.bf16.mxu0 0
        %855 = vmatpush1.bf16.msra.mxu0 0
        %856 = vmatprep.subr.bf16.mxu0 0
        %857 = vmatpush1.bf16.msra.mxu0 0
        %858 = vmatprep.subr.bf16.mxu0 0
        %859 = vmatpush1.bf16.msra.mxu0 0
        %860 = vmatprep.subr.bf16.mxu0 0
        %861 = vmatpush1.bf16.msra.mxu0 0
        %862 = vmatprep.mubr.bf16.mxu0 0
        %863 = vmatmul.mubr.bf16.gmra.mrb[0].mxu0 %v580
        %v864 = vpop.f32.mrb[0].mxu0
        %v865 = vadd.f32 0.0, %v864
        %v866 = vpop.f32.mrb[0].mxu0
        %v867 = vadd.f32 0.0, %v866
        %v868 = vpop.f32.mrb[0].mxu0
        %v869 = vpop.f32.mrb[0].mxu0
        %870 = vdwg.mxu0
        %871 = vmatprep.subr.bf16.mxu0 %v521
        %872 = vmatpush1.bf16.msra.mxu0 %v520
        %873 = vmatprep.subr.bf16.mxu0 %v535
        %874 = vmatpush1.bf16.msra.mxu0 %v534
        %875 = vmatprep.subr.bf16.mxu0 %v623
        %876 = vmatpush1.bf16.msra.mxu0 %v620
        %877 = vmatprep.subr.bf16.mxu0 0
        %878 = vmatpush1.bf16.msra.mxu0 0
        %879 = vmatprep.subr.bf16.mxu0 0
        %880 = vmatpush1.bf16.msra.mxu0 0
        %881 = vmatprep.subr.bf16.mxu0 0
        %882 = vmatpush1.bf16.msra.mxu0 0
        %883 = vmatprep.subr.bf16.mxu0 0
        %884 = vmatpush1.bf16.msra.mxu0 0
        %885 = vmatprep.subr.bf16.mxu0 0
        %886 = vmatpush1.bf16.msra.mxu0 0
        %887 = vmatprep.subr.bf16.mxu0 0
        %888 = vmatpush1.bf16.msra.mxu0 0
        %889 = vmatprep.subr.bf16.mxu0 0
        %890 = vmatpush1.bf16.msra.mxu0 0
        %891 = vmatprep.subr.bf16.mxu0 0
        %892 = vmatpush1.bf16.msra.mxu0 0
        %893 = vmatprep.subr.bf16.mxu0 0
        %894 = vmatpush1.bf16.msra.mxu0 0
        %895 = vmatprep.subr.bf16.mxu0 0
        %896 = vmatpush1.bf16.msra.mxu0 0
        %897 = vmatprep.subr.bf16.mxu0 0
        %898 = vmatpush1.bf16.msra.mxu0 0
        %899 = vmatprep.subr.bf16.mxu0 0
        %900 = vmatpush1.bf16.msra.mxu0 0
        %901 = vmatprep.subr.bf16.mxu0 0
        %902 = vmatpush1.bf16.msra.mxu0 0
        %903 = vmatprep.mubr.bf16.mxu0 0
        %904 = vmatmul.mubr.bf16.gmra.mrb[0].mxu0 %v580
        %v905 = vpop.f32.mrb[0].mxu0
        %v906 = vadd.f32 0.0, %v905
        %v907 = vpop.f32.mrb[0].mxu0
        %v908 = vadd.f32 0.0, %v907
        %v909 = vpop.f32.mrb[0].mxu0
        %v910 = vpop.f32.mrb[0].mxu0
        %911 = vdwg.mxu0
        %vm912 = vcmask 1041408
        %v913 = vsel %vm912, %v660, 0.0
        %v914 = vrot.slane %v913, 4
        %v915 = vadd.f32 %v913, %v914
        %v916 = vrot.slane %v915, 2
        %v917 = vadd.f32 %v915, %v916
        %v918 = vrot.slane %v917, 1
        %v919 = vadd.f32 %v917, %v918
        %v920 = vsel %vm912, %v662, 0.0
        %v921 = vrot.slane %v920, 4
        %v922 = vadd.f32 %v920, %v921
        %v923 = vrot.slane %v922, 2
        %v924 = vadd.f32 %v922, %v923
        %v925 = vrot.slane %v924, 1
        %v926 = vadd.f32 %v924, %v925
        %v927 = vsel %vm912, %v701, 0.0
        %v928 = vrot.slane %v927, 4
        %v929 = vadd.f32 %v927, %v928
        %v930 = vrot.slane %v929, 2
        %v931 = vadd.f32 %v929, %v930
        %v932 = vrot.slane %v931, 1
        %v933 = vadd.f32 %v931, %v932
        %v934 = vsel %vm912, %v703, 0.0
        %v935 = vrot.slane %v934, 4
        %v936 = vadd.f32 %v934, %v935
        %v937 = vrot.slane %v936, 2
        %v938 = vadd.f32 %v936, %v937
        %v939 = vrot.slane %v938, 1
        %v940 = vadd.f32 %v938, %v939
        %v941 = vsel %vm912, %v742, 0.0
        %v942 = vrot.slane %v941, 4
        %v943 = vadd.f32 %v941, %v942
        %v944 = vrot.slane %v943, 2
        %v945 = vadd.f32 %v943, %v944
        %v946 = vrot.slane %v945, 1
        %v947 = vadd.f32 %v945, %v946
        %v948 = vsel %vm912, %v744, 0.0
        %v949 = vrot.slane %v948, 4
        %v950 = vadd.f32 %v948, %v949
        %v951 = vrot.slane %v950, 2
        %v952 = vadd.f32 %v950, %v951
        %v953 = vrot.slane %v952, 1
        %v954 = vadd.f32 %v952, %v953
        %v955 = vsel %vm912, %v783, 0.0
        %v956 = vrot.slane %v955, 4
        %v957 = vadd.f32 %v955, %v956
        %v958 = vrot.slane %v957, 2
        %v959 = vadd.f32 %v957, %v958
        %v960 = vrot.slane %v959, 1
        %v961 = vadd.f32 %v959, %v960
        %v962 = vsel %vm912, %v785, 0.0
        %v963 = vrot.slane %v962, 4
        %v964 = vadd.f32 %v962, %v963
        %v965 = vrot.slane %v964, 2
        %v966 = vadd.f32 %v964, %v965
        %v967 = vrot.slane %v966, 1
        %v968 = vadd.f32 %v966, %v967
        %v969 = vsel %vm912, %v824, 0.0
        %v970 = vrot.slane %v969, 4
        %v971 = vadd.f32 %v969, %v970
        %v972 = vrot.slane %v971, 2
        %v973 = vadd.f32 %v971, %v972
        %v974 = vrot.slane %v973, 1
        %v975 = vadd.f32 %v973, %v974
        %v976 = vsel %vm912, %v826, 0.0
        %v977 = vrot.slane %v976, 4
        %v978 = vadd.f32 %v976, %v977
        %v979 = vrot.slane %v978, 2
        %v980 = vadd.f32 %v978, %v979
        %v981 = vrot.slane %v980, 1
        %v982 = vadd.f32 %v980, %v981
        %v983 = vsel %vm912, %v865, 0.0
        %v984 = vrot.slane %v983, 4
        %v985 = vadd.f32 %v983, %v984
        %v986 = vrot.slane %v985, 2
        %v987 = vadd.f32 %v985, %v986
        %v988 = vrot.slane %v987, 1
        %v989 = vadd.f32 %v987, %v988
        %v990 = vsel %vm912, %v867, 0.0
        %v991 = vrot.slane %v990, 4
        %v992 = vadd.f32 %v990, %v991
        %v993 = vrot.slane %v992, 2
        %v994 = vadd.f32 %v992, %v993
        %v995 = vrot.slane %v994, 1
        %v996 = vadd.f32 %v994, %v995
        %v997 = vsel %vm912, %v906, 0.0
        %v998 = vrot.slane %v997, 4
        %v999 = vadd.f32 %v997, %v998
        %v1000 = vrot.slane %v999, 2
        %v1001 = vadd.f32 %v999, %v1000
        %v1002 = vrot.slane %v1001, 1
        %v1003 = vadd.f32 %v1001, %v1002
        %v1004 = vsel %vm912, %v908, 0.0
        %v1005 = vrot.slane %v1004, 4
        %v1006 = vadd.f32 %v1004, %v1005
        %v1007 = vrot.slane %v1006, 2
        %v1008 = vadd.f32 %v1006, %v1007
        %v1009 = vrot.slane %v1008, 1
        %v1010 = vadd.f32 %v1008, %v1009
        %v1011 = vrcp.pop 2.0
        %v1012 = vmul.f32 %v919, %v1011
        %v1013 = vmul.f32 %v926, %v1011
        %v1014 = vmul.f32 %v933, %v1011
        %v1015 = vmul.f32 %v940, %v1011
        %v1016 = vmul.f32 %v947, %v1011
        %v1017 = vmul.f32 %v954, %v1011
        %v1018 = vmul.f32 %v961, %v1011
        %v1019 = vmul.f32 %v968, %v1011
        %v1020 = vmul.f32 %v975, %v1011
        %v1021 = vmul.f32 %v982, %v1011
        %v1022 = vmul.f32 %v989, %v1011
        %v1023 = vmul.f32 %v996, %v1011
        %v1024 = vmul.f32 %v1003, %v1011
        %v1025 = vmul.f32 %v1010, %v1011
        %v1026 = vsub.f32 %v660, %v1012
        %v1027 = vsub.f32 %v662, %v1013
        %v1028 = vsub.f32 %v701, %v1014
        %v1029 = vsub.f32 %v703, %v1015
        %v1030 = vsub.f32 %v742, %v1016
        %v1031 = vsub.f32 %v744, %v1017
        %v1032 = vsub.f32 %v783, %v1018
        %v1033 = vsub.f32 %v785, %v1019
        %v1034 = vsub.f32 %v824, %v1020
        %v1035 = vsub.f32 %v826, %v1021
        %v1036 = vsub.f32 %v865, %v1022
        %v1037 = vsub.f32 %v867, %v1023
        %v1038 = vsub.f32 %v906, %v1024
        %v1039 = vsub.f32 %v908, %v1025
        %v1040 = vmul.f32 %v1026, %v1026
        %v1041 = vmul.f32 %v1027, %v1027
        %v1042 = vmul.f32 %v1028, %v1028
        %v1043 = vmul.f32 %v1029, %v1029
        %v1044 = vmul.f32 %v1030, %v1030
        %v1045 = vmul.f32 %v1031, %v1031
        %v1046 = vmul.f32 %v1032, %v1032
        %v1047 = vmul.f32 %v1033, %v1033
        %v1048 = vmul.f32 %v1034, %v1034
        %v1049 = vmul.f32 %v1035, %v1035
        %v1050 = vmul.f32 %v1036, %v1036
        %v1051 = vmul.f32 %v1037, %v1037
        %v1052 = vmul.f32 %v1038, %v1038
        %v1053 = vmul.f32 %v1039, %v1039
        %v1054 = vsel %vm912, %v1040, 0.0
        %v1055 = vrot.slane %v1054, 4
        %v1056 = vadd.f32 %v1054, %v1055
        %v1057 = vrot.slane %v1056, 2
        %v1058 = vadd.f32 %v1056, %v1057
        %v1059 = vrot.slane %v1058, 1
        %v1060 = vadd.f32 %v1058, %v1059
        %v1061 = vsel %vm912, %v1041, 0.0
        %v1062 = vrot.slane %v1061, 4
        %v1063 = vadd.f32 %v1061, %v1062
        %v1064 = vrot.slane %v1063, 2
        %v1065 = vadd.f32 %v1063, %v1064
        %v1066 = vrot.slane %v1065, 1
        %v1067 = vadd.f32 %v1065, %v1066
        %v1068 = vsel %vm912, %v1042, 0.0
        %v1069 = vrot.slane %v1068, 4
        %v1070 = vadd.f32 %v1068, %v1069
        %v1071 = vrot.slane %v1070, 2
        %v1072 = vadd.f32 %v1070, %v1071
        %v1073 = vrot.slane %v1072, 1
        %v1074 = vadd.f32 %v1072, %v1073
        %v1075 = vsel %vm912, %v1043, 0.0
        %v1076 = vrot.slane %v1075, 4
        %v1077 = vadd.f32 %v1075, %v1076
        %v1078 = vrot.slane %v1077, 2
        %v1079 = vadd.f32 %v1077, %v1078
        %v1080 = vrot.slane %v1079, 1
        %v1081 = vadd.f32 %v1079, %v1080
        %v1082 = vsel %vm912, %v1044, 0.0
        %v1083 = vrot.slane %v1082, 4
        %v1084 = vadd.f32 %v1082, %v1083
        %v1085 = vrot.slane %v1084, 2
        %v1086 = vadd.f32 %v1084, %v1085
        %v1087 = vrot.slane %v1086, 1
        %v1088 = vadd.f32 %v1086, %v1087
        %v1089 = vsel %vm912, %v1045, 0.0
        %v1090 = vrot.slane %v1089, 4
        %v1091 = vadd.f32 %v1089, %v1090
        %v1092 = vrot.slane %v1091, 2
        %v1093 = vadd.f32 %v1091, %v1092
        %v1094 = vrot.slane %v1093, 1
        %v1095 = vadd.f32 %v1093, %v1094
        %v1096 = vsel %vm912, %v1046, 0.0
        %v1097 = vrot.slane %v1096, 4
        %v1098 = vadd.f32 %v1096, %v1097
        %v1099 = vrot.slane %v1098, 2
        %v1100 = vadd.f32 %v1098, %v1099
        %v1101 = vrot.slane %v1100, 1
        %v1102 = vadd.f32 %v1100, %v1101
        %v1103 = vsel %vm912, %v1047, 0.0
        %v1104 = vrot.slane %v1103, 4
        %v1105 = vadd.f32 %v1103, %v1104
        %v1106 = vrot.slane %v1105, 2
        %v1107 = vadd.f32 %v1105, %v1106
        %v1108 = vrot.slane %v1107, 1
        %v1109 = vadd.f32 %v1107, %v1108
        %v1110 = vsel %vm912, %v1048, 0.0
        %v1111 = vrot.slane %v1110, 4
        %v1112 = vadd.f32 %v1110, %v1111
        %v1113 = vrot.slane %v1112, 2
        %v1114 = vadd.f32 %v1112, %v1113
        %v1115 = vrot.slane %v1114, 1
        %v1116 = vadd.f32 %v1114, %v1115
        %v1117 = vsel %vm912, %v1049, 0.0
        %v1118 = vrot.slane %v1117, 4
        %v1119 = vadd.f32 %v1117, %v1118
        %v1120 = vrot.slane %v1119, 2
        %v1121 = vadd.f32 %v1119, %v1120
        %v1122 = vrot.slane %v1121, 1
        %v1123 = vadd.f32 %v1121, %v1122
        %v1124 = vsel %vm912, %v1050, 0.0
        %v1125 = vrot.slane %v1124, 4
        %v1126 = vadd.f32 %v1124, %v1125
        %v1127 = vrot.slane %v1126, 2
        %v1128 = vadd.f32 %v1126, %v1127
        %v1129 = vrot.slane %v1128, 1
        %v1130 = vadd.f32 %v1128, %v1129
        %v1131 = vsel %vm912, %v1051, 0.0
        %v1132 = vrot.slane %v1131, 4
        %v1133 = vadd.f32 %v1131, %v1132
        %v1134 = vrot.slane %v1133, 2
        %v1135 = vadd.f32 %v1133, %v1134
        %v1136 = vrot.slane %v1135, 1
        %v1137 = vadd.f32 %v1135, %v1136
        %v1138 = vsel %vm912, %v1052, 0.0
        %v1139 = vrot.slane %v1138, 4
        %v1140 = vadd.f32 %v1138, %v1139
        %v1141 = vrot.slane %v1140, 2
        %v1142 = vadd.f32 %v1140, %v1141
        %v1143 = vrot.slane %v1142, 1
        %v1144 = vadd.f32 %v1142, %v1143
        %v1145 = vsel %vm912, %v1053, 0.0
        %v1146 = vrot.slane %v1145, 4
        %v1147 = vadd.f32 %v1145, %v1146
        %v1148 = vrot.slane %v1147, 2
        %v1149 = vadd.f32 %v1147, %v1148
        %v1150 = vrot.slane %v1149, 1
        %v1151 = vadd.f32 %v1149, %v1150
        %v1152 = vmul.f32 %v1060, %v1011
        %v1153 = vmul.f32 %v1067, %v1011
        %v1154 = vmul.f32 %v1074, %v1011
        %v1155 = vmul.f32 %v1081, %v1011
        %v1156 = vmul.f32 %v1088, %v1011
        %v1157 = vmul.f32 %v1095, %v1011
        %v1158 = vmul.f32 %v1102, %v1011
        %v1159 = vmul.f32 %v1109, %v1011
        %v1160 = vmul.f32 %v1116, %v1011
        %v1161 = vmul.f32 %v1123, %v1011
        %v1162 = vmul.f32 %v1130, %v1011
        %v1163 = vmul.f32 %v1137, %v1011
        %v1164 = vmul.f32 %v1144, %v1011
        %v1165 = vmul.f32 %v1151, %v1011
        %v1166 = vadd.f32 %v1152, 1e-05
        %v1167 = vadd.f32 %v1153, 1e-05
        %v1168 = vadd.f32 %v1154, 1e-05
        %v1169 = vadd.f32 %v1155, 1e-05
        %v1170 = vadd.f32 %v1156, 1e-05
        %v1171 = vadd.f32 %v1157, 1e-05
        %v1172 = vadd.f32 %v1158, 1e-05
        %v1173 = vadd.f32 %v1159, 1e-05
        %v1174 = vadd.f32 %v1160, 1e-05
        %v1175 = vadd.f32 %v1161, 1e-05
        %v1176 = vadd.f32 %v1162, 1e-05
        %v1177 = vadd.f32 %v1163, 1e-05
        %v1178 = vadd.f32 %v1164, 1e-05
        %v1179 = vadd.f32 %v1165, 1e-05
        %v1180 = vrsqrt.pop %v1166
        %v1181 = vrsqrt.pop %v1167
        %v1182 = vrsqrt.pop %v1168
        %v1183 = vrsqrt.pop %v1169
        %v1184 = vrsqrt.pop %v1170
        %v1185 = vrsqrt.pop %v1171
        %v1186 = vrsqrt.pop %v1172
        %v1187 = vrsqrt.pop %v1173
        %v1188 = vrsqrt.pop %v1174
        %v1189 = vrsqrt.pop %v1175
        %v1190 = vrsqrt.pop %v1176
        %v1191 = vrsqrt.pop %v1177
        %v1192 = vrsqrt.pop %v1178
        %v1193 = vrsqrt.pop %v1179
        %v1194 = vmul.f32 %v1026, %v1180
        %v1195 = vmul.f32 %v1027, %v1181
        %v1196 = vmul.f32 %v1028, %v1182
        %v1197 = vmul.f32 %v1029, %v1183
        %v1198 = vmul.f32 %v1030, %v1184
        %v1199 = vmul.f32 %v1031, %v1185
        %v1200 = vmul.f32 %v1032, %v1186
        %v1201 = vmul.f32 %v1033, %v1187
        %v1202 = vmul.f32 %v1034, %v1188
        %v1203 = vmul.f32 %v1035, %v1189
        %v1204 = vmul.f32 %v1036, %v1190
        %v1205 = vmul.f32 %v1037, %v1191
        %v1206 = vmul.f32 %v1038, %v1192
        %v1207 = vmul.f32 %v1039, %v1193
        %v1208 = vld [vmem:[%s326] sm:$0xff]
        %v1209 = vld [vmem:[%s326 + $0x8] sm:$0x3f]
        %v1212 = vlaneseq
        %v1213 = vshrl.u32 %v1212, 7
        %v1214 = vsub.s32 0, %v1213
        %v1215 = vrot.slane %v1208, %v1214
        %v1216 = vlaneseq
        %v1217 = vshrl.u32 %v1216, 7
        %v1218 = vsub.s32 1, %v1217
        %v1219 = vrot.slane %v1208, %v1218
        %v1220 = vlaneseq
        %v1221 = vshrl.u32 %v1220, 7
        %v1222 = vsub.s32 2, %v1221
        %v1223 = vrot.slane %v1208, %v1222
        %v1224 = vlaneseq
        %v1225 = vshrl.u32 %v1224, 7
        %v1226 = vsub.s32 3, %v1225
        %v1227 = vrot.slane %v1208, %v1226
        %v1228 = vlaneseq
        %v1229 = vshrl.u32 %v1228, 7
        %v1230 = vsub.s32 4, %v1229
        %v1231 = vrot.slane %v1208, %v1230
        %v1232 = vlaneseq
        %v1233 = vshrl.u32 %v1232, 7
        %v1234 = vsub.s32 5, %v1233
        %v1235 = vrot.slane %v1208, %v1234
        %v1236 = vlaneseq
        %v1237 = vshrl.u32 %v1236, 7
        %v1238 = vsub.s32 6, %v1237
        %v1239 = vrot.slane %v1208, %v1238
        %v1240 = vlaneseq
        %v1241 = vshrl.u32 %v1240, 7
        %v1242 = vsub.s32 7, %v1241
        %v1243 = vrot.slane %v1208, %v1242
        %v1244 = vlaneseq
        %v1245 = vshrl.u32 %v1244, 7
        %v1246 = vsub.s32 0, %v1245
        %v1247 = vrot.slane %v1209, %v1246
        %v1248 = vlaneseq
        %v1249 = vshrl.u32 %v1248, 7
        %v1250 = vsub.s32 1, %v1249
        %v1251 = vrot.slane %v1209, %v1250
        %v1252 = vlaneseq
        %v1253 = vshrl.u32 %v1252, 7
        %v1254 = vsub.s32 2, %v1253
        %v1255 = vrot.slane %v1209, %v1254
        %v1256 = vlaneseq
        %v1257 = vshrl.u32 %v1256, 7
        %v1258 = vsub.s32 3, %v1257
        %v1259 = vrot.slane %v1209, %v1258
        %v1260 = vlaneseq
        %v1261 = vshrl.u32 %v1260, 7
        %v1262 = vsub.s32 4, %v1261
        %v1263 = vrot.slane %v1209, %v1262
        %v1264 = vlaneseq
        %v1265 = vshrl.u32 %v1264, 7
        %v1266 = vsub.s32 5, %v1265
        %v1267 = vrot.slane %v1209, %v1266
        %v1282 = vmul.f32 %v1194, %v1215
        %v1283 = vmul.f32 %v1195, %v1219
        %v1284 = vmul.f32 %v1196, %v1223
        %v1285 = vmul.f32 %v1197, %v1227
        %v1286 = vmul.f32 %v1198, %v1231
        %v1287 = vmul.f32 %v1199, %v1235
        %v1288 = vmul.f32 %v1200, %v1239
        %v1289 = vmul.f32 %v1201, %v1243
        %v1290 = vmul.f32 %v1202, %v1247
        %v1291 = vmul.f32 %v1203, %v1251
        %v1292 = vmul.f32 %v1204, %v1255
        %v1293 = vmul.f32 %v1205, %v1259
        %v1294 = vmul.f32 %v1206, %v1263
        %v1295 = vmul.f32 %v1207, %v1267
        %v1296 = vld [vmem:[%s331] sm:$0xff]
        %v1297 = vld [vmem:[%s331 + $0x8] sm:$0x3f]
        %v1300 = vlaneseq
        %v1301 = vshrl.u32 %v1300, 7
        %v1302 = vsub.s32 0, %v1301
        %v1303 = vrot.slane %v1296, %v1302
        %v1304 = vlaneseq
        %v1305 = vshrl.u32 %v1304, 7
        %v1306 = vsub.s32 1, %v1305
        %v1307 = vrot.slane %v1296, %v1306
        %v1308 = vlaneseq
        %v1309 = vshrl.u32 %v1308, 7
        %v1310 = vsub.s32 2, %v1309
        %v1311 = vrot.slane %v1296, %v1310
        %v1312 = vlaneseq
        %v1313 = vshrl.u32 %v1312, 7
        %v1314 = vsub.s32 3, %v1313
        %v1315 = vrot.slane %v1296, %v1314
        %v1316 = vlaneseq
        %v1317 = vshrl.u32 %v1316, 7
        %v1318 = vsub.s32 4, %v1317
        %v1319 = vrot.slane %v1296, %v1318
        %v1320 = vlaneseq
        %v1321 = vshrl.u32 %v1320, 7
        %v1322 = vsub.s32 5, %v1321
        %v1323 = vrot.slane %v1296, %v1322
        %v1324 = vlaneseq
        %v1325 = vshrl.u32 %v1324, 7
        %v1326 = vsub.s32 6, %v1325
        %v1327 = vrot.slane %v1296, %v1326
        %v1328 = vlaneseq
        %v1329 = vshrl.u32 %v1328, 7
        %v1330 = vsub.s32 7, %v1329
        %v1331 = vrot.slane %v1296, %v1330
        %v1332 = vlaneseq
        %v1333 = vshrl.u32 %v1332, 7
        %v1334 = vsub.s32 0, %v1333
        %v1335 = vrot.slane %v1297, %v1334
        %v1336 = vlaneseq
        %v1337 = vshrl.u32 %v1336, 7
        %v1338 = vsub.s32 1, %v1337
        %v1339 = vrot.slane %v1297, %v1338
        %v1340 = vlaneseq
        %v1341 = vshrl.u32 %v1340, 7
        %v1342 = vsub.s32 2, %v1341
        %v1343 = vrot.slane %v1297, %v1342
        %v1344 = vlaneseq
        %v1345 = vshrl.u32 %v1344, 7
        %v1346 = vsub.s32 3, %v1345
        %v1347 = vrot.slane %v1297, %v1346
        %v1348 = vlaneseq
        %v1349 = vshrl.u32 %v1348, 7
        %v1350 = vsub.s32 4, %v1349
        %v1351 = vrot.slane %v1297, %v1350
        %v1352 = vlaneseq
        %v1353 = vshrl.u32 %v1352, 7
        %v1354 = vsub.s32 5, %v1353
        %v1355 = vrot.slane %v1297, %v1354
        %v1370 = vadd.f32 %v1282, %v1303
        %v1371 = vadd.f32 %v1283, %v1307
        %v1372 = vadd.f32 %v1284, %v1311
        %v1373 = vadd.f32 %v1285, %v1315
        %v1374 = vadd.f32 %v1286, %v1319
        %v1375 = vadd.f32 %v1287, %v1323
        %v1376 = vadd.f32 %v1288, %v1327
        %v1377 = vadd.f32 %v1289, %v1331
        %v1378 = vadd.f32 %v1290, %v1335
        %v1379 = vadd.f32 %v1291, %v1339
        %v1380 = vadd.f32 %v1292, %v1343
        %v1381 = vadd.f32 %v1293, %v1347
        %v1382 = vadd.f32 %v1294, %v1351
        %v1383 = vadd.f32 %v1295, %v1355
        %v1384 = vmax.f32 %v1370, 0.0
        %v1385 = vmax.f32 %v1371, 0.0
        %v1386 = vmax.f32 %v1372, 0.0
        %v1387 = vmax.f32 %v1373, 0.0
        %v1388 = vmax.f32 %v1374, 0.0
        %v1389 = vmax.f32 %v1375, 0.0
        %v1390 = vmax.f32 %v1376, 0.0
        %v1391 = vmax.f32 %v1377, 0.0
        %v1392 = vmax.f32 %v1378, 0.0
        %v1393 = vmax.f32 %v1379, 0.0
        %v1394 = vmax.f32 %v1380, 0.0
        %v1395 = vmax.f32 %v1381, 0.0
        %v1396 = vmax.f32 %v1382, 0.0
        %v1397 = vmax.f32 %v1383, 0.0
        %v1398 = vpack.c.bf16 %v1384, %v1384
        %v1399 = vpack.c.bf16 %v1385, %v1385
        %v1400 = vpack.c.bf16 %v1386, %v1386
        %v1401 = vpack.c.bf16 %v1387, %v1387
        %v1402 = vpack.c.bf16 %v1388, %v1388
        %v1403 = vpack.c.bf16 %v1389, %v1389
        %v1404 = vpack.c.bf16 %v1390, %v1390
        %v1405 = vpack.c.bf16 %v1391, %v1391
        %v1406 = vpack.c.bf16 %v1392, %v1392
        %v1407 = vpack.c.bf16 %v1393, %v1393
        %v1408 = vpack.c.bf16 %v1394, %v1394
        %v1409 = vpack.c.bf16 %v1395, %v1395
        %v1410 = vpack.c.bf16 %v1396, %v1396
        %v1411 = vpack.c.bf16 %v1397, %v1397
        %v1426 = vcombine.low %v1398, %v1399
        %v1427 = vcombine.low %v1400, %v1401
        %v1428 = vcombine.low %v1402, %v1403
        %v1429 = vcombine.low %v1404, %v1405
        %v1431 = vunpack.c.l.s4 1966171168
        %v1432 = vunpack.c.0.s8 %v1431
        %v1433 = vlaneseq
        %v1434 = vshrl.u32 %v1433, 7
        %v1435 = vsub.s32 %v1432, %v1434
        %v1436 = vrot.slane %v1426, %v1435
        %v1438 = vunpack.c.l.s4 1966171168
        %v1439 = vunpack.c.0.s8 %v1438
        %v1440 = vlaneseq
        %v1441 = vshrl.u32 %v1440, 7
        %v1442 = vsub.s32 %v1439, %v1441
        %v1443 = vrot.slane %v1427, %v1442
        %v1445 = vunpack.c.l.s4 1966171168
        %v1446 = vunpack.c.0.s8 %v1445
        %v1447 = vlaneseq
        %v1448 = vshrl.u32 %v1447, 7
        %v1449 = vsub.s32 %v1446, %v1448
        %v1450 = vrot.slane %v1428, %v1449
        %v1452 = vunpack.c.l.s4 1966171168
        %v1453 = vunpack.c.0.s8 %v1452
        %v1454 = vlaneseq
        %v1455 = vshrl.u32 %v1454, 7
        %v1456 = vsub.s32 %v1453, %v1455
        %v1457 = vrot.slane %v1429, %v1456
        %v1458 = vcombine.low %v1436, %v1443
        %v1459 = vcombine.low %v1450, %v1457
        %v1461 = vunpack.c.l.s4 1966171168
        %v1462 = vunpack.c.0.s8 %v1461
        %v1463 = vlaneseq
        %v1464 = vshrl.u32 %v1463, 7
        %v1465 = vsub.s32 %v1462, %v1464
        %v1466 = vrot.slane %v1458, %v1465
        %v1468 = vunpack.c.l.s4 1966171168
        %v1469 = vunpack.c.0.s8 %v1468
        %v1470 = vlaneseq
        %v1471 = vshrl.u32 %v1470, 7
        %v1472 = vsub.s32 %v1469, %v1471
        %v1473 = vrot.slane %v1459, %v1472
        %v1474 = vcombine.low %v1466, %v1473
        %v1475 = vcombine.low %v1406, %v1407
        %v1476 = vcombine.low %v1408, %v1409
        %v1477 = vcombine.low %v1410, %v1411
        %v1479 = vunpack.c.l.s4 1966171168
        %v1480 = vunpack.c.0.s8 %v1479
        %v1481 = vlaneseq
        %v1482 = vshrl.u32 %v1481, 7
        %v1483 = vsub.s32 %v1480, %v1482
        %v1484 = vrot.slane %v1475, %v1483
        %v1486 = vunpack.c.l.s4 1966171168
        %v1487 = vunpack.c.0.s8 %v1486
        %v1488 = vlaneseq
        %v1489 = vshrl.u32 %v1488, 7
        %v1490 = vsub.s32 %v1487, %v1489
        %v1491 = vrot.slane %v1476, %v1490
        %v1493 = vunpack.c.l.s4 1966171168
        %v1494 = vunpack.c.0.s8 %v1493
        %v1495 = vlaneseq
        %v1496 = vshrl.u32 %v1495, 7
        %v1497 = vsub.s32 %v1494, %v1496
        %v1498 = vrot.slane %v1477, %v1497
        %v1499 = vcombine.low %v1484, %v1491
        %v1501 = vunpack.c.l.s4 1966171168
        %v1502 = vunpack.c.0.s8 %v1501
        %v1503 = vlaneseq
        %v1504 = vshrl.u32 %v1503, 7
        %v1505 = vsub.s32 %v1502, %v1504
        %v1506 = vrot.slane %v1499, %v1505
        %v1508 = vunpack.c.l.s4 1966171168
        %v1509 = vunpack.c.0.s8 %v1508
        %v1510 = vlaneseq
        %v1511 = vshrl.u32 %v1510, 7
        %v1512 = vsub.s32 %v1509, %v1511
        %v1513 = vrot.slane %v1498, %v1512
        %v1514 = vcombine.low %v1506, %v1513
        %1517 = vst [vmem:[%s336] sm:$0xff] %v1474
        %1518 = vst [vmem:[%s336 + $0x8] sm:$0x3f] %v1514
        %s1519 = smul.u32 14, %s15
        %p1520 = scmp.lt.s32.totalorder %s1519, 97
        %s1521 = scalar_select %p1520, %s1519, 97
        %s1522 = scalar_lea.vmem %s4, %s1521
        // Predicated region
        $region60: #{generator_forward.7} parent=54 // pred_check
          %p1523 = pneg %p132
        $region61: #{generator_forward.7} parent=54 // pred_check_branch
          %1525 = sbr.rel (%p1523) target = $region63
        $region62: #{generator_forward.7} parent=54 // pred_region
          %s1526 = smul.u32 14, %s15
        $region63: #{generator_forward.7} parent=54 // pred_fallthru
          _
      $region55: #{generator_forward.7} parent=5 // pred_fallthru
        _
      %p1527 = scmp.le.s32.totalorder 2, %s10
      // Predicated region
      $region64: #{generator_forward.7} parent=5 // pred_check
        %p1528 = pneg %p1527
      $region65: #{generator_forward.7} parent=5 // pred_check_branch
        %1530 = sbr.rel (%p1528) target = $region67
      $region66: #{generator_forward.7} parent=5 // pred_region
        %s1531 = ssub.s32 %s10, 2
        // Predicated region
        $region68: #{generator_forward.7} parent=66 // pred_check
          %p1532 = pneg %p138
        $region69: #{generator_forward.7} parent=66 // pred_check_branch
          %1534 = sbr.rel (%p1532) target = $region71
        $region70: #{generator_forward.7} parent=66 // pred_region
          %s1535 = smul.u32 14, %s16
          %p1536 = scmp.lt.s32.totalorder %s1535, 97
          %s1537 = scalar_select %p1536, %s1535, 97
          %s1538 = scalar_lea.vmem %s4, %s1537
        $region71: #{generator_forward.7} parent=66 // pred_fallthru
          _
      $region67: #{generator_forward.7} parent=5 // pred_fallthru
        _
    $region6: #{generator_forward.7} parent=1 // loop_footer
      %s14 = sadd.s32 1, %s10
    $region7: #{generator_forward.7} parent=1 // loop_footer_branch
      %9 = sbr.rel target = $region3
    $region8: #{generator_forward.7} parent=1 // loop_exit
      _

// kernel: generator_forward.8
$region0: #{generator_forward.8}
  #allocation0 [shape = 'u32[]', space=smem, size = 0x4, offset = 0x4, fixed_abs, tag = 'smem constant byte address 0x4 - core index']
  #allocation1 [shape = 'u32[144,128]{1,0:T(1,128)}', space=vmem, size = 0x12000, scoped, tag = 'internal scratch']
  %s0 = inlined_call_operand.vmem [shape: bf16[128,2304], index: 0, kind: input, shape index: {}]
  %s1 = inlined_call_operand.vmem [shape: bf16[2304,512], index: 1, kind: input, shape index: {}]
  %s2 = inlined_call_operand.vmem [shape: bf16[128,512], index: 2, kind: output, shape index: {0}]
  %s3 = inlined_call_operand.vmem [shape: f32[32,512], index: 3, kind: output, shape index: {1}]
  %4 = xla_tuple %s2, %s3
  %s5 = sld [smem:[#allocation0]]
  $region49: #{generator_forward.8} parent=0
    _
  %s7 = ssub.s32 1, %s5
  %s8 = scalar_select 0, %s7, %s5
  loop: start=0, step=1, limit=6
  $region2: #{generator_forward.8} parent=0 // loop_pre_header
    _
  $region3: #{generator_forward.8} parent=0 // loop_header
    %s10 = sphi 0, %s14
    %p11 = scmp.ge.s32.totalorder %s10, 6
    %s20 = sphi 0, %s22
    %s23 = sphi 0, %s20
    %s24 = sphi 0, %s23
    %s40 = sphi 0, %s24
    %s44 = sphi 0, %s44
    %s46 = sphi 0, %s44
    %s47 = sphi 0, %s46
    %s61 = sphi 0, %s47
    %s67 = sphi 0, %s69
    %s70 = sphi 0, %s67
    %s71 = sphi 0, %s70
    %s87 = sphi 0, %s71
    %s93 = sphi 0, %s95
    %s96 = sphi 0, %s93
    %s97 = sphi 0, %s96
    %s113 = sphi 0, %s97
  $region4: #{generator_forward.8} parent=0 // loop_header_branch
    %13 = sbr.rel (%p11) target = $region8
  $region5: #{generator_forward.8} parent=0 // loop_body
    %s15 = ssub.s32 %s10, 1
    %s16 = ssub.s32 %s10, 2
    %s17 = sadd.s32 %s10, 1
    %s18 = ssub.s32 %s10, %s17
    %p19 = scmp.eq.s32.totalorder %s18, 0
    %s21 = sadd.s32 %s20, 1
    %s22 = scalar_select %p19, %s20, %s21
    %p25 = pneg %p19
    %p26 = scmp.eq.s32.totalorder %s10, 3
    %p27 = por %p25, %p26
    %p28 = scmp.ne.s32.totalorder %s20, %s23
    %p29 = scmp.eq.s32.totalorder %s10, 0
    %p30 = por %p28, %p29
    %p31 = scmp.ne.s32.totalorder %s20, %s23
    %p32 = scmp.eq.s32.totalorder %s15, 3
    %p33 = por %p31, %p32
    %p34 = scmp.ne.s32.totalorder %s23, %s24
    %p35 = scmp.eq.s32.totalorder %s15, 0
    %p36 = por %p34, %p35
    %p37 = scmp.ne.s32.totalorder %s23, %s24
    %p38 = scmp.eq.s32.totalorder %s16, 3
    %p39 = por %p37, %p38
    %p41 = scmp.ne.s32.totalorder %s24, %s40
    %p42 = scmp.eq.s32.totalorder %s16, 0
    %p43 = por %p41, %p42
    %s45 = sadd.s32 %s44, 1
    %p48 = scmp.eq.s32.totalorder %s10, 3
    %p49 = scmp.ne.s32.totalorder %s44, %s46
    %p50 = scmp.eq.s32.totalorder %s10, 0
    %p51 = por %p49, %p50
    %p52 = scmp.ne.s32.totalorder %s44, %s46
    %p53 = scmp.eq.s32.totalorder %s15, 3
    %p54 = por %p52, %p53
    %p55 = scmp.ne.s32.totalorder %s46, %s47
    %p56 = scmp.eq.s32.totalorder %s15, 0
    %p57 = por %p55, %p56
    %p58 = scmp.ne.s32.totalorder %s46, %s47
    %p59 = scmp.eq.s32.totalorder %s16, 3
    %p60 = por %p58, %p59
    %p62 = scmp.ne.s32.totalorder %s47, %s61
    %p63 = scmp.eq.s32.totalorder %s16, 0
    %p64 = por %p62, %p63
    %s65 = ssub.s32 %s10, %s17
    %p66 = scmp.eq.s32.totalorder %s65, 0
    %s68 = sadd.s32 %s67, 1
    %s69 = scalar_select %p66, %s67, %s68
    %p72 = pneg %p66
    %p73 = scmp.eq.s32.totalorder %s10, 3
    %p74 = por %p72, %p73
    %p75 = scmp.ne.s32.totalorder %s67, %s70
    %p76 = scmp.eq.s32.totalorder %s10, 0
    %p77 = por %p75, %p76
    %p78 = scmp.ne.s32.totalorder %s67, %s70
    %p79 = scmp.eq.s32.totalorder %s15, 3
    %p80 = por %p78, %p79
    %p81 = scmp.ne.s32.totalorder %s70, %s71
    %p82 = scmp.eq.s32.totalorder %s15, 0
    %p83 = por %p81, %p82
    %p84 = scmp.ne.s32.totalorder %s70, %s71
    %p85 = scmp.eq.s32.totalorder %s16, 3
    %p86 = por %p84, %p85
    %p88 = scmp.ne.s32.totalorder %s71, %s87
    %p89 = scmp.eq.s32.totalorder %s16, 0
    %p90 = por %p88, %p89
    %s91 = ssub.s32 %s10, %s17
    %p92 = scmp.eq.s32.totalorder %s91, 0
    %s94 = sadd.s32 %s93, 1
    %s95 = scalar_select %p92, %s93, %s94
    %p98 = pneg %p92
    %p99 = scmp.eq.s32.totalorder %s10, 3
    %p100 = por %p98, %p99
    %p101 = scmp.ne.s32.totalorder %s93, %s96
    %p102 = scmp.eq.s32.totalorder %s10, 0
    %p103 = por %p101, %p102
    %p104 = scmp.ne.s32.totalorder %s93, %s96
    %p105 = scmp.eq.s32.totalorder %s15, 3
    %p106 = por %p104, %p105
    %p107 = scmp.ne.s32.totalorder %s96, %s97
    %p108 = scmp.eq.s32.totalorder %s15, 0
    %p109 = por %p107, %p108
    %p110 = scmp.ne.s32.totalorder %s96, %s97
    %p111 = scmp.eq.s32.totalorder %s16, 3
    %p112 = por %p110, %p111
    %p114 = scmp.ne.s32.totalorder %s97, %s113
    %p115 = scmp.eq.s32.totalorder %s16, 0
    %p116 = por %p114, %p115
    %p117 = scmp.le.s32.totalorder 1, %s10
    %p118 = scmp.lt.s32.totalorder %s10, 5
    %p119 = pnand %p117, %p118
    %p120 = pneg %p119
    // Predicated region
    $region9: #{generator_forward.8} parent=5 // pred_check
      _
    $region10: #{generator_forward.8} parent=5 // pred_check_branch
      %122 = sbr.rel (%p119) target = $region12
    $region11: #{generator_forward.8} parent=5 // pred_region
      %s123 = ssub.s32 %s10, 1
      // Predicated region
      $region13: #{generator_forward.8} parent=11 // pred_check
        %p124 = pneg %p57
      $region14: #{generator_forward.8} parent=11 // pred_check_branch
        %126 = sbr.rel (%p124) target = $region16
      $region15: #{generator_forward.8} parent=11 // pred_region
        _
      $region16: #{generator_forward.8} parent=11 // pred_fallthru
        _
    $region12: #{generator_forward.8} parent=5 // pred_fallthru
      _
    %p127 = scmp.lt.s32.totalorder %s10, 4
    // Predicated region
    $region17: #{generator_forward.8} parent=5 // pred_check
      %p128 = pneg %p127
    $region18: #{generator_forward.8} parent=5 // pred_check_branch
      %130 = sbr.rel (%p128) target = $region20
    $region19: #{generator_forward.8} parent=5 // pred_region
      // Predicated region
      $region21: #{generator_forward.8} parent=19 // pred_check
        %p131 = pneg %p30
      $region22: #{generator_forward.8} parent=19 // pred_check_branch
        %133 = sbr.rel (%p131) target = $region24
      $region23: #{generator_forward.8} parent=19 // pred_region
        %s134 = smul.u32 4, %s10
        %p135 = scmp.lt.s32.totalorder %s134, 15
        %s136 = scalar_select %p135, %s134, 15
        %s137 = smul.addr %s136, 18
        %s138 = smul.addr %s137, 4
        %s139 = scalar_lea.vmem %s0, %s138
        %s140 = smul.u32 4, %s10
      $region24: #{generator_forward.8} parent=19 // pred_fallthru
        _
    $region20: #{generator_forward.8} parent=5 // pred_fallthru
      _
    %p141 = scmp.le.s32.totalorder 1, %s10
    %p142 = scmp.lt.s32.totalorder %s10, 5
    %p143 = pnand %p141, %p142
    %p144 = pneg %p143
    // Predicated region
    $region25: #{generator_forward.8} parent=5 // pred_check
      _
    $region26: #{generator_forward.8} parent=5 // pred_check_branch
      %146 = sbr.rel (%p143) target = $region28
    $region27: #{generator_forward.8} parent=5 // pred_region
      %s147 = ssub.s32 %s10, 1
      %s148 = smul.u32 4, %s15
      %p149 = scmp.lt.s32.totalorder %s148, 15
      %s150 = scalar_select %p149, %s148, 15
      %s151 = smul.addr %s150, 18
      %s152 = smul.addr %s151, 4
      %s153 = scalar_lea.vmem %s0, %s152
      %p154 = pneg %p36
      %p155 = pneg %p33
      %p156 = pneg %p57
      %p157 = pneg %p54
      %p158 = pneg %p83
      %p159 = pneg %p80
      %s160 = smul.u32 4, %s15
      %p161 = scmp.lt.s32.totalorder %s160, 15
      %s162 = scalar_select %p161, %s160, 15
      %s163 = smul.addr %s162, 4
      %s164 = smul.addr %s163, 4
      %s165 = scalar_lea.vmem %s2, %s164
      %p166 = pneg %p109
      %p167 = pneg %p106
      %p168 = scmp.lt.s32.totalorder %s15, 3
      %s169 = scalar_select %p168, %s15, 3
      %s170 = smul.addr %s169, 4
      %s171 = smul.addr %s170, 8
      %s172 = scalar_lea.vmem %s3, %s171
      %s173 = smul.u32 4, %s15
      %p174 = scmp.lt.s32.totalorder %s173, 15
      %s175 = scalar_select %p174, %s173, 15
      %s176 = smul.addr %s175, 18
      %s177 = smul.addr %s176, 4
      %s178 = scalar_lea.vmem %s0, %s177
      %s179 = smul.u32 4, %s15
      %s180 = smul.u32 4, %s15
      %p181 = scmp.lt.s32.totalorder %s180, 15
      %s182 = scalar_select %p181, %s180, 15
      %s183 = smul.addr %s182, 4
      %s184 = smul.addr %s183, 4
      %s185 = scalar_lea.vmem %s2, %s184
      %s186 = smul.u32 4, %s15
      %p187 = scmp.lt.s32.totalorder %s15, 3
      %s188 = scalar_select %p187, %s15, 3
      %s189 = smul.addr %s188, 4
      %s190 = smul.addr %s189, 8
      %s191 = scalar_lea.vmem %s3, %s190
      %v192 = vld [vmem:[%s178] sm:$0xff]
      %v193 = vld [vmem:[%s178 + $0x8] sm:$0xff]
      %v194 = vld [vmem:[%s178 + $0x10] sm:$0xff]
      %v195 = vld [vmem:[%s178 + $0x18] sm:$0xff]
      %v196 = vld [vmem:[%s178 + $0x20] sm:$0xff]
      %v197 = vld [vmem:[%s178 + $0x28] sm:$0xff]
      %v198 = vld [vmem:[%s178 + $0x30] sm:$0xff]
      %v199 = vld [vmem:[%s178 + $0x38] sm:$0xff]
      %v200 = vld [vmem:[%s178 + $0x40] sm:$0xff]
      %v201 = vld [vmem:[%s178 + $0x48] sm:$0xff]
      %v202 = vld [vmem:[%s178 + $0x50] sm:$0xff]
      %v203 = vld [vmem:[%s178 + $0x58] sm:$0xff]
      %v204 = vld [vmem:[%s178 + $0x60] sm:$0xff]
      %v205 = vld [vmem:[%s178 + $0x68] sm:$0xff]
      %v206 = vld [vmem:[%s178 + $0x70] sm:$0xff]
      %v207 = vld [vmem:[%s178 + $0x78] sm:$0xff]
      %v208 = vld [vmem:[%s178 + $0x80] sm:$0xff]
      %v209 = vld [vmem:[%s178 + $0x88] sm:$0xff]
      %v210 = vld [vmem:[%s178 + $0x90] sm:$0xff]
      %v211 = vld [vmem:[%s178 + $0x98] sm:$0xff]
      %v212 = vld [vmem:[%s178 + $0xa0] sm:$0xff]
      %v213 = vld [vmem:[%s178 + $0xa8] sm:$0xff]
      %v214 = vld [vmem:[%s178 + $0xb0] sm:$0xff]
      %v215 = vld [vmem:[%s178 + $0xb8] sm:$0xff]
      %v216 = vld [vmem:[%s178 + $0xc0] sm:$0xff]
      %v217 = vld [vmem:[%s178 + $0xc8] sm:$0xff]
      %v218 = vld [vmem:[%s178 + $0xd0] sm:$0xff]
      %v219 = vld [vmem:[%s178 + $0xd8] sm:$0xff]
      %v220 = vld [vmem:[%s178 + $0xe0] sm:$0xff]
      %v221 = vld [vmem:[%s178 + $0xe8] sm:$0xff]
      %v222 = vld [vmem:[%s178 + $0xf0] sm:$0xff]
      %v223 = vld [vmem:[%s178 + $0xf8] sm:$0xff]
      %v224 = vld [vmem:[%s178 + $0x100] sm:$0xff]
      %v225 = vld [vmem:[%s178 + $0x108] sm:$0xff]
      %v226 = vld [vmem:[%s178 + $0x110] sm:$0xff]
      %v227 = vld [vmem:[%s178 + $0x118] sm:$0xff]
      %v228 = vld [vmem:[%s1] sm:$0xff]
      %v229 = vld [vmem:[%s1 + $0x8] sm:$0xff]
      %v230 = vld [vmem:[%s1 + $0x10] sm:$0xff]
      %v231 = vld [vmem:[%s1 + $0x18] sm:$0xff]
      %v232 = vld [vmem:[%s1 + $0x20] sm:$0xff]
      %v233 = vld [vmem:[%s1 + $0x28] sm:$0xff]
      %v234 = vld [vmem:[%s1 + $0x30] sm:$0xff]
      %v235 = vld [vmem:[%s1 + $0x38] sm:$0xff]
      %v236 = vld [vmem:[%s1 + $0x40] sm:$0xff]
      %v237 = vld [vmem:[%s1 + $0x48] sm:$0xff]
      %v238 = vld [vmem:[%s1 + $0x50] sm:$0xff]
      %v239 = vld [vmem:[%s1 + $0x58] sm:$0xff]
      %v240 = vld [vmem:[%s1 + $0x60] sm:$0xff]
      %v241 = vld [vmem:[%s1 + $0x68] sm:$0xff]
      %v242 = vld [vmem:[%s1 + $0x70] sm:$0xff]
      %v243 = vld [vmem:[%s1 + $0x78] sm:$0xff]
      %v244 = vld [vmem:[%s1 + $0x80] sm:$0xff]
      %v245 = vld [vmem:[%s1 + $0x88] sm:$0xff]
      %v246 = vld [vmem:[%s1 + $0x90] sm:$0xff]
      %v247 = vld [vmem:[%s1 + $0x98] sm:$0xff]
      %v248 = vld [vmem:[%s1 + $0xa0] sm:$0xff]
      %v249 = vld [vmem:[%s1 + $0xa8] sm:$0xff]
      %v250 = vld [vmem:[%s1 + $0xb0] sm:$0xff]
      %v251 = vld [vmem:[%s1 + $0xb8] sm:$0xff]
      %v252 = vld [vmem:[%s1 + $0xc0] sm:$0xff]
      %v253 = vld [vmem:[%s1 + $0xc8] sm:$0xff]
      %v254 = vld [vmem:[%s1 + $0xd0] sm:$0xff]
      %v255 = vld [vmem:[%s1 + $0xd8] sm:$0xff]
      %v256 = vld [vmem:[%s1 + $0xe0] sm:$0xff]
      %v257 = vld [vmem:[%s1 + $0xe8] sm:$0xff]
      %v258 = vld [vmem:[%s1 + $0xf0] sm:$0xff]
      %v259 = vld [vmem:[%s1 + $0xf8] sm:$0xff]
      %v260 = vld [vmem:[%s1 + $0x100] sm:$0xff]
      %v261 = vld [vmem:[%s1 + $0x108] sm:$0xff]
      %v262 = vld [vmem:[%s1 + $0x110] sm:$0xff]
      %v263 = vld [vmem:[%s1 + $0x118] sm:$0xff]
      %v264 = vld [vmem:[%s1 + $0x120] sm:$0xff]
      %v265 = vld [vmem:[%s1 + $0x128] sm:$0xff]
      %v266 = vld [vmem:[%s1 + $0x130] sm:$0xff]
      %v267 = vld [vmem:[%s1 + $0x138] sm:$0xff]
      %v268 = vld [vmem:[%s1 + $0x140] sm:$0xff]
      %v269 = vld [vmem:[%s1 + $0x148] sm:$0xff]
      %v270 = vld [vmem:[%s1 + $0x150] sm:$0xff]
      %v271 = vld [vmem:[%s1 + $0x158] sm:$0xff]
      %v272 = vld [vmem:[%s1 + $0x160] sm:$0xff]
      %v273 = vld [vmem:[%s1 + $0x168] sm:$0xff]
      %v274 = vld [vmem:[%s1 + $0x170] sm:$0xff]
      %v275 = vld [vmem:[%s1 + $0x178] sm:$0xff]
      %v276 = vld [vmem:[%s1 + $0x180] sm:$0xff]
      %v277 = vld [vmem:[%s1 + $0x188] sm:$0xff]
      %v278 = vld [vmem:[%s1 + $0x190] sm:$0xff]
      %v279 = vld [vmem:[%s1 + $0x198] sm:$0xff]
      %v280 = vld [vmem:[%s1 + $0x1a0] sm:$0xff]
      %v281 = vld [vmem:[%s1 + $0x1a8] sm:$0xff]
      %v282 = vld [vmem:[%s1 + $0x1b0] sm:$0xff]
      %v283 = vld [vmem:[%s1 + $0x1b8] sm:$0xff]
      %v284 = vld [vmem:[%s1 + $0x1c0] sm:$0xff]
      %v285 = vld [vmem:[%s1 + $0x1c8] sm:$0xff]
      %v286 = vld [vmem:[%s1 + $0x1d0] sm:$0xff]
      %v287 = vld [vmem:[%s1 + $0x1d8] sm:$0xff]
      %v288 = vld [vmem:[%s1 + $0x1e0] sm:$0xff]
      %v289 = vld [vmem:[%s1 + $0x1e8] sm:$0xff]
      %v290 = vld [vmem:[%s1 + $0x1f0] sm:$0xff]
      %v291 = vld [vmem:[%s1 + $0x1f8] sm:$0xff]
      %v292 = vld [vmem:[%s1 + $0x200] sm:$0xff]
      %v293 = vld [vmem:[%s1 + $0x208] sm:$0xff]
      %v294 = vld [vmem:[%s1 + $0x210] sm:$0xff]
      %v295 = vld [vmem:[%s1 + $0x218] sm:$0xff]
      %v296 = vld [vmem:[%s1 + $0x220] sm:$0xff]
      %v297 = vld [vmem:[%s1 + $0x228] sm:$0xff]
      %v298 = vld [vmem:[%s1 + $0x230] sm:$0xff]
      %v299 = vld [vmem:[%s1 + $0x238] sm:$0xff]
      %v300 = vld [vmem:[%s1 + $0x240] sm:$0xff]
      %v301 = vld [vmem:[%s1 + $0x248] sm:$0xff]
      %v302 = vld [vmem:[%s1 + $0x250] sm:$0xff]
      %v303 = vld [vmem:[%s1 + $0x258] sm:$0xff]
      %v304 = vld [vmem:[%s1 + $0x260] sm:$0xff]
      %v305 = vld [vmem:[%s1 + $0x268] sm:$0xff]
      %v306 = vld [vmem:[%s1 + $0x270] sm:$0xff]
      %v307 = vld [vmem:[%s1 + $0x278] sm:$0xff]
      %v308 = vld [vmem:[%s1 + $0x280] sm:$0xff]
      %v309 = vld [vmem:[%s1 + $0x288] sm:$0xff]
      %v310 = vld [vmem:[%s1 + $0x290] sm:$0xff]
      %v311 = vld [vmem:[%s1 + $0x298] sm:$0xff]
      %v312 = vld [vmem:[%s1 + $0x2a0] sm:$0xff]
      %v313 = vld [vmem:[%s1 + $0x2a8] sm:$0xff]
      %v314 = vld [vmem:[%s1 + $0x2b0] sm:$0xff]
      %v315 = vld [vmem:[%s1 + $0x2b8] sm:$0xff]
      %v316 = vld [vmem:[%s1 + $0x2c0] sm:$0xff]
      %v317 = vld [vmem:[%s1 + $0x2c8] sm:$0xff]
      %v318 = vld [vmem:[%s1 + $0x2d0] sm:$0xff]
      %v319 = vld [vmem:[%s1 + $0x2d8] sm:$0xff]
      %v320 = vld [vmem:[%s1 + $0x2e0] sm:$0xff]
      %v321 = vld [vmem:[%s1 + $0x2e8] sm:$0xff]
      %v322 = vld [vmem:[%s1 + $0x2f0] sm:$0xff]
      %v323 = vld [vmem:[%s1 + $0x2f8] sm:$0xff]
      %v324 = vld [vmem:[%s1 + $0x300] sm:$0xff]
      %v325 = vld [vmem:[%s1 + $0x308] sm:$0xff]
      %v326 = vld [vmem:[%s1 + $0x310] sm:$0xff]
      %v327 = vld [vmem:[%s1 + $0x318] sm:$0xff]
      %v328 = vld [vmem:[%s1 + $0x320] sm:$0xff]
      %v329 = vld [vmem:[%s1 + $0x328] sm:$0xff]
      %v330 = vld [vmem:[%s1 + $0x330] sm:$0xff]
      %v331 = vld [vmem:[%s1 + $0x338] sm:$0xff]
      %v332 = vld [vmem:[%s1 + $0x340] sm:$0xff]
      %v333 = vld [vmem:[%s1 + $0x348] sm:$0xff]
      %v334 = vld [vmem:[%s1 + $0x350] sm:$0xff]
      %v335 = vld [vmem:[%s1 + $0x358] sm:$0xff]
      %v336 = vld [vmem:[%s1 + $0x360] sm:$0xff]
      %v337 = vld [vmem:[%s1 + $0x368] sm:$0xff]
      %v338 = vld [vmem:[%s1 + $0x370] sm:$0xff]
      %v339 = vld [vmem:[%s1 + $0x378] sm:$0xff]
      %v340 = vld [vmem:[%s1 + $0x380] sm:$0xff]
      %v341 = vld [vmem:[%s1 + $0x388] sm:$0xff]
      %v342 = vld [vmem:[%s1 + $0x390] sm:$0xff]
      %v343 = vld [vmem:[%s1 + $0x398] sm:$0xff]
      %v344 = vld [vmem:[%s1 + $0x3a0] sm:$0xff]
      %v345 = vld [vmem:[%s1 + $0x3a8] sm:$0xff]
      %v346 = vld [vmem:[%s1 + $0x3b0] sm:$0xff]
      %v347 = vld [vmem:[%s1 + $0x3b8] sm:$0xff]
      %v348 = vld [vmem:[%s1 + $0x3c0] sm:$0xff]
      %v349 = vld [vmem:[%s1 + $0x3c8] sm:$0xff]
      %v350 = vld [vmem:[%s1 + $0x3d0] sm:$0xff]
      %v351 = vld [vmem:[%s1 + $0x3d8] sm:$0xff]
      %v352 = vld [vmem:[%s1 + $0x3e0] sm:$0xff]
      %v353 = vld [vmem:[%s1 + $0x3e8] sm:$0xff]
      %v354 = vld [vmem:[%s1 + $0x3f0] sm:$0xff]
      %v355 = vld [vmem:[%s1 + $0x3f8] sm:$0xff]
      %v356 = vld [vmem:[%s1 + $0x400] sm:$0xff]
      %v357 = vld [vmem:[%s1 + $0x408] sm:$0xff]
      %v358 = vld [vmem:[%s1 + $0x410] sm:$0xff]
      %v359 = vld [vmem:[%s1 + $0x418] sm:$0xff]
      %v360 = vld [vmem:[%s1 + $0x420] sm:$0xff]
      %v361 = vld [vmem:[%s1 + $0x428] sm:$0xff]
      %v362 = vld [vmem:[%s1 + $0x430] sm:$0xff]
      %v363 = vld [vmem:[%s1 + $0x438] sm:$0xff]
      %v364 = vld [vmem:[%s1 + $0x440] sm:$0xff]
      %v365 = vld [vmem:[%s1 + $0x448] sm:$0xff]
      %v366 = vld [vmem:[%s1 + $0x450] sm:$0xff]
      %v367 = vld [vmem:[%s1 + $0x458] sm:$0xff]
      %v368 = vld [vmem:[%s1 + $0x460] sm:$0xff]
      %v369 = vld [vmem:[%s1 + $0x468] sm:$0xff]
      %v370 = vld [vmem:[%s1 + $0x470] sm:$0xff]
      %v371 = vld [vmem:[%s1 + $0x478] sm:$0xff]
      %v372 = vld [vmem:[%s1 + $0x480] sm:$0xff]
      %v373 = vld [vmem:[%s1 + $0x488] sm:$0xff]
      %v374 = vld [vmem:[%s1 + $0x490] sm:$0xff]
      %v375 = vld [vmem:[%s1 + $0x498] sm:$0xff]
      %v376 = vld [vmem:[%s1 + $0x4a0] sm:$0xff]
      %v377 = vld [vmem:[%s1 + $0x4a8] sm:$0xff]
      %v378 = vld [vmem:[%s1 + $0x4b0] sm:$0xff]
      %v379 = vld [vmem:[%s1 + $0x4b8] sm:$0xff]
      %v380 = vld [vmem:[%s1 + $0x4c0] sm:$0xff]
      %v381 = vld [vmem:[%s1 + $0x4c8] sm:$0xff]
      %v382 = vld [vmem:[%s1 + $0x4d0] sm:$0xff]
      %v383 = vld [vmem:[%s1 + $0x4d8] sm:$0xff]
      %v384 = vld [vmem:[%s1 + $0x4e0] sm:$0xff]
      %v385 = vld [vmem:[%s1 + $0x4e8] sm:$0xff]
      %v386 = vld [vmem:[%s1 + $0x4f0] sm:$0xff]
      %v387 = vld [vmem:[%s1 + $0x4f8] sm:$0xff]
      %v388 = vld [vmem:[%s1 + $0x500] sm:$0xff]
      %v389 = vld [vmem:[%s1 + $0x508] sm:$0xff]
      %v390 = vld [vmem:[%s1 + $0x510] sm:$0xff]
      %v391 = vld [vmem:[%s1 + $0x518] sm:$0xff]
      %v392 = vld [vmem:[%s1 + $0x520] sm:$0xff]
      %v393 = vld [vmem:[%s1 + $0x528] sm:$0xff]
      %v394 = vld [vmem:[%s1 + $0x530] sm:$0xff]
      %v395 = vld [vmem:[%s1 + $0x538] sm:$0xff]
      %v396 = vld [vmem:[%s1 + $0x540] sm:$0xff]
      %v397 = vld [vmem:[%s1 + $0x548] sm:$0xff]
      %v398 = vld [vmem:[%s1 + $0x550] sm:$0xff]
      %v399 = vld [vmem:[%s1 + $0x558] sm:$0xff]
      %v400 = vld [vmem:[%s1 + $0x560] sm:$0xff]
      %v401 = vld [vmem:[%s1 + $0x568] sm:$0xff]
      %v402 = vld [vmem:[%s1 + $0x570] sm:$0xff]
      %v403 = vld [vmem:[%s1 + $0x578] sm:$0xff]
      %v404 = vld [vmem:[%s1 + $0x580] sm:$0xff]
      %v405 = vld [vmem:[%s1 + $0x588] sm:$0xff]
      %v406 = vld [vmem:[%s1 + $0x590] sm:$0xff]
      %v407 = vld [vmem:[%s1 + $0x598] sm:$0xff]
      %v408 = vld [vmem:[%s1 + $0x5a0] sm:$0xff]
      %v409 = vld [vmem:[%s1 + $0x5a8] sm:$0xff]
      %v410 = vld [vmem:[%s1 + $0x5b0] sm:$0xff]
      %v411 = vld [vmem:[%s1 + $0x5b8] sm:$0xff]
      %v412 = vld [vmem:[%s1 + $0x5c0] sm:$0xff]
      %v413 = vld [vmem:[%s1 + $0x5c8] sm:$0xff]
      %v414 = vld [vmem:[%s1 + $0x5d0] sm:$0xff]
      %v415 = vld [vmem:[%s1 + $0x5d8] sm:$0xff]
      %v416 = vld [vmem:[%s1 + $0x5e0] sm:$0xff]
      %v417 = vld [vmem:[%s1 + $0x5e8] sm:$0xff]
      %v418 = vld [vmem:[%s1 + $0x5f0] sm:$0xff]
      %v419 = vld [vmem:[%s1 + $0x5f8] sm:$0xff]
      %v420 = vld [vmem:[%s1 + $0x600] sm:$0xff]
      %v421 = vld [vmem:[%s1 + $0x608] sm:$0xff]
      %v422 = vld [vmem:[%s1 + $0x610] sm:$0xff]
      %v423 = vld [vmem:[%s1 + $0x618] sm:$0xff]
      %v424 = vld [vmem:[%s1 + $0x620] sm:$0xff]
      %v425 = vld [vmem:[%s1 + $0x628] sm:$0xff]
      %v426 = vld [vmem:[%s1 + $0x630] sm:$0xff]
      %v427 = vld [vmem:[%s1 + $0x638] sm:$0xff]
      %v428 = vld [vmem:[%s1 + $0x640] sm:$0xff]
      %v429 = vld [vmem:[%s1 + $0x648] sm:$0xff]
      %v430 = vld [vmem:[%s1 + $0x650] sm:$0xff]
      %v431 = vld [vmem:[%s1 + $0x658] sm:$0xff]
      %v432 = vld [vmem:[%s1 + $0x660] sm:$0xff]
      %v433 = vld [vmem:[%s1 + $0x668] sm:$0xff]
      %v434 = vld [vmem:[%s1 + $0x670] sm:$0xff]
      %v435 = vld [vmem:[%s1 + $0x678] sm:$0xff]
      %v436 = vld [vmem:[%s1 + $0x680] sm:$0xff]
      %v437 = vld [vmem:[%s1 + $0x688] sm:$0xff]
      %v438 = vld [vmem:[%s1 + $0x690] sm:$0xff]
      %v439 = vld [vmem:[%s1 + $0x698] sm:$0xff]
      %v440 = vld [vmem:[%s1 + $0x6a0] sm:$0xff]
      %v441 = vld [vmem:[%s1 + $0x6a8] sm:$0xff]
      %v442 = vld [vmem:[%s1 + $0x6b0] sm:$0xff]
      %v443 = vld [vmem:[%s1 + $0x6b8] sm:$0xff]
      %v444 = vld [vmem:[%s1 + $0x6c0] sm:$0xff]
      %v445 = vld [vmem:[%s1 + $0x6c8] sm:$0xff]
      %v446 = vld [vmem:[%s1 + $0x6d0] sm:$0xff]
      %v447 = vld [vmem:[%s1 + $0x6d8] sm:$0xff]
      %v448 = vld [vmem:[%s1 + $0x6e0] sm:$0xff]
      %v449 = vld [vmem:[%s1 + $0x6e8] sm:$0xff]
      %v450 = vld [vmem:[%s1 + $0x6f0] sm:$0xff]
      %v451 = vld [vmem:[%s1 + $0x6f8] sm:$0xff]
      %v452 = vld [vmem:[%s1 + $0x700] sm:$0xff]
      %v453 = vld [vmem:[%s1 + $0x708] sm:$0xff]
      %v454 = vld [vmem:[%s1 + $0x710] sm:$0xff]
      %v455 = vld [vmem:[%s1 + $0x718] sm:$0xff]
      %v456 = vld [vmem:[%s1 + $0x720] sm:$0xff]
      %v457 = vld [vmem:[%s1 + $0x728] sm:$0xff]
      %v458 = vld [vmem:[%s1 + $0x730] sm:$0xff]
      %v459 = vld [vmem:[%s1 + $0x738] sm:$0xff]
      %v460 = vld [vmem:[%s1 + $0x740] sm:$0xff]
      %v461 = vld [vmem:[%s1 + $0x748] sm:$0xff]
      %v462 = vld [vmem:[%s1 + $0x750] sm:$0xff]
      %v463 = vld [vmem:[%s1 + $0x758] sm:$0xff]
      %v464 = vld [vmem:[%s1 + $0x760] sm:$0xff]
      %v465 = vld [vmem:[%s1 + $0x768] sm:$0xff]
      %v466 = vld [vmem:[%s1 + $0x770] sm:$0xff]
      %v467 = vld [vmem:[%s1 + $0x778] sm:$0xff]
      %v468 = vld [vmem:[%s1 + $0x780] sm:$0xff]
      %v469 = vld [vmem:[%s1 + $0x788] sm:$0xff]
      %v470 = vld [vmem:[%s1 + $0x790] sm:$0xff]
      %v471 = vld [vmem:[%s1 + $0x798] sm:$0xff]
      %v472 = vld [vmem:[%s1 + $0x7a0] sm:$0xff]
      %v473 = vld [vmem:[%s1 + $0x7a8] sm:$0xff]
      %v474 = vld [vmem:[%s1 + $0x7b0] sm:$0xff]
      %v475 = vld [vmem:[%s1 + $0x7b8] sm:$0xff]
      %v476 = vld [vmem:[%s1 + $0x7c0] sm:$0xff]
      %v477 = vld [vmem:[%s1 + $0x7c8] sm:$0xff]
      %v478 = vld [vmem:[%s1 + $0x7d0] sm:$0xff]
      %v479 = vld [vmem:[%s1 + $0x7d8] sm:$0xff]
      %v480 = vld [vmem:[%s1 + $0x7e0] sm:$0xff]
      %v481 = vld [vmem:[%s1 + $0x7e8] sm:$0xff]
      %v482 = vld [vmem:[%s1 + $0x7f0] sm:$0xff]
      %v483 = vld [vmem:[%s1 + $0x7f8] sm:$0xff]
      %v484 = vld [vmem:[%s1 + $0x800] sm:$0xff]
      %v485 = vld [vmem:[%s1 + $0x808] sm:$0xff]
      %v486 = vld [vmem:[%s1 + $0x810] sm:$0xff]
      %v487 = vld [vmem:[%s1 + $0x818] sm:$0xff]
      %v488 = vld [vmem:[%s1 + $0x820] sm:$0xff]
      %v489 = vld [vmem:[%s1 + $0x828] sm:$0xff]
      %v490 = vld [vmem:[%s1 + $0x830] sm:$0xff]
      %v491 = vld [vmem:[%s1 + $0x838] sm:$0xff]
      %v492 = vld [vmem:[%s1 + $0x840] sm:$0xff]
      %v493 = vld [vmem:[%s1 + $0x848] sm:$0xff]
      %v494 = vld [vmem:[%s1 + $0x850] sm:$0xff]
      %v495 = vld [vmem:[%s1 + $0x858] sm:$0xff]
      %v496 = vld [vmem:[%s1 + $0x860] sm:$0xff]
      %v497 = vld [vmem:[%s1 + $0x868] sm:$0xff]
      %v498 = vld [vmem:[%s1 + $0x870] sm:$0xff]
      %v499 = vld [vmem:[%s1 + $0x878] sm:$0xff]
      %v500 = vld [vmem:[%s1 + $0x880] sm:$0xff]
      %v501 = vld [vmem:[%s1 + $0x888] sm:$0xff]
      %v502 = vld [vmem:[%s1 + $0x890] sm:$0xff]
      %v503 = vld [vmem:[%s1 + $0x898] sm:$0xff]
      %v504 = vld [vmem:[%s1 + $0x8a0] sm:$0xff]
      %v505 = vld [vmem:[%s1 + $0x8a8] sm:$0xff]
      %v506 = vld [vmem:[%s1 + $0x8b0] sm:$0xff]
      %v507 = vld [vmem:[%s1 + $0x8b8] sm:$0xff]
      %v508 = vld [vmem:[%s1 + $0x8c0] sm:$0xff]
      %v509 = vld [vmem:[%s1 + $0x8c8] sm:$0xff]
      %v510 = vld [vmem:[%s1 + $0x8d0] sm:$0xff]
      %v511 = vld [vmem:[%s1 + $0x8d8] sm:$0xff]
      %v512 = vld [vmem:[%s1 + $0x8e0] sm:$0xff]
      %v513 = vld [vmem:[%s1 + $0x8e8] sm:$0xff]
      %v514 = vld [vmem:[%s1 + $0x8f0] sm:$0xff]
      %v515 = vld [vmem:[%s1 + $0x8f8] sm:$0xff]
      %v516 = vld [vmem:[%s1 + $0x900] sm:$0xff]
      %v517 = vld [vmem:[%s1 + $0x908] sm:$0xff]
      %v518 = vld [vmem:[%s1 + $0x910] sm:$0xff]
      %v519 = vld [vmem:[%s1 + $0x918] sm:$0xff]
      %v520 = vld [vmem:[%s1 + $0x920] sm:$0xff]
      %v521 = vld [vmem:[%s1 + $0x928] sm:$0xff]
      %v522 = vld [vmem:[%s1 + $0x930] sm:$0xff]
      %v523 = vld [vmem:[%s1 + $0x938] sm:$0xff]
      %v524 = vld [vmem:[%s1 + $0x940] sm:$0xff]
      %v525 = vld [vmem:[%s1 + $0x948] sm:$0xff]
      %v526 = vld [vmem:[%s1 + $0x950] sm:$0xff]
      %v527 = vld [vmem:[%s1 + $0x958] sm:$0xff]
      %v528 = vld [vmem:[%s1 + $0x960] sm:$0xff]
      %v529 = vld [vmem:[%s1 + $0x968] sm:$0xff]
      %v530 = vld [vmem:[%s1 + $0x970] sm:$0xff]
      %v531 = vld [vmem:[%s1 + $0x978] sm:$0xff]
      %v532 = vld [vmem:[%s1 + $0x980] sm:$0xff]
      %v533 = vld [vmem:[%s1 + $0x988] sm:$0xff]
      %v534 = vld [vmem:[%s1 + $0x990] sm:$0xff]
      %v535 = vld [vmem:[%s1 + $0x998] sm:$0xff]
      %v536 = vld [vmem:[%s1 + $0x9a0] sm:$0xff]
      %v537 = vld [vmem:[%s1 + $0x9a8] sm:$0xff]
      %v538 = vld [vmem:[%s1 + $0x9b0] sm:$0xff]
      %v539 = vld [vmem:[%s1 + $0x9b8] sm:$0xff]
      %v540 = vld [vmem:[%s1 + $0x9c0] sm:$0xff]
      %v541 = vld [vmem:[%s1 + $0x9c8] sm:$0xff]
      %v542 = vld [vmem:[%s1 + $0x9d0] sm:$0xff]
      %v543 = vld [vmem:[%s1 + $0x9d8] sm:$0xff]
      %v544 = vld [vmem:[%s1 + $0x9e0] sm:$0xff]
      %v545 = vld [vmem:[%s1 + $0x9e8] sm:$0xff]
      %v546 = vld [vmem:[%s1 + $0x9f0] sm:$0xff]
      %v547 = vld [vmem:[%s1 + $0x9f8] sm:$0xff]
      %v548 = vld [vmem:[%s1 + $0xa00] sm:$0xff]
      %v549 = vld [vmem:[%s1 + $0xa08] sm:$0xff]
      %v550 = vld [vmem:[%s1 + $0xa10] sm:$0xff]
      %v551 = vld [vmem:[%s1 + $0xa18] sm:$0xff]
      %v552 = vld [vmem:[%s1 + $0xa20] sm:$0xff]
      %v553 = vld [vmem:[%s1 + $0xa28] sm:$0xff]
      %v554 = vld [vmem:[%s1 + $0xa30] sm:$0xff]
      %v555 = vld [vmem:[%s1 + $0xa38] sm:$0xff]
      %v556 = vld [vmem:[%s1 + $0xa40] sm:$0xff]
      %v557 = vld [vmem:[%s1 + $0xa48] sm:$0xff]
      %v558 = vld [vmem:[%s1 + $0xa50] sm:$0xff]
      %v559 = vld [vmem:[%s1 + $0xa58] sm:$0xff]
      %v560 = vld [vmem:[%s1 + $0xa60] sm:$0xff]
      %v561 = vld [vmem:[%s1 + $0xa68] sm:$0xff]
      %v562 = vld [vmem:[%s1 + $0xa70] sm:$0xff]
      %v563 = vld [vmem:[%s1 + $0xa78] sm:$0xff]
      %v564 = vld [vmem:[%s1 + $0xa80] sm:$0xff]
      %v565 = vld [vmem:[%s1 + $0xa88] sm:$0xff]
      %v566 = vld [vmem:[%s1 + $0xa90] sm:$0xff]
      %v567 = vld [vmem:[%s1 + $0xa98] sm:$0xff]
      %v568 = vld [vmem:[%s1 + $0xaa0] sm:$0xff]
      %v569 = vld [vmem:[%s1 + $0xaa8] sm:$0xff]
      %v570 = vld [vmem:[%s1 + $0xab0] sm:$0xff]
      %v571 = vld [vmem:[%s1 + $0xab8] sm:$0xff]
      %v572 = vld [vmem:[%s1 + $0xac0] sm:$0xff]
      %v573 = vld [vmem:[%s1 + $0xac8] sm:$0xff]
      %v574 = vld [vmem:[%s1 + $0xad0] sm:$0xff]
      %v575 = vld [vmem:[%s1 + $0xad8] sm:$0xff]
      %v576 = vld [vmem:[%s1 + $0xae0] sm:$0xff]
      %v577 = vld [vmem:[%s1 + $0xae8] sm:$0xff]
      %v578 = vld [vmem:[%s1 + $0xaf0] sm:$0xff]
      %v579 = vld [vmem:[%s1 + $0xaf8] sm:$0xff]
      %v580 = vld [vmem:[%s1 + $0xb00] sm:$0xff]
      %v581 = vld [vmem:[%s1 + $0xb08] sm:$0xff]
      %v582 = vld [vmem:[%s1 + $0xb10] sm:$0xff]
      %v583 = vld [vmem:[%s1 + $0xb18] sm:$0xff]
      %v584 = vld [vmem:[%s1 + $0xb20] sm:$0xff]
      %v585 = vld [vmem:[%s1 + $0xb28] sm:$0xff]
      %v586 = vld [vmem:[%s1 + $0xb30] sm:$0xff]
      %v587 = vld [vmem:[%s1 + $0xb38] sm:$0xff]
      %v588 = vld [vmem:[%s1 + $0xb40] sm:$0xff]
      %v589 = vld [vmem:[%s1 + $0xb48] sm:$0xff]
      %v590 = vld [vmem:[%s1 + $0xb50] sm:$0xff]
      %v591 = vld [vmem:[%s1 + $0xb58] sm:$0xff]
      %v592 = vld [vmem:[%s1 + $0xb60] sm:$0xff]
      %v593 = vld [vmem:[%s1 + $0xb68] sm:$0xff]
      %v594 = vld [vmem:[%s1 + $0xb70] sm:$0xff]
      %v595 = vld [vmem:[%s1 + $0xb78] sm:$0xff]
      %v596 = vld [vmem:[%s1 + $0xb80] sm:$0xff]
      %v597 = vld [vmem:[%s1 + $0xb88] sm:$0xff]
      %v598 = vld [vmem:[%s1 + $0xb90] sm:$0xff]
      %v599 = vld [vmem:[%s1 + $0xb98] sm:$0xff]
      %v600 = vld [vmem:[%s1 + $0xba0] sm:$0xff]
      %v601 = vld [vmem:[%s1 + $0xba8] sm:$0xff]
      %v602 = vld [vmem:[%s1 + $0xbb0] sm:$0xff]
      %v603 = vld [vmem:[%s1 + $0xbb8] sm:$0xff]
      %v604 = vld [vmem:[%s1 + $0xbc0] sm:$0xff]
      %v605 = vld [vmem:[%s1 + $0xbc8] sm:$0xff]
      %v606 = vld [vmem:[%s1 + $0xbd0] sm:$0xff]
      %v607 = vld [vmem:[%s1 + $0xbd8] sm:$0xff]
      %v608 = vld [vmem:[%s1 + $0xbe0] sm:$0xff]
      %v609 = vld [vmem:[%s1 + $0xbe8] sm:$0xff]
      %v610 = vld [vmem:[%s1 + $0xbf0] sm:$0xff]
      %v611 = vld [vmem:[%s1 + $0xbf8] sm:$0xff]
      %v612 = vld [vmem:[%s1 + $0xc00] sm:$0xff]
      %v613 = vld [vmem:[%s1 + $0xc08] sm:$0xff]
      %v614 = vld [vmem:[%s1 + $0xc10] sm:$0xff]
      %v615 = vld [vmem:[%s1 + $0xc18] sm:$0xff]
      %v616 = vld [vmem:[%s1 + $0xc20] sm:$0xff]
      %v617 = vld [vmem:[%s1 + $0xc28] sm:$0xff]
      %v618 = vld [vmem:[%s1 + $0xc30] sm:$0xff]
      %v619 = vld [vmem:[%s1 + $0xc38] sm:$0xff]
      %v620 = vld [vmem:[%s1 + $0xc40] sm:$0xff]
      %v621 = vld [vmem:[%s1 + $0xc48] sm:$0xff]
      %v622 = vld [vmem:[%s1 + $0xc50] sm:$0xff]
      %v623 = vld [vmem:[%s1 + $0xc58] sm:$0xff]
      %v624 = vld [vmem:[%s1 + $0xc60] sm:$0xff]
      %v625 = vld [vmem:[%s1 + $0xc68] sm:$0xff]
      %v626 = vld [vmem:[%s1 + $0xc70] sm:$0xff]
      %v627 = vld [vmem:[%s1 + $0xc78] sm:$0xff]
      %v628 = vld [vmem:[%s1 + $0xc80] sm:$0xff]
      %v629 = vld [vmem:[%s1 + $0xc88] sm:$0xff]
      %v630 = vld [vmem:[%s1 + $0xc90] sm:$0xff]
      %v631 = vld [vmem:[%s1 + $0xc98] sm:$0xff]
      %v632 = vld [vmem:[%s1 + $0xca0] sm:$0xff]
      %v633 = vld [vmem:[%s1 + $0xca8] sm:$0xff]
      %v634 = vld [vmem:[%s1 + $0xcb0] sm:$0xff]
      %v635 = vld [vmem:[%s1 + $0xcb8] sm:$0xff]
      %v636 = vld [vmem:[%s1 + $0xcc0] sm:$0xff]
      %v637 = vld [vmem:[%s1 + $0xcc8] sm:$0xff]
      %v638 = vld [vmem:[%s1 + $0xcd0] sm:$0xff]
      %v639 = vld [vmem:[%s1 + $0xcd8] sm:$0xff]
      %v640 = vld [vmem:[%s1 + $0xce0] sm:$0xff]
      %v641 = vld [vmem:[%s1 + $0xce8] sm:$0xff]
      %v642 = vld [vmem:[%s1 + $0xcf0] sm:$0xff]
      %v643 = vld [vmem:[%s1 + $0xcf8] sm:$0xff]
      %v644 = vld [vmem:[%s1 + $0xd00] sm:$0xff]
      %v645 = vld [vmem:[%s1 + $0xd08] sm:$0xff]
      %v646 = vld [vmem:[%s1 + $0xd10] sm:$0xff]
      %v647 = vld [vmem:[%s1 + $0xd18] sm:$0xff]
      %v648 = vld [vmem:[%s1 + $0xd20] sm:$0xff]
      %v649 = vld [vmem:[%s1 + $0xd28] sm:$0xff]
      %v650 = vld [vmem:[%s1 + $0xd30] sm:$0xff]
      %v651 = vld [vmem:[%s1 + $0xd38] sm:$0xff]
      %v652 = vld [vmem:[%s1 + $0xd40] sm:$0xff]
      %v653 = vld [vmem:[%s1 + $0xd48] sm:$0xff]
      %v654 = vld [vmem:[%s1 + $0xd50] sm:$0xff]
      %v655 = vld [vmem:[%s1 + $0xd58] sm:$0xff]
      %v656 = vld [vmem:[%s1 + $0xd60] sm:$0xff]
      %v657 = vld [vmem:[%s1 + $0xd68] sm:$0xff]
      %v658 = vld [vmem:[%s1 + $0xd70] sm:$0xff]
      %v659 = vld [vmem:[%s1 + $0xd78] sm:$0xff]
      %v660 = vld [vmem:[%s1 + $0xd80] sm:$0xff]
      %v661 = vld [vmem:[%s1 + $0xd88] sm:$0xff]
      %v662 = vld [vmem:[%s1 + $0xd90] sm:$0xff]
      %v663 = vld [vmem:[%s1 + $0xd98] sm:$0xff]
      %v664 = vld [vmem:[%s1 + $0xda0] sm:$0xff]
      %v665 = vld [vmem:[%s1 + $0xda8] sm:$0xff]
      %v666 = vld [vmem:[%s1 + $0xdb0] sm:$0xff]
      %v667 = vld [vmem:[%s1 + $0xdb8] sm:$0xff]
      %v668 = vld [vmem:[%s1 + $0xdc0] sm:$0xff]
      %v669 = vld [vmem:[%s1 + $0xdc8] sm:$0xff]
      %v670 = vld [vmem:[%s1 + $0xdd0] sm:$0xff]
      %v671 = vld [vmem:[%s1 + $0xdd8] sm:$0xff]
      %v672 = vld [vmem:[%s1 + $0xde0] sm:$0xff]
      %v673 = vld [vmem:[%s1 + $0xde8] sm:$0xff]
      %v674 = vld [vmem:[%s1 + $0xdf0] sm:$0xff]
      %v675 = vld [vmem:[%s1 + $0xdf8] sm:$0xff]
      %v676 = vld [vmem:[%s1 + $0xe00] sm:$0xff]
      %v677 = vld [vmem:[%s1 + $0xe08] sm:$0xff]
      %v678 = vld [vmem:[%s1 + $0xe10] sm:$0xff]
      %v679 = vld [vmem:[%s1 + $0xe18] sm:$0xff]
      %v680 = vld [vmem:[%s1 + $0xe20] sm:$0xff]
      %v681 = vld [vmem:[%s1 + $0xe28] sm:$0xff]
      %v682 = vld [vmem:[%s1 + $0xe30] sm:$0xff]
      %v683 = vld [vmem:[%s1 + $0xe38] sm:$0xff]
      %v684 = vld [vmem:[%s1 + $0xe40] sm:$0xff]
      %v685 = vld [vmem:[%s1 + $0xe48] sm:$0xff]
      %v686 = vld [vmem:[%s1 + $0xe50] sm:$0xff]
      %v687 = vld [vmem:[%s1 + $0xe58] sm:$0xff]
      %v688 = vld [vmem:[%s1 + $0xe60] sm:$0xff]
      %v689 = vld [vmem:[%s1 + $0xe68] sm:$0xff]
      %v690 = vld [vmem:[%s1 + $0xe70] sm:$0xff]
      %v691 = vld [vmem:[%s1 + $0xe78] sm:$0xff]
      %v692 = vld [vmem:[%s1 + $0xe80] sm:$0xff]
      %v693 = vld [vmem:[%s1 + $0xe88] sm:$0xff]
      %v694 = vld [vmem:[%s1 + $0xe90] sm:$0xff]
      %v695 = vld [vmem:[%s1 + $0xe98] sm:$0xff]
      %v696 = vld [vmem:[%s1 + $0xea0] sm:$0xff]
      %v697 = vld [vmem:[%s1 + $0xea8] sm:$0xff]
      %v698 = vld [vmem:[%s1 + $0xeb0] sm:$0xff]
      %v699 = vld [vmem:[%s1 + $0xeb8] sm:$0xff]
      %v700 = vld [vmem:[%s1 + $0xec0] sm:$0xff]
      %v701 = vld [vmem:[%s1 + $0xec8] sm:$0xff]
      %v702 = vld [vmem:[%s1 + $0xed0] sm:$0xff]
      %v703 = vld [vmem:[%s1 + $0xed8] sm:$0xff]
      %v704 = vld [vmem:[%s1 + $0xee0] sm:$0xff]
      %v705 = vld [vmem:[%s1 + $0xee8] sm:$0xff]
      %v706 = vld [vmem:[%s1 + $0xef0] sm:$0xff]
      %v707 = vld [vmem:[%s1 + $0xef8] sm:$0xff]
      %v708 = vld [vmem:[%s1 + $0xf00] sm:$0xff]
      %v709 = vld [vmem:[%s1 + $0xf08] sm:$0xff]
      %v710 = vld [vmem:[%s1 + $0xf10] sm:$0xff]
      %v711 = vld [vmem:[%s1 + $0xf18] sm:$0xff]
      %v712 = vld [vmem:[%s1 + $0xf20] sm:$0xff]
      %v713 = vld [vmem:[%s1 + $0xf28] sm:$0xff]
      %v714 = vld [vmem:[%s1 + $0xf30] sm:$0xff]
      %v715 = vld [vmem:[%s1 + $0xf38] sm:$0xff]
      %v716 = vld [vmem:[%s1 + $0xf40] sm:$0xff]
      %v717 = vld [vmem:[%s1 + $0xf48] sm:$0xff]
      %v718 = vld [vmem:[%s1 + $0xf50] sm:$0xff]
      %v719 = vld [vmem:[%s1 + $0xf58] sm:$0xff]
      %v720 = vld [vmem:[%s1 + $0xf60] sm:$0xff]
      %v721 = vld [vmem:[%s1 + $0xf68] sm:$0xff]
      %v722 = vld [vmem:[%s1 + $0xf70] sm:$0xff]
      %v723 = vld [vmem:[%s1 + $0xf78] sm:$0xff]
      %v724 = vld [vmem:[%s1 + $0xf80] sm:$0xff]
      %v725 = vld [vmem:[%s1 + $0xf88] sm:$0xff]
      %v726 = vld [vmem:[%s1 + $0xf90] sm:$0xff]
      %v727 = vld [vmem:[%s1 + $0xf98] sm:$0xff]
      %v728 = vld [vmem:[%s1 + $0xfa0] sm:$0xff]
      %v729 = vld [vmem:[%s1 + $0xfa8] sm:$0xff]
      %v730 = vld [vmem:[%s1 + $0xfb0] sm:$0xff]
      %v731 = vld [vmem:[%s1 + $0xfb8] sm:$0xff]
      %v732 = vld [vmem:[%s1 + $0xfc0] sm:$0xff]
      %v733 = vld [vmem:[%s1 + $0xfc8] sm:$0xff]
      %v734 = vld [vmem:[%s1 + $0xfd0] sm:$0xff]
      %v735 = vld [vmem:[%s1 + $0xfd8] sm:$0xff]
      %v736 = vld [vmem:[%s1 + $0xfe0] sm:$0xff]
      %v737 = vld [vmem:[%s1 + $0xfe8] sm:$0xff]
      %v738 = vld [vmem:[%s1 + $0xff0] sm:$0xff]
      %v739 = vld [vmem:[%s1 + $0xff8] sm:$0xff]
      %v740 = vld [vmem:[%s1 + $0x1000] sm:$0xff]
      %v741 = vld [vmem:[%s1 + $0x1008] sm:$0xff]
      %v742 = vld [vmem:[%s1 + $0x1010] sm:$0xff]
      %v743 = vld [vmem:[%s1 + $0x1018] sm:$0xff]
      %v744 = vld [vmem:[%s1 + $0x1020] sm:$0xff]
      %v745 = vld [vmem:[%s1 + $0x1028] sm:$0xff]
      %v746 = vld [vmem:[%s1 + $0x1030] sm:$0xff]
      %v747 = vld [vmem:[%s1 + $0x1038] sm:$0xff]
      %v748 = vld [vmem:[%s1 + $0x1040] sm:$0xff]
      %v749 = vld [vmem:[%s1 + $0x1048] sm:$0xff]
      %v750 = vld [vmem:[%s1 + $0x1050] sm:$0xff]
      %v751 = vld [vmem:[%s1 + $0x1058] sm:$0xff]
      %v752 = vld [vmem:[%s1 + $0x1060] sm:$0xff]
      %v753 = vld [vmem:[%s1 + $0x1068] sm:$0xff]
      %v754 = vld [vmem:[%s1 + $0x1070] sm:$0xff]
      %v755 = vld [vmem:[%s1 + $0x1078] sm:$0xff]
      %v756 = vld [vmem:[%s1 + $0x1080] sm:$0xff]
      %v757 = vld [vmem:[%s1 + $0x1088] sm:$0xff]
      %v758 = vld [vmem:[%s1 + $0x1090] sm:$0xff]
      %v759 = vld [vmem:[%s1 + $0x1098] sm:$0xff]
      %v760 = vld [vmem:[%s1 + $0x10a0] sm:$0xff]
      %v761 = vld [vmem:[%s1 + $0x10a8] sm:$0xff]
      %v762 = vld [vmem:[%s1 + $0x10b0] sm:$0xff]
      %v763 = vld [vmem:[%s1 + $0x10b8] sm:$0xff]
      %v764 = vld [vmem:[%s1 + $0x10c0] sm:$0xff]
      %v765 = vld [vmem:[%s1 + $0x10c8] sm:$0xff]
      %v766 = vld [vmem:[%s1 + $0x10d0] sm:$0xff]
      %v767 = vld [vmem:[%s1 + $0x10d8] sm:$0xff]
      %v768 = vld [vmem:[%s1 + $0x10e0] sm:$0xff]
      %v769 = vld [vmem:[%s1 + $0x10e8] sm:$0xff]
      %v770 = vld [vmem:[%s1 + $0x10f0] sm:$0xff]
      %v771 = vld [vmem:[%s1 + $0x10f8] sm:$0xff]
      %v772 = vld [vmem:[%s1 + $0x1100] sm:$0xff]
      %v773 = vld [vmem:[%s1 + $0x1108] sm:$0xff]
      %v774 = vld [vmem:[%s1 + $0x1110] sm:$0xff]
      %v775 = vld [vmem:[%s1 + $0x1118] sm:$0xff]
      %v776 = vld [vmem:[%s1 + $0x1120] sm:$0xff]
      %v777 = vld [vmem:[%s1 + $0x1128] sm:$0xff]
      %v778 = vld [vmem:[%s1 + $0x1130] sm:$0xff]
      %v779 = vld [vmem:[%s1 + $0x1138] sm:$0xff]
      %v780 = vld [vmem:[%s1 + $0x1140] sm:$0xff]
      %v781 = vld [vmem:[%s1 + $0x1148] sm:$0xff]
      %v782 = vld [vmem:[%s1 + $0x1150] sm:$0xff]
      %v783 = vld [vmem:[%s1 + $0x1158] sm:$0xff]
      %v784 = vld [vmem:[%s1 + $0x1160] sm:$0xff]
      %v785 = vld [vmem:[%s1 + $0x1168] sm:$0xff]
      %v786 = vld [vmem:[%s1 + $0x1170] sm:$0xff]
      %v787 = vld [vmem:[%s1 + $0x1178] sm:$0xff]
      %v788 = vld [vmem:[%s1 + $0x1180] sm:$0xff]
      %v789 = vld [vmem:[%s1 + $0x1188] sm:$0xff]
      %v790 = vld [vmem:[%s1 + $0x1190] sm:$0xff]
      %v791 = vld [vmem:[%s1 + $0x1198] sm:$0xff]
      %v792 = vld [vmem:[%s1 + $0x11a0] sm:$0xff]
      %v793 = vld [vmem:[%s1 + $0x11a8] sm:$0xff]
      %v794 = vld [vmem:[%s1 + $0x11b0] sm:$0xff]
      %v795 = vld [vmem:[%s1 + $0x11b8] sm:$0xff]
      %v796 = vld [vmem:[%s1 + $0x11c0] sm:$0xff]
      %v797 = vld [vmem:[%s1 + $0x11c8] sm:$0xff]
      %v798 = vld [vmem:[%s1 + $0x11d0] sm:$0xff]
      %v799 = vld [vmem:[%s1 + $0x11d8] sm:$0xff]
      %v800 = vld [vmem:[%s1 + $0x11e0] sm:$0xff]
      %v801 = vld [vmem:[%s1 + $0x11e8] sm:$0xff]
      %v802 = vld [vmem:[%s1 + $0x11f0] sm:$0xff]
      %v803 = vld [vmem:[%s1 + $0x11f8] sm:$0xff]
      %v840 = vunpack.c.l.b16 %v192
      %v841 = vunpack.c.h.b16 %v192
      %v842 = vunpack.c.l.b16 %v193
      %v843 = vunpack.c.h.b16 %v193
      %v844 = vunpack.c.l.b16 %v194
      %v845 = vunpack.c.h.b16 %v194
      %v846 = vunpack.c.l.b16 %v195
      %v847 = vunpack.c.h.b16 %v195
      %v848 = vunpack.c.l.b16 %v196
      %v849 = vunpack.c.h.b16 %v196
      %v850 = vunpack.c.l.b16 %v197
      %v851 = vunpack.c.h.b16 %v197
      %v852 = vunpack.c.l.b16 %v198
      %v853 = vunpack.c.h.b16 %v198
      %v854 = vunpack.c.l.b16 %v199
      %v855 = vunpack.c.h.b16 %v199
      %v856 = vunpack.c.l.b16 %v200
      %v857 = vunpack.c.h.b16 %v200
      %v858 = vunpack.c.l.b16 %v201
      %v859 = vunpack.c.h.b16 %v201
      %v860 = vunpack.c.l.b16 %v202
      %v861 = vunpack.c.h.b16 %v202
      %v862 = vunpack.c.l.b16 %v203
      %v863 = vunpack.c.h.b16 %v203
      %v864 = vunpack.c.l.b16 %v204
      %v865 = vunpack.c.h.b16 %v204
      %v866 = vunpack.c.l.b16 %v205
      %v867 = vunpack.c.h.b16 %v205
      %v868 = vunpack.c.l.b16 %v206
      %v869 = vunpack.c.h.b16 %v206
      %v870 = vunpack.c.l.b16 %v207
      %v871 = vunpack.c.h.b16 %v207
      %v872 = vunpack.c.l.b16 %v208
      %v873 = vunpack.c.h.b16 %v208
      %v874 = vunpack.c.l.b16 %v209
      %v875 = vunpack.c.h.b16 %v209
      %v876 = vunpack.c.l.b16 %v210
      %v877 = vunpack.c.h.b16 %v210
      %v878 = vunpack.c.l.b16 %v211
      %v879 = vunpack.c.h.b16 %v211
      %v880 = vunpack.c.l.b16 %v212
      %v881 = vunpack.c.h.b16 %v212
      %v882 = vunpack.c.l.b16 %v213
      %v883 = vunpack.c.h.b16 %v213
      %v884 = vunpack.c.l.b16 %v214
      %v885 = vunpack.c.h.b16 %v214
      %v886 = vunpack.c.l.b16 %v215
      %v887 = vunpack.c.h.b16 %v215
      %v888 = vunpack.c.l.b16 %v216
      %v889 = vunpack.c.h.b16 %v216
      %v890 = vunpack.c.l.b16 %v217
      %v891 = vunpack.c.h.b16 %v217
      %v892 = vunpack.c.l.b16 %v218
      %v893 = vunpack.c.h.b16 %v218
      %v894 = vunpack.c.l.b16 %v219
      %v895 = vunpack.c.h.b16 %v219
      %v896 = vunpack.c.l.b16 %v220
      %v897 = vunpack.c.h.b16 %v220
      %v898 = vunpack.c.l.b16 %v221
      %v899 = vunpack.c.h.b16 %v221
      %v900 = vunpack.c.l.b16 %v222
      %v901 = vunpack.c.h.b16 %v222
      %v902 = vunpack.c.l.b16 %v223
      %v903 = vunpack.c.h.b16 %v223
      %v904 = vunpack.c.l.b16 %v224
      %v905 = vunpack.c.h.b16 %v224
      %v906 = vunpack.c.l.b16 %v225
      %v907 = vunpack.c.h.b16 %v225
      %v908 = vunpack.c.l.b16 %v226
      %v909 = vunpack.c.h.b16 %v226
      %v910 = vunpack.c.l.b16 %v227
      %v911 = vunpack.c.h.b16 %v227
      %v912 = vpack.c.b16 %v858, %v840
      %v913 = vpack.c.b16 %v859, %v841
      %v914 = vpack.c.b16 %v860, %v842
      %v915 = vpack.c.b16 %v861, %v843
      %v916 = vpack.c.b16 %v862, %v844
      %v917 = vpack.c.b16 %v863, %v845
      %v918 = vpack.c.b16 %v864, %v846
      %v919 = vpack.c.b16 %v865, %v847
      %v920 = vpack.c.b16 %v866, %v848
      %v921 = vpack.c.b16 %v867, %v849
      %v922 = vpack.c.b16 %v868, %v850
      %v923 = vpack.c.b16 %v869, %v851
      %v924 = vpack.c.b16 %v870, %v852
      %v925 = vpack.c.b16 %v871, %v853
      %v926 = vpack.c.b16 %v872, %v854
      %v927 = vpack.c.b16 %v873, %v855
      %v928 = vpack.c.b16 %v874, %v856
      %v929 = vpack.c.b16 %v875, %v857
      %v930 = vpack.c.b16 %v894, %v876
      %v931 = vpack.c.b16 %v895, %v877
      %v932 = vpack.c.b16 %v896, %v878
      %v933 = vpack.c.b16 %v897, %v879
      %v934 = vpack.c.b16 %v898, %v880
      %v935 = vpack.c.b16 %v899, %v881
      %v936 = vpack.c.b16 %v900, %v882
      %v937 = vpack.c.b16 %v901, %v883
      %v938 = vpack.c.b16 %v902, %v884
      %v939 = vpack.c.b16 %v903, %v885
      %v940 = vpack.c.b16 %v904, %v886
      %v941 = vpack.c.b16 %v905, %v887
      %v942 = vpack.c.b16 %v906, %v888
      %v943 = vpack.c.b16 %v907, %v889
      %v944 = vpack.c.b16 %v908, %v890
      %v945 = vpack.c.b16 %v909, %v891
      %v946 = vpack.c.b16 %v910, %v892
      %v947 = vpack.c.b16 %v911, %v893
      %v1560 = vunpack.c.l.b16 %v228
      %v1561 = vunpack.c.h.b16 %v228
      %v1562 = vunpack.c.l.b16 %v229
      %v1563 = vunpack.c.h.b16 %v229
      %v1564 = vunpack.c.l.b16 %v230
      %v1565 = vunpack.c.h.b16 %v230
      %v1566 = vunpack.c.l.b16 %v231
      %v1567 = vunpack.c.h.b16 %v231
      %v1568 = vunpack.c.l.b16 %v232
      %v1569 = vunpack.c.h.b16 %v232
      %v1570 = vunpack.c.l.b16 %v233
      %v1571 = vunpack.c.h.b16 %v233
      %v1572 = vunpack.c.l.b16 %v234
      %v1573 = vunpack.c.h.b16 %v234
      %v1574 = vunpack.c.l.b16 %v235
      %v1575 = vunpack.c.h.b16 %v235
      %v1576 = vunpack.c.l.b16 %v236
      %v1577 = vunpack.c.h.b16 %v236
      %v1578 = vunpack.c.l.b16 %v237
      %v1579 = vunpack.c.h.b16 %v237
      %v1580 = vunpack.c.l.b16 %v238
      %v1581 = vunpack.c.h.b16 %v238
      %v1582 = vunpack.c.l.b16 %v239
      %v1583 = vunpack.c.h.b16 %v239
      %v1584 = vunpack.c.l.b16 %v240
      %v1585 = vunpack.c.h.b16 %v240
      %v1586 = vunpack.c.l.b16 %v241
      %v1587 = vunpack.c.h.b16 %v241
      %v1588 = vunpack.c.l.b16 %v242
      %v1589 = vunpack.c.h.b16 %v242
      %v1590 = vunpack.c.l.b16 %v243
      %v1591 = vunpack.c.h.b16 %v243
      %v1592 = vunpack.c.l.b16 %v244
      %v1593 = vunpack.c.h.b16 %v244
      %v1594 = vunpack.c.l.b16 %v245
      %v1595 = vunpack.c.h.b16 %v245
      %v1596 = vunpack.c.l.b16 %v246
      %v1597 = vunpack.c.h.b16 %v246
      %v1598 = vunpack.c.l.b16 %v247
      %v1599 = vunpack.c.h.b16 %v247
      %v1600 = vunpack.c.l.b16 %v248
      %v1601 = vunpack.c.h.b16 %v248
      %v1602 = vunpack.c.l.b16 %v249
      %v1603 = vunpack.c.h.b16 %v249
      %v1604 = vunpack.c.l.b16 %v250
      %v1605 = vunpack.c.h.b16 %v250
      %v1606 = vunpack.c.l.b16 %v251
      %v1607 = vunpack.c.h.b16 %v251
      %v1608 = vunpack.c.l.b16 %v252
      %v1609 = vunpack.c.h.b16 %v252
      %v1610 = vunpack.c.l.b16 %v253
      %v1611 = vunpack.c.h.b16 %v253
      %v1612 = vunpack.c.l.b16 %v254
      %v1613 = vunpack.c.h.b16 %v254
      %v1614 = vunpack.c.l.b16 %v255
      %v1615 = vunpack.c.h.b16 %v255
      %v1616 = vunpack.c.l.b16 %v256
      %v1617 = vunpack.c.h.b16 %v256
      %v1618 = vunpack.c.l.b16 %v257
      %v1619 = vunpack.c.h.b16 %v257
      %v1620 = vunpack.c.l.b16 %v258
      %v1621 = vunpack.c.h.b16 %v258
      %v1622 = vunpack.c.l.b16 %v259
      %v1623 = vunpack.c.h.b16 %v259
      %v1624 = vunpack.c.l.b16 %v260
      %v1625 = vunpack.c.h.b16 %v260
      %v1626 = vunpack.c.l.b16 %v261
      %v1627 = vunpack.c.h.b16 %v261
      %v1628 = vunpack.c.l.b16 %v262
      %v1629 = vunpack.c.h.b16 %v262
      %v1630 = vunpack.c.l.b16 %v263
      %v1631 = vunpack.c.h.b16 %v263
      %v1632 = vunpack.c.l.b16 %v264
      %v1633 = vunpack.c.h.b16 %v264
      %v1634 = vunpack.c.l.b16 %v265
      %v1635 = vunpack.c.h.b16 %v265
      %v1636 = vunpack.c.l.b16 %v266
      %v1637 = vunpack.c.h.b16 %v266
      %v1638 = vunpack.c.l.b16 %v267
      %v1639 = vunpack.c.h.b16 %v267
      %v1640 = vunpack.c.l.b16 %v268
      %v1641 = vunpack.c.h.b16 %v268
      %v1642 = vunpack.c.l.b16 %v269
      %v1643 = vunpack.c.h.b16 %v269
      %v1644 = vunpack.c.l.b16 %v270
      %v1645 = vunpack.c.h.b16 %v270
      %v1646 = vunpack.c.l.b16 %v271
      %v1647 = vunpack.c.h.b16 %v271
      %v1648 = vunpack.c.l.b16 %v272
      %v1649 = vunpack.c.h.b16 %v272
      %v1650 = vunpack.c.l.b16 %v273
      %v1651 = vunpack.c.h.b16 %v273
      %v1652 = vunpack.c.l.b16 %v274
      %v1653 = vunpack.c.h.b16 %v274
      %v1654 = vunpack.c.l.b16 %v275
      %v1655 = vunpack.c.h.b16 %v275
      %v1656 = vunpack.c.l.b16 %v276
      %v1657 = vunpack.c.h.b16 %v276
      %v1658 = vunpack.c.l.b16 %v277
      %v1659 = vunpack.c.h.b16 %v277
      %v1660 = vunpack.c.l.b16 %v278
      %v1661 = vunpack.c.h.b16 %v278
      %v1662 = vunpack.c.l.b16 %v279
      %v1663 = vunpack.c.h.b16 %v279
      %v1664 = vunpack.c.l.b16 %v280
      %v1665 = vunpack.c.h.b16 %v280
      %v1666 = vunpack.c.l.b16 %v281
      %v1667 = vunpack.c.h.b16 %v281
      %v1668 = vunpack.c.l.b16 %v282
      %v1669 = vunpack.c.h.b16 %v282
      %v1670 = vunpack.c.l.b16 %v283
      %v1671 = vunpack.c.h.b16 %v283
      %v1672 = vunpack.c.l.b16 %v284
      %v1673 = vunpack.c.h.b16 %v284
      %v1674 = vunpack.c.l.b16 %v285
      %v1675 = vunpack.c.h.b16 %v285
      %v1676 = vunpack.c.l.b16 %v286
      %v1677 = vunpack.c.h.b16 %v286
      %v1678 = vunpack.c.l.b16 %v287
      %v1679 = vunpack.c.h.b16 %v287
      %v1680 = vunpack.c.l.b16 %v288
      %v1681 = vunpack.c.h.b16 %v288
      %v1682 = vunpack.c.l.b16 %v289
      %v1683 = vunpack.c.h.b16 %v289
      %v1684 = vunpack.c.l.b16 %v290
      %v1685 = vunpack.c.h.b16 %v290
      %v1686 = vunpack.c.l.b16 %v291
      %v1687 = vunpack.c.h.b16 %v291
      %v1688 = vunpack.c.l.b16 %v292
      %v1689 = vunpack.c.h.b16 %v292
      %v1690 = vunpack.c.l.b16 %v293
      %v1691 = vunpack.c.h.b16 %v293
      %v1692 = vunpack.c.l.b16 %v294
      %v1693 = vunpack.c.h.b16 %v294
      %v1694 = vunpack.c.l.b16 %v295
      %v1695 = vunpack.c.h.b16 %v295
      %v1696 = vunpack.c.l.b16 %v296
      %v1697 = vunpack.c.h.b16 %v296
      %v1698 = vunpack.c.l.b16 %v297
      %v1699 = vunpack.c.h.b16 %v297
      %v1700 = vunpack.c.l.b16 %v298
      %v1701 = vunpack.c.h.b16 %v298
      %v1702 = vunpack.c.l.b16 %v299
      %v1703 = vunpack.c.h.b16 %v299
      %v1704 = vunpack.c.l.b16 %v300
      %v1705 = vunpack.c.h.b16 %v300
      %v1706 = vunpack.c.l.b16 %v301
      %v1707 = vunpack.c.h.b16 %v301
      %v1708 = vunpack.c.l.b16 %v302
      %v1709 = vunpack.c.h.b16 %v302
      %v1710 = vunpack.c.l.b16 %v303
      %v1711 = vunpack.c.h.b16 %v303
      %v1712 = vunpack.c.l.b16 %v304
      %v1713 = vunpack.c.h.b16 %v304
      %v1714 = vunpack.c.l.b16 %v305
      %v1715 = vunpack.c.h.b16 %v305
      %v1716 = vunpack.c.l.b16 %v306
      %v1717 = vunpack.c.h.b16 %v306
      %v1718 = vunpack.c.l.b16 %v307
      %v1719 = vunpack.c.h.b16 %v307
      %v1720 = vunpack.c.l.b16 %v308
      %v1721 = vunpack.c.h.b16 %v308
      %v1722 = vunpack.c.l.b16 %v309
      %v1723 = vunpack.c.h.b16 %v309
      %v1724 = vunpack.c.l.b16 %v310
      %v1725 = vunpack.c.h.b16 %v310
      %v1726 = vunpack.c.l.b16 %v311
      %v1727 = vunpack.c.h.b16 %v311
      %v1728 = vunpack.c.l.b16 %v312
      %v1729 = vunpack.c.h.b16 %v312
      %v1730 = vunpack.c.l.b16 %v313
      %v1731 = vunpack.c.h.b16 %v313
      %v1732 = vunpack.c.l.b16 %v314
      %v1733 = vunpack.c.h.b16 %v314
      %v1734 = vunpack.c.l.b16 %v315
      %v1735 = vunpack.c.h.b16 %v315
      %v1736 = vunpack.c.l.b16 %v316
      %v1737 = vunpack.c.h.b16 %v316
      %v1738 = vunpack.c.l.b16 %v317
      %v1739 = vunpack.c.h.b16 %v317
      %v1740 = vunpack.c.l.b16 %v318
      %v1741 = vunpack.c.h.b16 %v318
      %v1742 = vunpack.c.l.b16 %v319
      %v1743 = vunpack.c.h.b16 %v319
      %v1744 = vunpack.c.l.b16 %v320
      %v1745 = vunpack.c.h.b16 %v320
      %v1746 = vunpack.c.l.b16 %v321
      %v1747 = vunpack.c.h.b16 %v321
      %v1748 = vunpack.c.l.b16 %v322
      %v1749 = vunpack.c.h.b16 %v322
      %v1750 = vunpack.c.l.b16 %v323
      %v1751 = vunpack.c.h.b16 %v323
      %v1752 = vunpack.c.l.b16 %v324
      %v1753 = vunpack.c.h.b16 %v324
      %v1754 = vunpack.c.l.b16 %v325
      %v1755 = vunpack.c.h.b16 %v325
      %v1756 = vunpack.c.l.b16 %v326
      %v1757 = vunpack.c.h.b16 %v326
      %v1758 = vunpack.c.l.b16 %v327
      %v1759 = vunpack.c.h.b16 %v327
      %v1760 = vunpack.c.l.b16 %v328
      %v1761 = vunpack.c.h.b16 %v328
      %v1762 = vunpack.c.l.b16 %v329
      %v1763 = vunpack.c.h.b16 %v329
      %v1764 = vunpack.c.l.b16 %v330
      %v1765 = vunpack.c.h.b16 %v330
      %v1766 = vunpack.c.l.b16 %v331
      %v1767 = vunpack.c.h.b16 %v331
      %v1768 = vunpack.c.l.b16 %v332
      %v1769 = vunpack.c.h.b16 %v332
      %v1770 = vunpack.c.l.b16 %v333
      %v1771 = vunpack.c.h.b16 %v333
      %v1772 = vunpack.c.l.b16 %v334
      %v1773 = vunpack.c.h.b16 %v334
      %v1774 = vunpack.c.l.b16 %v335
      %v1775 = vunpack.c.h.b16 %v335
      %v1776 = vunpack.c.l.b16 %v336
      %v1777 = vunpack.c.h.b16 %v336
      %v1778 = vunpack.c.l.b16 %v337
      %v1779 = vunpack.c.h.b16 %v337
      %v1780 = vunpack.c.l.b16 %v338
      %v1781 = vunpack.c.h.b16 %v338
      %v1782 = vunpack.c.l.b16 %v339
      %v1783 = vunpack.c.h.b16 %v339
      %v1784 = vunpack.c.l.b16 %v340
      %v1785 = vunpack.c.h.b16 %v340
      %v1786 = vunpack.c.l.b16 %v341
      %v1787 = vunpack.c.h.b16 %v341
      %v1788 = vunpack.c.l.b16 %v342
      %v1789 = vunpack.c.h.b16 %v342
      %v1790 = vunpack.c.l.b16 %v343
      %v1791 = vunpack.c.h.b16 %v343
      %v1792 = vunpack.c.l.b16 %v344
      %v1793 = vunpack.c.h.b16 %v344
      %v1794 = vunpack.c.l.b16 %v345
      %v1795 = vunpack.c.h.b16 %v345
      %v1796 = vunpack.c.l.b16 %v346
      %v1797 = vunpack.c.h.b16 %v346
      %v1798 = vunpack.c.l.b16 %v347
      %v1799 = vunpack.c.h.b16 %v347
      %v1800 = vunpack.c.l.b16 %v348
      %v1801 = vunpack.c.h.b16 %v348
      %v1802 = vunpack.c.l.b16 %v349
      %v1803 = vunpack.c.h.b16 %v349
      %v1804 = vunpack.c.l.b16 %v350
      %v1805 = vunpack.c.h.b16 %v350
      %v1806 = vunpack.c.l.b16 %v351
      %v1807 = vunpack.c.h.b16 %v351
      %v1808 = vunpack.c.l.b16 %v352
      %v1809 = vunpack.c.h.b16 %v352
      %v1810 = vunpack.c.l.b16 %v353
      %v1811 = vunpack.c.h.b16 %v353
      %v1812 = vunpack.c.l.b16 %v354
      %v1813 = vunpack.c.h.b16 %v354
      %v1814 = vunpack.c.l.b16 %v355
      %v1815 = vunpack.c.h.b16 %v355
      %v1816 = vunpack.c.l.b16 %v356
      %v1817 = vunpack.c.h.b16 %v356
      %v1818 = vunpack.c.l.b16 %v357
      %v1819 = vunpack.c.h.b16 %v357
      %v1820 = vunpack.c.l.b16 %v358
      %v1821 = vunpack.c.h.b16 %v358
      %v1822 = vunpack.c.l.b16 %v359
      %v1823 = vunpack.c.h.b16 %v359
      %v1824 = vunpack.c.l.b16 %v360
      %v1825 = vunpack.c.h.b16 %v360
      %v1826 = vunpack.c.l.b16 %v361
      %v1827 = vunpack.c.h.b16 %v361
      %v1828 = vunpack.c.l.b16 %v362
      %v1829 = vunpack.c.h.b16 %v362
      %v1830 = vunpack.c.l.b16 %v363
      %v1831 = vunpack.c.h.b16 %v363
      %v1832 = vunpack.c.l.b16 %v364
      %v1833 = vunpack.c.h.b16 %v364
      %v1834 = vunpack.c.l.b16 %v365
      %v1835 = vunpack.c.h.b16 %v365
      %v1836 = vunpack.c.l.b16 %v366
      %v1837 = vunpack.c.h.b16 %v366
      %v1838 = vunpack.c.l.b16 %v367
      %v1839 = vunpack.c.h.b16 %v367
      %v1840 = vunpack.c.l.b16 %v368
      %v1841 = vunpack.c.h.b16 %v368
      %v1842 = vunpack.c.l.b16 %v369
      %v1843 = vunpack.c.h.b16 %v369
      %v1844 = vunpack.c.l.b16 %v370
      %v1845 = vunpack.c.h.b16 %v370
      %v1846 = vunpack.c.l.b16 %v371
      %v1847 = vunpack.c.h.b16 %v371
      %v1848 = vunpack.c.l.b16 %v372
      %v1849 = vunpack.c.h.b16 %v372
      %v1850 = vunpack.c.l.b16 %v373
      %v1851 = vunpack.c.h.b16 %v373
      %v1852 = vunpack.c.l.b16 %v374
      %v1853 = vunpack.c.h.b16 %v374
      %v1854 = vunpack.c.l.b16 %v375
      %v1855 = vunpack.c.h.b16 %v375
      %v1856 = vunpack.c.l.b16 %v376
      %v1857 = vunpack.c.h.b16 %v376
      %v1858 = vunpack.c.l.b16 %v377
      %v1859 = vunpack.c.h.b16 %v377
      %v1860 = vunpack.c.l.b16 %v378
      %v1861 = vunpack.c.h.b16 %v378
      %v1862 = vunpack.c.l.b16 %v379
      %v1863 = vunpack.c.h.b16 %v379
      %v1864 = vunpack.c.l.b16 %v380
      %v1865 = vunpack.c.h.b16 %v380
      %v1866 = vunpack.c.l.b16 %v381
      %v1867 = vunpack.c.h.b16 %v381
      %v1868 = vunpack.c.l.b16 %v382
      %v1869 = vunpack.c.h.b16 %v382
      %v1870 = vunpack.c.l.b16 %v383
      %v1871 = vunpack.c.h.b16 %v383
      %v1872 = vunpack.c.l.b16 %v384
      %v1873 = vunpack.c.h.b16 %v384
      %v1874 = vunpack.c.l.b16 %v385
      %v1875 = vunpack.c.h.b16 %v385
      %v1876 = vunpack.c.l.b16 %v386
      %v1877 = vunpack.c.h.b16 %v386
      %v1878 = vunpack.c.l.b16 %v387
      %v1879 = vunpack.c.h.b16 %v387
      %v1880 = vunpack.c.l.b16 %v388
      %v1881 = vunpack.c.h.b16 %v388
      %v1882 = vunpack.c.l.b16 %v389
      %v1883 = vunpack.c.h.b16 %v389
      %v1884 = vunpack.c.l.b16 %v390
      %v1885 = vunpack.c.h.b16 %v390
      %v1886 = vunpack.c.l.b16 %v391
      %v1887 = vunpack.c.h.b16 %v391
      %v1888 = vunpack.c.l.b16 %v392
      %v1889 = vunpack.c.h.b16 %v392
      %v1890 = vunpack.c.l.b16 %v393
      %v1891 = vunpack.c.h.b16 %v393
      %v1892 = vunpack.c.l.b16 %v394
      %v1893 = vunpack.c.h.b16 %v394
      %v1894 = vunpack.c.l.b16 %v395
      %v1895 = vunpack.c.h.b16 %v395
      %v1896 = vunpack.c.l.b16 %v396
      %v1897 = vunpack.c.h.b16 %v396
      %v1898 = vunpack.c.l.b16 %v397
      %v1899 = vunpack.c.h.b16 %v397
      %v1900 = vunpack.c.l.b16 %v398
      %v1901 = vunpack.c.h.b16 %v398
      %v1902 = vunpack.c.l.b16 %v399
      %v1903 = vunpack.c.h.b16 %v399
      %v1904 = vunpack.c.l.b16 %v400
      %v1905 = vunpack.c.h.b16 %v400
      %v1906 = vunpack.c.l.b16 %v401
      %v1907 = vunpack.c.h.b16 %v401
      %v1908 = vunpack.c.l.b16 %v402
      %v1909 = vunpack.c.h.b16 %v402
      %v1910 = vunpack.c.l.b16 %v403
      %v1911 = vunpack.c.h.b16 %v403
      %v1912 = vunpack.c.l.b16 %v404
      %v1913 = vunpack.c.h.b16 %v404
      %v1914 = vunpack.c.l.b16 %v405
      %v1915 = vunpack.c.h.b16 %v405
      %v1916 = vunpack.c.l.b16 %v406
      %v1917 = vunpack.c.h.b16 %v406
      %v1918 = vunpack.c.l.b16 %v407
      %v1919 = vunpack.c.h.b16 %v407
      %v1920 = vunpack.c.l.b16 %v408
      %v1921 = vunpack.c.h.b16 %v408
      %v1922 = vunpack.c.l.b16 %v409
      %v1923 = vunpack.c.h.b16 %v409
      %v1924 = vunpack.c.l.b16 %v410
      %v1925 = vunpack.c.h.b16 %v410
      %v1926 = vunpack.c.l.b16 %v411
      %v1927 = vunpack.c.h.b16 %v411
      %v1928 = vunpack.c.l.b16 %v412
      %v1929 = vunpack.c.h.b16 %v412
      %v1930 = vunpack.c.l.b16 %v413
      %v1931 = vunpack.c.h.b16 %v413
      %v1932 = vunpack.c.l.b16 %v414
      %v1933 = vunpack.c.h.b16 %v414
      %v1934 = vunpack.c.l.b16 %v415
      %v1935 = vunpack.c.h.b16 %v415
      %v1936 = vunpack.c.l.b16 %v416
      %v1937 = vunpack.c.h.b16 %v416
      %v1938 = vunpack.c.l.b16 %v417
      %v1939 = vunpack.c.h.b16 %v417
      %v1940 = vunpack.c.l.b16 %v418
      %v1941 = vunpack.c.h.b16 %v418
      %v1942 = vunpack.c.l.b16 %v419
      %v1943 = vunpack.c.h.b16 %v419
      %v1944 = vunpack.c.l.b16 %v420
      %v1945 = vunpack.c.h.b16 %v420
      %v1946 = vunpack.c.l.b16 %v421
      %v1947 = vunpack.c.h.b16 %v421
      %v1948 = vunpack.c.l.b16 %v422
      %v1949 = vunpack.c.h.b16 %v422
      %v1950 = vunpack.c.l.b16 %v423
      %v1951 = vunpack.c.h.b16 %v423
      %v1952 = vunpack.c.l.b16 %v424
      %v1953 = vunpack.c.h.b16 %v424
      %v1954 = vunpack.c.l.b16 %v425
      %v1955 = vunpack.c.h.b16 %v425
      %v1956 = vunpack.c.l.b16 %v426
      %v1957 = vunpack.c.h.b16 %v426
      %v1958 = vunpack.c.l.b16 %v427
      %v1959 = vunpack.c.h.b16 %v427
      %v1960 = vunpack.c.l.b16 %v428
      %v1961 = vunpack.c.h.b16 %v428
      %v1962 = vunpack.c.l.b16 %v429
      %v1963 = vunpack.c.h.b16 %v429
      %v1964 = vunpack.c.l.b16 %v430
      %v1965 = vunpack.c.h.b16 %v430
      %v1966 = vunpack.c.l.b16 %v431
      %v1967 = vunpack.c.h.b16 %v431
      %v1968 = vunpack.c.l.b16 %v432
      %v1969 = vunpack.c.h.b16 %v432
      %v1970 = vunpack.c.l.b16 %v433
      %v1971 = vunpack.c.h.b16 %v433
      %v1972 = vunpack.c.l.b16 %v434
      %v1973 = vunpack.c.h.b16 %v434
      %v1974 = vunpack.c.l.b16 %v435
      %v1975 = vunpack.c.h.b16 %v435
      %v1976 = vunpack.c.l.b16 %v436
      %v1977 = vunpack.c.h.b16 %v436
      %v1978 = vunpack.c.l.b16 %v437
      %v1979 = vunpack.c.h.b16 %v437
      %v1980 = vunpack.c.l.b16 %v438
      %v1981 = vunpack.c.h.b16 %v438
      %v1982 = vunpack.c.l.b16 %v439
      %v1983 = vunpack.c.h.b16 %v439
      %v1984 = vunpack.c.l.b16 %v440
      %v1985 = vunpack.c.h.b16 %v440
      %v1986 = vunpack.c.l.b16 %v441
      %v1987 = vunpack.c.h.b16 %v441
      %v1988 = vunpack.c.l.b16 %v442
      %v1989 = vunpack.c.h.b16 %v442
      %v1990 = vunpack.c.l.b16 %v443
      %v1991 = vunpack.c.h.b16 %v443
      %v1992 = vunpack.c.l.b16 %v444
      %v1993 = vunpack.c.h.b16 %v444
      %v1994 = vunpack.c.l.b16 %v445
      %v1995 = vunpack.c.h.b16 %v445
      %v1996 = vunpack.c.l.b16 %v446
      %v1997 = vunpack.c.h.b16 %v446
      %v1998 = vunpack.c.l.b16 %v447
      %v1999 = vunpack.c.h.b16 %v447
      %v2000 = vunpack.c.l.b16 %v448
      %v2001 = vunpack.c.h.b16 %v448
      %v2002 = vunpack.c.l.b16 %v449
      %v2003 = vunpack.c.h.b16 %v449
      %v2004 = vunpack.c.l.b16 %v450
      %v2005 = vunpack.c.h.b16 %v450
      %v2006 = vunpack.c.l.b16 %v451
      %v2007 = vunpack.c.h.b16 %v451
      %v2008 = vunpack.c.l.b16 %v452
      %v2009 = vunpack.c.h.b16 %v452
      %v2010 = vunpack.c.l.b16 %v453
      %v2011 = vunpack.c.h.b16 %v453
      %v2012 = vunpack.c.l.b16 %v454
      %v2013 = vunpack.c.h.b16 %v454
      %v2014 = vunpack.c.l.b16 %v455
      %v2015 = vunpack.c.h.b16 %v455
      %v2016 = vunpack.c.l.b16 %v456
      %v2017 = vunpack.c.h.b16 %v456
      %v2018 = vunpack.c.l.b16 %v457
      %v2019 = vunpack.c.h.b16 %v457
      %v2020 = vunpack.c.l.b16 %v458
      %v2021 = vunpack.c.h.b16 %v458
      %v2022 = vunpack.c.l.b16 %v459
      %v2023 = vunpack.c.h.b16 %v459
      %v2024 = vunpack.c.l.b16 %v460
      %v2025 = vunpack.c.h.b16 %v460
      %v2026 = vunpack.c.l.b16 %v461
      %v2027 = vunpack.c.h.b16 %v461
      %v2028 = vunpack.c.l.b16 %v462
      %v2029 = vunpack.c.h.b16 %v462
      %v2030 = vunpack.c.l.b16 %v463
      %v2031 = vunpack.c.h.b16 %v463
      %v2032 = vunpack.c.l.b16 %v464
      %v2033 = vunpack.c.h.b16 %v464
      %v2034 = vunpack.c.l.b16 %v465
      %v2035 = vunpack.c.h.b16 %v465
      %v2036 = vunpack.c.l.b16 %v466
      %v2037 = vunpack.c.h.b16 %v466
      %v2038 = vunpack.c.l.b16 %v467
      %v2039 = vunpack.c.h.b16 %v467
      %v2040 = vunpack.c.l.b16 %v468
      %v2041 = vunpack.c.h.b16 %v468
      %v2042 = vunpack.c.l.b16 %v469
      %v2043 = vunpack.c.h.b16 %v469
      %v2044 = vunpack.c.l.b16 %v470
      %v2045 = vunpack.c.h.b16 %v470
      %v2046 = vunpack.c.l.b16 %v471
      %v2047 = vunpack.c.h.b16 %v471
      %v2048 = vunpack.c.l.b16 %v472
      %v2049 = vunpack.c.h.b16 %v472
      %v2050 = vunpack.c.l.b16 %v473
      %v2051 = vunpack.c.h.b16 %v473
      %v2052 = vunpack.c.l.b16 %v474
      %v2053 = vunpack.c.h.b16 %v474
      %v2054 = vunpack.c.l.b16 %v475
      %v2055 = vunpack.c.h.b16 %v475
      %v2056 = vunpack.c.l.b16 %v476
      %v2057 = vunpack.c.h.b16 %v476
      %v2058 = vunpack.c.l.b16 %v477
      %v2059 = vunpack.c.h.b16 %v477
      %v2060 = vunpack.c.l.b16 %v478
      %v2061 = vunpack.c.h.b16 %v478
      %v2062 = vunpack.c.l.b16 %v479
      %v2063 = vunpack.c.h.b16 %v479
      %v2064 = vunpack.c.l.b16 %v480
      %v2065 = vunpack.c.h.b16 %v480
      %v2066 = vunpack.c.l.b16 %v481
      %v2067 = vunpack.c.h.b16 %v481
      %v2068 = vunpack.c.l.b16 %v482
      %v2069 = vunpack.c.h.b16 %v482
      %v2070 = vunpack.c.l.b16 %v483
      %v2071 = vunpack.c.h.b16 %v483
      %v2072 = vunpack.c.l.b16 %v484
      %v2073 = vunpack.c.h.b16 %v484
      %v2074 = vunpack.c.l.b16 %v485
      %v2075 = vunpack.c.h.b16 %v485
      %v2076 = vunpack.c.l.b16 %v486
      %v2077 = vunpack.c.h.b16 %v486
      %v2078 = vunpack.c.l.b16 %v487
      %v2079 = vunpack.c.h.b16 %v487
      %v2080 = vunpack.c.l.b16 %v488
      %v2081 = vunpack.c.h.b16 %v488
      %v2082 = vunpack.c.l.b16 %v489
      %v2083 = vunpack.c.h.b16 %v489
      %v2084 = vunpack.c.l.b16 %v490
      %v2085 = vunpack.c.h.b16 %v490
      %v2086 = vunpack.c.l.b16 %v491
      %v2087 = vunpack.c.h.b16 %v491
      %v2088 = vunpack.c.l.b16 %v492
      %v2089 = vunpack.c.h.b16 %v492
      %v2090 = vunpack.c.l.b16 %v493
      %v2091 = vunpack.c.h.b16 %v493
      %v2092 = vunpack.c.l.b16 %v494
      %v2093 = vunpack.c.h.b16 %v494
      %v2094 = vunpack.c.l.b16 %v495
      %v2095 = vunpack.c.h.b16 %v495
      %v2096 = vunpack.c.l.b16 %v496
      %v2097 = vunpack.c.h.b16 %v496
      %v2098 = vunpack.c.l.b16 %v497
      %v2099 = vunpack.c.h.b16 %v497
      %v2100 = vunpack.c.l.b16 %v498
      %v2101 = vunpack.c.h.b16 %v498
      %v2102 = vunpack.c.l.b16 %v499
      %v2103 = vunpack.c.h.b16 %v499
      %v2104 = vunpack.c.l.b16 %v500
      %v2105 = vunpack.c.h.b16 %v500
      %v2106 = vunpack.c.l.b16 %v501
      %v2107 = vunpack.c.h.b16 %v501
      %v2108 = vunpack.c.l.b16 %v502
      %v2109 = vunpack.c.h.b16 %v502
      %v2110 = vunpack.c.l.b16 %v503
      %v2111 = vunpack.c.h.b16 %v503
      %v2112 = vunpack.c.l.b16 %v504
      %v2113 = vunpack.c.h.b16 %v504
      %v2114 = vunpack.c.l.b16 %v505
      %v2115 = vunpack.c.h.b16 %v505
      %v2116 = vunpack.c.l.b16 %v506
      %v2117 = vunpack.c.h.b16 %v506
      %v2118 = vunpack.c.l.b16 %v507
      %v2119 = vunpack.c.h.b16 %v507
      %v2120 = vunpack.c.l.b16 %v508
      %v2121 = vunpack.c.h.b16 %v508
      %v2122 = vunpack.c.l.b16 %v509
      %v2123 = vunpack.c.h.b16 %v509
      %v2124 = vunpack.c.l.b16 %v510
      %v2125 = vunpack.c.h.b16 %v510
      %v2126 = vunpack.c.l.b16 %v511
      %v2127 = vunpack.c.h.b16 %v511
      %v2128 = vunpack.c.l.b16 %v512
      %v2129 = vunpack.c.h.b16 %v512
      %v2130 = vunpack.c.l.b16 %v513
      %v2131 = vunpack.c.h.b16 %v513
      %v2132 = vunpack.c.l.b16 %v514
      %v2133 = vunpack.c.h.b16 %v514
      %v2134 = vunpack.c.l.b16 %v515
      %v2135 = vunpack.c.h.b16 %v515
      %v2136 = vunpack.c.l.b16 %v516
      %v2137 = vunpack.c.h.b16 %v516
      %v2138 = vunpack.c.l.b16 %v517
      %v2139 = vunpack.c.h.b16 %v517
      %v2140 = vunpack.c.l.b16 %v518
      %v2141 = vunpack.c.h.b16 %v518
      %v2142 = vunpack.c.l.b16 %v519
      %v2143 = vunpack.c.h.b16 %v519
      %v2144 = vunpack.c.l.b16 %v520
      %v2145 = vunpack.c.h.b16 %v520
      %v2146 = vunpack.c.l.b16 %v521
      %v2147 = vunpack.c.h.b16 %v521
      %v2148 = vunpack.c.l.b16 %v522
      %v2149 = vunpack.c.h.b16 %v522
      %v2150 = vunpack.c.l.b16 %v523
      %v2151 = vunpack.c.h.b16 %v523
      %v2152 = vunpack.c.l.b16 %v524
      %v2153 = vunpack.c.h.b16 %v524
      %v2154 = vunpack.c.l.b16 %v525
      %v2155 = vunpack.c.h.b16 %v525
      %v2156 = vunpack.c.l.b16 %v526
      %v2157 = vunpack.c.h.b16 %v526
      %v2158 = vunpack.c.l.b16 %v527
      %v2159 = vunpack.c.h.b16 %v527
      %v2160 = vunpack.c.l.b16 %v528
      %v2161 = vunpack.c.h.b16 %v528
      %v2162 = vunpack.c.l.b16 %v529
      %v2163 = vunpack.c.h.b16 %v529
      %v2164 = vunpack.c.l.b16 %v530
      %v2165 = vunpack.c.h.b16 %v530
      %v2166 = vunpack.c.l.b16 %v531
      %v2167 = vunpack.c.h.b16 %v531
      %v2168 = vunpack.c.l.b16 %v532
      %v2169 = vunpack.c.h.b16 %v532
      %v2170 = vunpack.c.l.b16 %v533
      %v2171 = vunpack.c.h.b16 %v533
      %v2172 = vunpack.c.l.b16 %v534
      %v2173 = vunpack.c.h.b16 %v534
      %v2174 = vunpack.c.l.b16 %v535
      %v2175 = vunpack.c.h.b16 %v535
      %v2176 = vunpack.c.l.b16 %v536
      %v2177 = vunpack.c.h.b16 %v536
      %v2178 = vunpack.c.l.b16 %v537
      %v2179 = vunpack.c.h.b16 %v537
      %v2180 = vunpack.c.l.b16 %v538
      %v2181 = vunpack.c.h.b16 %v538
      %v2182 = vunpack.c.l.b16 %v539
      %v2183 = vunpack.c.h.b16 %v539
      %v2184 = vunpack.c.l.b16 %v540
      %v2185 = vunpack.c.h.b16 %v540
      %v2186 = vunpack.c.l.b16 %v541
      %v2187 = vunpack.c.h.b16 %v541
      %v2188 = vunpack.c.l.b16 %v542
      %v2189 = vunpack.c.h.b16 %v542
      %v2190 = vunpack.c.l.b16 %v543
      %v2191 = vunpack.c.h.b16 %v543
      %v2192 = vunpack.c.l.b16 %v544
      %v2193 = vunpack.c.h.b16 %v544
      %v2194 = vunpack.c.l.b16 %v545
      %v2195 = vunpack.c.h.b16 %v545
      %v2196 = vunpack.c.l.b16 %v546
      %v2197 = vunpack.c.h.b16 %v546
      %v2198 = vunpack.c.l.b16 %v547
      %v2199 = vunpack.c.h.b16 %v547
      %v2200 = vunpack.c.l.b16 %v548
      %v2201 = vunpack.c.h.b16 %v548
      %v2202 = vunpack.c.l.b16 %v549
      %v2203 = vunpack.c.h.b16 %v549
      %v2204 = vunpack.c.l.b16 %v550
      %v2205 = vunpack.c.h.b16 %v550
      %v2206 = vunpack.c.l.b16 %v551
      %v2207 = vunpack.c.h.b16 %v551
      %v2208 = vunpack.c.l.b16 %v552
      %v2209 = vunpack.c.h.b16 %v552
      %v2210 = vunpack.c.l.b16 %v553
      %v2211 = vunpack.c.h.b16 %v553
      %v2212 = vunpack.c.l.b16 %v554
      %v2213 = vunpack.c.h.b16 %v554
      %v2214 = vunpack.c.l.b16 %v555
      %v2215 = vunpack.c.h.b16 %v555
      %v2216 = vunpack.c.l.b16 %v556
      %v2217 = vunpack.c.h.b16 %v556
      %v2218 = vunpack.c.l.b16 %v557
      %v2219 = vunpack.c.h.b16 %v557
      %v2220 = vunpack.c.l.b16 %v558
      %v2221 = vunpack.c.h.b16 %v558
      %v2222 = vunpack.c.l.b16 %v559
      %v2223 = vunpack.c.h.b16 %v559
      %v2224 = vunpack.c.l.b16 %v560
      %v2225 = vunpack.c.h.b16 %v560
      %v2226 = vunpack.c.l.b16 %v561
      %v2227 = vunpack.c.h.b16 %v561
      %v2228 = vunpack.c.l.b16 %v562
      %v2229 = vunpack.c.h.b16 %v562
      %v2230 = vunpack.c.l.b16 %v563
      %v2231 = vunpack.c.h.b16 %v563
      %v2232 = vunpack.c.l.b16 %v564
      %v2233 = vunpack.c.h.b16 %v564
      %v2234 = vunpack.c.l.b16 %v565
      %v2235 = vunpack.c.h.b16 %v565
      %v2236 = vunpack.c.l.b16 %v566
      %v2237 = vunpack.c.h.b16 %v566
      %v2238 = vunpack.c.l.b16 %v567
      %v2239 = vunpack.c.h.b16 %v567
      %v2240 = vunpack.c.l.b16 %v568
      %v2241 = vunpack.c.h.b16 %v568
      %v2242 = vunpack.c.l.b16 %v569
      %v2243 = vunpack.c.h.b16 %v569
      %v2244 = vunpack.c.l.b16 %v570
      %v2245 = vunpack.c.h.b16 %v570
      %v2246 = vunpack.c.l.b16 %v571
      %v2247 = vunpack.c.h.b16 %v571
      %v2248 = vunpack.c.l.b16 %v572
      %v2249 = vunpack.c.h.b16 %v572
      %v2250 = vunpack.c.l.b16 %v573
      %v2251 = vunpack.c.h.b16 %v573
      %v2252 = vunpack.c.l.b16 %v574
      %v2253 = vunpack.c.h.b16 %v574
      %v2254 = vunpack.c.l.b16 %v575
      %v2255 = vunpack.c.h.b16 %v575
      %v2256 = vunpack.c.l.b16 %v576
      %v2257 = vunpack.c.h.b16 %v576
      %v2258 = vunpack.c.l.b16 %v577
      %v2259 = vunpack.c.h.b16 %v577
      %v2260 = vunpack.c.l.b16 %v578
      %v2261 = vunpack.c.h.b16 %v578
      %v2262 = vunpack.c.l.b16 %v579
      %v2263 = vunpack.c.h.b16 %v579
      %v2264 = vunpack.c.l.b16 %v580
      %v2265 = vunpack.c.h.b16 %v580
      %v2266 = vunpack.c.l.b16 %v581
      %v2267 = vunpack.c.h.b16 %v581
      %v2268 = vunpack.c.l.b16 %v582
      %v2269 = vunpack.c.h.b16 %v582
      %v2270 = vunpack.c.l.b16 %v583
      %v2271 = vunpack.c.h.b16 %v583
      %v2272 = vunpack.c.l.b16 %v584
      %v2273 = vunpack.c.h.b16 %v584
      %v2274 = vunpack.c.l.b16 %v585
      %v2275 = vunpack.c.h.b16 %v585
      %v2276 = vunpack.c.l.b16 %v586
      %v2277 = vunpack.c.h.b16 %v586
      %v2278 = vunpack.c.l.b16 %v587
      %v2279 = vunpack.c.h.b16 %v587
      %v2280 = vunpack.c.l.b16 %v588
      %v2281 = vunpack.c.h.b16 %v588
      %v2282 = vunpack.c.l.b16 %v589
      %v2283 = vunpack.c.h.b16 %v589
      %v2284 = vunpack.c.l.b16 %v590
      %v2285 = vunpack.c.h.b16 %v590
      %v2286 = vunpack.c.l.b16 %v591
      %v2287 = vunpack.c.h.b16 %v591
      %v2288 = vunpack.c.l.b16 %v592
      %v2289 = vunpack.c.h.b16 %v592
      %v2290 = vunpack.c.l.b16 %v593
      %v2291 = vunpack.c.h.b16 %v593
      %v2292 = vunpack.c.l.b16 %v594
      %v2293 = vunpack.c.h.b16 %v594
      %v2294 = vunpack.c.l.b16 %v595
      %v2295 = vunpack.c.h.b16 %v595
      %v2296 = vunpack.c.l.b16 %v596
      %v2297 = vunpack.c.h.b16 %v596
      %v2298 = vunpack.c.l.b16 %v597
      %v2299 = vunpack.c.h.b16 %v597
      %v2300 = vunpack.c.l.b16 %v598
      %v2301 = vunpack.c.h.b16 %v598
      %v2302 = vunpack.c.l.b16 %v599
      %v2303 = vunpack.c.h.b16 %v599
      %v2304 = vunpack.c.l.b16 %v600
      %v2305 = vunpack.c.h.b16 %v600
      %v2306 = vunpack.c.l.b16 %v601
      %v2307 = vunpack.c.h.b16 %v601
      %v2308 = vunpack.c.l.b16 %v602
      %v2309 = vunpack.c.h.b16 %v602
      %v2310 = vunpack.c.l.b16 %v603
      %v2311 = vunpack.c.h.b16 %v603
      %v2312 = vunpack.c.l.b16 %v604
      %v2313 = vunpack.c.h.b16 %v604
      %v2314 = vunpack.c.l.b16 %v605
      %v2315 = vunpack.c.h.b16 %v605
      %v2316 = vunpack.c.l.b16 %v606
      %v2317 = vunpack.c.h.b16 %v606
      %v2318 = vunpack.c.l.b16 %v607
      %v2319 = vunpack.c.h.b16 %v607
      %v2320 = vunpack.c.l.b16 %v608
      %v2321 = vunpack.c.h.b16 %v608
      %v2322 = vunpack.c.l.b16 %v609
      %v2323 = vunpack.c.h.b16 %v609
      %v2324 = vunpack.c.l.b16 %v610
      %v2325 = vunpack.c.h.b16 %v610
      %v2326 = vunpack.c.l.b16 %v611
      %v2327 = vunpack.c.h.b16 %v611
      %v2328 = vunpack.c.l.b16 %v612
      %v2329 = vunpack.c.h.b16 %v612
      %v2330 = vunpack.c.l.b16 %v613
      %v2331 = vunpack.c.h.b16 %v613
      %v2332 = vunpack.c.l.b16 %v614
      %v2333 = vunpack.c.h.b16 %v614
      %v2334 = vunpack.c.l.b16 %v615
      %v2335 = vunpack.c.h.b16 %v615
      %v2336 = vunpack.c.l.b16 %v616
      %v2337 = vunpack.c.h.b16 %v616
      %v2338 = vunpack.c.l.b16 %v617
      %v2339 = vunpack.c.h.b16 %v617
      %v2340 = vunpack.c.l.b16 %v618
      %v2341 = vunpack.c.h.b16 %v618
      %v2342 = vunpack.c.l.b16 %v619
      %v2343 = vunpack.c.h.b16 %v619
      %v2344 = vunpack.c.l.b16 %v620
      %v2345 = vunpack.c.h.b16 %v620
      %v2346 = vunpack.c.l.b16 %v621
      %v2347 = vunpack.c.h.b16 %v621
      %v2348 = vunpack.c.l.b16 %v622
      %v2349 = vunpack.c.h.b16 %v622
      %v2350 = vunpack.c.l.b16 %v623
      %v2351 = vunpack.c.h.b16 %v623
      %v2352 = vunpack.c.l.b16 %v624
      %v2353 = vunpack.c.h.b16 %v624
      %v2354 = vunpack.c.l.b16 %v625
      %v2355 = vunpack.c.h.b16 %v625
      %v2356 = vunpack.c.l.b16 %v626
      %v2357 = vunpack.c.h.b16 %v626
      %v2358 = vunpack.c.l.b16 %v627
      %v2359 = vunpack.c.h.b16 %v627
      %v2360 = vunpack.c.l.b16 %v628
      %v2361 = vunpack.c.h.b16 %v628
      %v2362 = vunpack.c.l.b16 %v629
      %v2363 = vunpack.c.h.b16 %v629
      %v2364 = vunpack.c.l.b16 %v630
      %v2365 = vunpack.c.h.b16 %v630
      %v2366 = vunpack.c.l.b16 %v631
      %v2367 = vunpack.c.h.b16 %v631
      %v2368 = vunpack.c.l.b16 %v632
      %v2369 = vunpack.c.h.b16 %v632
      %v2370 = vunpack.c.l.b16 %v633
      %v2371 = vunpack.c.h.b16 %v633
      %v2372 = vunpack.c.l.b16 %v634
      %v2373 = vunpack.c.h.b16 %v634
      %v2374 = vunpack.c.l.b16 %v635
      %v2375 = vunpack.c.h.b16 %v635
      %v2376 = vunpack.c.l.b16 %v636
      %v2377 = vunpack.c.h.b16 %v636
      %v2378 = vunpack.c.l.b16 %v637
      %v2379 = vunpack.c.h.b16 %v637
      %v2380 = vunpack.c.l.b16 %v638
      %v2381 = vunpack.c.h.b16 %v638
      %v2382 = vunpack.c.l.b16 %v639
      %v2383 = vunpack.c.h.b16 %v639
      %v2384 = vunpack.c.l.b16 %v640
      %v2385 = vunpack.c.h.b16 %v640
      %v2386 = vunpack.c.l.b16 %v641
      %v2387 = vunpack.c.h.b16 %v641
      %v2388 = vunpack.c.l.b16 %v642
      %v2389 = vunpack.c.h.b16 %v642
      %v2390 = vunpack.c.l.b16 %v643
      %v2391 = vunpack.c.h.b16 %v643
      %v2392 = vunpack.c.l.b16 %v644
      %v2393 = vunpack.c.h.b16 %v644
      %v2394 = vunpack.c.l.b16 %v645
      %v2395 = vunpack.c.h.b16 %v645
      %v2396 = vunpack.c.l.b16 %v646
      %v2397 = vunpack.c.h.b16 %v646
      %v2398 = vunpack.c.l.b16 %v647
      %v2399 = vunpack.c.h.b16 %v647
      %v2400 = vunpack.c.l.b16 %v648
      %v2401 = vunpack.c.h.b16 %v648
      %v2402 = vunpack.c.l.b16 %v649
      %v2403 = vunpack.c.h.b16 %v649
      %v2404 = vunpack.c.l.b16 %v650
      %v2405 = vunpack.c.h.b16 %v650
      %v2406 = vunpack.c.l.b16 %v651
      %v2407 = vunpack.c.h.b16 %v651
      %v2408 = vunpack.c.l.b16 %v652
      %v2409 = vunpack.c.h.b16 %v652
      %v2410 = vunpack.c.l.b16 %v653
      %v2411 = vunpack.c.h.b16 %v653
      %v2412 = vunpack.c.l.b16 %v654
      %v2413 = vunpack.c.h.b16 %v654
      %v2414 = vunpack.c.l.b16 %v655
      %v2415 = vunpack.c.h.b16 %v655
      %v2416 = vunpack.c.l.b16 %v656
      %v2417 = vunpack.c.h.b16 %v656
      %v2418 = vunpack.c.l.b16 %v657
      %v2419 = vunpack.c.h.b16 %v657
      %v2420 = vunpack.c.l.b16 %v658
      %v2421 = vunpack.c.h.b16 %v658
      %v2422 = vunpack.c.l.b16 %v659
      %v2423 = vunpack.c.h.b16 %v659
      %v2424 = vunpack.c.l.b16 %v660
      %v2425 = vunpack.c.h.b16 %v660
      %v2426 = vunpack.c.l.b16 %v661
      %v2427 = vunpack.c.h.b16 %v661
      %v2428 = vunpack.c.l.b16 %v662
      %v2429 = vunpack.c.h.b16 %v662
      %v2430 = vunpack.c.l.b16 %v663
      %v2431 = vunpack.c.h.b16 %v663
      %v2432 = vunpack.c.l.b16 %v664
      %v2433 = vunpack.c.h.b16 %v664
      %v2434 = vunpack.c.l.b16 %v665
      %v2435 = vunpack.c.h.b16 %v665
      %v2436 = vunpack.c.l.b16 %v666
      %v2437 = vunpack.c.h.b16 %v666
      %v2438 = vunpack.c.l.b16 %v667
      %v2439 = vunpack.c.h.b16 %v667
      %v2440 = vunpack.c.l.b16 %v668
      %v2441 = vunpack.c.h.b16 %v668
      %v2442 = vunpack.c.l.b16 %v669
      %v2443 = vunpack.c.h.b16 %v669
      %v2444 = vunpack.c.l.b16 %v670
      %v2445 = vunpack.c.h.b16 %v670
      %v2446 = vunpack.c.l.b16 %v671
      %v2447 = vunpack.c.h.b16 %v671
      %v2448 = vunpack.c.l.b16 %v672
      %v2449 = vunpack.c.h.b16 %v672
      %v2450 = vunpack.c.l.b16 %v673
      %v2451 = vunpack.c.h.b16 %v673
      %v2452 = vunpack.c.l.b16 %v674
      %v2453 = vunpack.c.h.b16 %v674
      %v2454 = vunpack.c.l.b16 %v675
      %v2455 = vunpack.c.h.b16 %v675
      %v2456 = vunpack.c.l.b16 %v676
      %v2457 = vunpack.c.h.b16 %v676
      %v2458 = vunpack.c.l.b16 %v677
      %v2459 = vunpack.c.h.b16 %v677
      %v2460 = vunpack.c.l.b16 %v678
      %v2461 = vunpack.c.h.b16 %v678
      %v2462 = vunpack.c.l.b16 %v679
      %v2463 = vunpack.c.h.b16 %v679
      %v2464 = vunpack.c.l.b16 %v680
      %v2465 = vunpack.c.h.b16 %v680
      %v2466 = vunpack.c.l.b16 %v681
      %v2467 = vunpack.c.h.b16 %v681
      %v2468 = vunpack.c.l.b16 %v682
      %v2469 = vunpack.c.h.b16 %v682
      %v2470 = vunpack.c.l.b16 %v683
      %v2471 = vunpack.c.h.b16 %v683
      %v2472 = vunpack.c.l.b16 %v684
      %v2473 = vunpack.c.h.b16 %v684
      %v2474 = vunpack.c.l.b16 %v685
      %v2475 = vunpack.c.h.b16 %v685
      %v2476 = vunpack.c.l.b16 %v686
      %v2477 = vunpack.c.h.b16 %v686
      %v2478 = vunpack.c.l.b16 %v687
      %v2479 = vunpack.c.h.b16 %v687
      %v2480 = vunpack.c.l.b16 %v688
      %v2481 = vunpack.c.h.b16 %v688
      %v2482 = vunpack.c.l.b16 %v689
      %v2483 = vunpack.c.h.b16 %v689
      %v2484 = vunpack.c.l.b16 %v690
      %v2485 = vunpack.c.h.b16 %v690
      %v2486 = vunpack.c.l.b16 %v691
      %v2487 = vunpack.c.h.b16 %v691
      %v2488 = vunpack.c.l.b16 %v692
      %v2489 = vunpack.c.h.b16 %v692
      %v2490 = vunpack.c.l.b16 %v693
      %v2491 = vunpack.c.h.b16 %v693
      %v2492 = vunpack.c.l.b16 %v694
      %v2493 = vunpack.c.h.b16 %v694
      %v2494 = vunpack.c.l.b16 %v695
      %v2495 = vunpack.c.h.b16 %v695
      %v2496 = vunpack.c.l.b16 %v696
      %v2497 = vunpack.c.h.b16 %v696
      %v2498 = vunpack.c.l.b16 %v697
      %v2499 = vunpack.c.h.b16 %v697
      %v2500 = vunpack.c.l.b16 %v698
      %v2501 = vunpack.c.h.b16 %v698
      %v2502 = vunpack.c.l.b16 %v699
      %v2503 = vunpack.c.h.b16 %v699
      %v2504 = vunpack.c.l.b16 %v700
      %v2505 = vunpack.c.h.b16 %v700
      %v2506 = vunpack.c.l.b16 %v701
      %v2507 = vunpack.c.h.b16 %v701
      %v2508 = vunpack.c.l.b16 %v702
      %v2509 = vunpack.c.h.b16 %v702
      %v2510 = vunpack.c.l.b16 %v703
      %v2511 = vunpack.c.h.b16 %v703
      %v2512 = vunpack.c.l.b16 %v704
      %v2513 = vunpack.c.h.b16 %v704
      %v2514 = vunpack.c.l.b16 %v705
      %v2515 = vunpack.c.h.b16 %v705
      %v2516 = vunpack.c.l.b16 %v706
      %v2517 = vunpack.c.h.b16 %v706
      %v2518 = vunpack.c.l.b16 %v707
      %v2519 = vunpack.c.h.b16 %v707
      %v2520 = vunpack.c.l.b16 %v708
      %v2521 = vunpack.c.h.b16 %v708
      %v2522 = vunpack.c.l.b16 %v709
      %v2523 = vunpack.c.h.b16 %v709
      %v2524 = vunpack.c.l.b16 %v710
      %v2525 = vunpack.c.h.b16 %v710
      %v2526 = vunpack.c.l.b16 %v711
      %v2527 = vunpack.c.h.b16 %v711
      %v2528 = vunpack.c.l.b16 %v712
      %v2529 = vunpack.c.h.b16 %v712
      %v2530 = vunpack.c.l.b16 %v713
      %v2531 = vunpack.c.h.b16 %v713
      %v2532 = vunpack.c.l.b16 %v714
      %v2533 = vunpack.c.h.b16 %v714
      %v2534 = vunpack.c.l.b16 %v715
      %v2535 = vunpack.c.h.b16 %v715
      %v2536 = vunpack.c.l.b16 %v716
      %v2537 = vunpack.c.h.b16 %v716
      %v2538 = vunpack.c.l.b16 %v717
      %v2539 = vunpack.c.h.b16 %v717
      %v2540 = vunpack.c.l.b16 %v718
      %v2541 = vunpack.c.h.b16 %v718
      %v2542 = vunpack.c.l.b16 %v719
      %v2543 = vunpack.c.h.b16 %v719
      %v2544 = vunpack.c.l.b16 %v720
      %v2545 = vunpack.c.h.b16 %v720
      %v2546 = vunpack.c.l.b16 %v721
      %v2547 = vunpack.c.h.b16 %v721
      %v2548 = vunpack.c.l.b16 %v722
      %v2549 = vunpack.c.h.b16 %v722
      %v2550 = vunpack.c.l.b16 %v723
      %v2551 = vunpack.c.h.b16 %v723
      %v2552 = vunpack.c.l.b16 %v724
      %v2553 = vunpack.c.h.b16 %v724
      %v2554 = vunpack.c.l.b16 %v725
      %v2555 = vunpack.c.h.b16 %v725
      %v2556 = vunpack.c.l.b16 %v726
      %v2557 = vunpack.c.h.b16 %v726
      %v2558 = vunpack.c.l.b16 %v727
      %v2559 = vunpack.c.h.b16 %v727
      %v2560 = vunpack.c.l.b16 %v728
      %v2561 = vunpack.c.h.b16 %v728
      %v2562 = vunpack.c.l.b16 %v729
      %v2563 = vunpack.c.h.b16 %v729
      %v2564 = vunpack.c.l.b16 %v730
      %v2565 = vunpack.c.h.b16 %v730
      %v2566 = vunpack.c.l.b16 %v731
      %v2567 = vunpack.c.h.b16 %v731
      %v2568 = vunpack.c.l.b16 %v732
      %v2569 = vunpack.c.h.b16 %v732
      %v2570 = vunpack.c.l.b16 %v733
      %v2571 = vunpack.c.h.b16 %v733
      %v2572 = vunpack.c.l.b16 %v734
      %v2573 = vunpack.c.h.b16 %v734
      %v2574 = vunpack.c.l.b16 %v735
      %v2575 = vunpack.c.h.b16 %v735
      %v2576 = vunpack.c.l.b16 %v736
      %v2577 = vunpack.c.h.b16 %v736
      %v2578 = vunpack.c.l.b16 %v737
      %v2579 = vunpack.c.h.b16 %v737
      %v2580 = vunpack.c.l.b16 %v738
      %v2581 = vunpack.c.h.b16 %v738
      %v2582 = vunpack.c.l.b16 %v739
      %v2583 = vunpack.c.h.b16 %v739
      %v2584 = vunpack.c.l.b16 %v740
      %v2585 = vunpack.c.h.b16 %v740
      %v2586 = vunpack.c.l.b16 %v741
      %v2587 = vunpack.c.h.b16 %v741
      %v2588 = vunpack.c.l.b16 %v742
      %v2589 = vunpack.c.h.b16 %v742
      %v2590 = vunpack.c.l.b16 %v743
      %v2591 = vunpack.c.h.b16 %v743
      %v2592 = vunpack.c.l.b16 %v744
      %v2593 = vunpack.c.h.b16 %v744
      %v2594 = vunpack.c.l.b16 %v745
      %v2595 = vunpack.c.h.b16 %v745
      %v2596 = vunpack.c.l.b16 %v746
      %v2597 = vunpack.c.h.b16 %v746
      %v2598 = vunpack.c.l.b16 %v747
      %v2599 = vunpack.c.h.b16 %v747
      %v2600 = vunpack.c.l.b16 %v748
      %v2601 = vunpack.c.h.b16 %v748
      %v2602 = vunpack.c.l.b16 %v749
      %v2603 = vunpack.c.h.b16 %v749
      %v2604 = vunpack.c.l.b16 %v750
      %v2605 = vunpack.c.h.b16 %v750
      %v2606 = vunpack.c.l.b16 %v751
      %v2607 = vunpack.c.h.b16 %v751
      %v2608 = vunpack.c.l.b16 %v752
      %v2609 = vunpack.c.h.b16 %v752
      %v2610 = vunpack.c.l.b16 %v753
      %v2611 = vunpack.c.h.b16 %v753
      %v2612 = vunpack.c.l.b16 %v754
      %v2613 = vunpack.c.h.b16 %v754
      %v2614 = vunpack.c.l.b16 %v755
      %v2615 = vunpack.c.h.b16 %v755
      %v2616 = vunpack.c.l.b16 %v756
      %v2617 = vunpack.c.h.b16 %v756
      %v2618 = vunpack.c.l.b16 %v757
      %v2619 = vunpack.c.h.b16 %v757
      %v2620 = vunpack.c.l.b16 %v758
      %v2621 = vunpack.c.h.b16 %v758
      %v2622 = vunpack.c.l.b16 %v759
      %v2623 = vunpack.c.h.b16 %v759
      %v2624 = vunpack.c.l.b16 %v760
      %v2625 = vunpack.c.h.b16 %v760
      %v2626 = vunpack.c.l.b16 %v761
      %v2627 = vunpack.c.h.b16 %v761
      %v2628 = vunpack.c.l.b16 %v762
      %v2629 = vunpack.c.h.b16 %v762
      %v2630 = vunpack.c.l.b16 %v763
      %v2631 = vunpack.c.h.b16 %v763
      %v2632 = vunpack.c.l.b16 %v764
      %v2633 = vunpack.c.h.b16 %v764
      %v2634 = vunpack.c.l.b16 %v765
      %v2635 = vunpack.c.h.b16 %v765
      %v2636 = vunpack.c.l.b16 %v766
      %v2637 = vunpack.c.h.b16 %v766
      %v2638 = vunpack.c.l.b16 %v767
      %v2639 = vunpack.c.h.b16 %v767
      %v2640 = vunpack.c.l.b16 %v768
      %v2641 = vunpack.c.h.b16 %v768
      %v2642 = vunpack.c.l.b16 %v769
      %v2643 = vunpack.c.h.b16 %v769
      %v2644 = vunpack.c.l.b16 %v770
      %v2645 = vunpack.c.h.b16 %v770
      %v2646 = vunpack.c.l.b16 %v771
      %v2647 = vunpack.c.h.b16 %v771
      %v2648 = vunpack.c.l.b16 %v772
      %v2649 = vunpack.c.h.b16 %v772
      %v2650 = vunpack.c.l.b16 %v773
      %v2651 = vunpack.c.h.b16 %v773
      %v2652 = vunpack.c.l.b16 %v774
      %v2653 = vunpack.c.h.b16 %v774
      %v2654 = vunpack.c.l.b16 %v775
      %v2655 = vunpack.c.h.b16 %v775
      %v2656 = vunpack.c.l.b16 %v776
      %v2657 = vunpack.c.h.b16 %v776
      %v2658 = vunpack.c.l.b16 %v777
      %v2659 = vunpack.c.h.b16 %v777
      %v2660 = vunpack.c.l.b16 %v778
      %v2661 = vunpack.c.h.b16 %v778
      %v2662 = vunpack.c.l.b16 %v779
      %v2663 = vunpack.c.h.b16 %v779
      %v2664 = vunpack.c.l.b16 %v780
      %v2665 = vunpack.c.h.b16 %v780
      %v2666 = vunpack.c.l.b16 %v781
      %v2667 = vunpack.c.h.b16 %v781
      %v2668 = vunpack.c.l.b16 %v782
      %v2669 = vunpack.c.h.b16 %v782
      %v2670 = vunpack.c.l.b16 %v783
      %v2671 = vunpack.c.h.b16 %v783
      %v2672 = vunpack.c.l.b16 %v784
      %v2673 = vunpack.c.h.b16 %v784
      %v2674 = vunpack.c.l.b16 %v785
      %v2675 = vunpack.c.h.b16 %v785
      %v2676 = vunpack.c.l.b16 %v786
      %v2677 = vunpack.c.h.b16 %v786
      %v2678 = vunpack.c.l.b16 %v787
      %v2679 = vunpack.c.h.b16 %v787
      %v2680 = vunpack.c.l.b16 %v788
      %v2681 = vunpack.c.h.b16 %v788
      %v2682 = vunpack.c.l.b16 %v789
      %v2683 = vunpack.c.h.b16 %v789
      %v2684 = vunpack.c.l.b16 %v790
      %v2685 = vunpack.c.h.b16 %v790
      %v2686 = vunpack.c.l.b16 %v791
      %v2687 = vunpack.c.h.b16 %v791
      %v2688 = vunpack.c.l.b16 %v792
      %v2689 = vunpack.c.h.b16 %v792
      %v2690 = vunpack.c.l.b16 %v793
      %v2691 = vunpack.c.h.b16 %v793
      %v2692 = vunpack.c.l.b16 %v794
      %v2693 = vunpack.c.h.b16 %v794
      %v2694 = vunpack.c.l.b16 %v795
      %v2695 = vunpack.c.h.b16 %v795
      %v2696 = vunpack.c.l.b16 %v796
      %v2697 = vunpack.c.h.b16 %v796
      %v2698 = vunpack.c.l.b16 %v797
      %v2699 = vunpack.c.h.b16 %v797
      %v2700 = vunpack.c.l.b16 %v798
      %v2701 = vunpack.c.h.b16 %v798
      %v2702 = vunpack.c.l.b16 %v799
      %v2703 = vunpack.c.h.b16 %v799
      %v2704 = vunpack.c.l.b16 %v800
      %v2705 = vunpack.c.h.b16 %v800
      %v2706 = vunpack.c.l.b16 %v801
      %v2707 = vunpack.c.h.b16 %v801
      %v2708 = vunpack.c.l.b16 %v802
      %v2709 = vunpack.c.h.b16 %v802
      %v2710 = vunpack.c.l.b16 %v803
      %v2711 = vunpack.c.h.b16 %v803
      %v2712 = vpack.c.b16 %v1564, %v1560
      %v2713 = vpack.c.b16 %v1565, %v1561
      %v2714 = vpack.c.b16 %v1566, %v1562
      %v2715 = vpack.c.b16 %v1567, %v1563
      %v2716 = vpack.c.b16 %v1572, %v1568
      %v2717 = vpack.c.b16 %v1573, %v1569
      %v2718 = vpack.c.b16 %v1574, %v1570
      %v2719 = vpack.c.b16 %v1575, %v1571
      %v2720 = vpack.c.b16 %v1580, %v1576
      %v2721 = vpack.c.b16 %v1581, %v1577
      %v2722 = vpack.c.b16 %v1582, %v1578
      %v2723 = vpack.c.b16 %v1583, %v1579
      %v2724 = vpack.c.b16 %v1588, %v1584
      %v2725 = vpack.c.b16 %v1589, %v1585
      %v2726 = vpack.c.b16 %v1590, %v1586
      %v2727 = vpack.c.b16 %v1591, %v1587
      %v2728 = vpack.c.b16 %v1596, %v1592
      %v2729 = vpack.c.b16 %v1597, %v1593
      %v2730 = vpack.c.b16 %v1598, %v1594
      %v2731 = vpack.c.b16 %v1599, %v1595
      %v2732 = vpack.c.b16 %v1604, %v1600
      %v2733 = vpack.c.b16 %v1605, %v1601
      %v2734 = vpack.c.b16 %v1606, %v1602
      %v2735 = vpack.c.b16 %v1607, %v1603
      %v2736 = vpack.c.b16 %v1612, %v1608
      %v2737 = vpack.c.b16 %v1613, %v1609
      %v2738 = vpack.c.b16 %v1614, %v1610
      %v2739 = vpack.c.b16 %v1615, %v1611
      %v2740 = vpack.c.b16 %v1620, %v1616
      %v2741 = vpack.c.b16 %v1621, %v1617
      %v2742 = vpack.c.b16 %v1622, %v1618
      %v2743 = vpack.c.b16 %v1623, %v1619
      %v2744 = vpack.c.b16 %v1628, %v1624
      %v2745 = vpack.c.b16 %v1629, %v1625
      %v2746 = vpack.c.b16 %v1630, %v1626
      %v2747 = vpack.c.b16 %v1631, %v1627
      %v2748 = vpack.c.b16 %v1636, %v1632
      %v2749 = vpack.c.b16 %v1637, %v1633
      %v2750 = vpack.c.b16 %v1638, %v1634
      %v2751 = vpack.c.b16 %v1639, %v1635
      %v2752 = vpack.c.b16 %v1644, %v1640
      %v2753 = vpack.c.b16 %v1645, %v1641
      %v2754 = vpack.c.b16 %v1646, %v1642
      %v2755 = vpack.c.b16 %v1647, %v1643
      %v2756 = vpack.c.b16 %v1652, %v1648
      %v2757 = vpack.c.b16 %v1653, %v1649
      %v2758 = vpack.c.b16 %v1654, %v1650
      %v2759 = vpack.c.b16 %v1655, %v1651
      %v2760 = vpack.c.b16 %v1660, %v1656
      %v2761 = vpack.c.b16 %v1661, %v1657
      %v2762 = vpack.c.b16 %v1662, %v1658
      %v2763 = vpack.c.b16 %v1663, %v1659
      %v2764 = vpack.c.b16 %v1668, %v1664
      %v2765 = vpack.c.b16 %v1669, %v1665
      %v2766 = vpack.c.b16 %v1670, %v1666
      %v2767 = vpack.c.b16 %v1671, %v1667
      %v2768 = vpack.c.b16 %v1676, %v1672
      %v2769 = vpack.c.b16 %v1677, %v1673
      %v2770 = vpack.c.b16 %v1678, %v1674
      %v2771 = vpack.c.b16 %v1679, %v1675
      %v2772 = vpack.c.b16 %v1684, %v1680
      %v2773 = vpack.c.b16 %v1685, %v1681
      %v2774 = vpack.c.b16 %v1686, %v1682
      %v2775 = vpack.c.b16 %v1687, %v1683
      %v2776 = vpack.c.b16 %v1692, %v1688
      %v2777 = vpack.c.b16 %v1693, %v1689
      %v2778 = vpack.c.b16 %v1694, %v1690
      %v2779 = vpack.c.b16 %v1695, %v1691
      %v2780 = vpack.c.b16 %v1700, %v1696
      %v2781 = vpack.c.b16 %v1701, %v1697
      %v2782 = vpack.c.b16 %v1702, %v1698
      %v2783 = vpack.c.b16 %v1703, %v1699
      %v2784 = vpack.c.b16 %v1708, %v1704
      %v2785 = vpack.c.b16 %v1709, %v1705
      %v2786 = vpack.c.b16 %v1710, %v1706
      %v2787 = vpack.c.b16 %v1711, %v1707
      %v2788 = vpack.c.b16 %v1716, %v1712
      %v2789 = vpack.c.b16 %v1717, %v1713
      %v2790 = vpack.c.b16 %v1718, %v1714
      %v2791 = vpack.c.b16 %v1719, %v1715
      %v2792 = vpack.c.b16 %v1724, %v1720
      %v2793 = vpack.c.b16 %v1725, %v1721
      %v2794 = vpack.c.b16 %v1726, %v1722
      %v2795 = vpack.c.b16 %v1727, %v1723
      %v2796 = vpack.c.b16 %v1732, %v1728
      %v2797 = vpack.c.b16 %v1733, %v1729
      %v2798 = vpack.c.b16 %v1734, %v1730
      %v2799 = vpack.c.b16 %v1735, %v1731
      %v2800 = vpack.c.b16 %v1740, %v1736
      %v2801 = vpack.c.b16 %v1741, %v1737
      %v2802 = vpack.c.b16 %v1742, %v1738
      %v2803 = vpack.c.b16 %v1743, %v1739
      %v2804 = vpack.c.b16 %v1748, %v1744
      %v2805 = vpack.c.b16 %v1749, %v1745
      %v2806 = vpack.c.b16 %v1750, %v1746
      %v2807 = vpack.c.b16 %v1751, %v1747
      %v2808 = vpack.c.b16 %v1756, %v1752
      %v2809 = vpack.c.b16 %v1757, %v1753
      %v2810 = vpack.c.b16 %v1758, %v1754
      %v2811 = vpack.c.b16 %v1759, %v1755
      %v2812 = vpack.c.b16 %v1764, %v1760
      %v2813 = vpack.c.b16 %v1765, %v1761
      %v2814 = vpack.c.b16 %v1766, %v1762
      %v2815 = vpack.c.b16 %v1767, %v1763
      %v2816 = vpack.c.b16 %v1772, %v1768
      %v2817 = vpack.c.b16 %v1773, %v1769
      %v2818 = vpack.c.b16 %v1774, %v1770
      %v2819 = vpack.c.b16 %v1775, %v1771
      %v2820 = vpack.c.b16 %v1780, %v1776
      %v2821 = vpack.c.b16 %v1781, %v1777
      %v2822 = vpack.c.b16 %v1782, %v1778
      %v2823 = vpack.c.b16 %v1783, %v1779
      %v2824 = vpack.c.b16 %v1788, %v1784
      %v2825 = vpack.c.b16 %v1789, %v1785
      %v2826 = vpack.c.b16 %v1790, %v1786
      %v2827 = vpack.c.b16 %v1791, %v1787
      %v2828 = vpack.c.b16 %v1796, %v1792
      %v2829 = vpack.c.b16 %v1797, %v1793
      %v2830 = vpack.c.b16 %v1798, %v1794
      %v2831 = vpack.c.b16 %v1799, %v1795
      %v2832 = vpack.c.b16 %v1804, %v1800
      %v2833 = vpack.c.b16 %v1805, %v1801
      %v2834 = vpack.c.b16 %v1806, %v1802
      %v2835 = vpack.c.b16 %v1807, %v1803
      %v2836 = vpack.c.b16 %v1812, %v1808
      %v2837 = vpack.c.b16 %v1813, %v1809
      %v2838 = vpack.c.b16 %v1814, %v1810
      %v2839 = vpack.c.b16 %v1815, %v1811
      %v2840 = vpack.c.b16 %v1820, %v1816
      %v2841 = vpack.c.b16 %v1821, %v1817
      %v2842 = vpack.c.b16 %v1822, %v1818
      %v2843 = vpack.c.b16 %v1823, %v1819
      %v2844 = vpack.c.b16 %v1828, %v1824
      %v2845 = vpack.c.b16 %v1829, %v1825
      %v2846 = vpack.c.b16 %v1830, %v1826
      %v2847 = vpack.c.b16 %v1831, %v1827
      %v2848 = vpack.c.b16 %v1836, %v1832
      %v2849 = vpack.c.b16 %v1837, %v1833
      %v2850 = vpack.c.b16 %v1838, %v1834
      %v2851 = vpack.c.b16 %v1839, %v1835
      %v2852 = vpack.c.b16 %v1844, %v1840
      %v2853 = vpack.c.b16 %v1845, %v1841
      %v2854 = vpack.c.b16 %v1846, %v1842
      %v2855 = vpack.c.b16 %v1847, %v1843
      %v2856 = vpack.c.b16 %v1852, %v1848
      %v2857 = vpack.c.b16 %v1853, %v1849
      %v2858 = vpack.c.b16 %v1854, %v1850
      %v2859 = vpack.c.b16 %v1855, %v1851
      %v2860 = vpack.c.b16 %v1860, %v1856
      %v2861 = vpack.c.b16 %v1861, %v1857
      %v2862 = vpack.c.b16 %v1862, %v1858
      %v2863 = vpack.c.b16 %v1863, %v1859
      %v2864 = vpack.c.b16 %v1868, %v1864
      %v2865 = vpack.c.b16 %v1869, %v1865
      %v2866 = vpack.c.b16 %v1870, %v1866
      %v2867 = vpack.c.b16 %v1871, %v1867
      %v2868 = vpack.c.b16 %v1876, %v1872
      %v2869 = vpack.c.b16 %v1877, %v1873
      %v2870 = vpack.c.b16 %v1878, %v1874
      %v2871 = vpack.c.b16 %v1879, %v1875
      %v2872 = vpack.c.b16 %v1884, %v1880
      %v2873 = vpack.c.b16 %v1885, %v1881
      %v2874 = vpack.c.b16 %v1886, %v1882
      %v2875 = vpack.c.b16 %v1887, %v1883
      %v2876 = vpack.c.b16 %v1892, %v1888
      %v2877 = vpack.c.b16 %v1893, %v1889
      %v2878 = vpack.c.b16 %v1894, %v1890
      %v2879 = vpack.c.b16 %v1895, %v1891
      %v2880 = vpack.c.b16 %v1900, %v1896
      %v2881 = vpack.c.b16 %v1901, %v1897
      %v2882 = vpack.c.b16 %v1902, %v1898
      %v2883 = vpack.c.b16 %v1903, %v1899
      %v2884 = vpack.c.b16 %v1908, %v1904
      %v2885 = vpack.c.b16 %v1909, %v1905
      %v2886 = vpack.c.b16 %v1910, %v1906
      %v2887 = vpack.c.b16 %v1911, %v1907
      %v2888 = vpack.c.b16 %v1916, %v1912
      %v2889 = vpack.c.b16 %v1917, %v1913
      %v2890 = vpack.c.b16 %v1918, %v1914
      %v2891 = vpack.c.b16 %v1919, %v1915
      %v2892 = vpack.c.b16 %v1924, %v1920
      %v2893 = vpack.c.b16 %v1925, %v1921
      %v2894 = vpack.c.b16 %v1926, %v1922
      %v2895 = vpack.c.b16 %v1927, %v1923
      %v2896 = vpack.c.b16 %v1932, %v1928
      %v2897 = vpack.c.b16 %v1933, %v1929
      %v2898 = vpack.c.b16 %v1934, %v1930
      %v2899 = vpack.c.b16 %v1935, %v1931
      %v2900 = vpack.c.b16 %v1940, %v1936
      %v2901 = vpack.c.b16 %v1941, %v1937
      %v2902 = vpack.c.b16 %v1942, %v1938
      %v2903 = vpack.c.b16 %v1943, %v1939
      %v2904 = vpack.c.b16 %v1948, %v1944
      %v2905 = vpack.c.b16 %v1949, %v1945
      %v2906 = vpack.c.b16 %v1950, %v1946
      %v2907 = vpack.c.b16 %v1951, %v1947
      %v2908 = vpack.c.b16 %v1956, %v1952
      %v2909 = vpack.c.b16 %v1957, %v1953
      %v2910 = vpack.c.b16 %v1958, %v1954
      %v2911 = vpack.c.b16 %v1959, %v1955
      %v2912 = vpack.c.b16 %v1964, %v1960
      %v2913 = vpack.c.b16 %v1965, %v1961
      %v2914 = vpack.c.b16 %v1966, %v1962
      %v2915 = vpack.c.b16 %v1967, %v1963
      %v2916 = vpack.c.b16 %v1972, %v1968
      %v2917 = vpack.c.b16 %v1973, %v1969
      %v2918 = vpack.c.b16 %v1974, %v1970
      %v2919 = vpack.c.b16 %v1975, %v1971
      %v2920 = vpack.c.b16 %v1980, %v1976
      %v2921 = vpack.c.b16 %v1981, %v1977
      %v2922 = vpack.c.b16 %v1982, %v1978
      %v2923 = vpack.c.b16 %v1983, %v1979
      %v2924 = vpack.c.b16 %v1988, %v1984
      %v2925 = vpack.c.b16 %v1989, %v1985
      %v2926 = vpack.c.b16 %v1990, %v1986
      %v2927 = vpack.c.b16 %v1991, %v1987
      %v2928 = vpack.c.b16 %v1996, %v1992
      %v2929 = vpack.c.b16 %v1997, %v1993
      %v2930 = vpack.c.b16 %v1998, %v1994
      %v2931 = vpack.c.b16 %v1999, %v1995
      %v2932 = vpack.c.b16 %v2004, %v2000
      %v2933 = vpack.c.b16 %v2005, %v2001
      %v2934 = vpack.c.b16 %v2006, %v2002
      %v2935 = vpack.c.b16 %v2007, %v2003
      %v2936 = vpack.c.b16 %v2012, %v2008
      %v2937 = vpack.c.b16 %v2013, %v2009
      %v2938 = vpack.c.b16 %v2014, %v2010
      %v2939 = vpack.c.b16 %v2015, %v2011
      %v2940 = vpack.c.b16 %v2020, %v2016
      %v2941 = vpack.c.b16 %v2021, %v2017
      %v2942 = vpack.c.b16 %v2022, %v2018
      %v2943 = vpack.c.b16 %v2023, %v2019
      %v2944 = vpack.c.b16 %v2028, %v2024
      %v2945 = vpack.c.b16 %v2029, %v2025
      %v2946 = vpack.c.b16 %v2030, %v2026
      %v2947 = vpack.c.b16 %v2031, %v2027
      %v2948 = vpack.c.b16 %v2036, %v2032
      %v2949 = vpack.c.b16 %v2037, %v2033
      %v2950 = vpack.c.b16 %v2038, %v2034
      %v2951 = vpack.c.b16 %v2039, %v2035
      %v2952 = vpack.c.b16 %v2044, %v2040
      %v2953 = vpack.c.b16 %v2045, %v2041
      %v2954 = vpack.c.b16 %v2046, %v2042
      %v2955 = vpack.c.b16 %v2047, %v2043
      %v2956 = vpack.c.b16 %v2052, %v2048
      %v2957 = vpack.c.b16 %v2053, %v2049
      %v2958 = vpack.c.b16 %v2054, %v2050
      %v2959 = vpack.c.b16 %v2055, %v2051
      %v2960 = vpack.c.b16 %v2060, %v2056
      %v2961 = vpack.c.b16 %v2061, %v2057
      %v2962 = vpack.c.b16 %v2062, %v2058
      %v2963 = vpack.c.b16 %v2063, %v2059
      %v2964 = vpack.c.b16 %v2068, %v2064
      %v2965 = vpack.c.b16 %v2069, %v2065
      %v2966 = vpack.c.b16 %v2070, %v2066
      %v2967 = vpack.c.b16 %v2071, %v2067
      %v2968 = vpack.c.b16 %v2076, %v2072
      %v2969 = vpack.c.b16 %v2077, %v2073
      %v2970 = vpack.c.b16 %v2078, %v2074
      %v2971 = vpack.c.b16 %v2079, %v2075
      %v2972 = vpack.c.b16 %v2084, %v2080
      %v2973 = vpack.c.b16 %v2085, %v2081
      %v2974 = vpack.c.b16 %v2086, %v2082
      %v2975 = vpack.c.b16 %v2087, %v2083
      %v2976 = vpack.c.b16 %v2092, %v2088
      %v2977 = vpack.c.b16 %v2093, %v2089
      %v2978 = vpack.c.b16 %v2094, %v2090
      %v2979 = vpack.c.b16 %v2095, %v2091
      %v2980 = vpack.c.b16 %v2100, %v2096
      %v2981 = vpack.c.b16 %v2101, %v2097
      %v2982 = vpack.c.b16 %v2102, %v2098
      %v2983 = vpack.c.b16 %v2103, %v2099
      %v2984 = vpack.c.b16 %v2108, %v2104
      %v2985 = vpack.c.b16 %v2109, %v2105
      %v2986 = vpack.c.b16 %v2110, %v2106
      %v2987 = vpack.c.b16 %v2111, %v2107
      %v2988 = vpack.c.b16 %v2116, %v2112
      %v2989 = vpack.c.b16 %v2117, %v2113
      %v2990 = vpack.c.b16 %v2118, %v2114
      %v2991 = vpack.c.b16 %v2119, %v2115
      %v2992 = vpack.c.b16 %v2124, %v2120
      %v2993 = vpack.c.b16 %v2125, %v2121
      %v2994 = vpack.c.b16 %v2126, %v2122
      %v2995 = vpack.c.b16 %v2127, %v2123
      %v2996 = vpack.c.b16 %v2132, %v2128
      %v2997 = vpack.c.b16 %v2133, %v2129
      %v2998 = vpack.c.b16 %v2134, %v2130
      %v2999 = vpack.c.b16 %v2135, %v2131
      %v3000 = vpack.c.b16 %v2140, %v2136
      %v3001 = vpack.c.b16 %v2141, %v2137
      %v3002 = vpack.c.b16 %v2142, %v2138
      %v3003 = vpack.c.b16 %v2143, %v2139
      %v3004 = vpack.c.b16 %v2148, %v2144
      %v3005 = vpack.c.b16 %v2149, %v2145
      %v3006 = vpack.c.b16 %v2150, %v2146
      %v3007 = vpack.c.b16 %v2151, %v2147
      %v3008 = vpack.c.b16 %v2156, %v2152
      %v3009 = vpack.c.b16 %v2157, %v2153
      %v3010 = vpack.c.b16 %v2158, %v2154
      %v3011 = vpack.c.b16 %v2159, %v2155
      %v3012 = vpack.c.b16 %v2164, %v2160
      %v3013 = vpack.c.b16 %v2165, %v2161
      %v3014 = vpack.c.b16 %v2166, %v2162
      %v3015 = vpack.c.b16 %v2167, %v2163
      %v3016 = vpack.c.b16 %v2172, %v2168
      %v3017 = vpack.c.b16 %v2173, %v2169
      %v3018 = vpack.c.b16 %v2174, %v2170
      %v3019 = vpack.c.b16 %v2175, %v2171
      %v3020 = vpack.c.b16 %v2180, %v2176
      %v3021 = vpack.c.b16 %v2181, %v2177
      %v3022 = vpack.c.b16 %v2182, %v2178
      %v3023 = vpack.c.b16 %v2183, %v2179
      %v3024 = vpack.c.b16 %v2188, %v2184
      %v3025 = vpack.c.b16 %v2189, %v2185
      %v3026 = vpack.c.b16 %v2190, %v2186
      %v3027 = vpack.c.b16 %v2191, %v2187
      %v3028 = vpack.c.b16 %v2196, %v2192
      %v3029 = vpack.c.b16 %v2197, %v2193
      %v3030 = vpack.c.b16 %v2198, %v2194
      %v3031 = vpack.c.b16 %v2199, %v2195
      %v3032 = vpack.c.b16 %v2204, %v2200
      %v3033 = vpack.c.b16 %v2205, %v2201
      %v3034 = vpack.c.b16 %v2206, %v2202
      %v3035 = vpack.c.b16 %v2207, %v2203
      %v3036 = vpack.c.b16 %v2212, %v2208
      %v3037 = vpack.c.b16 %v2213, %v2209
      %v3038 = vpack.c.b16 %v2214, %v2210
      %v3039 = vpack.c.b16 %v2215, %v2211
      %v3040 = vpack.c.b16 %v2220, %v2216
      %v3041 = vpack.c.b16 %v2221, %v2217
      %v3042 = vpack.c.b16 %v2222, %v2218
      %v3043 = vpack.c.b16 %v2223, %v2219
      %v3044 = vpack.c.b16 %v2228, %v2224
      %v3045 = vpack.c.b16 %v2229, %v2225
      %v3046 = vpack.c.b16 %v2230, %v2226
      %v3047 = vpack.c.b16 %v2231, %v2227
      %v3048 = vpack.c.b16 %v2236, %v2232
      %v3049 = vpack.c.b16 %v2237, %v2233
      %v3050 = vpack.c.b16 %v2238, %v2234
      %v3051 = vpack.c.b16 %v2239, %v2235
      %v3052 = vpack.c.b16 %v2244, %v2240
      %v3053 = vpack.c.b16 %v2245, %v2241
      %v3054 = vpack.c.b16 %v2246, %v2242
      %v3055 = vpack.c.b16 %v2247, %v2243
      %v3056 = vpack.c.b16 %v2252, %v2248
      %v3057 = vpack.c.b16 %v2253, %v2249
      %v3058 = vpack.c.b16 %v2254, %v2250
      %v3059 = vpack.c.b16 %v2255, %v2251
      %v3060 = vpack.c.b16 %v2260, %v2256
      %v3061 = vpack.c.b16 %v2261, %v2257
      %v3062 = vpack.c.b16 %v2262, %v2258
      %v3063 = vpack.c.b16 %v2263, %v2259
      %v3064 = vpack.c.b16 %v2268, %v2264
      %v3065 = vpack.c.b16 %v2269, %v2265
      %v3066 = vpack.c.b16 %v2270, %v2266
      %v3067 = vpack.c.b16 %v2271, %v2267
      %v3068 = vpack.c.b16 %v2276, %v2272
      %v3069 = vpack.c.b16 %v2277, %v2273
      %v3070 = vpack.c.b16 %v2278, %v2274
      %v3071 = vpack.c.b16 %v2279, %v2275
      %v3072 = vpack.c.b16 %v2284, %v2280
      %v3073 = vpack.c.b16 %v2285, %v2281
      %v3074 = vpack.c.b16 %v2286, %v2282
      %v3075 = vpack.c.b16 %v2287, %v2283
      %v3076 = vpack.c.b16 %v2292, %v2288
      %v3077 = vpack.c.b16 %v2293, %v2289
      %v3078 = vpack.c.b16 %v2294, %v2290
      %v3079 = vpack.c.b16 %v2295, %v2291
      %v3080 = vpack.c.b16 %v2300, %v2296
      %v3081 = vpack.c.b16 %v2301, %v2297
      %v3082 = vpack.c.b16 %v2302, %v2298
      %v3083 = vpack.c.b16 %v2303, %v2299
      %v3084 = vpack.c.b16 %v2308, %v2304
      %v3085 = vpack.c.b16 %v2309, %v2305
      %v3086 = vpack.c.b16 %v2310, %v2306
      %v3087 = vpack.c.b16 %v2311, %v2307
      %v3088 = vpack.c.b16 %v2316, %v2312
      %v3089 = vpack.c.b16 %v2317, %v2313
      %v3090 = vpack.c.b16 %v2318, %v2314
      %v3091 = vpack.c.b16 %v2319, %v2315
      %v3092 = vpack.c.b16 %v2324, %v2320
      %v3093 = vpack.c.b16 %v2325, %v2321
      %v3094 = vpack.c.b16 %v2326, %v2322
      %v3095 = vpack.c.b16 %v2327, %v2323
      %v3096 = vpack.c.b16 %v2332, %v2328
      %v3097 = vpack.c.b16 %v2333, %v2329
      %v3098 = vpack.c.b16 %v2334, %v2330
      %v3099 = vpack.c.b16 %v2335, %v2331
      %v3100 = vpack.c.b16 %v2340, %v2336
      %v3101 = vpack.c.b16 %v2341, %v2337
      %v3102 = vpack.c.b16 %v2342, %v2338
      %v3103 = vpack.c.b16 %v2343, %v2339
      %v3104 = vpack.c.b16 %v2348, %v2344
      %v3105 = vpack.c.b16 %v2349, %v2345
      %v3106 = vpack.c.b16 %v2350, %v2346
      %v3107 = vpack.c.b16 %v2351, %v2347
      %v3108 = vpack.c.b16 %v2356, %v2352
      %v3109 = vpack.c.b16 %v2357, %v2353
      %v3110 = vpack.c.b16 %v2358, %v2354
      %v3111 = vpack.c.b16 %v2359, %v2355
      %v3112 = vpack.c.b16 %v2364, %v2360
      %v3113 = vpack.c.b16 %v2365, %v2361
      %v3114 = vpack.c.b16 %v2366, %v2362
      %v3115 = vpack.c.b16 %v2367, %v2363
      %v3116 = vpack.c.b16 %v2372, %v2368
      %v3117 = vpack.c.b16 %v2373, %v2369
      %v3118 = vpack.c.b16 %v2374, %v2370
      %v3119 = vpack.c.b16 %v2375, %v2371
      %v3120 = vpack.c.b16 %v2380, %v2376
      %v3121 = vpack.c.b16 %v2381, %v2377
      %v3122 = vpack.c.b16 %v2382, %v2378
      %v3123 = vpack.c.b16 %v2383, %v2379
      %v3124 = vpack.c.b16 %v2388, %v2384
      %v3125 = vpack.c.b16 %v2389, %v2385
      %v3126 = vpack.c.b16 %v2390, %v2386
      %v3127 = vpack.c.b16 %v2391, %v2387
      %v3128 = vpack.c.b16 %v2396, %v2392
      %v3129 = vpack.c.b16 %v2397, %v2393
      %v3130 = vpack.c.b16 %v2398, %v2394
      %v3131 = vpack.c.b16 %v2399, %v2395
      %v3132 = vpack.c.b16 %v2404, %v2400
      %v3133 = vpack.c.b16 %v2405, %v2401
      %v3134 = vpack.c.b16 %v2406, %v2402
      %v3135 = vpack.c.b16 %v2407, %v2403
      %v3136 = vpack.c.b16 %v2412, %v2408
      %v3137 = vpack.c.b16 %v2413, %v2409
      %v3138 = vpack.c.b16 %v2414, %v2410
      %v3139 = vpack.c.b16 %v2415, %v2411
      %v3140 = vpack.c.b16 %v2420, %v2416
      %v3141 = vpack.c.b16 %v2421, %v2417
      %v3142 = vpack.c.b16 %v2422, %v2418
      %v3143 = vpack.c.b16 %v2423, %v2419
      %v3144 = vpack.c.b16 %v2428, %v2424
      %v3145 = vpack.c.b16 %v2429, %v2425
      %v3146 = vpack.c.b16 %v2430, %v2426
      %v3147 = vpack.c.b16 %v2431, %v2427
      %v3148 = vpack.c.b16 %v2436, %v2432
      %v3149 = vpack.c.b16 %v2437, %v2433
      %v3150 = vpack.c.b16 %v2438, %v2434
      %v3151 = vpack.c.b16 %v2439, %v2435
      %v3152 = vpack.c.b16 %v2444, %v2440
      %v3153 = vpack.c.b16 %v2445, %v2441
      %v3154 = vpack.c.b16 %v2446, %v2442
      %v3155 = vpack.c.b16 %v2447, %v2443
      %v3156 = vpack.c.b16 %v2452, %v2448
      %v3157 = vpack.c.b16 %v2453, %v2449
      %v3158 = vpack.c.b16 %v2454, %v2450
      %v3159 = vpack.c.b16 %v2455, %v2451
      %v3160 = vpack.c.b16 %v2460, %v2456
      %v3161 = vpack.c.b16 %v2461, %v2457
      %v3162 = vpack.c.b16 %v2462, %v2458
      %v3163 = vpack.c.b16 %v2463, %v2459
      %v3164 = vpack.c.b16 %v2468, %v2464
      %v3165 = vpack.c.b16 %v2469, %v2465
      %v3166 = vpack.c.b16 %v2470, %v2466
      %v3167 = vpack.c.b16 %v2471, %v2467
      %v3168 = vpack.c.b16 %v2476, %v2472
      %v3169 = vpack.c.b16 %v2477, %v2473
      %v3170 = vpack.c.b16 %v2478, %v2474
      %v3171 = vpack.c.b16 %v2479, %v2475
      %v3172 = vpack.c.b16 %v2484, %v2480
      %v3173 = vpack.c.b16 %v2485, %v2481
      %v3174 = vpack.c.b16 %v2486, %v2482
      %v3175 = vpack.c.b16 %v2487, %v2483
      %v3176 = vpack.c.b16 %v2492, %v2488
      %v3177 = vpack.c.b16 %v2493, %v2489
      %v3178 = vpack.c.b16 %v2494, %v2490
      %v3179 = vpack.c.b16 %v2495, %v2491
      %v3180 = vpack.c.b16 %v2500, %v2496
      %v3181 = vpack.c.b16 %v2501, %v2497
      %v3182 = vpack.c.b16 %v2502, %v2498
      %v3183 = vpack.c.b16 %v2503, %v2499
      %v3184 = vpack.c.b16 %v2508, %v2504
      %v3185 = vpack.c.b16 %v2509, %v2505
      %v3186 = vpack.c.b16 %v2510, %v2506
      %v3187 = vpack.c.b16 %v2511, %v2507
      %v3188 = vpack.c.b16 %v2516, %v2512
      %v3189 = vpack.c.b16 %v2517, %v2513
      %v3190 = vpack.c.b16 %v2518, %v2514
      %v3191 = vpack.c.b16 %v2519, %v2515
      %v3192 = vpack.c.b16 %v2524, %v2520
      %v3193 = vpack.c.b16 %v2525, %v2521
      %v3194 = vpack.c.b16 %v2526, %v2522
      %v3195 = vpack.c.b16 %v2527, %v2523
      %v3196 = vpack.c.b16 %v2532, %v2528
      %v3197 = vpack.c.b16 %v2533, %v2529
      %v3198 = vpack.c.b16 %v2534, %v2530
      %v3199 = vpack.c.b16 %v2535, %v2531
      %v3200 = vpack.c.b16 %v2540, %v2536
      %v3201 = vpack.c.b16 %v2541, %v2537
      %v3202 = vpack.c.b16 %v2542, %v2538
      %v3203 = vpack.c.b16 %v2543, %v2539
      %v3204 = vpack.c.b16 %v2548, %v2544
      %v3205 = vpack.c.b16 %v2549, %v2545
      %v3206 = vpack.c.b16 %v2550, %v2546
      %v3207 = vpack.c.b16 %v2551, %v2547
      %v3208 = vpack.c.b16 %v2556, %v2552
      %v3209 = vpack.c.b16 %v2557, %v2553
      %v3210 = vpack.c.b16 %v2558, %v2554
      %v3211 = vpack.c.b16 %v2559, %v2555
      %v3212 = vpack.c.b16 %v2564, %v2560
      %v3213 = vpack.c.b16 %v2565, %v2561
      %v3214 = vpack.c.b16 %v2566, %v2562
      %v3215 = vpack.c.b16 %v2567, %v2563
      %v3216 = vpack.c.b16 %v2572, %v2568
      %v3217 = vpack.c.b16 %v2573, %v2569
      %v3218 = vpack.c.b16 %v2574, %v2570
      %v3219 = vpack.c.b16 %v2575, %v2571
      %v3220 = vpack.c.b16 %v2580, %v2576
      %v3221 = vpack.c.b16 %v2581, %v2577
      %v3222 = vpack.c.b16 %v2582, %v2578
      %v3223 = vpack.c.b16 %v2583, %v2579
      %v3224 = vpack.c.b16 %v2588, %v2584
      %v3225 = vpack.c.b16 %v2589, %v2585
      %v3226 = vpack.c.b16 %v2590, %v2586
      %v3227 = vpack.c.b16 %v2591, %v2587
      %v3228 = vpack.c.b16 %v2596, %v2592
      %v3229 = vpack.c.b16 %v2597, %v2593
      %v3230 = vpack.c.b16 %v2598, %v2594
      %v3231 = vpack.c.b16 %v2599, %v2595
      %v3232 = vpack.c.b16 %v2604, %v2600
      %v3233 = vpack.c.b16 %v2605, %v2601
      %v3234 = vpack.c.b16 %v2606, %v2602
      %v3235 = vpack.c.b16 %v2607, %v2603
      %v3236 = vpack.c.b16 %v2612, %v2608
      %v3237 = vpack.c.b16 %v2613, %v2609
      %v3238 = vpack.c.b16 %v2614, %v2610
      %v3239 = vpack.c.b16 %v2615, %v2611
      %v3240 = vpack.c.b16 %v2620, %v2616
      %v3241 = vpack.c.b16 %v2621, %v2617
      %v3242 = vpack.c.b16 %v2622, %v2618
      %v3243 = vpack.c.b16 %v2623, %v2619
      %v3244 = vpack.c.b16 %v2628, %v2624
      %v3245 = vpack.c.b16 %v2629, %v2625
      %v3246 = vpack.c.b16 %v2630, %v2626
      %v3247 = vpack.c.b16 %v2631, %v2627
      %v3248 = vpack.c.b16 %v2636, %v2632
      %v3249 = vpack.c.b16 %v2637, %v2633
      %v3250 = vpack.c.b16 %v2638, %v2634
      %v3251 = vpack.c.b16 %v2639, %v2635
      %v3252 = vpack.c.b16 %v2644, %v2640
      %v3253 = vpack.c.b16 %v2645, %v2641
      %v3254 = vpack.c.b16 %v2646, %v2642
      %v3255 = vpack.c.b16 %v2647, %v2643
      %v3256 = vpack.c.b16 %v2652, %v2648
      %v3257 = vpack.c.b16 %v2653, %v2649
      %v3258 = vpack.c.b16 %v2654, %v2650
      %v3259 = vpack.c.b16 %v2655, %v2651
      %v3260 = vpack.c.b16 %v2660, %v2656
      %v3261 = vpack.c.b16 %v2661, %v2657
      %v3262 = vpack.c.b16 %v2662, %v2658
      %v3263 = vpack.c.b16 %v2663, %v2659
      %v3264 = vpack.c.b16 %v2668, %v2664
      %v3265 = vpack.c.b16 %v2669, %v2665
      %v3266 = vpack.c.b16 %v2670, %v2666
      %v3267 = vpack.c.b16 %v2671, %v2667
      %v3268 = vpack.c.b16 %v2676, %v2672
      %v3269 = vpack.c.b16 %v2677, %v2673
      %v3270 = vpack.c.b16 %v2678, %v2674
      %v3271 = vpack.c.b16 %v2679, %v2675
      %v3272 = vpack.c.b16 %v2684, %v2680
      %v3273 = vpack.c.b16 %v2685, %v2681
      %v3274 = vpack.c.b16 %v2686, %v2682
      %v3275 = vpack.c.b16 %v2687, %v2683
      %v3276 = vpack.c.b16 %v2692, %v2688
      %v3277 = vpack.c.b16 %v2693, %v2689
      %v3278 = vpack.c.b16 %v2694, %v2690
      %v3279 = vpack.c.b16 %v2695, %v2691
      %v3280 = vpack.c.b16 %v2700, %v2696
      %v3281 = vpack.c.b16 %v2701, %v2697
      %v3282 = vpack.c.b16 %v2702, %v2698
      %v3283 = vpack.c.b16 %v2703, %v2699
      %v3284 = vpack.c.b16 %v2708, %v2704
      %v3285 = vpack.c.b16 %v2709, %v2705
      %v3286 = vpack.c.b16 %v2710, %v2706
      %v3287 = vpack.c.b16 %v2711, %v2707
      %3864 = vmatprep.subr.bf16.mxu0 %v2713
      %3865 = vmatpush1.bf16.msra.mxu0 %v2712
      %3866 = vmatprep.subr.bf16.mxu0 %v2717
      %3867 = vmatpush1.bf16.msra.mxu0 %v2716
      %3868 = vmatprep.subr.bf16.mxu0 %v2721
      %3869 = vmatpush1.bf16.msra.mxu0 %v2720
      %3870 = vmatprep.subr.bf16.mxu0 %v2725
      %3871 = vmatpush1.bf16.msra.mxu0 %v2724
      %3872 = vmatprep.subr.bf16.mxu0 %v2729
      %3873 = vmatpush1.bf16.msra.mxu0 %v2728
      %3874 = vmatprep.subr.bf16.mxu0 %v2733
      %3875 = vmatpush1.bf16.msra.mxu0 %v2732
      %3876 = vmatprep.subr.bf16.mxu0 %v2737
      %3877 = vmatpush1.bf16.msra.mxu0 %v2736
      %3878 = vmatprep.subr.bf16.mxu0 %v2741
      %3879 = vmatpush1.bf16.msra.mxu0 %v2740
      %3880 = vmatprep.subr.bf16.mxu0 %v2745
      %3881 = vmatpush1.bf16.msra.mxu0 %v2744
      %3882 = vmatprep.subr.bf16.mxu0 %v2749
      %3883 = vmatpush1.bf16.msra.mxu0 %v2748
      %3884 = vmatprep.subr.bf16.mxu0 %v2753
      %3885 = vmatpush1.bf16.msra.mxu0 %v2752
      %3886 = vmatprep.subr.bf16.mxu0 %v2757
      %3887 = vmatpush1.bf16.msra.mxu0 %v2756
      %3888 = vmatprep.subr.bf16.mxu0 %v2761
      %3889 = vmatpush1.bf16.msra.mxu0 %v2760
      %3890 = vmatprep.subr.bf16.mxu0 %v2765
      %3891 = vmatpush1.bf16.msra.mxu0 %v2764
      %3892 = vmatprep.subr.bf16.mxu0 %v2769
      %3893 = vmatpush1.bf16.msra.mxu0 %v2768
      %3894 = vmatprep.subr.bf16.mxu0 %v2773
      %3895 = vmatpush1.bf16.msra.mxu0 %v2772
      %3896 = vmatprep.mubr.bf16.mxu0 %v913
      %3897 = vmatmul.mubr.bf16.gmra.mrb[0].mxu0 %v912
      %v3898 = vpop.f32.mrb[0].mxu0
      %v3899 = vadd.f32 0.0, %v3898
      %v3900 = vpop.f32.mrb[0].mxu0
      %v3901 = vadd.f32 0.0, %v3900
      %v3902 = vpop.f32.mrb[0].mxu0
      %v3903 = vadd.f32 0.0, %v3902
      %v3904 = vpop.f32.mrb[0].mxu0
      %v3905 = vadd.f32 0.0, %v3904
      %3906 = vmatprep.mubr.bf16.mxu0 %v931
      %3907 = vmatmul.mubr.bf16.gmra.mrb[0].mxu0 %v930
      %v3908 = vpop.f32.mrb[0].mxu0
      %v3909 = vadd.f32 0.0, %v3908
      %v3910 = vpop.f32.mrb[0].mxu0
      %v3911 = vadd.f32 0.0, %v3910
      %v3912 = vpop.f32.mrb[0].mxu0
      %v3913 = vadd.f32 0.0, %v3912
      %v3914 = vpop.f32.mrb[0].mxu0
      %v3915 = vadd.f32 0.0, %v3914
      %3916 = vdwg.mxu0
      %3917 = vmatprep.subr.bf16.mxu0 %v2777
      %3918 = vmatpush1.bf16.msra.mxu0 %v2776
      %3919 = vmatprep.subr.bf16.mxu0 %v2781
      %3920 = vmatpush1.bf16.msra.mxu0 %v2780
      %3921 = vmatprep.subr.bf16.mxu0 %v2785
      %3922 = vmatpush1.bf16.msra.mxu0 %v2784
      %3923 = vmatprep.subr.bf16.mxu0 %v2789
      %3924 = vmatpush1.bf16.msra.mxu0 %v2788
      %3925 = vmatprep.subr.bf16.mxu0 %v2793
      %3926 = vmatpush1.bf16.msra.mxu0 %v2792
      %3927 = vmatprep.subr.bf16.mxu0 %v2797
      %3928 = vmatpush1.bf16.msra.mxu0 %v2796
      %3929 = vmatprep.subr.bf16.mxu0 %v2801
      %3930 = vmatpush1.bf16.msra.mxu0 %v2800
      %3931 = vmatprep.subr.bf16.mxu0 %v2805
      %3932 = vmatpush1.bf16.msra.mxu0 %v2804
      %3933 = vmatprep.subr.bf16.mxu0 %v2809
      %3934 = vmatpush1.bf16.msra.mxu0 %v2808
      %3935 = vmatprep.subr.bf16.mxu0 %v2813
      %3936 = vmatpush1.bf16.msra.mxu0 %v2812
      %3937 = vmatprep.subr.bf16.mxu0 %v2817
      %3938 = vmatpush1.bf16.msra.mxu0 %v2816
      %3939 = vmatprep.subr.bf16.mxu0 %v2821
      %3940 = vmatpush1.bf16.msra.mxu0 %v2820
      %3941 = vmatprep.subr.bf16.mxu0 %v2825
      %3942 = vmatpush1.bf16.msra.mxu0 %v2824
      %3943 = vmatprep.subr.bf16.mxu0 %v2829
      %3944 = vmatpush1.bf16.msra.mxu0 %v2828
      %3945 = vmatprep.subr.bf16.mxu0 %v2833
      %3946 = vmatpush1.bf16.msra.mxu0 %v2832
      %3947 = vmatprep.subr.bf16.mxu0 %v2837
      %3948 = vmatpush1.bf16.msra.mxu0 %v2836
      %3949 = vmatprep.mubr.bf16.mxu0 %v915
      %3950 = vmatmul.mubr.bf16.gmra.mrb[0].mxu0 %v914
      %v3951 = vpop.f32.mrb[0].mxu0
      %v3952 = vadd.f32 %v3899, %v3951
      %v3953 = vpop.f32.mrb[0].mxu0
      %v3954 = vadd.f32 %v3901, %v3953
      %v3955 = vpop.f32.mrb[0].mxu0
      %v3956 = vadd.f32 %v3903, %v3955
      %v3957 = vpop.f32.mrb[0].mxu0
      %v3958 = vadd.f32 %v3905, %v3957
      %3959 = vmatprep.mubr.bf16.mxu0 %v933
      %3960 = vmatmul.mubr.bf16.gmra.mrb[0].mxu0 %v932
      %v3961 = vpop.f32.mrb[0].mxu0
      %v3962 = vadd.f32 %v3909, %v3961
      %v3963 = vpop.f32.mrb[0].mxu0
      %v3964 = vadd.f32 %v3911, %v3963
      %v3965 = vpop.f32.mrb[0].mxu0
      %v3966 = vadd.f32 %v3913, %v3965
      %v3967 = vpop.f32.mrb[0].mxu0
      %v3968 = vadd.f32 %v3915, %v3967
      %3969 = vdwg.mxu0
      %3970 = vmatprep.subr.bf16.mxu0 %v2841
      %3971 = vmatpush1.bf16.msra.mxu0 %v2840
      %3972 = vmatprep.subr.bf16.mxu0 %v2845
      %3973 = vmatpush1.bf16.msra.mxu0 %v2844
      %3974 = vmatprep.subr.bf16.mxu0 %v2849
      %3975 = vmatpush1.bf16.msra.mxu0 %v2848
      %3976 = vmatprep.subr.bf16.mxu0 %v2853
      %3977 = vmatpush1.bf16.msra.mxu0 %v2852
      %3978 = vmatprep.subr.bf16.mxu0 %v2857
      %3979 = vmatpush1.bf16.msra.mxu0 %v2856
      %3980 = vmatprep.subr.bf16.mxu0 %v2861
      %3981 = vmatpush1.bf16.msra.mxu0 %v2860
      %3982 = vmatprep.subr.bf16.mxu0 %v2865
      %3983 = vmatpush1.bf16.msra.mxu0 %v2864
      %3984 = vmatprep.subr.bf16.mxu0 %v2869
      %3985 = vmatpush1.bf16.msra.mxu0 %v2868
      %3986 = vmatprep.subr.bf16.mxu0 %v2873
      %3987 = vmatpush1.bf16.msra.mxu0 %v2872
      %3988 = vmatprep.subr.bf16.mxu0 %v2877
      %3989 = vmatpush1.bf16.msra.mxu0 %v2876
      %3990 = vmatprep.subr.bf16.mxu0 %v2881
      %3991 = vmatpush1.bf16.msra.mxu0 %v2880
      %3992 = vmatprep.subr.bf16.mxu0 %v2885
      %3993 = vmatpush1.bf16.msra.mxu0 %v2884
      %3994 = vmatprep.subr.bf16.mxu0 %v2889
      %3995 = vmatpush1.bf16.msra.mxu0 %v2888
      %3996 = vmatprep.subr.bf16.mxu0 %v2893
      %3997 = vmatpush1.bf16.msra.mxu0 %v2892
      %3998 = vmatprep.subr.bf16.mxu0 %v2897
      %3999 = vmatpush1.bf16.msra.mxu0 %v2896
      %4000 = vmatprep.subr.bf16.mxu0 %v2901
      %4001 = vmatpush1.bf16.msra.mxu0 %v2900
      %4002 = vmatprep.mubr.bf16.mxu0 %v917
      %4003 = vmatmul.mubr.bf16.gmra.mrb[0].mxu0 %v916
      %v4004 = vpop.f32.mrb[0].mxu0
      %v4005 = vadd.f32 %v3952, %v4004
      %v4006 = vpop.f32.mrb[0].mxu0
      %v4007 = vadd.f32 %v3954, %v4006
      %v4008 = vpop.f32.mrb[0].mxu0
      %v4009 = vadd.f32 %v3956, %v4008
      %v4010 = vpop.f32.mrb[0].mxu0
      %v4011 = vadd.f32 %v3958, %v4010
      %4012 = vmatprep.mubr.bf16.mxu0 %v935
      %4013 = vmatmul.mubr.bf16.gmra.mrb[0].mxu0 %v934
      %v4014 = vpop.f32.mrb[0].mxu0
      %v4015 = vadd.f32 %v3962, %v4014
      %v4016 = vpop.f32.mrb[0].mxu0
      %v4017 = vadd.f32 %v3964, %v4016
      %v4018 = vpop.f32.mrb[0].mxu0
      %v4019 = vadd.f32 %v3966, %v4018
      %v4020 = vpop.f32.mrb[0].mxu0
      %v4021 = vadd.f32 %v3968, %v4020
      %4022 = vdwg.mxu0
      %4023 = vmatprep.subr.bf16.mxu0 %v2905
      %4024 = vmatpush1.bf16.msra.mxu0 %v2904
      %4025 = vmatprep.subr.bf16.mxu0 %v2909
      %4026 = vmatpush1.bf16.msra.mxu0 %v2908
      %4027 = vmatprep.subr.bf16.mxu0 %v2913
      %4028 = vmatpush1.bf16.msra.mxu0 %v2912
      %4029 = vmatprep.subr.bf16.mxu0 %v2917
      %4030 = vmatpush1.bf16.msra.mxu0 %v2916
      %4031 = vmatprep.subr.bf16.mxu0 %v2921
      %4032 = vmatpush1.bf16.msra.mxu0 %v2920
      %4033 = vmatprep.subr.bf16.mxu0 %v2925
      %4034 = vmatpush1.bf16.msra.mxu0 %v2924
      %4035 = vmatprep.subr.bf16.mxu0 %v2929
      %4036 = vmatpush1.bf16.msra.mxu0 %v2928
      %4037 = vmatprep.subr.bf16.mxu0 %v2933
      %4038 = vmatpush1.bf16.msra.mxu0 %v2932
      %4039 = vmatprep.subr.bf16.mxu0 %v2937
      %4040 = vmatpush1.bf16.msra.mxu0 %v2936
      %4041 = vmatprep.subr.bf16.mxu0 %v2941
      %4042 = vmatpush1.bf16.msra.mxu0 %v2940
      %4043 = vmatprep.subr.bf16.mxu0 %v2945
      %4044 = vmatpush1.bf16.msra.mxu0 %v2944
      %4045 = vmatprep.subr.bf16.mxu0 %v2949
      %4046 = vmatpush1.bf16.msra.mxu0 %v2948
      %4047 = vmatprep.subr.bf16.mxu0 %v2953
      %4048 = vmatpush1.bf16.msra.mxu0 %v2952
      %4049 = vmatprep.subr.bf16.mxu0 %v2957
      %4050 = vmatpush1.bf16.msra.mxu0 %v2956
      %4051 = vmatprep.subr.bf16.mxu0 %v2961
      %4052 = vmatpush1.bf16.msra.mxu0 %v2960
      %4053 = vmatprep.subr.bf16.mxu0 %v2965
      %4054 = vmatpush1.bf16.msra.mxu0 %v2964
      %4055 = vmatprep.mubr.bf16.mxu0 %v919
      %4056 = vmatmul.mubr.bf16.gmra.mrb[0].mxu0 %v918
      %v4057 = vpop.f32.mrb[0].mxu0
      %v4058 = vadd.f32 %v4005, %v4057
      %v4059 = vpop.f32.mrb[0].mxu0
      %v4060 = vadd.f32 %v4007, %v4059
      %v4061 = vpop.f32.mrb[0].mxu0
      %v4062 = vadd.f32 %v4009, %v4061
      %v4063 = vpop.f32.mrb[0].mxu0
      %v4064 = vadd.f32 %v4011, %v4063
      %4065 = vmatprep.mubr.bf16.mxu0 %v937
      %4066 = vmatmul.mubr.bf16.gmra.mrb[0].mxu0 %v936
      %v4067 = vpop.f32.mrb[0].mxu0
      %v4068 = vadd.f32 %v4015, %v4067
      %v4069 = vpop.f32.mrb[0].mxu0
      %v4070 = vadd.f32 %v4017, %v4069
      %v4071 = vpop.f32.mrb[0].mxu0
      %v4072 = vadd.f32 %v4019, %v4071
      %v4073 = vpop.f32.mrb[0].mxu0
      %v4074 = vadd.f32 %v4021, %v4073
      %4075 = vdwg.mxu0
      %4076 = vmatprep.subr.bf16.mxu0 %v2969
      %4077 = vmatpush1.bf16.msra.mxu0 %v2968
      %4078 = vmatprep.subr.bf16.mxu0 %v2973
      %4079 = vmatpush1.bf16.msra.mxu0 %v2972
      %4080 = vmatprep.subr.bf16.mxu0 %v2977
      %4081 = vmatpush1.bf16.msra.mxu0 %v2976
      %4082 = vmatprep.subr.bf16.mxu0 %v2981
      %4083 = vmatpush1.bf16.msra.mxu0 %v2980
      %4084 = vmatprep.subr.bf16.mxu0 %v2985
      %4085 = vmatpush1.bf16.msra.mxu0 %v2984
      %4086 = vmatprep.subr.bf16.mxu0 %v2989
      %4087 = vmatpush1.bf16.msra.mxu0 %v2988
      %4088 = vmatprep.subr.bf16.mxu0 %v2993
      %4089 = vmatpush1.bf16.msra.mxu0 %v2992
      %4090 = vmatprep.subr.bf16.mxu0 %v2997
      %4091 = vmatpush1.bf16.msra.mxu0 %v2996
      %4092 = vmatprep.subr.bf16.mxu0 %v3001
      %4093 = vmatpush1.bf16.msra.mxu0 %v3000
      %4094 = vmatprep.subr.bf16.mxu0 %v3005
      %4095 = vmatpush1.bf16.msra.mxu0 %v3004
      %4096 = vmatprep.subr.bf16.mxu0 %v3009
      %4097 = vmatpush1.bf16.msra.mxu0 %v3008
      %4098 = vmatprep.subr.bf16.mxu0 %v3013
      %4099 = vmatpush1.bf16.msra.mxu0 %v3012
      %4100 = vmatprep.subr.bf16.mxu0 %v3017
      %4101 = vmatpush1.bf16.msra.mxu0 %v3016
      %4102 = vmatprep.subr.bf16.mxu0 %v3021
      %4103 = vmatpush1.bf16.msra.mxu0 %v3020
      %4104 = vmatprep.subr.bf16.mxu0 %v3025
      %4105 = vmatpush1.bf16.msra.mxu0 %v3024
      %4106 = vmatprep.subr.bf16.mxu0 %v3029
      %4107 = vmatpush1.bf16.msra.mxu0 %v3028
      %4108 = vmatprep.mubr.bf16.mxu0 %v921
      %4109 = vmatmul.mubr.bf16.gmra.mrb[0].mxu0 %v920
      %v4110 = vpop.f32.mrb[0].mxu0
      %v4111 = vadd.f32 %v4058, %v4110
      %v4112 = vpop.f32.mrb[0].mxu0
      %v4113 = vadd.f32 %v4060, %v4112
      %v4114 = vpop.f32.mrb[0].mxu0
      %v4115 = vadd.f32 %v4062, %v4114
      %v4116 = vpop.f32.mrb[0].mxu0
      %v4117 = vadd.f32 %v4064, %v4116
      %4118 = vmatprep.mubr.bf16.mxu0 %v939
      %4119 = vmatmul.mubr.bf16.gmra.mrb[0].mxu0 %v938
      %v4120 = vpop.f32.mrb[0].mxu0
      %v4121 = vadd.f32 %v4068, %v4120
      %v4122 = vpop.f32.mrb[0].mxu0
      %v4123 = vadd.f32 %v4070, %v4122
      %v4124 = vpop.f32.mrb[0].mxu0
      %v4125 = vadd.f32 %v4072, %v4124
      %v4126 = vpop.f32.mrb[0].mxu0
      %v4127 = vadd.f32 %v4074, %v4126
      %4128 = vdwg.mxu0
      %4129 = vmatprep.subr.bf16.mxu0 %v3033
      %4130 = vmatpush1.bf16.msra.mxu0 %v3032
      %4131 = vmatprep.subr.bf16.mxu0 %v3037
      %4132 = vmatpush1.bf16.msra.mxu0 %v3036
      %4133 = vmatprep.subr.bf16.mxu0 %v3041
      %4134 = vmatpush1.bf16.msra.mxu0 %v3040
      %4135 = vmatprep.subr.bf16.mxu0 %v3045
      %4136 = vmatpush1.bf16.msra.mxu0 %v3044
      %4137 = vmatprep.subr.bf16.mxu0 %v3049
      %4138 = vmatpush1.bf16.msra.mxu0 %v3048
      %4139 = vmatprep.subr.bf16.mxu0 %v3053
      %4140 = vmatpush1.bf16.msra.mxu0 %v3052
      %4141 = vmatprep.subr.bf16.mxu0 %v3057
      %4142 = vmatpush1.bf16.msra.mxu0 %v3056
      %4143 = vmatprep.subr.bf16.mxu0 %v3061
      %4144 = vmatpush1.bf16.msra.mxu0 %v3060
      %4145 = vmatprep.subr.bf16.mxu0 %v3065
      %4146 = vmatpush1.bf16.msra.mxu0 %v3064
      %4147 = vmatprep.subr.bf16.mxu0 %v3069
      %4148 = vmatpush1.bf16.msra.mxu0 %v3068
      %4149 = vmatprep.subr.bf16.mxu0 %v3073
      %4150 = vmatpush1.bf16.msra.mxu0 %v3072
      %4151 = vmatprep.subr.bf16.mxu0 %v3077
      %4152 = vmatpush1.bf16.msra.mxu0 %v3076
      %4153 = vmatprep.subr.bf16.mxu0 %v3081
      %4154 = vmatpush1.bf16.msra.mxu0 %v3080
      %4155 = vmatprep.subr.bf16.mxu0 %v3085
      %4156 = vmatpush1.bf16.msra.mxu0 %v3084
      %4157 = vmatprep.subr.bf16.mxu0 %v3089
      %4158 = vmatpush1.bf16.msra.mxu0 %v3088
      %4159 = vmatprep.subr.bf16.mxu0 %v3093
      %4160 = vmatpush1.bf16.msra.mxu0 %v3092
      %4161 = vmatprep.mubr.bf16.mxu0 %v923
      %4162 = vmatmul.mubr.bf16.gmra.mrb[0].mxu0 %v922
      %v4163 = vpop.f32.mrb[0].mxu0
      %v4164 = vadd.f32 %v4111, %v4163
      %v4165 = vpop.f32.mrb[0].mxu0
      %v4166 = vadd.f32 %v4113, %v4165
      %v4167 = vpop.f32.mrb[0].mxu0
      %v4168 = vadd.f32 %v4115, %v4167
      %v4169 = vpop.f32.mrb[0].mxu0
      %v4170 = vadd.f32 %v4117, %v4169
      %4171 = vmatprep.mubr.bf16.mxu0 %v941
      %4172 = vmatmul.mubr.bf16.gmra.mrb[0].mxu0 %v940
      %v4173 = vpop.f32.mrb[0].mxu0
      %v4174 = vadd.f32 %v4121, %v4173
      %v4175 = vpop.f32.mrb[0].mxu0
      %v4176 = vadd.f32 %v4123, %v4175
      %v4177 = vpop.f32.mrb[0].mxu0
      %v4178 = vadd.f32 %v4125, %v4177
      %v4179 = vpop.f32.mrb[0].mxu0
      %v4180 = vadd.f32 %v4127, %v4179
      %4181 = vdwg.mxu0
      %4182 = vmatprep.subr.bf16.mxu0 %v3097
      %4183 = vmatpush1.bf16.msra.mxu0 %v3096
      %4184 = vmatprep.subr.bf16.mxu0 %v3101
      %4185 = vmatpush1.bf16.msra.mxu0 %v3100
      %4186 = vmatprep.subr.bf16.mxu0 %v3105
      %4187 = vmatpush1.bf16.msra.mxu0 %v3104
      %4188 = vmatprep.subr.bf16.mxu0 %v3109
      %4189 = vmatpush1.bf16.msra.mxu0 %v3108
      %4190 = vmatprep.subr.bf16.mxu0 %v3113
      %4191 = vmatpush1.bf16.msra.mxu0 %v3112
      %4192 = vmatprep.subr.bf16.mxu0 %v3117
      %4193 = vmatpush1.bf16.msra.mxu0 %v3116
      %4194 = vmatprep.subr.bf16.mxu0 %v3121
      %4195 = vmatpush1.bf16.msra.mxu0 %v3120
      %4196 = vmatprep.subr.bf16.mxu0 %v3125
      %4197 = vmatpush1.bf16.msra.mxu0 %v3124
      %4198 = vmatprep.subr.bf16.mxu0 %v3129
      %4199 = vmatpush1.bf16.msra.mxu0 %v3128
      %4200 = vmatprep.subr.bf16.mxu0 %v3133
      %4201 = vmatpush1.bf16.msra.mxu0 %v3132
      %4202 = vmatprep.subr.bf16.mxu0 %v3137
      %4203 = vmatpush1.bf16.msra.mxu0 %v3136
      %4204 = vmatprep.subr.bf16.mxu0 %v3141
      %4205 = vmatpush1.bf16.msra.mxu0 %v3140
      %4206 = vmatprep.subr.bf16.mxu0 %v3145
      %4207 = vmatpush1.bf16.msra.mxu0 %v3144
      %4208 = vmatprep.subr.bf16.mxu0 %v3149
      %4209 = vmatpush1.bf16.msra.mxu0 %v3148
      %4210 = vmatprep.subr.bf16.mxu0 %v3153
      %4211 = vmatpush1.bf16.msra.mxu0 %v3152
      %4212 = vmatprep.subr.bf16.mxu0 %v3157
      %4213 = vmatpush1.bf16.msra.mxu0 %v3156
      %4214 = vmatprep.mubr.bf16.mxu0 %v925
      %4215 = vmatmul.mubr.bf16.gmra.mrb[0].mxu0 %v924
      %v4216 = vpop.f32.mrb[0].mxu0
      %v4217 = vadd.f32 %v4164, %v4216
      %v4218 = vpop.f32.mrb[0].mxu0
      %v4219 = vadd.f32 %v4166, %v4218
      %v4220 = vpop.f32.mrb[0].mxu0
      %v4221 = vadd.f32 %v4168, %v4220
      %v4222 = vpop.f32.mrb[0].mxu0
      %v4223 = vadd.f32 %v4170, %v4222
      %4224 = vmatprep.mubr.bf16.mxu0 %v943
      %4225 = vmatmul.mubr.bf16.gmra.mrb[0].mxu0 %v942
      %v4226 = vpop.f32.mrb[0].mxu0
      %v4227 = vadd.f32 %v4174, %v4226
      %v4228 = vpop.f32.mrb[0].mxu0
      %v4229 = vadd.f32 %v4176, %v4228
      %v4230 = vpop.f32.mrb[0].mxu0
      %v4231 = vadd.f32 %v4178, %v4230
      %v4232 = vpop.f32.mrb[0].mxu0
      %v4233 = vadd.f32 %v4180, %v4232
      %4234 = vdwg.mxu0
      %4235 = vmatprep.subr.bf16.mxu0 %v3161
      %4236 = vmatpush1.bf16.msra.mxu0 %v3160
      %4237 = vmatprep.subr.bf16.mxu0 %v3165
      %4238 = vmatpush1.bf16.msra.mxu0 %v3164
      %4239 = vmatprep.subr.bf16.mxu0 %v3169
      %4240 = vmatpush1.bf16.msra.mxu0 %v3168
      %4241 = vmatprep.subr.bf16.mxu0 %v3173
      %4242 = vmatpush1.bf16.msra.mxu0 %v3172
      %4243 = vmatprep.subr.bf16.mxu0 %v3177
      %4244 = vmatpush1.bf16.msra.mxu0 %v3176
      %4245 = vmatprep.subr.bf16.mxu0 %v3181
      %4246 = vmatpush1.bf16.msra.mxu0 %v3180
      %4247 = vmatprep.subr.bf16.mxu0 %v3185
      %4248 = vmatpush1.bf16.msra.mxu0 %v3184
      %4249 = vmatprep.subr.bf16.mxu0 %v3189
      %4250 = vmatpush1.bf16.msra.mxu0 %v3188
      %4251 = vmatprep.subr.bf16.mxu0 %v3193
      %4252 = vmatpush1.bf16.msra.mxu0 %v3192
      %4253 = vmatprep.subr.bf16.mxu0 %v3197
      %4254 = vmatpush1.bf16.msra.mxu0 %v3196
      %4255 = vmatprep.subr.bf16.mxu0 %v3201
      %4256 = vmatpush1.bf16.msra.mxu0 %v3200
      %4257 = vmatprep.subr.bf16.mxu0 %v3205
      %4258 = vmatpush1.bf16.msra.mxu0 %v3204
      %4259 = vmatprep.subr.bf16.mxu0 %v3209
      %4260 = vmatpush1.bf16.msra.mxu0 %v3208
      %4261 = vmatprep.subr.bf16.mxu0 %v3213
      %4262 = vmatpush1.bf16.msra.mxu0 %v3212
      %4263 = vmatprep.subr.bf16.mxu0 %v3217
      %4264 = vmatpush1.bf16.msra.mxu0 %v3216
      %4265 = vmatprep.subr.bf16.mxu0 %v3221
      %4266 = vmatpush1.bf16.msra.mxu0 %v3220
      %4267 = vmatprep.mubr.bf16.mxu0 %v927
      %4268 = vmatmul.mubr.bf16.gmra.mrb[0].mxu0 %v926
      %v4269 = vpop.f32.mrb[0].mxu0
      %v4270 = vadd.f32 %v4217, %v4269
      %v4271 = vpop.f32.mrb[0].mxu0
      %v4272 = vadd.f32 %v4219, %v4271
      %v4273 = vpop.f32.mrb[0].mxu0
      %v4274 = vadd.f32 %v4221, %v4273
      %v4275 = vpop.f32.mrb[0].mxu0
      %v4276 = vadd.f32 %v4223, %v4275
      %4277 = vmatprep.mubr.bf16.mxu0 %v945
      %4278 = vmatmul.mubr.bf16.gmra.mrb[0].mxu0 %v944
      %v4279 = vpop.f32.mrb[0].mxu0
      %v4280 = vadd.f32 %v4227, %v4279
      %v4281 = vpop.f32.mrb[0].mxu0
      %v4282 = vadd.f32 %v4229, %v4281
      %v4283 = vpop.f32.mrb[0].mxu0
      %v4284 = vadd.f32 %v4231, %v4283
      %v4285 = vpop.f32.mrb[0].mxu0
      %v4286 = vadd.f32 %v4233, %v4285
      %4287 = vdwg.mxu0
      %4288 = vmatprep.subr.bf16.mxu0 %v3225
      %4289 = vmatpush1.bf16.msra.mxu0 %v3224
      %4290 = vmatprep.subr.bf16.mxu0 %v3229
      %4291 = vmatpush1.bf16.msra.mxu0 %v3228
      %4292 = vmatprep.subr.bf16.mxu0 %v3233
      %4293 = vmatpush1.bf16.msra.mxu0 %v3232
      %4294 = vmatprep.subr.bf16.mxu0 %v3237
      %4295 = vmatpush1.bf16.msra.mxu0 %v3236
      %4296 = vmatprep.subr.bf16.mxu0 %v3241
      %4297 = vmatpush1.bf16.msra.mxu0 %v3240
      %4298 = vmatprep.subr.bf16.mxu0 %v3245
      %4299 = vmatpush1.bf16.msra.mxu0 %v3244
      %4300 = vmatprep.subr.bf16.mxu0 %v3249
      %4301 = vmatpush1.bf16.msra.mxu0 %v3248
      %4302 = vmatprep.subr.bf16.mxu0 %v3253
      %4303 = vmatpush1.bf16.msra.mxu0 %v3252
      %4304 = vmatprep.subr.bf16.mxu0 %v3257
      %4305 = vmatpush1.bf16.msra.mxu0 %v3256
      %4306 = vmatprep.subr.bf16.mxu0 %v3261
      %4307 = vmatpush1.bf16.msra.mxu0 %v3260
      %4308 = vmatprep.subr.bf16.mxu0 %v3265
      %4309 = vmatpush1.bf16.msra.mxu0 %v3264
      %4310 = vmatprep.subr.bf16.mxu0 %v3269
      %4311 = vmatpush1.bf16.msra.mxu0 %v3268
      %4312 = vmatprep.subr.bf16.mxu0 %v3273
      %4313 = vmatpush1.bf16.msra.mxu0 %v3272
      %4314 = vmatprep.subr.bf16.mxu0 %v3277
      %4315 = vmatpush1.bf16.msra.mxu0 %v3276
      %4316 = vmatprep.subr.bf16.mxu0 %v3281
      %4317 = vmatpush1.bf16.msra.mxu0 %v3280
      %4318 = vmatprep.subr.bf16.mxu0 %v3285
      %4319 = vmatpush1.bf16.msra.mxu0 %v3284
      %4320 = vmatprep.mubr.bf16.mxu0 %v929
      %4321 = vmatmul.mubr.bf16.gmra.mrb[0].mxu0 %v928
      %v4322 = vpop.f32.mrb[0].mxu0
      %v4323 = vadd.f32 %v4270, %v4322
      %v4324 = vpop.f32.mrb[0].mxu0
      %v4325 = vadd.f32 %v4272, %v4324
      %v4326 = vpop.f32.mrb[0].mxu0
      %v4327 = vadd.f32 %v4274, %v4326
      %v4328 = vpop.f32.mrb[0].mxu0
      %v4329 = vadd.f32 %v4276, %v4328
      %4330 = vmatprep.mubr.bf16.mxu0 %v947
      %4331 = vmatmul.mubr.bf16.gmra.mrb[0].mxu0 %v946
      %v4332 = vpop.f32.mrb[0].mxu0
      %v4333 = vadd.f32 %v4280, %v4332
      %v4334 = vpop.f32.mrb[0].mxu0
      %v4335 = vadd.f32 %v4282, %v4334
      %v4336 = vpop.f32.mrb[0].mxu0
      %v4337 = vadd.f32 %v4284, %v4336
      %v4338 = vpop.f32.mrb[0].mxu0
      %v4339 = vadd.f32 %v4286, %v4338
      %4340 = vdwg.mxu0
      %4341 = vmatprep.subr.bf16.mxu0 %v2715
      %4342 = vmatpush1.bf16.msra.mxu0 %v2714
      %4343 = vmatprep.subr.bf16.mxu0 %v2719
      %4344 = vmatpush1.bf16.msra.mxu0 %v2718
      %4345 = vmatprep.subr.bf16.mxu0 %v2723
      %4346 = vmatpush1.bf16.msra.mxu0 %v2722
      %4347 = vmatprep.subr.bf16.mxu0 %v2727
      %4348 = vmatpush1.bf16.msra.mxu0 %v2726
      %4349 = vmatprep.subr.bf16.mxu0 %v2731
      %4350 = vmatpush1.bf16.msra.mxu0 %v2730
      %4351 = vmatprep.subr.bf16.mxu0 %v2735
      %4352 = vmatpush1.bf16.msra.mxu0 %v2734
      %4353 = vmatprep.subr.bf16.mxu0 %v2739
      %4354 = vmatpush1.bf16.msra.mxu0 %v2738
      %4355 = vmatprep.subr.bf16.mxu0 %v2743
      %4356 = vmatpush1.bf16.msra.mxu0 %v2742
      %4357 = vmatprep.subr.bf16.mxu0 %v2747
      %4358 = vmatpush1.bf16.msra.mxu0 %v2746
      %4359 = vmatprep.subr.bf16.mxu0 %v2751
      %4360 = vmatpush1.bf16.msra.mxu0 %v2750
      %4361 = vmatprep.subr.bf16.mxu0 %v2755
      %4362 = vmatpush1.bf16.msra.mxu0 %v2754
      %4363 = vmatprep.subr.bf16.mxu0 %v2759
      %4364 = vmatpush1.bf16.msra.mxu0 %v2758
      %4365 = vmatprep.subr.bf16.mxu0 %v2763
      %4366 = vmatpush1.bf16.msra.mxu0 %v2762
      %4367 = vmatprep.subr.bf16.mxu0 %v2767
      %4368 = vmatpush1.bf16.msra.mxu0 %v2766
      %4369 = vmatprep.subr.bf16.mxu0 %v2771
      %4370 = vmatpush1.bf16.msra.mxu0 %v2770
      %4371 = vmatprep.subr.bf16.mxu0 %v2775
      %4372 = vmatpush1.bf16.msra.mxu0 %v2774
      %4373 = vmatprep.mubr.bf16.mxu0 %v913
      %4374 = vmatmul.mubr.bf16.gmra.mrb[0].mxu0 %v912
      %v4375 = vpop.f32.mrb[0].mxu0
      %v4376 = vadd.f32 0.0, %v4375
      %v4377 = vpop.f32.mrb[0].mxu0
      %v4378 = vadd.f32 0.0, %v4377
      %v4379 = vpop.f32.mrb[0].mxu0
      %v4380 = vadd.f32 0.0, %v4379
      %v4381 = vpop.f32.mrb[0].mxu0
      %v4382 = vadd.f32 0.0, %v4381
      %4383 = vmatprep.mubr.bf16.mxu0 %v931
      %4384 = vmatmul.mubr.bf16.gmra.mrb[0].mxu0 %v930
      %v4385 = vpop.f32.mrb[0].mxu0
      %v4386 = vadd.f32 0.0, %v4385
      %v4387 = vpop.f32.mrb[0].mxu0
      %v4388 = vadd.f32 0.0, %v4387
      %v4389 = vpop.f32.mrb[0].mxu0
      %v4390 = vadd.f32 0.0, %v4389
      %v4391 = vpop.f32.mrb[0].mxu0
      %v4392 = vadd.f32 0.0, %v4391
      %4393 = vdwg.mxu0
      %4394 = vmatprep.subr.bf16.mxu0 %v2779
      %4395 = vmatpush1.bf16.msra.mxu0 %v2778
      %4396 = vmatprep.subr.bf16.mxu0 %v2783
      %4397 = vmatpush1.bf16.msra.mxu0 %v2782
      %4398 = vmatprep.subr.bf16.mxu0 %v2787
      %4399 = vmatpush1.bf16.msra.mxu0 %v2786
      %4400 = vmatprep.subr.bf16.mxu0 %v2791
      %4401 = vmatpush1.bf16.msra.mxu0 %v2790
      %4402 = vmatprep.subr.bf16.mxu0 %v2795
      %4403 = vmatpush1.bf16.msra.mxu0 %v2794
      %4404 = vmatprep.subr.bf16.mxu0 %v2799
      %4405 = vmatpush1.bf16.msra.mxu0 %v2798
      %4406 = vmatprep.subr.bf16.mxu0 %v2803
      %4407 = vmatpush1.bf16.msra.mxu0 %v2802
      %4408 = vmatprep.subr.bf16.mxu0 %v2807
      %4409 = vmatpush1.bf16.msra.mxu0 %v2806
      %4410 = vmatprep.subr.bf16.mxu0 %v2811
      %4411 = vmatpush1.bf16.msra.mxu0 %v2810
      %4412 = vmatprep.subr.bf16.mxu0 %v2815
      %4413 = vmatpush1.bf16.msra.mxu0 %v2814
      %4414 = vmatprep.subr.bf16.mxu0 %v2819
      %4415 = vmatpush1.bf16.msra.mxu0 %v2818
      %4416 = vmatprep.subr.bf16.mxu0 %v2823
      %4417 = vmatpush1.bf16.msra.mxu0 %v2822
      %4418 = vmatprep.subr.bf16.mxu0 %v2827
      %4419 = vmatpush1.bf16.msra.mxu0 %v2826
      %4420 = vmatprep.subr.bf16.mxu0 %v2831
      %4421 = vmatpush1.bf16.msra.mxu0 %v2830
      %4422 = vmatprep.subr.bf16.mxu0 %v2835
      %4423 = vmatpush1.bf16.msra.mxu0 %v2834
      %4424 = vmatprep.subr.bf16.mxu0 %v2839
      %4425 = vmatpush1.bf16.msra.mxu0 %v2838
      %4426 = vmatprep.mubr.bf16.mxu0 %v915
      %4427 = vmatmul.mubr.bf16.gmra.mrb[0].mxu0 %v914
      %v4428 = vpop.f32.mrb[0].mxu0
      %v4429 = vadd.f32 %v4376, %v4428
      %v4430 = vpop.f32.mrb[0].mxu0
      %v4431 = vadd.f32 %v4378, %v4430
      %v4432 = vpop.f32.mrb[0].mxu0
      %v4433 = vadd.f32 %v4380, %v4432
      %v4434 = vpop.f32.mrb[0].mxu0
      %v4435 = vadd.f32 %v4382, %v4434
      %4436 = vmatprep.mubr.bf16.mxu0 %v933
      %4437 = vmatmul.mubr.bf16.gmra.mrb[0].mxu0 %v932
      %v4438 = vpop.f32.mrb[0].mxu0
      %v4439 = vadd.f32 %v4386, %v4438
      %v4440 = vpop.f32.mrb[0].mxu0
      %v4441 = vadd.f32 %v4388, %v4440
      %v4442 = vpop.f32.mrb[0].mxu0
      %v4443 = vadd.f32 %v4390, %v4442
      %v4444 = vpop.f32.mrb[0].mxu0
      %v4445 = vadd.f32 %v4392, %v4444
      %4446 = vdwg.mxu0
      %4447 = vmatprep.subr.bf16.mxu0 %v2843
      %4448 = vmatpush1.bf16.msra.mxu0 %v2842
      %4449 = vmatprep.subr.bf16.mxu0 %v2847
      %4450 = vmatpush1.bf16.msra.mxu0 %v2846
      %4451 = vmatprep.subr.bf16.mxu0 %v2851
      %4452 = vmatpush1.bf16.msra.mxu0 %v2850
      %4453 = vmatprep.subr.bf16.mxu0 %v2855
      %4454 = vmatpush1.bf16.msra.mxu0 %v2854
      %4455 = vmatprep.subr.bf16.mxu0 %v2859
      %4456 = vmatpush1.bf16.msra.mxu0 %v2858
      %4457 = vmatprep.subr.bf16.mxu0 %v2863
      %4458 = vmatpush1.bf16.msra.mxu0 %v2862
      %4459 = vmatprep.subr.bf16.mxu0 %v2867
      %4460 = vmatpush1.bf16.msra.mxu0 %v2866
      %4461 = vmatprep.subr.bf16.mxu0 %v2871
      %4462 = vmatpush1.bf16.msra.mxu0 %v2870
      %4463 = vmatprep.subr.bf16.mxu0 %v2875
      %4464 = vmatpush1.bf16.msra.mxu0 %v2874
      %4465 = vmatprep.subr.bf16.mxu0 %v2879
      %4466 = vmatpush1.bf16.msra.mxu0 %v2878
      %4467 = vmatprep.subr.bf16.mxu0 %v2883
      %4468 = vmatpush1.bf16.msra.mxu0 %v2882
      %4469 = vmatprep.subr.bf16.mxu0 %v2887
      %4470 = vmatpush1.bf16.msra.mxu0 %v2886
      %4471 = vmatprep.subr.bf16.mxu0 %v2891
      %4472 = vmatpush1.bf16.msra.mxu0 %v2890
      %4473 = vmatprep.subr.bf16.mxu0 %v2895
      %4474 = vmatpush1.bf16.msra.mxu0 %v2894
      %4475 = vmatprep.subr.bf16.mxu0 %v2899
      %4476 = vmatpush1.bf16.msra.mxu0 %v2898
      %4477 = vmatprep.subr.bf16.mxu0 %v2903
      %4478 = vmatpush1.bf16.msra.mxu0 %v2902
      %4479 = vmatprep.mubr.bf16.mxu0 %v917
      %4480 = vmatmul.mubr.bf16.gmra.mrb[0].mxu0 %v916
      %v4481 = vpop.f32.mrb[0].mxu0
      %v4482 = vadd.f32 %v4429, %v4481
      %v4483 = vpop.f32.mrb[0].mxu0
      %v4484 = vadd.f32 %v4431, %v4483
      %v4485 = vpop.f32.mrb[0].mxu0
      %v4486 = vadd.f32 %v4433, %v4485
      %v4487 = vpop.f32.mrb[0].mxu0
      %v4488 = vadd.f32 %v4435, %v4487
      %4489 = vmatprep.mubr.bf16.mxu0 %v935
      %4490 = vmatmul.mubr.bf16.gmra.mrb[0].mxu0 %v934
      %v4491 = vpop.f32.mrb[0].mxu0
      %v4492 = vadd.f32 %v4439, %v4491
      %v4493 = vpop.f32.mrb[0].mxu0
      %v4494 = vadd.f32 %v4441, %v4493
      %v4495 = vpop.f32.mrb[0].mxu0
      %v4496 = vadd.f32 %v4443, %v4495
      %v4497 = vpop.f32.mrb[0].mxu0
      %v4498 = vadd.f32 %v4445, %v4497
      %4499 = vdwg.mxu0
      %4500 = vmatprep.subr.bf16.mxu0 %v2907
      %4501 = vmatpush1.bf16.msra.mxu0 %v2906
      %4502 = vmatprep.subr.bf16.mxu0 %v2911
      %4503 = vmatpush1.bf16.msra.mxu0 %v2910
      %4504 = vmatprep.subr.bf16.mxu0 %v2915
      %4505 = vmatpush1.bf16.msra.mxu0 %v2914
      %4506 = vmatprep.subr.bf16.mxu0 %v2919
      %4507 = vmatpush1.bf16.msra.mxu0 %v2918
      %4508 = vmatprep.subr.bf16.mxu0 %v2923
      %4509 = vmatpush1.bf16.msra.mxu0 %v2922
      %4510 = vmatprep.subr.bf16.mxu0 %v2927
      %4511 = vmatpush1.bf16.msra.mxu0 %v2926
      %4512 = vmatprep.subr.bf16.mxu0 %v2931
      %4513 = vmatpush1.bf16.msra.mxu0 %v2930
      %4514 = vmatprep.subr.bf16.mxu0 %v2935
      %4515 = vmatpush1.bf16.msra.mxu0 %v2934
      %4516 = vmatprep.subr.bf16.mxu0 %v2939
      %4517 = vmatpush1.bf16.msra.mxu0 %v2938
      %4518 = vmatprep.subr.bf16.mxu0 %v2943
      %4519 = vmatpush1.bf16.msra.mxu0 %v2942
      %4520 = vmatprep.subr.bf16.mxu0 %v2947
      %4521 = vmatpush1.bf16.msra.mxu0 %v2946
      %4522 = vmatprep.subr.bf16.mxu0 %v2951
      %4523 = vmatpush1.bf16.msra.mxu0 %v2950
      %4524 = vmatprep.subr.bf16.mxu0 %v2955
      %4525 = vmatpush1.bf16.msra.mxu0 %v2954
      %4526 = vmatprep.subr.bf16.mxu0 %v2959
      %4527 = vmatpush1.bf16.msra.mxu0 %v2958
      %4528 = vmatprep.subr.bf16.mxu0 %v2963
      %4529 = vmatpush1.bf16.msra.mxu0 %v2962
      %4530 = vmatprep.subr.bf16.mxu0 %v2967
      %4531 = vmatpush1.bf16.msra.mxu0 %v2966
      %4532 = vmatprep.mubr.bf16.mxu0 %v919
      %4533 = vmatmul.mubr.bf16.gmra.mrb[0].mxu0 %v918
      %v4534 = vpop.f32.mrb[0].mxu0
      %v4535 = vadd.f32 %v4482, %v4534
      %v4536 = vpop.f32.mrb[0].mxu0
      %v4537 = vadd.f32 %v4484, %v4536
      %v4538 = vpop.f32.mrb[0].mxu0
      %v4539 = vadd.f32 %v4486, %v4538
      %v4540 = vpop.f32.mrb[0].mxu0
      %v4541 = vadd.f32 %v4488, %v4540
      %4542 = vmatprep.mubr.bf16.mxu0 %v937
      %4543 = vmatmul.mubr.bf16.gmra.mrb[0].mxu0 %v936
      %v4544 = vpop.f32.mrb[0].mxu0
      %v4545 = vadd.f32 %v4492, %v4544
      %v4546 = vpop.f32.mrb[0].mxu0
      %v4547 = vadd.f32 %v4494, %v4546
      %v4548 = vpop.f32.mrb[0].mxu0
      %v4549 = vadd.f32 %v4496, %v4548
      %v4550 = vpop.f32.mrb[0].mxu0
      %v4551 = vadd.f32 %v4498, %v4550
      %4552 = vdwg.mxu0
      %4553 = vmatprep.subr.bf16.mxu0 %v2971
      %4554 = vmatpush1.bf16.msra.mxu0 %v2970
      %4555 = vmatprep.subr.bf16.mxu0 %v2975
      %4556 = vmatpush1.bf16.msra.mxu0 %v2974
      %4557 = vmatprep.subr.bf16.mxu0 %v2979
      %4558 = vmatpush1.bf16.msra.mxu0 %v2978
      %4559 = vmatprep.subr.bf16.mxu0 %v2983
      %4560 = vmatpush1.bf16.msra.mxu0 %v2982
      %4561 = vmatprep.subr.bf16.mxu0 %v2987
      %4562 = vmatpush1.bf16.msra.mxu0 %v2986
      %4563 = vmatprep.subr.bf16.mxu0 %v2991
      %4564 = vmatpush1.bf16.msra.mxu0 %v2990
      %4565 = vmatprep.subr.bf16.mxu0 %v2995
      %4566 = vmatpush1.bf16.msra.mxu0 %v2994
      %4567 = vmatprep.subr.bf16.mxu0 %v2999
      %4568 = vmatpush1.bf16.msra.mxu0 %v2998
      %4569 = vmatprep.subr.bf16.mxu0 %v3003
      %4570 = vmatpush1.bf16.msra.mxu0 %v3002
      %4571 = vmatprep.subr.bf16.mxu0 %v3007
      %4572 = vmatpush1.bf16.msra.mxu0 %v3006
      %4573 = vmatprep.subr.bf16.mxu0 %v3011
      %4574 = vmatpush1.bf16.msra.mxu0 %v3010
      %4575 = vmatprep.subr.bf16.mxu0 %v3015
      %4576 = vmatpush1.bf16.msra.mxu0 %v3014
      %4577 = vmatprep.subr.bf16.mxu0 %v3019
      %4578 = vmatpush1.bf16.msra.mxu0 %v3018
      %4579 = vmatprep.subr.bf16.mxu0 %v3023
      %4580 = vmatpush1.bf16.msra.mxu0 %v3022
      %4581 = vmatprep.subr.bf16.mxu0 %v3027
      %4582 = vmatpush1.bf16.msra.mxu0 %v3026
      %4583 = vmatprep.subr.bf16.mxu0 %v3031
      %4584 = vmatpush1.bf16.msra.mxu0 %v3030
      %4585 = vmatprep.mubr.bf16.mxu0 %v921
      %4586 = vmatmul.mubr.bf16.gmra.mrb[0].mxu0 %v920
      %v4587 = vpop.f32.mrb[0].mxu0
      %v4588 = vadd.f32 %v4535, %v4587
      %v4589 = vpop.f32.mrb[0].mxu0
      %v4590 = vadd.f32 %v4537, %v4589
      %v4591 = vpop.f32.mrb[0].mxu0
      %v4592 = vadd.f32 %v4539, %v4591
      %v4593 = vpop.f32.mrb[0].mxu0
      %v4594 = vadd.f32 %v4541, %v4593
      %4595 = vmatprep.mubr.bf16.mxu0 %v939
      %4596 = vmatmul.mubr.bf16.gmra.mrb[0].mxu0 %v938
      %v4597 = vpop.f32.mrb[0].mxu0
      %v4598 = vadd.f32 %v4545, %v4597
      %v4599 = vpop.f32.mrb[0].mxu0
      %v4600 = vadd.f32 %v4547, %v4599
      %v4601 = vpop.f32.mrb[0].mxu0
      %v4602 = vadd.f32 %v4549, %v4601
      %v4603 = vpop.f32.mrb[0].mxu0
      %v4604 = vadd.f32 %v4551, %v4603
      %4605 = vdwg.mxu0
      %4606 = vmatprep.subr.bf16.mxu0 %v3035
      %4607 = vmatpush1.bf16.msra.mxu0 %v3034
      %4608 = vmatprep.subr.bf16.mxu0 %v3039
      %4609 = vmatpush1.bf16.msra.mxu0 %v3038
      %4610 = vmatprep.subr.bf16.mxu0 %v3043
      %4611 = vmatpush1.bf16.msra.mxu0 %v3042
      %4612 = vmatprep.subr.bf16.mxu0 %v3047
      %4613 = vmatpush1.bf16.msra.mxu0 %v3046
      %4614 = vmatprep.subr.bf16.mxu0 %v3051
      %4615 = vmatpush1.bf16.msra.mxu0 %v3050
      %4616 = vmatprep.subr.bf16.mxu0 %v3055
      %4617 = vmatpush1.bf16.msra.mxu0 %v3054
      %4618 = vmatprep.subr.bf16.mxu0 %v3059
      %4619 = vmatpush1.bf16.msra.mxu0 %v3058
      %4620 = vmatprep.subr.bf16.mxu0 %v3063
      %4621 = vmatpush1.bf16.msra.mxu0 %v3062
      %4622 = vmatprep.subr.bf16.mxu0 %v3067
      %4623 = vmatpush1.bf16.msra.mxu0 %v3066
      %4624 = vmatprep.subr.bf16.mxu0 %v3071
      %4625 = vmatpush1.bf16.msra.mxu0 %v3070
      %4626 = vmatprep.subr.bf16.mxu0 %v3075
      %4627 = vmatpush1.bf16.msra.mxu0 %v3074
      %4628 = vmatprep.subr.bf16.mxu0 %v3079
      %4629 = vmatpush1.bf16.msra.mxu0 %v3078
      %4630 = vmatprep.subr.bf16.mxu0 %v3083
      %4631 = vmatpush1.bf16.msra.mxu0 %v3082
      %4632 = vmatprep.subr.bf16.mxu0 %v3087
      %4633 = vmatpush1.bf16.msra.mxu0 %v3086
      %4634 = vmatprep.subr.bf16.mxu0 %v3091
      %4635 = vmatpush1.bf16.msra.mxu0 %v3090
      %4636 = vmatprep.subr.bf16.mxu0 %v3095
      %4637 = vmatpush1.bf16.msra.mxu0 %v3094
      %4638 = vmatprep.mubr.bf16.mxu0 %v923
      %4639 = vmatmul.mubr.bf16.gmra.mrb[0].mxu0 %v922
      %v4640 = vpop.f32.mrb[0].mxu0
      %v4641 = vadd.f32 %v4588, %v4640
      %v4642 = vpop.f32.mrb[0].mxu0
      %v4643 = vadd.f32 %v4590, %v4642
      %v4644 = vpop.f32.mrb[0].mxu0
      %v4645 = vadd.f32 %v4592, %v4644
      %v4646 = vpop.f32.mrb[0].mxu0
      %v4647 = vadd.f32 %v4594, %v4646
      %4648 = vmatprep.mubr.bf16.mxu0 %v941
      %4649 = vmatmul.mubr.bf16.gmra.mrb[0].mxu0 %v940
      %v4650 = vpop.f32.mrb[0].mxu0
      %v4651 = vadd.f32 %v4598, %v4650
      %v4652 = vpop.f32.mrb[0].mxu0
      %v4653 = vadd.f32 %v4600, %v4652
      %v4654 = vpop.f32.mrb[0].mxu0
      %v4655 = vadd.f32 %v4602, %v4654
      %v4656 = vpop.f32.mrb[0].mxu0
      %v4657 = vadd.f32 %v4604, %v4656
      %4658 = vdwg.mxu0
      %4659 = vmatprep.subr.bf16.mxu0 %v3099
      %4660 = vmatpush1.bf16.msra.mxu0 %v3098
      %4661 = vmatprep.subr.bf16.mxu0 %v3103
      %4662 = vmatpush1.bf16.msra.mxu0 %v3102
      %4663 = vmatprep.subr.bf16.mxu0 %v3107
      %4664 = vmatpush1.bf16.msra.mxu0 %v3106
      %4665 = vmatprep.subr.bf16.mxu0 %v3111
      %4666 = vmatpush1.bf16.msra.mxu0 %v3110
      %4667 = vmatprep.subr.bf16.mxu0 %v3115
      %4668 = vmatpush1.bf16.msra.mxu0 %v3114
      %4669 = vmatprep.subr.bf16.mxu0 %v3119
      %4670 = vmatpush1.bf16.msra.mxu0 %v3118
      %4671 = vmatprep.subr.bf16.mxu0 %v3123
      %4672 = vmatpush1.bf16.msra.mxu0 %v3122
      %4673 = vmatprep.subr.bf16.mxu0 %v3127
      %4674 = vmatpush1.bf16.msra.mxu0 %v3126
      %4675 = vmatprep.subr.bf16.mxu0 %v3131
      %4676 = vmatpush1.bf16.msra.mxu0 %v3130
      %4677 = vmatprep.subr.bf16.mxu0 %v3135
      %4678 = vmatpush1.bf16.msra.mxu0 %v3134
      %4679 = vmatprep.subr.bf16.mxu0 %v3139
      %4680 = vmatpush1.bf16.msra.mxu0 %v3138
      %4681 = vmatprep.subr.bf16.mxu0 %v3143
      %4682 = vmatpush1.bf16.msra.mxu0 %v3142
      %4683 = vmatprep.subr.bf16.mxu0 %v3147
      %4684 = vmatpush1.bf16.msra.mxu0 %v3146
      %4685 = vmatprep.subr.bf16.mxu0 %v3151
      %4686 = vmatpush1.bf16.msra.mxu0 %v3150
      %4687 = vmatprep.subr.bf16.mxu0 %v3155
      %4688 = vmatpush1.bf16.msra.mxu0 %v3154
      %4689 = vmatprep.subr.bf16.mxu0 %v3159
      %4690 = vmatpush1.bf16.msra.mxu0 %v3158
      %4691 = vmatprep.mubr.bf16.mxu0 %v925
      %4692 = vmatmul.mubr.bf16.gmra.mrb[0].mxu0 %v924
      %v4693 = vpop.f32.mrb[0].mxu0
      %v4694 = vadd.f32 %v4641, %v4693
      %v4695 = vpop.f32.mrb[0].mxu0
      %v4696 = vadd.f32 %v4643, %v4695
      %v4697 = vpop.f32.mrb[0].mxu0
      %v4698 = vadd.f32 %v4645, %v4697
      %v4699 = vpop.f32.mrb[0].mxu0
      %v4700 = vadd.f32 %v4647, %v4699
      %4701 = vmatprep.mubr.bf16.mxu0 %v943
      %4702 = vmatmul.mubr.bf16.gmra.mrb[0].mxu0 %v942
      %v4703 = vpop.f32.mrb[0].mxu0
      %v4704 = vadd.f32 %v4651, %v4703
      %v4705 = vpop.f32.mrb[0].mxu0
      %v4706 = vadd.f32 %v4653, %v4705
      %v4707 = vpop.f32.mrb[0].mxu0
      %v4708 = vadd.f32 %v4655, %v4707
      %v4709 = vpop.f32.mrb[0].mxu0
      %v4710 = vadd.f32 %v4657, %v4709
      %4711 = vdwg.mxu0
      %4712 = vmatprep.subr.bf16.mxu0 %v3163
      %4713 = vmatpush1.bf16.msra.mxu0 %v3162
      %4714 = vmatprep.subr.bf16.mxu0 %v3167
      %4715 = vmatpush1.bf16.msra.mxu0 %v3166
      %4716 = vmatprep.subr.bf16.mxu0 %v3171
      %4717 = vmatpush1.bf16.msra.mxu0 %v3170
      %4718 = vmatprep.subr.bf16.mxu0 %v3175
      %4719 = vmatpush1.bf16.msra.mxu0 %v3174
      %4720 = vmatprep.subr.bf16.mxu0 %v3179
      %4721 = vmatpush1.bf16.msra.mxu0 %v3178
      %4722 = vmatprep.subr.bf16.mxu0 %v3183
      %4723 = vmatpush1.bf16.msra.mxu0 %v3182
      %4724 = vmatprep.subr.bf16.mxu0 %v3187
      %4725 = vmatpush1.bf16.msra.mxu0 %v3186
      %4726 = vmatprep.subr.bf16.mxu0 %v3191
      %4727 = vmatpush1.bf16.msra.mxu0 %v3190
      %4728 = vmatprep.subr.bf16.mxu0 %v3195
      %4729 = vmatpush1.bf16.msra.mxu0 %v3194
      %4730 = vmatprep.subr.bf16.mxu0 %v3199
      %4731 = vmatpush1.bf16.msra.mxu0 %v3198
      %4732 = vmatprep.subr.bf16.mxu0 %v3203
      %4733 = vmatpush1.bf16.msra.mxu0 %v3202
      %4734 = vmatprep.subr.bf16.mxu0 %v3207
      %4735 = vmatpush1.bf16.msra.mxu0 %v3206
      %4736 = vmatprep.subr.bf16.mxu0 %v3211
      %4737 = vmatpush1.bf16.msra.mxu0 %v3210
      %4738 = vmatprep.subr.bf16.mxu0 %v3215
      %4739 = vmatpush1.bf16.msra.mxu0 %v3214
      %4740 = vmatprep.subr.bf16.mxu0 %v3219
      %4741 = vmatpush1.bf16.msra.mxu0 %v3218
      %4742 = vmatprep.subr.bf16.mxu0 %v3223
      %4743 = vmatpush1.bf16.msra.mxu0 %v3222
      %4744 = vmatprep.mubr.bf16.mxu0 %v927
      %4745 = vmatmul.mubr.bf16.gmra.mrb[0].mxu0 %v926
      %v4746 = vpop.f32.mrb[0].mxu0
      %v4747 = vadd.f32 %v4694, %v4746
      %v4748 = vpop.f32.mrb[0].mxu0
      %v4749 = vadd.f32 %v4696, %v4748
      %v4750 = vpop.f32.mrb[0].mxu0
      %v4751 = vadd.f32 %v4698, %v4750
      %v4752 = vpop.f32.mrb[0].mxu0
      %v4753 = vadd.f32 %v4700, %v4752
      %4754 = vmatprep.mubr.bf16.mxu0 %v945
      %4755 = vmatmul.mubr.bf16.gmra.mrb[0].mxu0 %v944
      %v4756 = vpop.f32.mrb[0].mxu0
      %v4757 = vadd.f32 %v4704, %v4756
      %v4758 = vpop.f32.mrb[0].mxu0
      %v4759 = vadd.f32 %v4706, %v4758
      %v4760 = vpop.f32.mrb[0].mxu0
      %v4761 = vadd.f32 %v4708, %v4760
      %v4762 = vpop.f32.mrb[0].mxu0
      %v4763 = vadd.f32 %v4710, %v4762
      %4764 = vdwg.mxu0
      %4765 = vmatprep.subr.bf16.mxu0 %v3227
      %4766 = vmatpush1.bf16.msra.mxu0 %v3226
      %4767 = vmatprep.subr.bf16.mxu0 %v3231
      %4768 = vmatpush1.bf16.msra.mxu0 %v3230
      %4769 = vmatprep.subr.bf16.mxu0 %v3235
      %4770 = vmatpush1.bf16.msra.mxu0 %v3234
      %4771 = vmatprep.subr.bf16.mxu0 %v3239
      %4772 = vmatpush1.bf16.msra.mxu0 %v3238
      %4773 = vmatprep.subr.bf16.mxu0 %v3243
      %4774 = vmatpush1.bf16.msra.mxu0 %v3242
      %4775 = vmatprep.subr.bf16.mxu0 %v3247
      %4776 = vmatpush1.bf16.msra.mxu0 %v3246
      %4777 = vmatprep.subr.bf16.mxu0 %v3251
      %4778 = vmatpush1.bf16.msra.mxu0 %v3250
      %4779 = vmatprep.subr.bf16.mxu0 %v3255
      %4780 = vmatpush1.bf16.msra.mxu0 %v3254
      %4781 = vmatprep.subr.bf16.mxu0 %v3259
      %4782 = vmatpush1.bf16.msra.mxu0 %v3258
      %4783 = vmatprep.subr.bf16.mxu0 %v3263
      %4784 = vmatpush1.bf16.msra.mxu0 %v3262
      %4785 = vmatprep.subr.bf16.mxu0 %v3267
      %4786 = vmatpush1.bf16.msra.mxu0 %v3266
      %4787 = vmatprep.subr.bf16.mxu0 %v3271
      %4788 = vmatpush1.bf16.msra.mxu0 %v3270
      %4789 = vmatprep.subr.bf16.mxu0 %v3275
      %4790 = vmatpush1.bf16.msra.mxu0 %v3274
      %4791 = vmatprep.subr.bf16.mxu0 %v3279
      %4792 = vmatpush1.bf16.msra.mxu0 %v3278
      %4793 = vmatprep.subr.bf16.mxu0 %v3283
      %4794 = vmatpush1.bf16.msra.mxu0 %v3282
      %4795 = vmatprep.subr.bf16.mxu0 %v3287
      %4796 = vmatpush1.bf16.msra.mxu0 %v3286
      %4797 = vmatprep.mubr.bf16.mxu0 %v929
      %4798 = vmatmul.mubr.bf16.gmra.mrb[0].mxu0 %v928
      %v4799 = vpop.f32.mrb[0].mxu0
      %v4800 = vadd.f32 %v4747, %v4799
      %v4801 = vpop.f32.mrb[0].mxu0
      %v4802 = vadd.f32 %v4749, %v4801
      %v4803 = vpop.f32.mrb[0].mxu0
      %v4804 = vadd.f32 %v4751, %v4803
      %v4805 = vpop.f32.mrb[0].mxu0
      %v4806 = vadd.f32 %v4753, %v4805
      %4807 = vmatprep.mubr.bf16.mxu0 %v947
      %4808 = vmatmul.mubr.bf16.gmra.mrb[0].mxu0 %v946
      %v4809 = vpop.f32.mrb[0].mxu0
      %v4810 = vadd.f32 %v4757, %v4809
      %v4811 = vpop.f32.mrb[0].mxu0
      %v4812 = vadd.f32 %v4759, %v4811
      %v4813 = vpop.f32.mrb[0].mxu0
      %v4814 = vadd.f32 %v4761, %v4813
      %v4815 = vpop.f32.mrb[0].mxu0
      %v4816 = vadd.f32 %v4763, %v4815
      %4817 = vdwg.mxu0
      %v4818 = vpack.c.bf16 %v4327, %v4323
      %v4819 = vpack.c.bf16 %v4329, %v4325
      %v4820 = vpack.c.bf16 %v4804, %v4800
      %v4821 = vpack.c.bf16 %v4806, %v4802
      %v4822 = vpack.c.bf16 %v4337, %v4333
      %v4823 = vpack.c.bf16 %v4339, %v4335
      %v4824 = vpack.c.bf16 %v4814, %v4810
      %v4825 = vpack.c.bf16 %v4816, %v4812
      %v4834 = vunpack.c.l.b16 %v4818
      %v4835 = vunpack.c.l.b16 %v4819
      %v4836 = vunpack.c.l.b16 %v4820
      %v4837 = vunpack.c.l.b16 %v4821
      %v4838 = vunpack.c.h.b16 %v4818
      %v4839 = vunpack.c.h.b16 %v4819
      %v4840 = vunpack.c.h.b16 %v4820
      %v4841 = vunpack.c.h.b16 %v4821
      %v4842 = vunpack.c.l.b16 %v4822
      %v4843 = vunpack.c.l.b16 %v4823
      %v4844 = vunpack.c.l.b16 %v4824
      %v4845 = vunpack.c.l.b16 %v4825
      %v4846 = vunpack.c.h.b16 %v4822
      %v4847 = vunpack.c.h.b16 %v4823
      %v4848 = vunpack.c.h.b16 %v4824
      %v4849 = vunpack.c.h.b16 %v4825
      %v4850 = vpack.c.b16 %v4835, %v4834
      %v4851 = vpack.c.b16 %v4837, %v4836
      %v4852 = vpack.c.b16 %v4839, %v4838
      %v4853 = vpack.c.b16 %v4841, %v4840
      %v4854 = vpack.c.b16 %v4843, %v4842
      %v4855 = vpack.c.b16 %v4845, %v4844
      %v4856 = vpack.c.b16 %v4847, %v4846
      %v4857 = vpack.c.b16 %v4849, %v4848
      %4866 = vst [vmem:[%s185] sm:$0xff] %v4850
      %4867 = vst [vmem:[%s185 + $0x8] sm:$0xff] %v4851
      %4868 = vst [vmem:[%s185 + $0x10] sm:$0xff] %v4852
      %4869 = vst [vmem:[%s185 + $0x18] sm:$0xff] %v4853
      %4870 = vst [vmem:[%s185 + $0x20] sm:$0xff] %v4854
      %4871 = vst [vmem:[%s185 + $0x28] sm:$0xff] %v4855
      %4872 = vst [vmem:[%s185 + $0x30] sm:$0xff] %v4856
      %4873 = vst [vmem:[%s185 + $0x38] sm:$0xff] %v4857
      %v4874 = vadd.f32 %v4323, %v4327
      %v4875 = vadd.f32 %v4874, %v4333
      %v4876 = vadd.f32 %v4875, %v4337
      %v4877 = vrot.slane %v4876, 4
      %v4878 = vadd.f32 %v4876, %v4877
      %v4879 = vrot.slane %v4878, 2
      %v4880 = vadd.f32 %v4878, %v4879
      %v4881 = vrot.slane %v4880, 1
      %v4882 = vadd.f32 %v4880, %v4881
      %v4883 = vadd.f32 %v4325, %v4329
      %v4884 = vadd.f32 %v4883, %v4335
      %v4885 = vadd.f32 %v4884, %v4339
      %v4886 = vrot.slane %v4885, 4
      %v4887 = vadd.f32 %v4885, %v4886
      %v4888 = vrot.slane %v4887, 2
      %v4889 = vadd.f32 %v4887, %v4888
      %v4890 = vrot.slane %v4889, 1
      %v4891 = vadd.f32 %v4889, %v4890
      %v4892 = vadd.f32 %v4800, %v4804
      %v4893 = vadd.f32 %v4892, %v4810
      %v4894 = vadd.f32 %v4893, %v4814
      %v4895 = vrot.slane %v4894, 4
      %v4896 = vadd.f32 %v4894, %v4895
      %v4897 = vrot.slane %v4896, 2
      %v4898 = vadd.f32 %v4896, %v4897
      %v4899 = vrot.slane %v4898, 1
      %v4900 = vadd.f32 %v4898, %v4899
      %v4901 = vadd.f32 %v4802, %v4806
      %v4902 = vadd.f32 %v4901, %v4812
      %v4903 = vadd.f32 %v4902, %v4816
      %v4904 = vrot.slane %v4903, 4
      %v4905 = vadd.f32 %v4903, %v4904
      %v4906 = vrot.slane %v4905, 2
      %v4907 = vadd.f32 %v4905, %v4906
      %v4908 = vrot.slane %v4907, 1
      %v4909 = vadd.f32 %v4907, %v4908
      %v4910 = vmul.f32 %v4323, %v4323
      %v4911 = vmul.f32 %v4325, %v4325
      %v4912 = vmul.f32 %v4800, %v4800
      %v4913 = vmul.f32 %v4802, %v4802
      %v4914 = vmul.f32 %v4327, %v4327
      %v4915 = vmul.f32 %v4329, %v4329
      %v4916 = vmul.f32 %v4804, %v4804
      %v4917 = vmul.f32 %v4806, %v4806
      %v4918 = vmul.f32 %v4333, %v4333
      %v4919 = vmul.f32 %v4335, %v4335
      %v4920 = vmul.f32 %v4810, %v4810
      %v4921 = vmul.f32 %v4812, %v4812
      %v4922 = vmul.f32 %v4337, %v4337
      %v4923 = vmul.f32 %v4339, %v4339
      %v4924 = vmul.f32 %v4814, %v4814
      %v4925 = vmul.f32 %v4816, %v4816
      %v4926 = vadd.f32 %v4910, %v4914
      %v4927 = vadd.f32 %v4926, %v4918
      %v4928 = vadd.f32 %v4927, %v4922
      %v4929 = vrot.slane %v4928, 4
      %v4930 = vadd.f32 %v4928, %v4929
      %v4931 = vrot.slane %v4930, 2
      %v4932 = vadd.f32 %v4930, %v4931
      %v4933 = vrot.slane %v4932, 1
      %v4934 = vadd.f32 %v4932, %v4933
      %v4935 = vadd.f32 %v4911, %v4915
      %v4936 = vadd.f32 %v4935, %v4919
      %v4937 = vadd.f32 %v4936, %v4923
      %v4938 = vrot.slane %v4937, 4
      %v4939 = vadd.f32 %v4937, %v4938
      %v4940 = vrot.slane %v4939, 2
      %v4941 = vadd.f32 %v4939, %v4940
      %v4942 = vrot.slane %v4941, 1
      %v4943 = vadd.f32 %v4941, %v4942
      %v4944 = vadd.f32 %v4912, %v4916
      %v4945 = vadd.f32 %v4944, %v4920
      %v4946 = vadd.f32 %v4945, %v4924
      %v4947 = vrot.slane %v4946, 4
      %v4948 = vadd.f32 %v4946, %v4947
      %v4949 = vrot.slane %v4948, 2
      %v4950 = vadd.f32 %v4948, %v4949
      %v4951 = vrot.slane %v4950, 1
      %v4952 = vadd.f32 %v4950, %v4951
      %v4953 = vadd.f32 %v4913, %v4917
      %v4954 = vadd.f32 %v4953, %v4921
      %v4955 = vadd.f32 %v4954, %v4925
      %v4956 = vrot.slane %v4955, 4
      %v4957 = vadd.f32 %v4955, %v4956
      %v4958 = vrot.slane %v4957, 2
      %v4959 = vadd.f32 %v4957, %v4958
      %v4960 = vrot.slane %v4959, 1
      %v4961 = vadd.f32 %v4959, %v4960
      %v4962 = vlaneseq
      %v4963 = vshrl.u32 %v4962, 7
      %vm4964 = vcmp.eq.s32.totalorder %v4963, 0
      %v4965 = vsel %vm4964, %v4882, 0.0
      %v4966 = vsel %vm4964, %v4891, 0.0
      %v4967 = vsel %vm4964, %v4900, 0.0
      %v4968 = vsel %vm4964, %v4909, 0.0
      %vm4969 = vcmp.eq.s32.totalorder %v4963, 1
      %v4970 = vsel %vm4969, %v4934, 0.0
      %v4971 = vsel %vm4969, %v4943, 0.0
      %v4972 = vsel %vm4969, %v4952, 0.0
      %v4973 = vsel %vm4969, %v4961, 0.0
      %v4974 = vadd.f32 %v4965, %v4970
      %v4975 = vadd.f32 %v4966, %v4971
      %v4976 = vadd.f32 %v4967, %v4972
      %v4977 = vadd.f32 %v4968, %v4973
      %4978 = vst [vmem:[%s191] sm:$0xff] %v4974
      %4979 = vst [vmem:[%s191 + $0x8] sm:$0xff] %v4975
      %4980 = vst [vmem:[%s191 + $0x10] sm:$0xff] %v4976
      %4981 = vst [vmem:[%s191 + $0x18] sm:$0xff] %v4977
      %s4982 = smul.u32 4, %s15
      %p4983 = scmp.lt.s32.totalorder %s4982, 15
      %s4984 = scalar_select %p4983, %s4982, 15
      %s4985 = smul.addr %s4984, 4
      %s4986 = smul.addr %s4985, 4
      %s4987 = scalar_lea.vmem %s2, %s4986
      %p4988 = scmp.lt.s32.totalorder %s15, 3
      %s4989 = scalar_select %p4988, %s15, 3
      %s4990 = smul.addr %s4989, 4
      %s4991 = smul.addr %s4990, 8
      %s4992 = scalar_lea.vmem %s3, %s4991
      // Predicated region
      $region29: #{generator_forward.8} parent=27 // pred_check
        %p4993 = pneg %p80
      $region30: #{generator_forward.8} parent=27 // pred_check_branch
        %4995 = sbr.rel (%p4993) target = $region32
      $region31: #{generator_forward.8} parent=27 // pred_region
        %s4996 = smul.u32 4, %s15
      $region32: #{generator_forward.8} parent=27 // pred_fallthru
        _
      // Predicated region
      $region33: #{generator_forward.8} parent=27 // pred_check
        %p4997 = pneg %p106
      $region34: #{generator_forward.8} parent=27 // pred_check_branch
        %4999 = sbr.rel (%p4997) target = $region36
      $region35: #{generator_forward.8} parent=27 // pred_region
        _
      $region36: #{generator_forward.8} parent=27 // pred_fallthru
        _
    $region28: #{generator_forward.8} parent=5 // pred_fallthru
      _
    %p5000 = scmp.le.s32.totalorder 2, %s10
    // Predicated region
    $region37: #{generator_forward.8} parent=5 // pred_check
      %p5001 = pneg %p5000
    $region38: #{generator_forward.8} parent=5 // pred_check_branch
      %5003 = sbr.rel (%p5001) target = $region40
    $region39: #{generator_forward.8} parent=5 // pred_region
      %s5004 = ssub.s32 %s10, 2
      // Predicated region
      $region41: #{generator_forward.8} parent=39 // pred_check
        %p5005 = pneg %p86
      $region42: #{generator_forward.8} parent=39 // pred_check_branch
        %5007 = sbr.rel (%p5005) target = $region44
      $region43: #{generator_forward.8} parent=39 // pred_region
        %s5008 = smul.u32 4, %s16
        %p5009 = scmp.lt.s32.totalorder %s5008, 15
        %s5010 = scalar_select %p5009, %s5008, 15
        %s5011 = smul.addr %s5010, 4
        %s5012 = smul.addr %s5011, 4
        %s5013 = scalar_lea.vmem %s2, %s5012
      $region44: #{generator_forward.8} parent=39 // pred_fallthru
        _
      // Predicated region
      $region45: #{generator_forward.8} parent=39 // pred_check
        %p5014 = pneg %p112
      $region46: #{generator_forward.8} parent=39 // pred_check_branch
        %5016 = sbr.rel (%p5014) target = $region48
      $region47: #{generator_forward.8} parent=39 // pred_region
        %p5017 = scmp.lt.s32.totalorder %s16, 3
        %s5018 = scalar_select %p5017, %s16, 3
        %s5019 = smul.addr %s5018, 4
        %s5020 = smul.addr %s5019, 8
        %s5021 = scalar_lea.vmem %s3, %s5020
      $region48: #{generator_forward.8} parent=39 // pred_fallthru
        _
    $region40: #{generator_forward.8} parent=5 // pred_fallthru
      _
  $region6: #{generator_forward.8} parent=0 // loop_footer
    %s14 = sadd.s32 1, %s10
  $region7: #{generator_forward.8} parent=0 // loop_footer_branch
    %9 = sbr.rel target = $region3
  $region8: #{generator_forward.8} parent=0 // loop_exit
    _

// kernel: tile.23
$region0: #{tile.23}
  #allocation0 [shape = 's32[1]{0}', space=sflag, size = 0x4, scoped, tag = 'scoped memory for tile.23']
  %s0 = inlined_call_operand.vmem [shape: f32[128], index: 0, kind: input, shape index: {}]
  %s1 = inlined_call_operand.vmem [shape: f32[4,128], index: 1, kind: output, shape index: {}]
  // Predicated region
  $region2: #{tile.23} parent=0 // pred_check
    _
  $region3: #{tile.23} parent=0 // pred_check_branch
    %3 = sbr.rel (0) target = $region5
  $region4: #{tile.23} parent=0 // pred_region
    _
  $region5: #{tile.23} parent=0 // pred_fallthru
    _
  %v4 = vld [vmem:[%s0] ss:$0 sm:$0xff]
  %5 = vst [vmem:[%s1] sm:$0xf] %v4

// kernel: generator_forward.9
$region0: #{generator_forward.9}
  #allocation0 [shape = 'u32[]', space=smem, size = 0x4, offset = 0x4, fixed_abs, tag = 'smem constant byte address 0x4 - core index']
  #allocation1 [shape = 'u32[144,128]{1,0:T(1,128)}', space=vmem, size = 0x12000, scoped, tag = 'internal scratch']
  %s0 = inlined_call_operand.vmem [shape: bf16[128,512], index: 0, kind: input, shape index: {}]
  %s1 = inlined_call_operand.vmem [shape: f32[1,512], index: 1, kind: input, shape index: {}]
  %s2 = inlined_call_operand.vmem [shape: f32[1,512], index: 2, kind: input, shape index: {}]
  %s3 = inlined_call_operand.vmem [shape: bf16[128,512], index: 3, kind: output, shape index: {}]
  %s4 = sld [smem:[#allocation0]]
  $region45: #{generator_forward.9} parent=0
    _
  %s6 = ssub.s32 1, %s4
  %s7 = scalar_select 0, %s6, %s4
  loop: start=0, step=1, limit=6
  $region2: #{generator_forward.9} parent=0 // loop_pre_header
    _
  $region3: #{generator_forward.9} parent=0 // loop_header
    %s9 = sphi 0, %s13
    %p10 = scmp.ge.s32.totalorder %s9, 6
    %s19 = sphi 0, %s21
    %s22 = sphi 0, %s19
    %s23 = sphi 0, %s22
    %s39 = sphi 0, %s23
    %s43 = sphi 0, %s43
    %s45 = sphi 0, %s43
    %s46 = sphi 0, %s45
    %s60 = sphi 0, %s46
    %s64 = sphi 0, %s64
    %s66 = sphi 0, %s64
    %s67 = sphi 0, %s66
    %s81 = sphi 0, %s67
    %s87 = sphi 0, %s89
    %s90 = sphi 0, %s87
    %s91 = sphi 0, %s90
    %s107 = sphi 0, %s91
  $region4: #{generator_forward.9} parent=0 // loop_header_branch
    %12 = sbr.rel (%p10) target = $region8
  $region5: #{generator_forward.9} parent=0 // loop_body
    %s14 = ssub.s32 %s9, 1
    %s15 = ssub.s32 %s9, 2
    %s16 = sadd.s32 %s9, 1
    %s17 = ssub.s32 %s9, %s16
    %p18 = scmp.eq.s32.totalorder %s17, 0
    %s20 = sadd.s32 %s19, 1
    %s21 = scalar_select %p18, %s19, %s20
    %p24 = pneg %p18
    %p25 = scmp.eq.s32.totalorder %s9, 3
    %p26 = por %p24, %p25
    %p27 = scmp.ne.s32.totalorder %s19, %s22
    %p28 = scmp.eq.s32.totalorder %s9, 0
    %p29 = por %p27, %p28
    %p30 = scmp.ne.s32.totalorder %s19, %s22
    %p31 = scmp.eq.s32.totalorder %s14, 3
    %p32 = por %p30, %p31
    %p33 = scmp.ne.s32.totalorder %s22, %s23
    %p34 = scmp.eq.s32.totalorder %s14, 0
    %p35 = por %p33, %p34
    %p36 = scmp.ne.s32.totalorder %s22, %s23
    %p37 = scmp.eq.s32.totalorder %s15, 3
    %p38 = por %p36, %p37
    %p40 = scmp.ne.s32.totalorder %s23, %s39
    %p41 = scmp.eq.s32.totalorder %s15, 0
    %p42 = por %p40, %p41
    %s44 = sadd.s32 %s43, 1
    %p47 = scmp.eq.s32.totalorder %s9, 3
    %p48 = scmp.ne.s32.totalorder %s43, %s45
    %p49 = scmp.eq.s32.totalorder %s9, 0
    %p50 = por %p48, %p49
    %p51 = scmp.ne.s32.totalorder %s43, %s45
    %p52 = scmp.eq.s32.totalorder %s14, 3
    %p53 = por %p51, %p52
    %p54 = scmp.ne.s32.totalorder %s45, %s46
    %p55 = scmp.eq.s32.totalorder %s14, 0
    %p56 = por %p54, %p55
    %p57 = scmp.ne.s32.totalorder %s45, %s46
    %p58 = scmp.eq.s32.totalorder %s15, 3
    %p59 = por %p57, %p58
    %p61 = scmp.ne.s32.totalorder %s46, %s60
    %p62 = scmp.eq.s32.totalorder %s15, 0
    %p63 = por %p61, %p62
    %s65 = sadd.s32 %s64, 1
    %p68 = scmp.eq.s32.totalorder %s9, 3
    %p69 = scmp.ne.s32.totalorder %s64, %s66
    %p70 = scmp.eq.s32.totalorder %s9, 0
    %p71 = por %p69, %p70
    %p72 = scmp.ne.s32.totalorder %s64, %s66
    %p73 = scmp.eq.s32.totalorder %s14, 3
    %p74 = por %p72, %p73
    %p75 = scmp.ne.s32.totalorder %s66, %s67
    %p76 = scmp.eq.s32.totalorder %s14, 0
    %p77 = por %p75, %p76
    %p78 = scmp.ne.s32.totalorder %s66, %s67
    %p79 = scmp.eq.s32.totalorder %s15, 3
    %p80 = por %p78, %p79
    %p82 = scmp.ne.s32.totalorder %s67, %s81
    %p83 = scmp.eq.s32.totalorder %s15, 0
    %p84 = por %p82, %p83
    %s85 = ssub.s32 %s9, %s16
    %p86 = scmp.eq.s32.totalorder %s85, 0
    %s88 = sadd.s32 %s87, 1
    %s89 = scalar_select %p86, %s87, %s88
    %p92 = pneg %p86
    %p93 = scmp.eq.s32.totalorder %s9, 3
    %p94 = por %p92, %p93
    %p95 = scmp.ne.s32.totalorder %s87, %s90
    %p96 = scmp.eq.s32.totalorder %s9, 0
    %p97 = por %p95, %p96
    %p98 = scmp.ne.s32.totalorder %s87, %s90
    %p99 = scmp.eq.s32.totalorder %s14, 3
    %p100 = por %p98, %p99
    %p101 = scmp.ne.s32.totalorder %s90, %s91
    %p102 = scmp.eq.s32.totalorder %s14, 0
    %p103 = por %p101, %p102
    %p104 = scmp.ne.s32.totalorder %s90, %s91
    %p105 = scmp.eq.s32.totalorder %s15, 3
    %p106 = por %p104, %p105
    %p108 = scmp.ne.s32.totalorder %s91, %s107
    %p109 = scmp.eq.s32.totalorder %s15, 0
    %p110 = por %p108, %p109
    %p111 = scmp.le.s32.totalorder 1, %s9
    %p112 = scmp.lt.s32.totalorder %s9, 5
    %p113 = pnand %p111, %p112
    %p114 = pneg %p113
    // Predicated region
    $region9: #{generator_forward.9} parent=5 // pred_check
      _
    $region10: #{generator_forward.9} parent=5 // pred_check_branch
      %116 = sbr.rel (%p113) target = $region12
    $region11: #{generator_forward.9} parent=5 // pred_region
      %s117 = ssub.s32 %s9, 1
      // Predicated region
      $region13: #{generator_forward.9} parent=11 // pred_check
        %p118 = pneg %p56
      $region14: #{generator_forward.9} parent=11 // pred_check_branch
        %120 = sbr.rel (%p118) target = $region16
      $region15: #{generator_forward.9} parent=11 // pred_region
        _
      $region16: #{generator_forward.9} parent=11 // pred_fallthru
        _
      // Predicated region
      $region17: #{generator_forward.9} parent=11 // pred_check
        %p121 = pneg %p77
      $region18: #{generator_forward.9} parent=11 // pred_check_branch
        %123 = sbr.rel (%p121) target = $region20
      $region19: #{generator_forward.9} parent=11 // pred_region
        _
      $region20: #{generator_forward.9} parent=11 // pred_fallthru
        _
    $region12: #{generator_forward.9} parent=5 // pred_fallthru
      _
    %p124 = scmp.lt.s32.totalorder %s9, 4
    // Predicated region
    $region21: #{generator_forward.9} parent=5 // pred_check
      %p125 = pneg %p124
    $region22: #{generator_forward.9} parent=5 // pred_check_branch
      %127 = sbr.rel (%p125) target = $region24
    $region23: #{generator_forward.9} parent=5 // pred_region
      // Predicated region
      $region25: #{generator_forward.9} parent=23 // pred_check
        %p128 = pneg %p29
      $region26: #{generator_forward.9} parent=23 // pred_check_branch
        %130 = sbr.rel (%p128) target = $region28
      $region27: #{generator_forward.9} parent=23 // pred_region
        %s131 = smul.u32 4, %s9
        %p132 = scmp.lt.s32.totalorder %s131, 15
        %s133 = scalar_select %p132, %s131, 15
        %s134 = smul.addr %s133, 4
        %s135 = smul.addr %s134, 4
        %s136 = scalar_lea.vmem %s0, %s135
        %s137 = smul.u32 4, %s9
      $region28: #{generator_forward.9} parent=23 // pred_fallthru
        _
    $region24: #{generator_forward.9} parent=5 // pred_fallthru
      _
    %p138 = scmp.le.s32.totalorder 1, %s9
    %p139 = scmp.lt.s32.totalorder %s9, 5
    %p140 = pnand %p138, %p139
    %p141 = pneg %p140
    // Predicated region
    $region29: #{generator_forward.9} parent=5 // pred_check
      _
    $region30: #{generator_forward.9} parent=5 // pred_check_branch
      %143 = sbr.rel (%p140) target = $region32
    $region31: #{generator_forward.9} parent=5 // pred_region
      %s144 = ssub.s32 %s9, 1
      %s145 = smul.u32 4, %s14
      %p146 = scmp.lt.s32.totalorder %s145, 15
      %s147 = scalar_select %p146, %s145, 15
      %s148 = smul.addr %s147, 4
      %s149 = smul.addr %s148, 4
      %s150 = scalar_lea.vmem %s0, %s149
      %p151 = pneg %p35
      %p152 = pneg %p32
      %p153 = pneg %p56
      %p154 = pneg %p53
      %p155 = pneg %p77
      %p156 = pneg %p74
      %p157 = pneg %p103
      %p158 = pneg %p100
      %s159 = smul.u32 4, %s14
      %p160 = scmp.lt.s32.totalorder %s159, 15
      %s161 = scalar_select %p160, %s159, 15
      %s162 = smul.addr %s161, 4
      %s163 = smul.addr %s162, 4
      %s164 = scalar_lea.vmem %s3, %s163
      %s165 = smul.u32 4, %s14
      %p166 = scmp.lt.s32.totalorder %s165, 15
      %s167 = scalar_select %p166, %s165, 15
      %s168 = smul.addr %s167, 4
      %s169 = smul.addr %s168, 4
      %s170 = scalar_lea.vmem %s0, %s169
      %s171 = smul.u32 4, %s14
      %s172 = smul.u32 4, %s14
      %p173 = scmp.lt.s32.totalorder %s172, 15
      %s174 = scalar_select %p173, %s172, 15
      %s175 = smul.addr %s174, 4
      %s176 = smul.addr %s175, 4
      %s177 = scalar_lea.vmem %s3, %s176
      %s178 = smul.u32 4, %s14
      %v179 = vld [vmem:[%s170] sm:$0xff]
      %v180 = vld [vmem:[%s170 + $0x8] sm:$0xff]
      %v181 = vld [vmem:[%s170 + $0x10] sm:$0xff]
      %v182 = vld [vmem:[%s170 + $0x18] sm:$0xff]
      %v183 = vld [vmem:[%s170 + $0x20] sm:$0xff]
      %v184 = vld [vmem:[%s170 + $0x28] sm:$0xff]
      %v185 = vld [vmem:[%s170 + $0x30] sm:$0xff]
      %v186 = vld [vmem:[%s170 + $0x38] sm:$0xff]
      %v187 = vunpack.c.l.bf16 %v179
      %v188 = vunpack.c.h.bf16 %v179
      %v189 = vunpack.c.l.bf16 %v180
      %v190 = vunpack.c.h.bf16 %v180
      %v191 = vunpack.c.l.bf16 %v181
      %v192 = vunpack.c.h.bf16 %v181
      %v193 = vunpack.c.l.bf16 %v182
      %v194 = vunpack.c.h.bf16 %v182
      %v195 = vunpack.c.l.bf16 %v183
      %v196 = vunpack.c.h.bf16 %v183
      %v197 = vunpack.c.l.bf16 %v184
      %v198 = vunpack.c.h.bf16 %v184
      %v199 = vunpack.c.l.bf16 %v185
      %v200 = vunpack.c.h.bf16 %v185
      %v201 = vunpack.c.l.bf16 %v186
      %v202 = vunpack.c.h.bf16 %v186
      %v203 = vld [vmem:[%s1] sm:$0xf]
      %v205 = vlaneseq
      %v206 = vshrl.u32 %v205, 7
      %v207 = vsub.s32 0, %v206
      %v208 = vrot.slane %v203, %v207
      %v209 = vlaneseq
      %v210 = vshrl.u32 %v209, 7
      %v211 = vsub.s32 1, %v210
      %v212 = vrot.slane %v203, %v211
      %v213 = vlaneseq
      %v214 = vshrl.u32 %v213, 7
      %v215 = vsub.s32 2, %v214
      %v216 = vrot.slane %v203, %v215
      %v217 = vlaneseq
      %v218 = vshrl.u32 %v217, 7
      %v219 = vsub.s32 3, %v218
      %v220 = vrot.slane %v203, %v219
      %v225 = vmul.f32 %v187, %v208
      %v226 = vmul.f32 %v188, %v212
      %v227 = vmul.f32 %v189, %v216
      %v228 = vmul.f32 %v190, %v220
      %v229 = vmul.f32 %v191, %v208
      %v230 = vmul.f32 %v192, %v212
      %v231 = vmul.f32 %v193, %v216
      %v232 = vmul.f32 %v194, %v220
      %v233 = vmul.f32 %v195, %v208
      %v234 = vmul.f32 %v196, %v212
      %v235 = vmul.f32 %v197, %v216
      %v236 = vmul.f32 %v198, %v220
      %v237 = vmul.f32 %v199, %v208
      %v238 = vmul.f32 %v200, %v212
      %v239 = vmul.f32 %v201, %v216
      %v240 = vmul.f32 %v202, %v220
      %v241 = vld [vmem:[%s2] sm:$0xf]
      %v243 = vlaneseq
      %v244 = vshrl.u32 %v243, 7
      %v245 = vsub.s32 0, %v244
      %v246 = vrot.slane %v241, %v245
      %v247 = vlaneseq
      %v248 = vshrl.u32 %v247, 7
      %v249 = vsub.s32 1, %v248
      %v250 = vrot.slane %v241, %v249
      %v251 = vlaneseq
      %v252 = vshrl.u32 %v251, 7
      %v253 = vsub.s32 2, %v252
      %v254 = vrot.slane %v241, %v253
      %v255 = vlaneseq
      %v256 = vshrl.u32 %v255, 7
      %v257 = vsub.s32 3, %v256
      %v258 = vrot.slane %v241, %v257
      %v263 = vadd.f32 %v225, %v246
      %v264 = vadd.f32 %v226, %v250
      %v265 = vadd.f32 %v227, %v254
      %v266 = vadd.f32 %v228, %v258
      %v267 = vadd.f32 %v229, %v246
      %v268 = vadd.f32 %v230, %v250
      %v269 = vadd.f32 %v231, %v254
      %v270 = vadd.f32 %v232, %v258
      %v271 = vadd.f32 %v233, %v246
      %v272 = vadd.f32 %v234, %v250
      %v273 = vadd.f32 %v235, %v254
      %v274 = vadd.f32 %v236, %v258
      %v275 = vadd.f32 %v237, %v246
      %v276 = vadd.f32 %v238, %v250
      %v277 = vadd.f32 %v239, %v254
      %v278 = vadd.f32 %v240, %v258
      %v279 = vmax.f32 %v263, 0.0
      %v280 = vmax.f32 %v264, 0.0
      %v281 = vmax.f32 %v265, 0.0
      %v282 = vmax.f32 %v266, 0.0
      %v283 = vmax.f32 %v267, 0.0
      %v284 = vmax.f32 %v268, 0.0
      %v285 = vmax.f32 %v269, 0.0
      %v286 = vmax.f32 %v270, 0.0
      %v287 = vmax.f32 %v271, 0.0
      %v288 = vmax.f32 %v272, 0.0
      %v289 = vmax.f32 %v273, 0.0
      %v290 = vmax.f32 %v274, 0.0
      %v291 = vmax.f32 %v275, 0.0
      %v292 = vmax.f32 %v276, 0.0
      %v293 = vmax.f32 %v277, 0.0
      %v294 = vmax.f32 %v278, 0.0
      %v295 = vpack.c.bf16 %v283, %v279
      %v296 = vpack.c.bf16 %v284, %v280
      %v297 = vpack.c.bf16 %v285, %v281
      %v298 = vpack.c.bf16 %v286, %v282
      %v299 = vpack.c.bf16 %v291, %v287
      %v300 = vpack.c.bf16 %v292, %v288
      %v301 = vpack.c.bf16 %v293, %v289
      %v302 = vpack.c.bf16 %v294, %v290
      %v311 = vunpack.c.l.b16 %v295
      %v312 = vunpack.c.l.b16 %v296
      %v313 = vunpack.c.l.b16 %v297
      %v314 = vunpack.c.l.b16 %v298
      %v315 = vunpack.c.h.b16 %v295
      %v316 = vunpack.c.h.b16 %v296
      %v317 = vunpack.c.h.b16 %v297
      %v318 = vunpack.c.h.b16 %v298
      %v319 = vunpack.c.l.b16 %v299
      %v320 = vunpack.c.l.b16 %v300
      %v321 = vunpack.c.l.b16 %v301
      %v322 = vunpack.c.l.b16 %v302
      %v323 = vunpack.c.h.b16 %v299
      %v324 = vunpack.c.h.b16 %v300
      %v325 = vunpack.c.h.b16 %v301
      %v326 = vunpack.c.h.b16 %v302
      %v327 = vpack.c.b16 %v312, %v311
      %v328 = vpack.c.b16 %v314, %v313
      %v329 = vpack.c.b16 %v316, %v315
      %v330 = vpack.c.b16 %v318, %v317
      %v331 = vpack.c.b16 %v320, %v319
      %v332 = vpack.c.b16 %v322, %v321
      %v333 = vpack.c.b16 %v324, %v323
      %v334 = vpack.c.b16 %v326, %v325
      %343 = vst [vmem:[%s177] sm:$0xff] %v327
      %344 = vst [vmem:[%s177 + $0x8] sm:$0xff] %v328
      %345 = vst [vmem:[%s177 + $0x10] sm:$0xff] %v329
      %346 = vst [vmem:[%s177 + $0x18] sm:$0xff] %v330
      %347 = vst [vmem:[%s177 + $0x20] sm:$0xff] %v331
      %348 = vst [vmem:[%s177 + $0x28] sm:$0xff] %v332
      %349 = vst [vmem:[%s177 + $0x30] sm:$0xff] %v333
      %350 = vst [vmem:[%s177 + $0x38] sm:$0xff] %v334
      %s351 = smul.u32 4, %s14
      %p352 = scmp.lt.s32.totalorder %s351, 15
      %s353 = scalar_select %p352, %s351, 15
      %s354 = smul.addr %s353, 4
      %s355 = smul.addr %s354, 4
      %s356 = scalar_lea.vmem %s3, %s355
      // Predicated region
      $region33: #{generator_forward.9} parent=31 // pred_check
        %p357 = pneg %p100
      $region34: #{generator_forward.9} parent=31 // pred_check_branch
        %359 = sbr.rel (%p357) target = $region36
      $region35: #{generator_forward.9} parent=31 // pred_region
        %s360 = smul.u32 4, %s14
      $region36: #{generator_forward.9} parent=31 // pred_fallthru
        _
    $region32: #{generator_forward.9} parent=5 // pred_fallthru
      _
    %p361 = scmp.le.s32.totalorder 2, %s9
    // Predicated region
    $region37: #{generator_forward.9} parent=5 // pred_check
      %p362 = pneg %p361
    $region38: #{generator_forward.9} parent=5 // pred_check_branch
      %364 = sbr.rel (%p362) target = $region40
    $region39: #{generator_forward.9} parent=5 // pred_region
      %s365 = ssub.s32 %s9, 2
      // Predicated region
      $region41: #{generator_forward.9} parent=39 // pred_check
        %p366 = pneg %p106
      $region42: #{generator_forward.9} parent=39 // pred_check_branch
        %368 = sbr.rel (%p366) target = $region44
      $region43: #{generator_forward.9} parent=39 // pred_region
        %s369 = smul.u32 4, %s15
        %p370 = scmp.lt.s32.totalorder %s369, 15
        %s371 = scalar_select %p370, %s369, 15
        %s372 = smul.addr %s371, 4
        %s373 = smul.addr %s372, 4
        %s374 = scalar_lea.vmem %s3, %s373
      $region44: #{generator_forward.9} parent=39 // pred_fallthru
        _
    $region40: #{generator_forward.9} parent=5 // pred_fallthru
      _
  $region6: #{generator_forward.9} parent=0 // loop_footer
    %s13 = sadd.s32 1, %s9
  $region7: #{generator_forward.9} parent=0 // loop_footer_branch
    %8 = sbr.rel target = $region3
  $region8: #{generator_forward.9} parent=0 // loop_exit
    _

// kernel: tile.33
$region0: #{tile.33}
  #allocation0 [shape = 's32[1]{0}', space=sflag, size = 0x4, scoped, tag = 'scoped memory for tile.33']
  %s0 = inlined_call_operand.vmem [shape: f32[64], index: 0, kind: input, shape index: {}]
  %s1 = inlined_call_operand.vmem [shape: f32[4,64], index: 1, kind: output, shape index: {}]
  // Predicated region
  $region2: #{tile.33} parent=0 // pred_check
    _
  $region3: #{tile.33} parent=0 // pred_check_branch
    %3 = sbr.rel (0) target = $region5
  $region4: #{tile.33} parent=0 // pred_region
    _
  $region5: #{tile.33} parent=0 // pred_fallthru
    _
  %v4 = vld [vmem:[%s0] ss:$0 sm:$0xff]
  %5 = vst [vmem:[%s1] sm:$0xf] %v4

// kernel: tile.38
$region0: #{tile.38}
  %s0 = inlined_call_operand.vmem [shape: f32[4,64], index: 0, kind: input, shape index: {}]
  %s1 = inlined_call_operand.vmem [shape: f32[1,256], index: 1, kind: output, shape index: {}]
  $region1: #{tile.38} parent=0
    #allocation0 [shape = 'u8[8192]{0}', space=vmem, size = 0x2000, scoped, tag = 'scoped mem for output reshape']
    #allocation1 [shape = 'u8[4096]{0}', space=vmem, size = 0x1000, scoped, tag = 'scoped mem for input reshape']
    %s3 = sshllo.u32 0, 4
    %v4 = vld [vmem:[%s0] sm:%s3]
    %5 = vst [vmem:[#allocation1] sm:%s3] %v4
    %s6 = smov 3
    %v7 = vld [vmem:[#allocation1] ss:$2 sm:%s6]
    %vm8 = vcmask 523264
    %9 = vst.msk [vmem:[#allocation0] ss:$8 sm:$0x3] %vm8, %v7
    %s10 = scalar_lea.vmem [#allocation1], 1
    %s11 = smov 3
    %v12 = vld [vmem:[%s10] ss:$2 sm:%s11]
    %13 = vrot.lane.b32.xlu0 %v12, 64
    %v14 = vpop.permute.xlu0 %13
    %vm15 = vcmask 1048064
    %16 = vst.msk [vmem:[#allocation0] ss:$8 sm:$0x3] %vm15, %v14
    %s18 = sshllo.u32 0, 1
    %v20 = vld [vmem:[#allocation0] sm:%s18]
    %s21 = sshllo.u32 0, 1
    %22 = vst [vmem:[%s1] sm:%s21] %v20
    %s23 = scalar_lea.vmem [#allocation0], 8
    %v24 = vld [vmem:[%s23] sm:%s18]
    %s25 = sshllo.u32 0, 1
    %s26 = scalar_lea.vmem %s1, 1
    %27 = vst [vmem:[%s26] sm:%s25] %v24

// kernel: generator_forward.11
$region0: #{generator_forward.11}
  #allocation0 [shape = 'u32[]', space=smem, size = 0x4, offset = 0x4, fixed_abs, tag = 'smem constant byte address 0x4 - core index']
  #allocation1 [shape = 'u32[144,128]{1,0:T(1,128)}', space=vmem, size = 0x12000, scoped, tag = 'internal scratch']
  %s0 = inlined_call_operand.vmem [shape: bf16[448,256], index: 0, kind: input, shape index: {}]
  %s1 = inlined_call_operand.vmem [shape: f32[1,256], index: 1, kind: input, shape index: {}]
  %s2 = inlined_call_operand.vmem [shape: f32[1,256], index: 2, kind: input, shape index: {}]
  %s3 = inlined_call_operand.vmem [shape: bf16[448,256], index: 3, kind: output, shape index: {}]
  %s4 = sld [smem:[#allocation0]]
  $region45: #{generator_forward.11} parent=0
    _
  %s6 = ssub.s32 1, %s4
  %s7 = scalar_select 0, %s6, %s4
  loop: start=0, step=1, limit=6
  $region2: #{generator_forward.11} parent=0 // loop_pre_header
    _
  $region3: #{generator_forward.11} parent=0 // loop_header
    %s9 = sphi 0, %s13
    %p10 = scmp.ge.s32.totalorder %s9, 6
    %s19 = sphi 0, %s21
    %s22 = sphi 0, %s19
    %s23 = sphi 0, %s22
    %s39 = sphi 0, %s23
    %s43 = sphi 0, %s43
    %s45 = sphi 0, %s43
    %s46 = sphi 0, %s45
    %s60 = sphi 0, %s46
    %s64 = sphi 0, %s64
    %s66 = sphi 0, %s64
    %s67 = sphi 0, %s66
    %s81 = sphi 0, %s67
    %s87 = sphi 0, %s89
    %s90 = sphi 0, %s87
    %s91 = sphi 0, %s90
    %s107 = sphi 0, %s91
  $region4: #{generator_forward.11} parent=0 // loop_header_branch
    %12 = sbr.rel (%p10) target = $region8
  $region5: #{generator_forward.11} parent=0 // loop_body
    %s14 = ssub.s32 %s9, 1
    %s15 = ssub.s32 %s9, 2
    %s16 = sadd.s32 %s9, 1
    %s17 = ssub.s32 %s9, %s16
    %p18 = scmp.eq.s32.totalorder %s17, 0
    %s20 = sadd.s32 %s19, 1
    %s21 = scalar_select %p18, %s19, %s20
    %p24 = pneg %p18
    %p25 = scmp.eq.s32.totalorder %s9, 3
    %p26 = por %p24, %p25
    %p27 = scmp.ne.s32.totalorder %s19, %s22
    %p28 = scmp.eq.s32.totalorder %s9, 0
    %p29 = por %p27, %p28
    %p30 = scmp.ne.s32.totalorder %s19, %s22
    %p31 = scmp.eq.s32.totalorder %s14, 3
    %p32 = por %p30, %p31
    %p33 = scmp.ne.s32.totalorder %s22, %s23
    %p34 = scmp.eq.s32.totalorder %s14, 0
    %p35 = por %p33, %p34
    %p36 = scmp.ne.s32.totalorder %s22, %s23
    %p37 = scmp.eq.s32.totalorder %s15, 3
    %p38 = por %p36, %p37
    %p40 = scmp.ne.s32.totalorder %s23, %s39
    %p41 = scmp.eq.s32.totalorder %s15, 0
    %p42 = por %p40, %p41
    %s44 = sadd.s32 %s43, 1
    %p47 = scmp.eq.s32.totalorder %s9, 3
    %p48 = scmp.ne.s32.totalorder %s43, %s45
    %p49 = scmp.eq.s32.totalorder %s9, 0
    %p50 = por %p48, %p49
    %p51 = scmp.ne.s32.totalorder %s43, %s45
    %p52 = scmp.eq.s32.totalorder %s14, 3
    %p53 = por %p51, %p52
    %p54 = scmp.ne.s32.totalorder %s45, %s46
    %p55 = scmp.eq.s32.totalorder %s14, 0
    %p56 = por %p54, %p55
    %p57 = scmp.ne.s32.totalorder %s45, %s46
    %p58 = scmp.eq.s32.totalorder %s15, 3
    %p59 = por %p57, %p58
    %p61 = scmp.ne.s32.totalorder %s46, %s60
    %p62 = scmp.eq.s32.totalorder %s15, 0
    %p63 = por %p61, %p62
    %s65 = sadd.s32 %s64, 1
    %p68 = scmp.eq.s32.totalorder %s9, 3
    %p69 = scmp.ne.s32.totalorder %s64, %s66
    %p70 = scmp.eq.s32.totalorder %s9, 0
    %p71 = por %p69, %p70
    %p72 = scmp.ne.s32.totalorder %s64, %s66
    %p73 = scmp.eq.s32.totalorder %s14, 3
    %p74 = por %p72, %p73
    %p75 = scmp.ne.s32.totalorder %s66, %s67
    %p76 = scmp.eq.s32.totalorder %s14, 0
    %p77 = por %p75, %p76
    %p78 = scmp.ne.s32.totalorder %s66, %s67
    %p79 = scmp.eq.s32.totalorder %s15, 3
    %p80 = por %p78, %p79
    %p82 = scmp.ne.s32.totalorder %s67, %s81
    %p83 = scmp.eq.s32.totalorder %s15, 0
    %p84 = por %p82, %p83
    %s85 = ssub.s32 %s9, %s16
    %p86 = scmp.eq.s32.totalorder %s85, 0
    %s88 = sadd.s32 %s87, 1
    %s89 = scalar_select %p86, %s87, %s88
    %p92 = pneg %p86
    %p93 = scmp.eq.s32.totalorder %s9, 3
    %p94 = por %p92, %p93
    %p95 = scmp.ne.s32.totalorder %s87, %s90
    %p96 = scmp.eq.s32.totalorder %s9, 0
    %p97 = por %p95, %p96
    %p98 = scmp.ne.s32.totalorder %s87, %s90
    %p99 = scmp.eq.s32.totalorder %s14, 3
    %p100 = por %p98, %p99
    %p101 = scmp.ne.s32.totalorder %s90, %s91
    %p102 = scmp.eq.s32.totalorder %s14, 0
    %p103 = por %p101, %p102
    %p104 = scmp.ne.s32.totalorder %s90, %s91
    %p105 = scmp.eq.s32.totalorder %s15, 3
    %p106 = por %p104, %p105
    %p108 = scmp.ne.s32.totalorder %s91, %s107
    %p109 = scmp.eq.s32.totalorder %s15, 0
    %p110 = por %p108, %p109
    %p111 = scmp.le.s32.totalorder 1, %s9
    %p112 = scmp.lt.s32.totalorder %s9, 5
    %p113 = pnand %p111, %p112
    %p114 = pneg %p113
    // Predicated region
    $region9: #{generator_forward.11} parent=5 // pred_check
      _
    $region10: #{generator_forward.11} parent=5 // pred_check_branch
      %116 = sbr.rel (%p113) target = $region12
    $region11: #{generator_forward.11} parent=5 // pred_region
      %s117 = ssub.s32 %s9, 1
      // Predicated region
      $region13: #{generator_forward.11} parent=11 // pred_check
        %p118 = pneg %p56
      $region14: #{generator_forward.11} parent=11 // pred_check_branch
        %120 = sbr.rel (%p118) target = $region16
      $region15: #{generator_forward.11} parent=11 // pred_region
        _
      $region16: #{generator_forward.11} parent=11 // pred_fallthru
        _
      // Predicated region
      $region17: #{generator_forward.11} parent=11 // pred_check
        %p121 = pneg %p77
      $region18: #{generator_forward.11} parent=11 // pred_check_branch
        %123 = sbr.rel (%p121) target = $region20
      $region19: #{generator_forward.11} parent=11 // pred_region
        _
      $region20: #{generator_forward.11} parent=11 // pred_fallthru
        _
    $region12: #{generator_forward.11} parent=5 // pred_fallthru
      _
    %p124 = scmp.lt.s32.totalorder %s9, 4
    // Predicated region
    $region21: #{generator_forward.11} parent=5 // pred_check
      %p125 = pneg %p124
    $region22: #{generator_forward.11} parent=5 // pred_check_branch
      %127 = sbr.rel (%p125) target = $region24
    $region23: #{generator_forward.11} parent=5 // pred_region
      // Predicated region
      $region25: #{generator_forward.11} parent=23 // pred_check
        %p128 = pneg %p29
      $region26: #{generator_forward.11} parent=23 // pred_check_branch
        %130 = sbr.rel (%p128) target = $region28
      $region27: #{generator_forward.11} parent=23 // pred_region
        %s131 = smul.u32 14, %s9
        %p132 = scmp.lt.s32.totalorder %s131, 55
        %s133 = scalar_select %p132, %s131, 55
        %s134 = smul.addr %s133, 2
        %s135 = smul.addr %s134, 4
        %s136 = scalar_lea.vmem %s0, %s135
        %s137 = smul.u32 14, %s9
      $region28: #{generator_forward.11} parent=23 // pred_fallthru
        _
    $region24: #{generator_forward.11} parent=5 // pred_fallthru
      _
    %p138 = scmp.le.s32.totalorder 1, %s9
    %p139 = scmp.lt.s32.totalorder %s9, 5
    %p140 = pnand %p138, %p139
    %p141 = pneg %p140
    // Predicated region
    $region29: #{generator_forward.11} parent=5 // pred_check
      _
    $region30: #{generator_forward.11} parent=5 // pred_check_branch
      %143 = sbr.rel (%p140) target = $region32
    $region31: #{generator_forward.11} parent=5 // pred_region
      %s144 = ssub.s32 %s9, 1
      %s145 = smul.u32 14, %s14
      %p146 = scmp.lt.s32.totalorder %s145, 55
      %s147 = scalar_select %p146, %s145, 55
      %s148 = smul.addr %s147, 2
      %s149 = smul.addr %s148, 4
      %s150 = scalar_lea.vmem %s0, %s149
      %p151 = pneg %p35
      %p152 = pneg %p32
      %p153 = pneg %p56
      %p154 = pneg %p53
      %p155 = pneg %p77
      %p156 = pneg %p74
      %p157 = pneg %p103
      %p158 = pneg %p100
      %s159 = smul.u32 14, %s14
      %p160 = scmp.lt.s32.totalorder %s159, 55
      %s161 = scalar_select %p160, %s159, 55
      %s162 = smul.addr %s161, 2
      %s163 = smul.addr %s162, 4
      %s164 = scalar_lea.vmem %s3, %s163
      %s165 = smul.u32 14, %s14
      %p166 = scmp.lt.s32.totalorder %s165, 55
      %s167 = scalar_select %p166, %s165, 55
      %s168 = smul.addr %s167, 2
      %s169 = smul.addr %s168, 4
      %s170 = scalar_lea.vmem %s0, %s169
      %s171 = smul.u32 14, %s14
      %s172 = smul.u32 14, %s14
      %p173 = scmp.lt.s32.totalorder %s172, 55
      %s174 = scalar_select %p173, %s172, 55
      %s175 = smul.addr %s174, 2
      %s176 = smul.addr %s175, 4
      %s177 = scalar_lea.vmem %s3, %s176
      %s178 = smul.u32 14, %s14
      %v179 = vld [vmem:[%s170] sm:$0xff]
      %v180 = vld [vmem:[%s170 + $0x8] sm:$0xff]
      %v181 = vld [vmem:[%s170 + $0x10] sm:$0xff]
      %v182 = vld [vmem:[%s170 + $0x18] sm:$0xff]
      %v183 = vld [vmem:[%s170 + $0x20] sm:$0xff]
      %v184 = vld [vmem:[%s170 + $0x28] sm:$0xff]
      %v185 = vld [vmem:[%s170 + $0x30] sm:$0xff]
      %v186 = vld [vmem:[%s170 + $0x38] sm:$0xff]
      %v187 = vld [vmem:[%s170 + $0x40] sm:$0xff]
      %v188 = vld [vmem:[%s170 + $0x48] sm:$0xff]
      %v189 = vld [vmem:[%s170 + $0x50] sm:$0xff]
      %v190 = vld [vmem:[%s170 + $0x58] sm:$0xff]
      %v191 = vld [vmem:[%s170 + $0x60] sm:$0xff]
      %v192 = vld [vmem:[%s170 + $0x68] sm:$0xff]
      %v193 = vunpack.c.l.bf16 %v179
      %v194 = vunpack.c.h.bf16 %v179
      %v195 = vunpack.c.l.bf16 %v180
      %v196 = vunpack.c.h.bf16 %v180
      %v197 = vunpack.c.l.bf16 %v181
      %v198 = vunpack.c.h.bf16 %v181
      %v199 = vunpack.c.l.bf16 %v182
      %v200 = vunpack.c.h.bf16 %v182
      %v201 = vunpack.c.l.bf16 %v183
      %v202 = vunpack.c.h.bf16 %v183
      %v203 = vunpack.c.l.bf16 %v184
      %v204 = vunpack.c.h.bf16 %v184
      %v205 = vunpack.c.l.bf16 %v185
      %v206 = vunpack.c.h.bf16 %v185
      %v207 = vunpack.c.l.bf16 %v186
      %v208 = vunpack.c.h.bf16 %v186
      %v209 = vunpack.c.l.bf16 %v187
      %v210 = vunpack.c.h.bf16 %v187
      %v211 = vunpack.c.l.bf16 %v188
      %v212 = vunpack.c.h.bf16 %v188
      %v213 = vunpack.c.l.bf16 %v189
      %v214 = vunpack.c.h.bf16 %v189
      %v215 = vunpack.c.l.bf16 %v190
      %v216 = vunpack.c.h.bf16 %v190
      %v217 = vunpack.c.l.bf16 %v191
      %v218 = vunpack.c.h.bf16 %v191
      %v219 = vunpack.c.l.bf16 %v192
      %v220 = vunpack.c.h.bf16 %v192
      %v221 = vld [vmem:[%s1] sm:$0x3]
      %v223 = vlaneseq
      %v224 = vshrl.u32 %v223, 7
      %v225 = vsub.s32 0, %v224
      %v226 = vrot.slane %v221, %v225
      %v227 = vlaneseq
      %v228 = vshrl.u32 %v227, 7
      %v229 = vsub.s32 1, %v228
      %v230 = vrot.slane %v221, %v229
      %v233 = vmul.f32 %v193, %v226
      %v234 = vmul.f32 %v194, %v230
      %v235 = vmul.f32 %v195, %v226
      %v236 = vmul.f32 %v196, %v230
      %v237 = vmul.f32 %v197, %v226
      %v238 = vmul.f32 %v198, %v230
      %v239 = vmul.f32 %v199, %v226
      %v240 = vmul.f32 %v200, %v230
      %v241 = vmul.f32 %v201, %v226
      %v242 = vmul.f32 %v202, %v230
      %v243 = vmul.f32 %v203, %v226
      %v244 = vmul.f32 %v204, %v230
      %v245 = vmul.f32 %v205, %v226
      %v246 = vmul.f32 %v206, %v230
      %v247 = vmul.f32 %v207, %v226
      %v248 = vmul.f32 %v208, %v230
      %v249 = vmul.f32 %v209, %v226
      %v250 = vmul.f32 %v210, %v230
      %v251 = vmul.f32 %v211, %v226
      %v252 = vmul.f32 %v212, %v230
      %v253 = vmul.f32 %v213, %v226
      %v254 = vmul.f32 %v214, %v230
      %v255 = vmul.f32 %v215, %v226
      %v256 = vmul.f32 %v216, %v230
      %v257 = vmul.f32 %v217, %v226
      %v258 = vmul.f32 %v218, %v230
      %v259 = vmul.f32 %v219, %v226
      %v260 = vmul.f32 %v220, %v230
      %v261 = vld [vmem:[%s2] sm:$0x3]
      %v263 = vlaneseq
      %v264 = vshrl.u32 %v263, 7
      %v265 = vsub.s32 0, %v264
      %v266 = vrot.slane %v261, %v265
      %v267 = vlaneseq
      %v268 = vshrl.u32 %v267, 7
      %v269 = vsub.s32 1, %v268
      %v270 = vrot.slane %v261, %v269
      %v273 = vadd.f32 %v233, %v266
      %v274 = vadd.f32 %v234, %v270
      %v275 = vadd.f32 %v235, %v266
      %v276 = vadd.f32 %v236, %v270
      %v277 = vadd.f32 %v237, %v266
      %v278 = vadd.f32 %v238, %v270
      %v279 = vadd.f32 %v239, %v266
      %v280 = vadd.f32 %v240, %v270
      %v281 = vadd.f32 %v241, %v266
      %v282 = vadd.f32 %v242, %v270
      %v283 = vadd.f32 %v243, %v266
      %v284 = vadd.f32 %v244, %v270
      %v285 = vadd.f32 %v245, %v266
      %v286 = vadd.f32 %v246, %v270
      %v287 = vadd.f32 %v247, %v266
      %v288 = vadd.f32 %v248, %v270
      %v289 = vadd.f32 %v249, %v266
      %v290 = vadd.f32 %v250, %v270
      %v291 = vadd.f32 %v251, %v266
      %v292 = vadd.f32 %v252, %v270
      %v293 = vadd.f32 %v253, %v266
      %v294 = vadd.f32 %v254, %v270
      %v295 = vadd.f32 %v255, %v266
      %v296 = vadd.f32 %v256, %v270
      %v297 = vadd.f32 %v257, %v266
      %v298 = vadd.f32 %v258, %v270
      %v299 = vadd.f32 %v259, %v266
      %v300 = vadd.f32 %v260, %v270
      %v301 = vmax.f32 %v273, 0.0
      %v302 = vmax.f32 %v274, 0.0
      %v303 = vmax.f32 %v275, 0.0
      %v304 = vmax.f32 %v276, 0.0
      %v305 = vmax.f32 %v277, 0.0
      %v306 = vmax.f32 %v278, 0.0
      %v307 = vmax.f32 %v279, 0.0
      %v308 = vmax.f32 %v280, 0.0
      %v309 = vmax.f32 %v281, 0.0
      %v310 = vmax.f32 %v282, 0.0
      %v311 = vmax.f32 %v283, 0.0
      %v312 = vmax.f32 %v284, 0.0
      %v313 = vmax.f32 %v285, 0.0
      %v314 = vmax.f32 %v286, 0.0
      %v315 = vmax.f32 %v287, 0.0
      %v316 = vmax.f32 %v288, 0.0
      %v317 = vmax.f32 %v289, 0.0
      %v318 = vmax.f32 %v290, 0.0
      %v319 = vmax.f32 %v291, 0.0
      %v320 = vmax.f32 %v292, 0.0
      %v321 = vmax.f32 %v293, 0.0
      %v322 = vmax.f32 %v294, 0.0
      %v323 = vmax.f32 %v295, 0.0
      %v324 = vmax.f32 %v296, 0.0
      %v325 = vmax.f32 %v297, 0.0
      %v326 = vmax.f32 %v298, 0.0
      %v327 = vmax.f32 %v299, 0.0
      %v328 = vmax.f32 %v300, 0.0
      %v329 = vpack.c.bf16 %v303, %v301
      %v330 = vpack.c.bf16 %v304, %v302
      %v331 = vpack.c.bf16 %v307, %v305
      %v332 = vpack.c.bf16 %v308, %v306
      %v333 = vpack.c.bf16 %v311, %v309
      %v334 = vpack.c.bf16 %v312, %v310
      %v335 = vpack.c.bf16 %v315, %v313
      %v336 = vpack.c.bf16 %v316, %v314
      %v337 = vpack.c.bf16 %v319, %v317
      %v338 = vpack.c.bf16 %v320, %v318
      %v339 = vpack.c.bf16 %v323, %v321
      %v340 = vpack.c.bf16 %v324, %v322
      %v341 = vpack.c.bf16 %v327, %v325
      %v342 = vpack.c.bf16 %v328, %v326
      %v357 = vunpack.c.l.b16 %v329
      %v358 = vunpack.c.l.b16 %v330
      %v359 = vunpack.c.h.b16 %v329
      %v360 = vunpack.c.h.b16 %v330
      %v361 = vunpack.c.l.b16 %v331
      %v362 = vunpack.c.l.b16 %v332
      %v363 = vunpack.c.h.b16 %v331
      %v364 = vunpack.c.h.b16 %v332
      %v365 = vunpack.c.l.b16 %v333
      %v366 = vunpack.c.l.b16 %v334
      %v367 = vunpack.c.h.b16 %v333
      %v368 = vunpack.c.h.b16 %v334
      %v369 = vunpack.c.l.b16 %v335
      %v370 = vunpack.c.l.b16 %v336
      %v371 = vunpack.c.h.b16 %v335
      %v372 = vunpack.c.h.b16 %v336
      %v373 = vunpack.c.l.b16 %v337
      %v374 = vunpack.c.l.b16 %v338
      %v375 = vunpack.c.h.b16 %v337
      %v376 = vunpack.c.h.b16 %v338
      %v377 = vunpack.c.l.b16 %v339
      %v378 = vunpack.c.l.b16 %v340
      %v379 = vunpack.c.h.b16 %v339
      %v380 = vunpack.c.h.b16 %v340
      %v381 = vunpack.c.l.b16 %v341
      %v382 = vunpack.c.l.b16 %v342
      %v383 = vunpack.c.h.b16 %v341
      %v384 = vunpack.c.h.b16 %v342
      %v385 = vpack.c.b16 %v358, %v357
      %v386 = vpack.c.b16 %v360, %v359
      %v387 = vpack.c.b16 %v362, %v361
      %v388 = vpack.c.b16 %v364, %v363
      %v389 = vpack.c.b16 %v366, %v365
      %v390 = vpack.c.b16 %v368, %v367
      %v391 = vpack.c.b16 %v370, %v369
      %v392 = vpack.c.b16 %v372, %v371
      %v393 = vpack.c.b16 %v374, %v373
      %v394 = vpack.c.b16 %v376, %v375
      %v395 = vpack.c.b16 %v378, %v377
      %v396 = vpack.c.b16 %v380, %v379
      %v397 = vpack.c.b16 %v382, %v381
      %v398 = vpack.c.b16 %v384, %v383
      %413 = vst [vmem:[%s177] sm:$0xff] %v385
      %414 = vst [vmem:[%s177 + $0x8] sm:$0xff] %v386
      %415 = vst [vmem:[%s177 + $0x10] sm:$0xff] %v387
      %416 = vst [vmem:[%s177 + $0x18] sm:$0xff] %v388
      %417 = vst [vmem:[%s177 + $0x20] sm:$0xff] %v389
      %418 = vst [vmem:[%s177 + $0x28] sm:$0xff] %v390
      %419 = vst [vmem:[%s177 + $0x30] sm:$0xff] %v391
      %420 = vst [vmem:[%s177 + $0x38] sm:$0xff] %v392
      %421 = vst [vmem:[%s177 + $0x40] sm:$0xff] %v393
      %422 = vst [vmem:[%s177 + $0x48] sm:$0xff] %v394
      %423 = vst [vmem:[%s177 + $0x50] sm:$0xff] %v395
      %424 = vst [vmem:[%s177 + $0x58] sm:$0xff] %v396
      %425 = vst [vmem:[%s177 + $0x60] sm:$0xff] %v397
      %426 = vst [vmem:[%s177 + $0x68] sm:$0xff] %v398
      %s427 = smul.u32 14, %s14
      %p428 = scmp.lt.s32.totalorder %s427, 55
      %s429 = scalar_select %p428, %s427, 55
      %s430 = smul.addr %s429, 2
      %s431 = smul.addr %s430, 4
      %s432 = scalar_lea.vmem %s3, %s431
      // Predicated region
      $region33: #{generator_forward.11} parent=31 // pred_check
        %p433 = pneg %p100
      $region34: #{generator_forward.11} parent=31 // pred_check_branch
        %435 = sbr.rel (%p433) target = $region36
      $region35: #{generator_forward.11} parent=31 // pred_region
        %s436 = smul.u32 14, %s14
      $region36: #{generator_forward.11} parent=31 // pred_fallthru
        _
    $region32: #{generator_forward.11} parent=5 // pred_fallthru
      _
    %p437 = scmp.le.s32.totalorder 2, %s9
    // Predicated region
    $region37: #{generator_forward.11} parent=5 // pred_check
      %p438 = pneg %p437
    $region38: #{generator_forward.11} parent=5 // pred_check_branch
      %440 = sbr.rel (%p438) target = $region40
    $region39: #{generator_forward.11} parent=5 // pred_region
      %s441 = ssub.s32 %s9, 2
      // Predicated region
      $region41: #{generator_forward.11} parent=39 // pred_check
        %p442 = pneg %p106
      $region42: #{generator_forward.11} parent=39 // pred_check_branch
        %444 = sbr.rel (%p442) target = $region44
      $region43: #{generator_forward.11} parent=39 // pred_region
        %s445 = smul.u32 14, %s15
        %p446 = scmp.lt.s32.totalorder %s445, 55
        %s447 = scalar_select %p446, %s445, 55
        %s448 = smul.addr %s447, 2
        %s449 = smul.addr %s448, 4
        %s450 = scalar_lea.vmem %s3, %s449
      $region44: #{generator_forward.11} parent=39 // pred_fallthru
        _
    $region40: #{generator_forward.11} parent=5 // pred_fallthru
      _
  $region6: #{generator_forward.11} parent=0 // loop_footer
    %s13 = sadd.s32 1, %s9
  $region7: #{generator_forward.11} parent=0 // loop_footer_branch
    %8 = sbr.rel target = $region3
  $region8: #{generator_forward.11} parent=0 // loop_exit
    _

// kernel: generator_forward.10
$region0: #{generator_forward.10}
  #allocation0 [shape = 'u32[]', space=smem, size = 0x4, offset = 0x4, fixed_abs, tag = 'smem constant byte address 0x4 - core index']
  #allocation1 [shape = 'u32[144,128]{1,0:T(1,128)}', space=vmem, size = 0x12000, scoped, tag = 'internal scratch']
  %s0 = inlined_call_operand.vmem [shape: bf16[448,1152], index: 0, kind: input, shape index: {}]
  %s1 = inlined_call_operand.vmem [shape: bf16[1152,256], index: 1, kind: input, shape index: {}]
  %s2 = inlined_call_operand.vmem [shape: bf16[448,256], index: 2, kind: output, shape index: {0}]
  %s3 = inlined_call_operand.vmem [shape: f32[32,256], index: 3, kind: output, shape index: {1}]
  %4 = xla_tuple %s2, %s3
  %s5 = sld [smem:[#allocation0]]
  $region49: #{generator_forward.10} parent=0
    _
  %s7 = ssub.s32 1, %s5
  %s8 = scalar_select 0, %s7, %s5
  loop: start=0, step=1, limit=6
  $region2: #{generator_forward.10} parent=0 // loop_pre_header
    _
  $region3: #{generator_forward.10} parent=0 // loop_header
    %s10 = sphi 0, %s14
    %p11 = scmp.ge.s32.totalorder %s10, 6
    %s20 = sphi 0, %s22
    %s23 = sphi 0, %s20
    %s24 = sphi 0, %s23
    %s40 = sphi 0, %s24
    %s44 = sphi 0, %s44
    %s46 = sphi 0, %s44
    %s47 = sphi 0, %s46
    %s61 = sphi 0, %s47
    %s67 = sphi 0, %s69
    %s70 = sphi 0, %s67
    %s71 = sphi 0, %s70
    %s87 = sphi 0, %s71
    %s93 = sphi 0, %s95
    %s96 = sphi 0, %s93
    %s97 = sphi 0, %s96
    %s113 = sphi 0, %s97
  $region4: #{generator_forward.10} parent=0 // loop_header_branch
    %13 = sbr.rel (%p11) target = $region8
  $region5: #{generator_forward.10} parent=0 // loop_body
    %s15 = ssub.s32 %s10, 1
    %s16 = ssub.s32 %s10, 2
    %s17 = sadd.s32 %s10, 1
    %s18 = ssub.s32 %s10, %s17
    %p19 = scmp.eq.s32.totalorder %s18, 0
    %s21 = sadd.s32 %s20, 1
    %s22 = scalar_select %p19, %s20, %s21
    %p25 = pneg %p19
    %p26 = scmp.eq.s32.totalorder %s10, 3
    %p27 = por %p25, %p26
    %p28 = scmp.ne.s32.totalorder %s20, %s23
    %p29 = scmp.eq.s32.totalorder %s10, 0
    %p30 = por %p28, %p29
    %p31 = scmp.ne.s32.totalorder %s20, %s23
    %p32 = scmp.eq.s32.totalorder %s15, 3
    %p33 = por %p31, %p32
    %p34 = scmp.ne.s32.totalorder %s23, %s24
    %p35 = scmp.eq.s32.totalorder %s15, 0
    %p36 = por %p34, %p35
    %p37 = scmp.ne.s32.totalorder %s23, %s24
    %p38 = scmp.eq.s32.totalorder %s16, 3
    %p39 = por %p37, %p38
    %p41 = scmp.ne.s32.totalorder %s24, %s40
    %p42 = scmp.eq.s32.totalorder %s16, 0
    %p43 = por %p41, %p42
    %s45 = sadd.s32 %s44, 1
    %p48 = scmp.eq.s32.totalorder %s10, 3
    %p49 = scmp.ne.s32.totalorder %s44, %s46
    %p50 = scmp.eq.s32.totalorder %s10, 0
    %p51 = por %p49, %p50
    %p52 = scmp.ne.s32.totalorder %s44, %s46
    %p53 = scmp.eq.s32.totalorder %s15, 3
    %p54 = por %p52, %p53
    %p55 = scmp.ne.s32.totalorder %s46, %s47
    %p56 = scmp.eq.s32.totalorder %s15, 0
    %p57 = por %p55, %p56
    %p58 = scmp.ne.s32.totalorder %s46, %s47
    %p59 = scmp.eq.s32.totalorder %s16, 3
    %p60 = por %p58, %p59
    %p62 = scmp.ne.s32.totalorder %s47, %s61
    %p63 = scmp.eq.s32.totalorder %s16, 0
    %p64 = por %p62, %p63
    %s65 = ssub.s32 %s10, %s17
    %p66 = scmp.eq.s32.totalorder %s65, 0
    %s68 = sadd.s32 %s67, 1
    %s69 = scalar_select %p66, %s67, %s68
    %p72 = pneg %p66
    %p73 = scmp.eq.s32.totalorder %s10, 3
    %p74 = por %p72, %p73
    %p75 = scmp.ne.s32.totalorder %s67, %s70
    %p76 = scmp.eq.s32.totalorder %s10, 0
    %p77 = por %p75, %p76
    %p78 = scmp.ne.s32.totalorder %s67, %s70
    %p79 = scmp.eq.s32.totalorder %s15, 3
    %p80 = por %p78, %p79
    %p81 = scmp.ne.s32.totalorder %s70, %s71
    %p82 = scmp.eq.s32.totalorder %s15, 0
    %p83 = por %p81, %p82
    %p84 = scmp.ne.s32.totalorder %s70, %s71
    %p85 = scmp.eq.s32.totalorder %s16, 3
    %p86 = por %p84, %p85
    %p88 = scmp.ne.s32.totalorder %s71, %s87
    %p89 = scmp.eq.s32.totalorder %s16, 0
    %p90 = por %p88, %p89
    %s91 = ssub.s32 %s10, %s17
    %p92 = scmp.eq.s32.totalorder %s91, 0
    %s94 = sadd.s32 %s93, 1
    %s95 = scalar_select %p92, %s93, %s94
    %p98 = pneg %p92
    %p99 = scmp.eq.s32.totalorder %s10, 3
    %p100 = por %p98, %p99
    %p101 = scmp.ne.s32.totalorder %s93, %s96
    %p102 = scmp.eq.s32.totalorder %s10, 0
    %p103 = por %p101, %p102
    %p104 = scmp.ne.s32.totalorder %s93, %s96
    %p105 = scmp.eq.s32.totalorder %s15, 3
    %p106 = por %p104, %p105
    %p107 = scmp.ne.s32.totalorder %s96, %s97
    %p108 = scmp.eq.s32.totalorder %s15, 0
    %p109 = por %p107, %p108
    %p110 = scmp.ne.s32.totalorder %s96, %s97
    %p111 = scmp.eq.s32.totalorder %s16, 3
    %p112 = por %p110, %p111
    %p114 = scmp.ne.s32.totalorder %s97, %s113
    %p115 = scmp.eq.s32.totalorder %s16, 0
    %p116 = por %p114, %p115
    %p117 = scmp.le.s32.totalorder 1, %s10
    %p118 = scmp.lt.s32.totalorder %s10, 5
    %p119 = pnand %p117, %p118
    %p120 = pneg %p119
    // Predicated region
    $region9: #{generator_forward.10} parent=5 // pred_check
      _
    $region10: #{generator_forward.10} parent=5 // pred_check_branch
      %122 = sbr.rel (%p119) target = $region12
    $region11: #{generator_forward.10} parent=5 // pred_region
      %s123 = ssub.s32 %s10, 1
      // Predicated region
      $region13: #{generator_forward.10} parent=11 // pred_check
        %p124 = pneg %p57
      $region14: #{generator_forward.10} parent=11 // pred_check_branch
        %126 = sbr.rel (%p124) target = $region16
      $region15: #{generator_forward.10} parent=11 // pred_region
        _
      $region16: #{generator_forward.10} parent=11 // pred_fallthru
        _
    $region12: #{generator_forward.10} parent=5 // pred_fallthru
      _
    %p127 = scmp.lt.s32.totalorder %s10, 4
    // Predicated region
    $region17: #{generator_forward.10} parent=5 // pred_check
      %p128 = pneg %p127
    $region18: #{generator_forward.10} parent=5 // pred_check_branch
      %130 = sbr.rel (%p128) target = $region20
    $region19: #{generator_forward.10} parent=5 // pred_region
      // Predicated region
      $region21: #{generator_forward.10} parent=19 // pred_check
        %p131 = pneg %p30
      $region22: #{generator_forward.10} parent=19 // pred_check_branch
        %133 = sbr.rel (%p131) target = $region24
      $region23: #{generator_forward.10} parent=19 // pred_region
        %s134 = smul.u32 14, %s10
        %p135 = scmp.lt.s32.totalorder %s134, 55
        %s136 = scalar_select %p135, %s134, 55
        %s137 = smul.addr %s136, 9
        %s138 = smul.addr %s137, 4
        %s139 = scalar_lea.vmem %s0, %s138
        %s140 = smul.u32 14, %s10
      $region24: #{generator_forward.10} parent=19 // pred_fallthru
        _
    $region20: #{generator_forward.10} parent=5 // pred_fallthru
      _
    %p141 = scmp.le.s32.totalorder 1, %s10
    %p142 = scmp.lt.s32.totalorder %s10, 5
    %p143 = pnand %p141, %p142
    %p144 = pneg %p143
    // Predicated region
    $region25: #{generator_forward.10} parent=5 // pred_check
      _
    $region26: #{generator_forward.10} parent=5 // pred_check_branch
      %146 = sbr.rel (%p143) target = $region28
    $region27: #{generator_forward.10} parent=5 // pred_region
      %s147 = ssub.s32 %s10, 1
      %s148 = smul.u32 14, %s15
      %p149 = scmp.lt.s32.totalorder %s148, 55
      %s150 = scalar_select %p149, %s148, 55
      %s151 = smul.addr %s150, 9
      %s152 = smul.addr %s151, 4
      %s153 = scalar_lea.vmem %s0, %s152
      %p154 = pneg %p36
      %p155 = pneg %p33
      %p156 = pneg %p57
      %p157 = pneg %p54
      %p158 = pneg %p83
      %p159 = pneg %p80
      %s160 = smul.u32 14, %s15
      %p161 = scmp.lt.s32.totalorder %s160, 55
      %s162 = scalar_select %p161, %s160, 55
      %s163 = smul.addr %s162, 2
      %s164 = smul.addr %s163, 4
      %s165 = scalar_lea.vmem %s2, %s164
      %p166 = pneg %p109
      %p167 = pneg %p106
      %p168 = scmp.lt.s32.totalorder %s15, 3
      %s169 = scalar_select %p168, %s15, 3
      %s170 = smul.addr %s169, 2
      %s171 = smul.addr %s170, 8
      %s172 = scalar_lea.vmem %s3, %s171
      %s173 = smul.u32 14, %s15
      %p174 = scmp.lt.s32.totalorder %s173, 55
      %s175 = scalar_select %p174, %s173, 55
      %s176 = smul.addr %s175, 9
      %s177 = smul.addr %s176, 4
      %s178 = scalar_lea.vmem %s0, %s177
      %s179 = smul.u32 14, %s15
      %s180 = smul.u32 14, %s15
      %p181 = scmp.lt.s32.totalorder %s180, 55
      %s182 = scalar_select %p181, %s180, 55
      %s183 = smul.addr %s182, 2
      %s184 = smul.addr %s183, 4
      %s185 = scalar_lea.vmem %s2, %s184
      %s186 = smul.u32 14, %s15
      %p187 = scmp.lt.s32.totalorder %s15, 3
      %s188 = scalar_select %p187, %s15, 3
      %s189 = smul.addr %s188, 2
      %s190 = smul.addr %s189, 8
      %s191 = scalar_lea.vmem %s3, %s190
      %v193 = vld [vmem:[%s178] sm:$0xff]
      %v194 = vld [vmem:[%s178 + $0x8] sm:$0xff]
      %v195 = vld [vmem:[%s178 + $0x10] sm:$0xff]
      %v196 = vld [vmem:[%s178 + $0x18] sm:$0xff]
      %v197 = vld [vmem:[%s178 + $0x20] sm:$0xf]
      %v198 = vld [vmem:[%s178 + $0x24] sm:$0xff]
      %v199 = vld [vmem:[%s178 + $0x2c] sm:$0xff]
      %v200 = vld [vmem:[%s178 + $0x34] sm:$0xff]
      %v201 = vld [vmem:[%s178 + $0x3c] sm:$0xff]
      %v202 = vld [vmem:[%s178 + $0x44] sm:$0xf]
      %v203 = vld [vmem:[%s178 + $0x48] sm:$0xff]
      %v204 = vld [vmem:[%s178 + $0x50] sm:$0xff]
      %v205 = vld [vmem:[%s178 + $0x58] sm:$0xff]
      %v206 = vld [vmem:[%s178 + $0x60] sm:$0xff]
      %v207 = vld [vmem:[%s178 + $0x68] sm:$0xf]
      %v208 = vld [vmem:[%s178 + $0x6c] sm:$0xff]
      %v209 = vld [vmem:[%s178 + $0x74] sm:$0xff]
      %v210 = vld [vmem:[%s178 + $0x7c] sm:$0xff]
      %v211 = vld [vmem:[%s178 + $0x84] sm:$0xff]
      %v212 = vld [vmem:[%s178 + $0x8c] sm:$0xf]
      %v213 = vld [vmem:[%s178 + $0x90] sm:$0xff]
      %v214 = vld [vmem:[%s178 + $0x98] sm:$0xff]
      %v215 = vld [vmem:[%s178 + $0xa0] sm:$0xff]
      %v216 = vld [vmem:[%s178 + $0xa8] sm:$0xff]
      %v217 = vld [vmem:[%s178 + $0xb0] sm:$0xf]
      %v218 = vld [vmem:[%s178 + $0xb4] sm:$0xff]
      %v219 = vld [vmem:[%s178 + $0xbc] sm:$0xff]
      %v220 = vld [vmem:[%s178 + $0xc4] sm:$0xff]
      %v221 = vld [vmem:[%s178 + $0xcc] sm:$0xff]
      %v222 = vld [vmem:[%s178 + $0xd4] sm:$0xf]
      %v223 = vld [vmem:[%s178 + $0xd8] sm:$0xff]
      %v224 = vld [vmem:[%s178 + $0xe0] sm:$0xff]
      %v225 = vld [vmem:[%s178 + $0xe8] sm:$0xff]
      %v226 = vld [vmem:[%s178 + $0xf0] sm:$0xff]
      %v227 = vld [vmem:[%s178 + $0xf8] sm:$0xf]
      %v228 = vld [vmem:[%s178 + $0xfc] sm:$0xff]
      %v229 = vld [vmem:[%s178 + $0x104] sm:$0xff]
      %v230 = vld [vmem:[%s178 + $0x10c] sm:$0xff]
      %v231 = vld [vmem:[%s178 + $0x114] sm:$0xff]
      %v232 = vld [vmem:[%s178 + $0x11c] sm:$0xf]
      %v233 = vld [vmem:[%s178 + $0x120] sm:$0xff]
      %v234 = vld [vmem:[%s178 + $0x128] sm:$0xff]
      %v235 = vld [vmem:[%s178 + $0x130] sm:$0xff]
      %v236 = vld [vmem:[%s178 + $0x138] sm:$0xff]
      %v237 = vld [vmem:[%s178 + $0x140] sm:$0xf]
      %v238 = vld [vmem:[%s178 + $0x144] sm:$0xff]
      %v239 = vld [vmem:[%s178 + $0x14c] sm:$0xff]
      %v240 = vld [vmem:[%s178 + $0x154] sm:$0xff]
      %v241 = vld [vmem:[%s178 + $0x15c] sm:$0xff]
      %v242 = vld [vmem:[%s178 + $0x164] sm:$0xf]
      %v243 = vld [vmem:[%s178 + $0x168] sm:$0xff]
      %v244 = vld [vmem:[%s178 + $0x170] sm:$0xff]
      %v245 = vld [vmem:[%s178 + $0x178] sm:$0xff]
      %v246 = vld [vmem:[%s178 + $0x180] sm:$0xff]
      %v247 = vld [vmem:[%s178 + $0x188] sm:$0xf]
      %v248 = vld [vmem:[%s178 + $0x18c] sm:$0xff]
      %v249 = vld [vmem:[%s178 + $0x194] sm:$0xff]
      %v250 = vld [vmem:[%s178 + $0x19c] sm:$0xff]
      %v251 = vld [vmem:[%s178 + $0x1a4] sm:$0xff]
      %v252 = vld [vmem:[%s178 + $0x1ac] sm:$0xf]
      %v253 = vld [vmem:[%s178 + $0x1b0] sm:$0xff]
      %v254 = vld [vmem:[%s178 + $0x1b8] sm:$0xff]
      %v255 = vld [vmem:[%s178 + $0x1c0] sm:$0xff]
      %v256 = vld [vmem:[%s178 + $0x1c8] sm:$0xff]
      %v257 = vld [vmem:[%s178 + $0x1d0] sm:$0xf]
      %v258 = vld [vmem:[%s178 + $0x1d4] sm:$0xff]
      %v259 = vld [vmem:[%s178 + $0x1dc] sm:$0xff]
      %v260 = vld [vmem:[%s178 + $0x1e4] sm:$0xff]
      %v261 = vld [vmem:[%s178 + $0x1ec] sm:$0xff]
      %v262 = vld [vmem:[%s178 + $0x1f4] sm:$0xf]
      %v263 = vld [vmem:[%s1] sm:$0xff]
      %v264 = vld [vmem:[%s1 + $0x8] sm:$0xff]
      %v265 = vld [vmem:[%s1 + $0x10] sm:$0xff]
      %v266 = vld [vmem:[%s1 + $0x18] sm:$0xff]
      %v267 = vld [vmem:[%s1 + $0x20] sm:$0xff]
      %v268 = vld [vmem:[%s1 + $0x28] sm:$0xff]
      %v269 = vld [vmem:[%s1 + $0x30] sm:$0xff]
      %v270 = vld [vmem:[%s1 + $0x38] sm:$0xff]
      %v271 = vld [vmem:[%s1 + $0x40] sm:$0xff]
      %v272 = vld [vmem:[%s1 + $0x48] sm:$0xff]
      %v273 = vld [vmem:[%s1 + $0x50] sm:$0xff]
      %v274 = vld [vmem:[%s1 + $0x58] sm:$0xff]
      %v275 = vld [vmem:[%s1 + $0x60] sm:$0xff]
      %v276 = vld [vmem:[%s1 + $0x68] sm:$0xff]
      %v277 = vld [vmem:[%s1 + $0x70] sm:$0xff]
      %v278 = vld [vmem:[%s1 + $0x78] sm:$0xff]
      %v279 = vld [vmem:[%s1 + $0x80] sm:$0xff]
      %v280 = vld [vmem:[%s1 + $0x88] sm:$0xff]
      %v281 = vld [vmem:[%s1 + $0x90] sm:$0xff]
      %v282 = vld [vmem:[%s1 + $0x98] sm:$0xff]
      %v283 = vld [vmem:[%s1 + $0xa0] sm:$0xff]
      %v284 = vld [vmem:[%s1 + $0xa8] sm:$0xff]
      %v285 = vld [vmem:[%s1 + $0xb0] sm:$0xff]
      %v286 = vld [vmem:[%s1 + $0xb8] sm:$0xff]
      %v287 = vld [vmem:[%s1 + $0xc0] sm:$0xff]
      %v288 = vld [vmem:[%s1 + $0xc8] sm:$0xff]
      %v289 = vld [vmem:[%s1 + $0xd0] sm:$0xff]
      %v290 = vld [vmem:[%s1 + $0xd8] sm:$0xff]
      %v291 = vld [vmem:[%s1 + $0xe0] sm:$0xff]
      %v292 = vld [vmem:[%s1 + $0xe8] sm:$0xff]
      %v293 = vld [vmem:[%s1 + $0xf0] sm:$0xff]
      %v294 = vld [vmem:[%s1 + $0xf8] sm:$0xff]
      %v295 = vld [vmem:[%s1 + $0x100] sm:$0xff]
      %v296 = vld [vmem:[%s1 + $0x108] sm:$0xff]
      %v297 = vld [vmem:[%s1 + $0x110] sm:$0xff]
      %v298 = vld [vmem:[%s1 + $0x118] sm:$0xff]
      %v299 = vld [vmem:[%s1 + $0x120] sm:$0xff]
      %v300 = vld [vmem:[%s1 + $0x128] sm:$0xff]
      %v301 = vld [vmem:[%s1 + $0x130] sm:$0xff]
      %v302 = vld [vmem:[%s1 + $0x138] sm:$0xff]
      %v303 = vld [vmem:[%s1 + $0x140] sm:$0xff]
      %v304 = vld [vmem:[%s1 + $0x148] sm:$0xff]
      %v305 = vld [vmem:[%s1 + $0x150] sm:$0xff]
      %v306 = vld [vmem:[%s1 + $0x158] sm:$0xff]
      %v307 = vld [vmem:[%s1 + $0x160] sm:$0xff]
      %v308 = vld [vmem:[%s1 + $0x168] sm:$0xff]
      %v309 = vld [vmem:[%s1 + $0x170] sm:$0xff]
      %v310 = vld [vmem:[%s1 + $0x178] sm:$0xff]
      %v311 = vld [vmem:[%s1 + $0x180] sm:$0xff]
      %v312 = vld [vmem:[%s1 + $0x188] sm:$0xff]
      %v313 = vld [vmem:[%s1 + $0x190] sm:$0xff]
      %v314 = vld [vmem:[%s1 + $0x198] sm:$0xff]
      %v315 = vld [vmem:[%s1 + $0x1a0] sm:$0xff]
      %v316 = vld [vmem:[%s1 + $0x1a8] sm:$0xff]
      %v317 = vld [vmem:[%s1 + $0x1b0] sm:$0xff]
      %v318 = vld [vmem:[%s1 + $0x1b8] sm:$0xff]
      %v319 = vld [vmem:[%s1 + $0x1c0] sm:$0xff]
      %v320 = vld [vmem:[%s1 + $0x1c8] sm:$0xff]
      %v321 = vld [vmem:[%s1 + $0x1d0] sm:$0xff]
      %v322 = vld [vmem:[%s1 + $0x1d8] sm:$0xff]
      %v323 = vld [vmem:[%s1 + $0x1e0] sm:$0xff]
      %v324 = vld [vmem:[%s1 + $0x1e8] sm:$0xff]
      %v325 = vld [vmem:[%s1 + $0x1f0] sm:$0xff]
      %v326 = vld [vmem:[%s1 + $0x1f8] sm:$0xff]
      %v327 = vld [vmem:[%s1 + $0x200] sm:$0xff]
      %v328 = vld [vmem:[%s1 + $0x208] sm:$0xff]
      %v329 = vld [vmem:[%s1 + $0x210] sm:$0xff]
      %v330 = vld [vmem:[%s1 + $0x218] sm:$0xff]
      %v331 = vld [vmem:[%s1 + $0x220] sm:$0xff]
      %v332 = vld [vmem:[%s1 + $0x228] sm:$0xff]
      %v333 = vld [vmem:[%s1 + $0x230] sm:$0xff]
      %v334 = vld [vmem:[%s1 + $0x238] sm:$0xff]
      %v335 = vld [vmem:[%s1 + $0x240] sm:$0xff]
      %v336 = vld [vmem:[%s1 + $0x248] sm:$0xff]
      %v337 = vld [vmem:[%s1 + $0x250] sm:$0xff]
      %v338 = vld [vmem:[%s1 + $0x258] sm:$0xff]
      %v339 = vld [vmem:[%s1 + $0x260] sm:$0xff]
      %v340 = vld [vmem:[%s1 + $0x268] sm:$0xff]
      %v341 = vld [vmem:[%s1 + $0x270] sm:$0xff]
      %v342 = vld [vmem:[%s1 + $0x278] sm:$0xff]
      %v343 = vld [vmem:[%s1 + $0x280] sm:$0xff]
      %v344 = vld [vmem:[%s1 + $0x288] sm:$0xff]
      %v345 = vld [vmem:[%s1 + $0x290] sm:$0xff]
      %v346 = vld [vmem:[%s1 + $0x298] sm:$0xff]
      %v347 = vld [vmem:[%s1 + $0x2a0] sm:$0xff]
      %v348 = vld [vmem:[%s1 + $0x2a8] sm:$0xff]
      %v349 = vld [vmem:[%s1 + $0x2b0] sm:$0xff]
      %v350 = vld [vmem:[%s1 + $0x2b8] sm:$0xff]
      %v351 = vld [vmem:[%s1 + $0x2c0] sm:$0xff]
      %v352 = vld [vmem:[%s1 + $0x2c8] sm:$0xff]
      %v353 = vld [vmem:[%s1 + $0x2d0] sm:$0xff]
      %v354 = vld [vmem:[%s1 + $0x2d8] sm:$0xff]
      %v355 = vld [vmem:[%s1 + $0x2e0] sm:$0xff]
      %v356 = vld [vmem:[%s1 + $0x2e8] sm:$0xff]
      %v357 = vld [vmem:[%s1 + $0x2f0] sm:$0xff]
      %v358 = vld [vmem:[%s1 + $0x2f8] sm:$0xff]
      %v359 = vld [vmem:[%s1 + $0x300] sm:$0xff]
      %v360 = vld [vmem:[%s1 + $0x308] sm:$0xff]
      %v361 = vld [vmem:[%s1 + $0x310] sm:$0xff]
      %v362 = vld [vmem:[%s1 + $0x318] sm:$0xff]
      %v363 = vld [vmem:[%s1 + $0x320] sm:$0xff]
      %v364 = vld [vmem:[%s1 + $0x328] sm:$0xff]
      %v365 = vld [vmem:[%s1 + $0x330] sm:$0xff]
      %v366 = vld [vmem:[%s1 + $0x338] sm:$0xff]
      %v367 = vld [vmem:[%s1 + $0x340] sm:$0xff]
      %v368 = vld [vmem:[%s1 + $0x348] sm:$0xff]
      %v369 = vld [vmem:[%s1 + $0x350] sm:$0xff]
      %v370 = vld [vmem:[%s1 + $0x358] sm:$0xff]
      %v371 = vld [vmem:[%s1 + $0x360] sm:$0xff]
      %v372 = vld [vmem:[%s1 + $0x368] sm:$0xff]
      %v373 = vld [vmem:[%s1 + $0x370] sm:$0xff]
      %v374 = vld [vmem:[%s1 + $0x378] sm:$0xff]
      %v375 = vld [vmem:[%s1 + $0x380] sm:$0xff]
      %v376 = vld [vmem:[%s1 + $0x388] sm:$0xff]
      %v377 = vld [vmem:[%s1 + $0x390] sm:$0xff]
      %v378 = vld [vmem:[%s1 + $0x398] sm:$0xff]
      %v379 = vld [vmem:[%s1 + $0x3a0] sm:$0xff]
      %v380 = vld [vmem:[%s1 + $0x3a8] sm:$0xff]
      %v381 = vld [vmem:[%s1 + $0x3b0] sm:$0xff]
      %v382 = vld [vmem:[%s1 + $0x3b8] sm:$0xff]
      %v383 = vld [vmem:[%s1 + $0x3c0] sm:$0xff]
      %v384 = vld [vmem:[%s1 + $0x3c8] sm:$0xff]
      %v385 = vld [vmem:[%s1 + $0x3d0] sm:$0xff]
      %v386 = vld [vmem:[%s1 + $0x3d8] sm:$0xff]
      %v387 = vld [vmem:[%s1 + $0x3e0] sm:$0xff]
      %v388 = vld [vmem:[%s1 + $0x3e8] sm:$0xff]
      %v389 = vld [vmem:[%s1 + $0x3f0] sm:$0xff]
      %v390 = vld [vmem:[%s1 + $0x3f8] sm:$0xff]
      %v391 = vld [vmem:[%s1 + $0x400] sm:$0xff]
      %v392 = vld [vmem:[%s1 + $0x408] sm:$0xff]
      %v393 = vld [vmem:[%s1 + $0x410] sm:$0xff]
      %v394 = vld [vmem:[%s1 + $0x418] sm:$0xff]
      %v395 = vld [vmem:[%s1 + $0x420] sm:$0xff]
      %v396 = vld [vmem:[%s1 + $0x428] sm:$0xff]
      %v397 = vld [vmem:[%s1 + $0x430] sm:$0xff]
      %v398 = vld [vmem:[%s1 + $0x438] sm:$0xff]
      %v399 = vld [vmem:[%s1 + $0x440] sm:$0xff]
      %v400 = vld [vmem:[%s1 + $0x448] sm:$0xff]
      %v401 = vld [vmem:[%s1 + $0x450] sm:$0xff]
      %v402 = vld [vmem:[%s1 + $0x458] sm:$0xff]
      %v403 = vld [vmem:[%s1 + $0x460] sm:$0xff]
      %v404 = vld [vmem:[%s1 + $0x468] sm:$0xff]
      %v405 = vld [vmem:[%s1 + $0x470] sm:$0xff]
      %v406 = vld [vmem:[%s1 + $0x478] sm:$0xff]
      %v477 = vunpack.c.l.b16 %v193
      %v478 = vunpack.c.h.b16 %v193
      %v479 = vunpack.c.l.b16 %v194
      %v480 = vunpack.c.h.b16 %v194
      %v481 = vunpack.c.l.b16 %v195
      %v482 = vunpack.c.h.b16 %v195
      %v483 = vunpack.c.l.b16 %v196
      %v484 = vunpack.c.h.b16 %v196
      %v485 = vunpack.c.l.b16 %v197
      %v486 = vunpack.c.l.b16 %v198
      %v487 = vunpack.c.h.b16 %v198
      %v488 = vunpack.c.l.b16 %v199
      %v489 = vunpack.c.h.b16 %v199
      %v490 = vunpack.c.l.b16 %v200
      %v491 = vunpack.c.h.b16 %v200
      %v492 = vunpack.c.l.b16 %v201
      %v493 = vunpack.c.h.b16 %v201
      %v494 = vunpack.c.l.b16 %v202
      %v495 = vunpack.c.l.b16 %v203
      %v496 = vunpack.c.h.b16 %v203
      %v497 = vunpack.c.l.b16 %v204
      %v498 = vunpack.c.h.b16 %v204
      %v499 = vunpack.c.l.b16 %v205
      %v500 = vunpack.c.h.b16 %v205
      %v501 = vunpack.c.l.b16 %v206
      %v502 = vunpack.c.h.b16 %v206
      %v503 = vunpack.c.l.b16 %v207
      %v504 = vunpack.c.l.b16 %v208
      %v505 = vunpack.c.h.b16 %v208
      %v506 = vunpack.c.l.b16 %v209
      %v507 = vunpack.c.h.b16 %v209
      %v508 = vunpack.c.l.b16 %v210
      %v509 = vunpack.c.h.b16 %v210
      %v510 = vunpack.c.l.b16 %v211
      %v511 = vunpack.c.h.b16 %v211
      %v512 = vunpack.c.l.b16 %v212
      %v513 = vunpack.c.l.b16 %v213
      %v514 = vunpack.c.h.b16 %v213
      %v515 = vunpack.c.l.b16 %v214
      %v516 = vunpack.c.h.b16 %v214
      %v517 = vunpack.c.l.b16 %v215
      %v518 = vunpack.c.h.b16 %v215
      %v519 = vunpack.c.l.b16 %v216
      %v520 = vunpack.c.h.b16 %v216
      %v521 = vunpack.c.l.b16 %v217
      %v522 = vunpack.c.l.b16 %v218
      %v523 = vunpack.c.h.b16 %v218
      %v524 = vunpack.c.l.b16 %v219
      %v525 = vunpack.c.h.b16 %v219
      %v526 = vunpack.c.l.b16 %v220
      %v527 = vunpack.c.h.b16 %v220
      %v528 = vunpack.c.l.b16 %v221
      %v529 = vunpack.c.h.b16 %v221
      %v530 = vunpack.c.l.b16 %v222
      %v531 = vunpack.c.l.b16 %v223
      %v532 = vunpack.c.h.b16 %v223
      %v533 = vunpack.c.l.b16 %v224
      %v534 = vunpack.c.h.b16 %v224
      %v535 = vunpack.c.l.b16 %v225
      %v536 = vunpack.c.h.b16 %v225
      %v537 = vunpack.c.l.b16 %v226
      %v538 = vunpack.c.h.b16 %v226
      %v539 = vunpack.c.l.b16 %v227
      %v540 = vunpack.c.l.b16 %v228
      %v541 = vunpack.c.h.b16 %v228
      %v542 = vunpack.c.l.b16 %v229
      %v543 = vunpack.c.h.b16 %v229
      %v544 = vunpack.c.l.b16 %v230
      %v545 = vunpack.c.h.b16 %v230
      %v546 = vunpack.c.l.b16 %v231
      %v547 = vunpack.c.h.b16 %v231
      %v548 = vunpack.c.l.b16 %v232
      %v549 = vunpack.c.l.b16 %v233
      %v550 = vunpack.c.h.b16 %v233
      %v551 = vunpack.c.l.b16 %v234
      %v552 = vunpack.c.h.b16 %v234
      %v553 = vunpack.c.l.b16 %v235
      %v554 = vunpack.c.h.b16 %v235
      %v555 = vunpack.c.l.b16 %v236
      %v556 = vunpack.c.h.b16 %v236
      %v557 = vunpack.c.l.b16 %v237
      %v558 = vunpack.c.l.b16 %v238
      %v559 = vunpack.c.h.b16 %v238
      %v560 = vunpack.c.l.b16 %v239
      %v561 = vunpack.c.h.b16 %v239
      %v562 = vunpack.c.l.b16 %v240
      %v563 = vunpack.c.h.b16 %v240
      %v564 = vunpack.c.l.b16 %v241
      %v565 = vunpack.c.h.b16 %v241
      %v566 = vunpack.c.l.b16 %v242
      %v567 = vunpack.c.l.b16 %v243
      %v568 = vunpack.c.h.b16 %v243
      %v569 = vunpack.c.l.b16 %v244
      %v570 = vunpack.c.h.b16 %v244
      %v571 = vunpack.c.l.b16 %v245
      %v572 = vunpack.c.h.b16 %v245
      %v573 = vunpack.c.l.b16 %v246
      %v574 = vunpack.c.h.b16 %v246
      %v575 = vunpack.c.l.b16 %v247
      %v576 = vunpack.c.l.b16 %v248
      %v577 = vunpack.c.h.b16 %v248
      %v578 = vunpack.c.l.b16 %v249
      %v579 = vunpack.c.h.b16 %v249
      %v580 = vunpack.c.l.b16 %v250
      %v581 = vunpack.c.h.b16 %v250
      %v582 = vunpack.c.l.b16 %v251
      %v583 = vunpack.c.h.b16 %v251
      %v584 = vunpack.c.l.b16 %v252
      %v585 = vunpack.c.l.b16 %v253
      %v586 = vunpack.c.h.b16 %v253
      %v587 = vunpack.c.l.b16 %v254
      %v588 = vunpack.c.h.b16 %v254
      %v589 = vunpack.c.l.b16 %v255
      %v590 = vunpack.c.h.b16 %v255
      %v591 = vunpack.c.l.b16 %v256
      %v592 = vunpack.c.h.b16 %v256
      %v593 = vunpack.c.l.b16 %v257
      %v594 = vunpack.c.l.b16 %v258
      %v595 = vunpack.c.h.b16 %v258
      %v596 = vunpack.c.l.b16 %v259
      %v597 = vunpack.c.h.b16 %v259
      %v598 = vunpack.c.l.b16 %v260
      %v599 = vunpack.c.h.b16 %v260
      %v600 = vunpack.c.l.b16 %v261
      %v601 = vunpack.c.h.b16 %v261
      %v602 = vunpack.c.l.b16 %v262
      %v603 = vpack.c.b16 %v486, %v477
      %v604 = vpack.c.b16 %v487, %v478
      %v605 = vpack.c.b16 %v488, %v479
      %v606 = vpack.c.b16 %v489, %v480
      %v607 = vpack.c.b16 %v490, %v481
      %v608 = vpack.c.b16 %v491, %v482
      %v609 = vpack.c.b16 %v492, %v483
      %v610 = vpack.c.b16 %v493, %v484
      %v611 = vpack.c.b16 %v494, %v485
      %v612 = vpack.c.b16 %v504, %v495
      %v613 = vpack.c.b16 %v505, %v496
      %v614 = vpack.c.b16 %v506, %v497
      %v615 = vpack.c.b16 %v507, %v498
      %v616 = vpack.c.b16 %v508, %v499
      %v617 = vpack.c.b16 %v509, %v500
      %v618 = vpack.c.b16 %v510, %v501
      %v619 = vpack.c.b16 %v511, %v502
      %v620 = vpack.c.b16 %v512, %v503
      %v621 = vpack.c.b16 %v522, %v513
      %v622 = vpack.c.b16 %v523, %v514
      %v623 = vpack.c.b16 %v524, %v515
      %v624 = vpack.c.b16 %v525, %v516
      %v625 = vpack.c.b16 %v526, %v517
      %v626 = vpack.c.b16 %v527, %v518
      %v627 = vpack.c.b16 %v528, %v519
      %v628 = vpack.c.b16 %v529, %v520
      %v629 = vpack.c.b16 %v530, %v521
      %v630 = vpack.c.b16 %v540, %v531
      %v631 = vpack.c.b16 %v541, %v532
      %v632 = vpack.c.b16 %v542, %v533
      %v633 = vpack.c.b16 %v543, %v534
      %v634 = vpack.c.b16 %v544, %v535
      %v635 = vpack.c.b16 %v545, %v536
      %v636 = vpack.c.b16 %v546, %v537
      %v637 = vpack.c.b16 %v547, %v538
      %v638 = vpack.c.b16 %v548, %v539
      %v639 = vpack.c.b16 %v558, %v549
      %v640 = vpack.c.b16 %v559, %v550
      %v641 = vpack.c.b16 %v560, %v551
      %v642 = vpack.c.b16 %v561, %v552
      %v643 = vpack.c.b16 %v562, %v553
      %v644 = vpack.c.b16 %v563, %v554
      %v645 = vpack.c.b16 %v564, %v555
      %v646 = vpack.c.b16 %v565, %v556
      %v647 = vpack.c.b16 %v566, %v557
      %v648 = vpack.c.b16 %v576, %v567
      %v649 = vpack.c.b16 %v577, %v568
      %v650 = vpack.c.b16 %v578, %v569
      %v651 = vpack.c.b16 %v579, %v570
      %v652 = vpack.c.b16 %v580, %v571
      %v653 = vpack.c.b16 %v581, %v572
      %v654 = vpack.c.b16 %v582, %v573
      %v655 = vpack.c.b16 %v583, %v574
      %v656 = vpack.c.b16 %v584, %v575
      %v657 = vpack.c.b16 %v594, %v585
      %v658 = vpack.c.b16 %v595, %v586
      %v659 = vpack.c.b16 %v596, %v587
      %v660 = vpack.c.b16 %v597, %v588
      %v661 = vpack.c.b16 %v598, %v589
      %v662 = vpack.c.b16 %v599, %v590
      %v663 = vpack.c.b16 %v600, %v591
      %v664 = vpack.c.b16 %v601, %v592
      %v665 = vpack.c.b16 %v602, %v593
      %v873 = vunpack.c.l.b16 %v263
      %v874 = vunpack.c.h.b16 %v263
      %v875 = vunpack.c.l.b16 %v264
      %v876 = vunpack.c.h.b16 %v264
      %v877 = vunpack.c.l.b16 %v265
      %v878 = vunpack.c.h.b16 %v265
      %v879 = vunpack.c.l.b16 %v266
      %v880 = vunpack.c.h.b16 %v266
      %v881 = vunpack.c.l.b16 %v267
      %v882 = vunpack.c.h.b16 %v267
      %v883 = vunpack.c.l.b16 %v268
      %v884 = vunpack.c.h.b16 %v268
      %v885 = vunpack.c.l.b16 %v269
      %v886 = vunpack.c.h.b16 %v269
      %v887 = vunpack.c.l.b16 %v270
      %v888 = vunpack.c.h.b16 %v270
      %v889 = vunpack.c.l.b16 %v271
      %v890 = vunpack.c.h.b16 %v271
      %v891 = vunpack.c.l.b16 %v272
      %v892 = vunpack.c.h.b16 %v272
      %v893 = vunpack.c.l.b16 %v273
      %v894 = vunpack.c.h.b16 %v273
      %v895 = vunpack.c.l.b16 %v274
      %v896 = vunpack.c.h.b16 %v274
      %v897 = vunpack.c.l.b16 %v275
      %v898 = vunpack.c.h.b16 %v275
      %v899 = vunpack.c.l.b16 %v276
      %v900 = vunpack.c.h.b16 %v276
      %v901 = vunpack.c.l.b16 %v277
      %v902 = vunpack.c.h.b16 %v277
      %v903 = vunpack.c.l.b16 %v278
      %v904 = vunpack.c.h.b16 %v278
      %v905 = vunpack.c.l.b16 %v279
      %v906 = vunpack.c.h.b16 %v279
      %v907 = vunpack.c.l.b16 %v280
      %v908 = vunpack.c.h.b16 %v280
      %v909 = vunpack.c.l.b16 %v281
      %v910 = vunpack.c.h.b16 %v281
      %v911 = vunpack.c.l.b16 %v282
      %v912 = vunpack.c.h.b16 %v282
      %v913 = vunpack.c.l.b16 %v283
      %v914 = vunpack.c.h.b16 %v283
      %v915 = vunpack.c.l.b16 %v284
      %v916 = vunpack.c.h.b16 %v284
      %v917 = vunpack.c.l.b16 %v285
      %v918 = vunpack.c.h.b16 %v285
      %v919 = vunpack.c.l.b16 %v286
      %v920 = vunpack.c.h.b16 %v286
      %v921 = vunpack.c.l.b16 %v287
      %v922 = vunpack.c.h.b16 %v287
      %v923 = vunpack.c.l.b16 %v288
      %v924 = vunpack.c.h.b16 %v288
      %v925 = vunpack.c.l.b16 %v289
      %v926 = vunpack.c.h.b16 %v289
      %v927 = vunpack.c.l.b16 %v290
      %v928 = vunpack.c.h.b16 %v290
      %v929 = vunpack.c.l.b16 %v291
      %v930 = vunpack.c.h.b16 %v291
      %v931 = vunpack.c.l.b16 %v292
      %v932 = vunpack.c.h.b16 %v292
      %v933 = vunpack.c.l.b16 %v293
      %v934 = vunpack.c.h.b16 %v293
      %v935 = vunpack.c.l.b16 %v294
      %v936 = vunpack.c.h.b16 %v294
      %v937 = vunpack.c.l.b16 %v295
      %v938 = vunpack.c.h.b16 %v295
      %v939 = vunpack.c.l.b16 %v296
      %v940 = vunpack.c.h.b16 %v296
      %v941 = vunpack.c.l.b16 %v297
      %v942 = vunpack.c.h.b16 %v297
      %v943 = vunpack.c.l.b16 %v298
      %v944 = vunpack.c.h.b16 %v298
      %v945 = vunpack.c.l.b16 %v299
      %v946 = vunpack.c.h.b16 %v299
      %v947 = vunpack.c.l.b16 %v300
      %v948 = vunpack.c.h.b16 %v300
      %v949 = vunpack.c.l.b16 %v301
      %v950 = vunpack.c.h.b16 %v301
      %v951 = vunpack.c.l.b16 %v302
      %v952 = vunpack.c.h.b16 %v302
      %v953 = vunpack.c.l.b16 %v303
      %v954 = vunpack.c.h.b16 %v303
      %v955 = vunpack.c.l.b16 %v304
      %v956 = vunpack.c.h.b16 %v304
      %v957 = vunpack.c.l.b16 %v305
      %v958 = vunpack.c.h.b16 %v305
      %v959 = vunpack.c.l.b16 %v306
      %v960 = vunpack.c.h.b16 %v306
      %v961 = vunpack.c.l.b16 %v307
      %v962 = vunpack.c.h.b16 %v307
      %v963 = vunpack.c.l.b16 %v308
      %v964 = vunpack.c.h.b16 %v308
      %v965 = vunpack.c.l.b16 %v309
      %v966 = vunpack.c.h.b16 %v309
      %v967 = vunpack.c.l.b16 %v310
      %v968 = vunpack.c.h.b16 %v310
      %v969 = vunpack.c.l.b16 %v311
      %v970 = vunpack.c.h.b16 %v311
      %v971 = vunpack.c.l.b16 %v312
      %v972 = vunpack.c.h.b16 %v312
      %v973 = vunpack.c.l.b16 %v313
      %v974 = vunpack.c.h.b16 %v313
      %v975 = vunpack.c.l.b16 %v314
      %v976 = vunpack.c.h.b16 %v314
      %v977 = vunpack.c.l.b16 %v315
      %v978 = vunpack.c.h.b16 %v315
      %v979 = vunpack.c.l.b16 %v316
      %v980 = vunpack.c.h.b16 %v316
      %v981 = vunpack.c.l.b16 %v317
      %v982 = vunpack.c.h.b16 %v317
      %v983 = vunpack.c.l.b16 %v318
      %v984 = vunpack.c.h.b16 %v318
      %v985 = vunpack.c.l.b16 %v319
      %v986 = vunpack.c.h.b16 %v319
      %v987 = vunpack.c.l.b16 %v320
      %v988 = vunpack.c.h.b16 %v320
      %v989 = vunpack.c.l.b16 %v321
      %v990 = vunpack.c.h.b16 %v321
      %v991 = vunpack.c.l.b16 %v322
      %v992 = vunpack.c.h.b16 %v322
      %v993 = vunpack.c.l.b16 %v323
      %v994 = vunpack.c.h.b16 %v323
      %v995 = vunpack.c.l.b16 %v324
      %v996 = vunpack.c.h.b16 %v324
      %v997 = vunpack.c.l.b16 %v325
      %v998 = vunpack.c.h.b16 %v325
      %v999 = vunpack.c.l.b16 %v326
      %v1000 = vunpack.c.h.b16 %v326
      %v1001 = vunpack.c.l.b16 %v327
      %v1002 = vunpack.c.h.b16 %v327
      %v1003 = vunpack.c.l.b16 %v328
      %v1004 = vunpack.c.h.b16 %v328
      %v1005 = vunpack.c.l.b16 %v329
      %v1006 = vunpack.c.h.b16 %v329
      %v1007 = vunpack.c.l.b16 %v330
      %v1008 = vunpack.c.h.b16 %v330
      %v1009 = vunpack.c.l.b16 %v331
      %v1010 = vunpack.c.h.b16 %v331
      %v1011 = vunpack.c.l.b16 %v332
      %v1012 = vunpack.c.h.b16 %v332
      %v1013 = vunpack.c.l.b16 %v333
      %v1014 = vunpack.c.h.b16 %v333
      %v1015 = vunpack.c.l.b16 %v334
      %v1016 = vunpack.c.h.b16 %v334
      %v1017 = vunpack.c.l.b16 %v335
      %v1018 = vunpack.c.h.b16 %v335
      %v1019 = vunpack.c.l.b16 %v336
      %v1020 = vunpack.c.h.b16 %v336
      %v1021 = vunpack.c.l.b16 %v337
      %v1022 = vunpack.c.h.b16 %v337
      %v1023 = vunpack.c.l.b16 %v338
      %v1024 = vunpack.c.h.b16 %v338
      %v1025 = vunpack.c.l.b16 %v339
      %v1026 = vunpack.c.h.b16 %v339
      %v1027 = vunpack.c.l.b16 %v340
      %v1028 = vunpack.c.h.b16 %v340
      %v1029 = vunpack.c.l.b16 %v341
      %v1030 = vunpack.c.h.b16 %v341
      %v1031 = vunpack.c.l.b16 %v342
      %v1032 = vunpack.c.h.b16 %v342
      %v1033 = vunpack.c.l.b16 %v343
      %v1034 = vunpack.c.h.b16 %v343
      %v1035 = vunpack.c.l.b16 %v344
      %v1036 = vunpack.c.h.b16 %v344
      %v1037 = vunpack.c.l.b16 %v345
      %v1038 = vunpack.c.h.b16 %v345
      %v1039 = vunpack.c.l.b16 %v346
      %v1040 = vunpack.c.h.b16 %v346
      %v1041 = vunpack.c.l.b16 %v347
      %v1042 = vunpack.c.h.b16 %v347
      %v1043 = vunpack.c.l.b16 %v348
      %v1044 = vunpack.c.h.b16 %v348
      %v1045 = vunpack.c.l.b16 %v349
      %v1046 = vunpack.c.h.b16 %v349
      %v1047 = vunpack.c.l.b16 %v350
      %v1048 = vunpack.c.h.b16 %v350
      %v1049 = vunpack.c.l.b16 %v351
      %v1050 = vunpack.c.h.b16 %v351
      %v1051 = vunpack.c.l.b16 %v352
      %v1052 = vunpack.c.h.b16 %v352
      %v1053 = vunpack.c.l.b16 %v353
      %v1054 = vunpack.c.h.b16 %v353
      %v1055 = vunpack.c.l.b16 %v354
      %v1056 = vunpack.c.h.b16 %v354
      %v1057 = vunpack.c.l.b16 %v355
      %v1058 = vunpack.c.h.b16 %v355
      %v1059 = vunpack.c.l.b16 %v356
      %v1060 = vunpack.c.h.b16 %v356
      %v1061 = vunpack.c.l.b16 %v357
      %v1062 = vunpack.c.h.b16 %v357
      %v1063 = vunpack.c.l.b16 %v358
      %v1064 = vunpack.c.h.b16 %v358
      %v1065 = vunpack.c.l.b16 %v359
      %v1066 = vunpack.c.h.b16 %v359
      %v1067 = vunpack.c.l.b16 %v360
      %v1068 = vunpack.c.h.b16 %v360
      %v1069 = vunpack.c.l.b16 %v361
      %v1070 = vunpack.c.h.b16 %v361
      %v1071 = vunpack.c.l.b16 %v362
      %v1072 = vunpack.c.h.b16 %v362
      %v1073 = vunpack.c.l.b16 %v363
      %v1074 = vunpack.c.h.b16 %v363
      %v1075 = vunpack.c.l.b16 %v364
      %v1076 = vunpack.c.h.b16 %v364
      %v1077 = vunpack.c.l.b16 %v365
      %v1078 = vunpack.c.h.b16 %v365
      %v1079 = vunpack.c.l.b16 %v366
      %v1080 = vunpack.c.h.b16 %v366
      %v1081 = vunpack.c.l.b16 %v367
      %v1082 = vunpack.c.h.b16 %v367
      %v1083 = vunpack.c.l.b16 %v368
      %v1084 = vunpack.c.h.b16 %v368
      %v1085 = vunpack.c.l.b16 %v369
      %v1086 = vunpack.c.h.b16 %v369
      %v1087 = vunpack.c.l.b16 %v370
      %v1088 = vunpack.c.h.b16 %v370
      %v1089 = vunpack.c.l.b16 %v371
      %v1090 = vunpack.c.h.b16 %v371
      %v1091 = vunpack.c.l.b16 %v372
      %v1092 = vunpack.c.h.b16 %v372
      %v1093 = vunpack.c.l.b16 %v373
      %v1094 = vunpack.c.h.b16 %v373
      %v1095 = vunpack.c.l.b16 %v374
      %v1096 = vunpack.c.h.b16 %v374
      %v1097 = vunpack.c.l.b16 %v375
      %v1098 = vunpack.c.h.b16 %v375
      %v1099 = vunpack.c.l.b16 %v376
      %v1100 = vunpack.c.h.b16 %v376
      %v1101 = vunpack.c.l.b16 %v377
      %v1102 = vunpack.c.h.b16 %v377
      %v1103 = vunpack.c.l.b16 %v378
      %v1104 = vunpack.c.h.b16 %v378
      %v1105 = vunpack.c.l.b16 %v379
      %v1106 = vunpack.c.h.b16 %v379
      %v1107 = vunpack.c.l.b16 %v380
      %v1108 = vunpack.c.h.b16 %v380
      %v1109 = vunpack.c.l.b16 %v381
      %v1110 = vunpack.c.h.b16 %v381
      %v1111 = vunpack.c.l.b16 %v382
      %v1112 = vunpack.c.h.b16 %v382
      %v1113 = vunpack.c.l.b16 %v383
      %v1114 = vunpack.c.h.b16 %v383
      %v1115 = vunpack.c.l.b16 %v384
      %v1116 = vunpack.c.h.b16 %v384
      %v1117 = vunpack.c.l.b16 %v385
      %v1118 = vunpack.c.h.b16 %v385
      %v1119 = vunpack.c.l.b16 %v386
      %v1120 = vunpack.c.h.b16 %v386
      %v1121 = vunpack.c.l.b16 %v387
      %v1122 = vunpack.c.h.b16 %v387
      %v1123 = vunpack.c.l.b16 %v388
      %v1124 = vunpack.c.h.b16 %v388
      %v1125 = vunpack.c.l.b16 %v389
      %v1126 = vunpack.c.h.b16 %v389
      %v1127 = vunpack.c.l.b16 %v390
      %v1128 = vunpack.c.h.b16 %v390
      %v1129 = vunpack.c.l.b16 %v391
      %v1130 = vunpack.c.h.b16 %v391
      %v1131 = vunpack.c.l.b16 %v392
      %v1132 = vunpack.c.h.b16 %v392
      %v1133 = vunpack.c.l.b16 %v393
      %v1134 = vunpack.c.h.b16 %v393
      %v1135 = vunpack.c.l.b16 %v394
      %v1136 = vunpack.c.h.b16 %v394
      %v1137 = vunpack.c.l.b16 %v395
      %v1138 = vunpack.c.h.b16 %v395
      %v1139 = vunpack.c.l.b16 %v396
      %v1140 = vunpack.c.h.b16 %v396
      %v1141 = vunpack.c.l.b16 %v397
      %v1142 = vunpack.c.h.b16 %v397
      %v1143 = vunpack.c.l.b16 %v398
      %v1144 = vunpack.c.h.b16 %v398
      %v1145 = vunpack.c.l.b16 %v399
      %v1146 = vunpack.c.h.b16 %v399
      %v1147 = vunpack.c.l.b16 %v400
      %v1148 = vunpack.c.h.b16 %v400
      %v1149 = vunpack.c.l.b16 %v401
      %v1150 = vunpack.c.h.b16 %v401
      %v1151 = vunpack.c.l.b16 %v402
      %v1152 = vunpack.c.h.b16 %v402
      %v1153 = vunpack.c.l.b16 %v403
      %v1154 = vunpack.c.h.b16 %v403
      %v1155 = vunpack.c.l.b16 %v404
      %v1156 = vunpack.c.h.b16 %v404
      %v1157 = vunpack.c.l.b16 %v405
      %v1158 = vunpack.c.h.b16 %v405
      %v1159 = vunpack.c.l.b16 %v406
      %v1160 = vunpack.c.h.b16 %v406
      %v1161 = vpack.c.b16 %v875, %v873
      %v1162 = vpack.c.b16 %v876, %v874
      %v1163 = vpack.c.b16 %v879, %v877
      %v1164 = vpack.c.b16 %v880, %v878
      %v1165 = vpack.c.b16 %v883, %v881
      %v1166 = vpack.c.b16 %v884, %v882
      %v1167 = vpack.c.b16 %v887, %v885
      %v1168 = vpack.c.b16 %v888, %v886
      %v1169 = vpack.c.b16 %v891, %v889
      %v1170 = vpack.c.b16 %v892, %v890
      %v1171 = vpack.c.b16 %v895, %v893
      %v1172 = vpack.c.b16 %v896, %v894
      %v1173 = vpack.c.b16 %v899, %v897
      %v1174 = vpack.c.b16 %v900, %v898
      %v1175 = vpack.c.b16 %v903, %v901
      %v1176 = vpack.c.b16 %v904, %v902
      %v1177 = vpack.c.b16 %v907, %v905
      %v1178 = vpack.c.b16 %v908, %v906
      %v1179 = vpack.c.b16 %v911, %v909
      %v1180 = vpack.c.b16 %v912, %v910
      %v1181 = vpack.c.b16 %v915, %v913
      %v1182 = vpack.c.b16 %v916, %v914
      %v1183 = vpack.c.b16 %v919, %v917
      %v1184 = vpack.c.b16 %v920, %v918
      %v1185 = vpack.c.b16 %v923, %v921
      %v1186 = vpack.c.b16 %v924, %v922
      %v1187 = vpack.c.b16 %v927, %v925
      %v1188 = vpack.c.b16 %v928, %v926
      %v1189 = vpack.c.b16 %v931, %v929
      %v1190 = vpack.c.b16 %v932, %v930
      %v1191 = vpack.c.b16 %v935, %v933
      %v1192 = vpack.c.b16 %v936, %v934
      %v1193 = vpack.c.b16 %v939, %v937
      %v1194 = vpack.c.b16 %v940, %v938
      %v1195 = vpack.c.b16 %v943, %v941
      %v1196 = vpack.c.b16 %v944, %v942
      %v1197 = vpack.c.b16 %v947, %v945
      %v1198 = vpack.c.b16 %v948, %v946
      %v1199 = vpack.c.b16 %v951, %v949
      %v1200 = vpack.c.b16 %v952, %v950
      %v1201 = vpack.c.b16 %v955, %v953
      %v1202 = vpack.c.b16 %v956, %v954
      %v1203 = vpack.c.b16 %v959, %v957
      %v1204 = vpack.c.b16 %v960, %v958
      %v1205 = vpack.c.b16 %v963, %v961
      %v1206 = vpack.c.b16 %v964, %v962
      %v1207 = vpack.c.b16 %v967, %v965
      %v1208 = vpack.c.b16 %v968, %v966
      %v1209 = vpack.c.b16 %v971, %v969
      %v1210 = vpack.c.b16 %v972, %v970
      %v1211 = vpack.c.b16 %v975, %v973
      %v1212 = vpack.c.b16 %v976, %v974
      %v1213 = vpack.c.b16 %v979, %v977
      %v1214 = vpack.c.b16 %v980, %v978
      %v1215 = vpack.c.b16 %v983, %v981
      %v1216 = vpack.c.b16 %v984, %v982
      %v1217 = vpack.c.b16 %v987, %v985
      %v1218 = vpack.c.b16 %v988, %v986
      %v1219 = vpack.c.b16 %v991, %v989
      %v1220 = vpack.c.b16 %v992, %v990
      %v1221 = vpack.c.b16 %v995, %v993
      %v1222 = vpack.c.b16 %v996, %v994
      %v1223 = vpack.c.b16 %v999, %v997
      %v1224 = vpack.c.b16 %v1000, %v998
      %v1225 = vpack.c.b16 %v1003, %v1001
      %v1226 = vpack.c.b16 %v1004, %v1002
      %v1227 = vpack.c.b16 %v1007, %v1005
      %v1228 = vpack.c.b16 %v1008, %v1006
      %v1229 = vpack.c.b16 %v1011, %v1009
      %v1230 = vpack.c.b16 %v1012, %v1010
      %v1231 = vpack.c.b16 %v1015, %v1013
      %v1232 = vpack.c.b16 %v1016, %v1014
      %v1233 = vpack.c.b16 %v1019, %v1017
      %v1234 = vpack.c.b16 %v1020, %v1018
      %v1235 = vpack.c.b16 %v1023, %v1021
      %v1236 = vpack.c.b16 %v1024, %v1022
      %v1237 = vpack.c.b16 %v1027, %v1025
      %v1238 = vpack.c.b16 %v1028, %v1026
      %v1239 = vpack.c.b16 %v1031, %v1029
      %v1240 = vpack.c.b16 %v1032, %v1030
      %v1241 = vpack.c.b16 %v1035, %v1033
      %v1242 = vpack.c.b16 %v1036, %v1034
      %v1243 = vpack.c.b16 %v1039, %v1037
      %v1244 = vpack.c.b16 %v1040, %v1038
      %v1245 = vpack.c.b16 %v1043, %v1041
      %v1246 = vpack.c.b16 %v1044, %v1042
      %v1247 = vpack.c.b16 %v1047, %v1045
      %v1248 = vpack.c.b16 %v1048, %v1046
      %v1249 = vpack.c.b16 %v1051, %v1049
      %v1250 = vpack.c.b16 %v1052, %v1050
      %v1251 = vpack.c.b16 %v1055, %v1053
      %v1252 = vpack.c.b16 %v1056, %v1054
      %v1253 = vpack.c.b16 %v1059, %v1057
      %v1254 = vpack.c.b16 %v1060, %v1058
      %v1255 = vpack.c.b16 %v1063, %v1061
      %v1256 = vpack.c.b16 %v1064, %v1062
      %v1257 = vpack.c.b16 %v1067, %v1065
      %v1258 = vpack.c.b16 %v1068, %v1066
      %v1259 = vpack.c.b16 %v1071, %v1069
      %v1260 = vpack.c.b16 %v1072, %v1070
      %v1261 = vpack.c.b16 %v1075, %v1073
      %v1262 = vpack.c.b16 %v1076, %v1074
      %v1263 = vpack.c.b16 %v1079, %v1077
      %v1264 = vpack.c.b16 %v1080, %v1078
      %v1265 = vpack.c.b16 %v1083, %v1081
      %v1266 = vpack.c.b16 %v1084, %v1082
      %v1267 = vpack.c.b16 %v1087, %v1085
      %v1268 = vpack.c.b16 %v1088, %v1086
      %v1269 = vpack.c.b16 %v1091, %v1089
      %v1270 = vpack.c.b16 %v1092, %v1090
      %v1271 = vpack.c.b16 %v1095, %v1093
      %v1272 = vpack.c.b16 %v1096, %v1094
      %v1273 = vpack.c.b16 %v1099, %v1097
      %v1274 = vpack.c.b16 %v1100, %v1098
      %v1275 = vpack.c.b16 %v1103, %v1101
      %v1276 = vpack.c.b16 %v1104, %v1102
      %v1277 = vpack.c.b16 %v1107, %v1105
      %v1278 = vpack.c.b16 %v1108, %v1106
      %v1279 = vpack.c.b16 %v1111, %v1109
      %v1280 = vpack.c.b16 %v1112, %v1110
      %v1281 = vpack.c.b16 %v1115, %v1113
      %v1282 = vpack.c.b16 %v1116, %v1114
      %v1283 = vpack.c.b16 %v1119, %v1117
      %v1284 = vpack.c.b16 %v1120, %v1118
      %v1285 = vpack.c.b16 %v1123, %v1121
      %v1286 = vpack.c.b16 %v1124, %v1122
      %v1287 = vpack.c.b16 %v1127, %v1125
      %v1288 = vpack.c.b16 %v1128, %v1126
      %v1289 = vpack.c.b16 %v1131, %v1129
      %v1290 = vpack.c.b16 %v1132, %v1130
      %v1291 = vpack.c.b16 %v1135, %v1133
      %v1292 = vpack.c.b16 %v1136, %v1134
      %v1293 = vpack.c.b16 %v1139, %v1137
      %v1294 = vpack.c.b16 %v1140, %v1138
      %v1295 = vpack.c.b16 %v1143, %v1141
      %v1296 = vpack.c.b16 %v1144, %v1142
      %v1297 = vpack.c.b16 %v1147, %v1145
      %v1298 = vpack.c.b16 %v1148, %v1146
      %v1299 = vpack.c.b16 %v1151, %v1149
      %v1300 = vpack.c.b16 %v1152, %v1150
      %v1301 = vpack.c.b16 %v1155, %v1153
      %v1302 = vpack.c.b16 %v1156, %v1154
      %v1303 = vpack.c.b16 %v1159, %v1157
      %v1304 = vpack.c.b16 %v1160, %v1158
      %1449 = vmatprep.subr.bf16.mxu0 %v1162
      %1450 = vmatpush1.bf16.msra.mxu0 %v1161
      %1451 = vmatprep.subr.bf16.mxu0 %v1164
      %1452 = vmatpush1.bf16.msra.mxu0 %v1163
      %1453 = vmatprep.subr.bf16.mxu0 %v1166
      %1454 = vmatpush1.bf16.msra.mxu0 %v1165
      %1455 = vmatprep.subr.bf16.mxu0 %v1168
      %1456 = vmatpush1.bf16.msra.mxu0 %v1167
      %1457 = vmatprep.subr.bf16.mxu0 %v1170
      %1458 = vmatpush1.bf16.msra.mxu0 %v1169
      %1459 = vmatprep.subr.bf16.mxu0 %v1172
      %1460 = vmatpush1.bf16.msra.mxu0 %v1171
      %1461 = vmatprep.subr.bf16.mxu0 %v1174
      %1462 = vmatpush1.bf16.msra.mxu0 %v1173
      %1463 = vmatprep.subr.bf16.mxu0 %v1176
      %1464 = vmatpush1.bf16.msra.mxu0 %v1175
      %1465 = vmatprep.subr.bf16.mxu0 %v1178
      %1466 = vmatpush1.bf16.msra.mxu0 %v1177
      %1467 = vmatprep.subr.bf16.mxu0 %v1180
      %1468 = vmatpush1.bf16.msra.mxu0 %v1179
      %1469 = vmatprep.subr.bf16.mxu0 %v1182
      %1470 = vmatpush1.bf16.msra.mxu0 %v1181
      %1471 = vmatprep.subr.bf16.mxu0 %v1184
      %1472 = vmatpush1.bf16.msra.mxu0 %v1183
      %1473 = vmatprep.subr.bf16.mxu0 %v1186
      %1474 = vmatpush1.bf16.msra.mxu0 %v1185
      %1475 = vmatprep.subr.bf16.mxu0 %v1188
      %1476 = vmatpush1.bf16.msra.mxu0 %v1187
      %1477 = vmatprep.subr.bf16.mxu0 %v1190
      %1478 = vmatpush1.bf16.msra.mxu0 %v1189
      %1479 = vmatprep.subr.bf16.mxu0 %v1192
      %1480 = vmatpush1.bf16.msra.mxu0 %v1191
      %1481 = vmatprep.mubr.bf16.mxu0 %v604
      %1482 = vmatmul.mubr.bf16.gmra.mrb[0].mxu0 %v603
      %v1483 = vpop.f32.mrb[0].mxu0
      %v1484 = vadd.f32 0.0, %v1483
      %v1485 = vpop.f32.mrb[0].mxu0
      %v1486 = vadd.f32 0.0, %v1485
      %v1487 = vpop.f32.mrb[0].mxu0
      %v1488 = vadd.f32 0.0, %v1487
      %v1489 = vpop.f32.mrb[0].mxu0
      %v1490 = vadd.f32 0.0, %v1489
      %1491 = vmatprep.mubr.bf16.mxu0 %v613
      %1492 = vmatmul.mubr.bf16.gmra.mrb[0].mxu0 %v612
      %v1493 = vpop.f32.mrb[0].mxu0
      %v1494 = vadd.f32 0.0, %v1493
      %v1495 = vpop.f32.mrb[0].mxu0
      %v1496 = vadd.f32 0.0, %v1495
      %v1497 = vpop.f32.mrb[0].mxu0
      %v1498 = vadd.f32 0.0, %v1497
      %v1499 = vpop.f32.mrb[0].mxu0
      %v1500 = vadd.f32 0.0, %v1499
      %1501 = vmatprep.mubr.bf16.mxu0 %v622
      %1502 = vmatmul.mubr.bf16.gmra.mrb[0].mxu0 %v621
      %v1503 = vpop.f32.mrb[0].mxu0
      %v1504 = vadd.f32 0.0, %v1503
      %v1505 = vpop.f32.mrb[0].mxu0
      %v1506 = vadd.f32 0.0, %v1505
      %v1507 = vpop.f32.mrb[0].mxu0
      %v1508 = vadd.f32 0.0, %v1507
      %v1509 = vpop.f32.mrb[0].mxu0
      %v1510 = vadd.f32 0.0, %v1509
      %1511 = vmatprep.mubr.bf16.mxu0 %v631
      %1512 = vmatmul.mubr.bf16.gmra.mrb[0].mxu0 %v630
      %v1513 = vpop.f32.mrb[0].mxu0
      %v1514 = vadd.f32 0.0, %v1513
      %v1515 = vpop.f32.mrb[0].mxu0
      %v1516 = vadd.f32 0.0, %v1515
      %v1517 = vpop.f32.mrb[0].mxu0
      %v1518 = vadd.f32 0.0, %v1517
      %v1519 = vpop.f32.mrb[0].mxu0
      %v1520 = vadd.f32 0.0, %v1519
      %1521 = vmatprep.mubr.bf16.mxu0 %v640
      %1522 = vmatmul.mubr.bf16.gmra.mrb[0].mxu0 %v639
      %v1523 = vpop.f32.mrb[0].mxu0
      %v1524 = vadd.f32 0.0, %v1523
      %v1525 = vpop.f32.mrb[0].mxu0
      %v1526 = vadd.f32 0.0, %v1525
      %v1527 = vpop.f32.mrb[0].mxu0
      %v1528 = vadd.f32 0.0, %v1527
      %v1529 = vpop.f32.mrb[0].mxu0
      %v1530 = vadd.f32 0.0, %v1529
      %1531 = vmatprep.mubr.bf16.mxu0 %v649
      %1532 = vmatmul.mubr.bf16.gmra.mrb[0].mxu0 %v648
      %v1533 = vpop.f32.mrb[0].mxu0
      %v1534 = vadd.f32 0.0, %v1533
      %v1535 = vpop.f32.mrb[0].mxu0
      %v1536 = vadd.f32 0.0, %v1535
      %v1537 = vpop.f32.mrb[0].mxu0
      %v1538 = vadd.f32 0.0, %v1537
      %v1539 = vpop.f32.mrb[0].mxu0
      %v1540 = vadd.f32 0.0, %v1539
      %1541 = vmatprep.mubr.bf16.mxu0 %v658
      %1542 = vmatmul.mubr.bf16.gmra.mrb[0].mxu0 %v657
      %v1543 = vpop.f32.mrb[0].mxu0
      %v1544 = vadd.f32 0.0, %v1543
      %v1545 = vpop.f32.mrb[0].mxu0
      %v1546 = vadd.f32 0.0, %v1545
      %v1547 = vpop.f32.mrb[0].mxu0
      %v1548 = vadd.f32 0.0, %v1547
      %v1549 = vpop.f32.mrb[0].mxu0
      %v1550 = vadd.f32 0.0, %v1549
      %1551 = vdwg.mxu0
      %1552 = vmatprep.subr.bf16.mxu0 %v1194
      %1553 = vmatpush1.bf16.msra.mxu0 %v1193
      %1554 = vmatprep.subr.bf16.mxu0 %v1196
      %1555 = vmatpush1.bf16.msra.mxu0 %v1195
      %1556 = vmatprep.subr.bf16.mxu0 %v1198
      %1557 = vmatpush1.bf16.msra.mxu0 %v1197
      %1558 = vmatprep.subr.bf16.mxu0 %v1200
      %1559 = vmatpush1.bf16.msra.mxu0 %v1199
      %1560 = vmatprep.subr.bf16.mxu0 %v1202
      %1561 = vmatpush1.bf16.msra.mxu0 %v1201
      %1562 = vmatprep.subr.bf16.mxu0 %v1204
      %1563 = vmatpush1.bf16.msra.mxu0 %v1203
      %1564 = vmatprep.subr.bf16.mxu0 %v1206
      %1565 = vmatpush1.bf16.msra.mxu0 %v1205
      %1566 = vmatprep.subr.bf16.mxu0 %v1208
      %1567 = vmatpush1.bf16.msra.mxu0 %v1207
      %1568 = vmatprep.subr.bf16.mxu0 %v1210
      %1569 = vmatpush1.bf16.msra.mxu0 %v1209
      %1570 = vmatprep.subr.bf16.mxu0 %v1212
      %1571 = vmatpush1.bf16.msra.mxu0 %v1211
      %1572 = vmatprep.subr.bf16.mxu0 %v1214
      %1573 = vmatpush1.bf16.msra.mxu0 %v1213
      %1574 = vmatprep.subr.bf16.mxu0 %v1216
      %1575 = vmatpush1.bf16.msra.mxu0 %v1215
      %1576 = vmatprep.subr.bf16.mxu0 %v1218
      %1577 = vmatpush1.bf16.msra.mxu0 %v1217
      %1578 = vmatprep.subr.bf16.mxu0 %v1220
      %1579 = vmatpush1.bf16.msra.mxu0 %v1219
      %1580 = vmatprep.subr.bf16.mxu0 %v1222
      %1581 = vmatpush1.bf16.msra.mxu0 %v1221
      %1582 = vmatprep.subr.bf16.mxu0 %v1224
      %1583 = vmatpush1.bf16.msra.mxu0 %v1223
      %1584 = vmatprep.mubr.bf16.mxu0 %v606
      %1585 = vmatmul.mubr.bf16.gmra.mrb[0].mxu0 %v605
      %v1586 = vpop.f32.mrb[0].mxu0
      %v1587 = vadd.f32 %v1484, %v1586
      %v1588 = vpop.f32.mrb[0].mxu0
      %v1589 = vadd.f32 %v1486, %v1588
      %v1590 = vpop.f32.mrb[0].mxu0
      %v1591 = vadd.f32 %v1488, %v1590
      %v1592 = vpop.f32.mrb[0].mxu0
      %v1593 = vadd.f32 %v1490, %v1592
      %1594 = vmatprep.mubr.bf16.mxu0 %v615
      %1595 = vmatmul.mubr.bf16.gmra.mrb[0].mxu0 %v614
      %v1596 = vpop.f32.mrb[0].mxu0
      %v1597 = vadd.f32 %v1494, %v1596
      %v1598 = vpop.f32.mrb[0].mxu0
      %v1599 = vadd.f32 %v1496, %v1598
      %v1600 = vpop.f32.mrb[0].mxu0
      %v1601 = vadd.f32 %v1498, %v1600
      %v1602 = vpop.f32.mrb[0].mxu0
      %v1603 = vadd.f32 %v1500, %v1602
      %1604 = vmatprep.mubr.bf16.mxu0 %v624
      %1605 = vmatmul.mubr.bf16.gmra.mrb[0].mxu0 %v623
      %v1606 = vpop.f32.mrb[0].mxu0
      %v1607 = vadd.f32 %v1504, %v1606
      %v1608 = vpop.f32.mrb[0].mxu0
      %v1609 = vadd.f32 %v1506, %v1608
      %v1610 = vpop.f32.mrb[0].mxu0
      %v1611 = vadd.f32 %v1508, %v1610
      %v1612 = vpop.f32.mrb[0].mxu0
      %v1613 = vadd.f32 %v1510, %v1612
      %1614 = vmatprep.mubr.bf16.mxu0 %v633
      %1615 = vmatmul.mubr.bf16.gmra.mrb[0].mxu0 %v632
      %v1616 = vpop.f32.mrb[0].mxu0
      %v1617 = vadd.f32 %v1514, %v1616
      %v1618 = vpop.f32.mrb[0].mxu0
      %v1619 = vadd.f32 %v1516, %v1618
      %v1620 = vpop.f32.mrb[0].mxu0
      %v1621 = vadd.f32 %v1518, %v1620
      %v1622 = vpop.f32.mrb[0].mxu0
      %v1623 = vadd.f32 %v1520, %v1622
      %1624 = vmatprep.mubr.bf16.mxu0 %v642
      %1625 = vmatmul.mubr.bf16.gmra.mrb[0].mxu0 %v641
      %v1626 = vpop.f32.mrb[0].mxu0
      %v1627 = vadd.f32 %v1524, %v1626
      %v1628 = vpop.f32.mrb[0].mxu0
      %v1629 = vadd.f32 %v1526, %v1628
      %v1630 = vpop.f32.mrb[0].mxu0
      %v1631 = vadd.f32 %v1528, %v1630
      %v1632 = vpop.f32.mrb[0].mxu0
      %v1633 = vadd.f32 %v1530, %v1632
      %1634 = vmatprep.mubr.bf16.mxu0 %v651
      %1635 = vmatmul.mubr.bf16.gmra.mrb[0].mxu0 %v650
      %v1636 = vpop.f32.mrb[0].mxu0
      %v1637 = vadd.f32 %v1534, %v1636
      %v1638 = vpop.f32.mrb[0].mxu0
      %v1639 = vadd.f32 %v1536, %v1638
      %v1640 = vpop.f32.mrb[0].mxu0
      %v1641 = vadd.f32 %v1538, %v1640
      %v1642 = vpop.f32.mrb[0].mxu0
      %v1643 = vadd.f32 %v1540, %v1642
      %1644 = vmatprep.mubr.bf16.mxu0 %v660
      %1645 = vmatmul.mubr.bf16.gmra.mrb[0].mxu0 %v659
      %v1646 = vpop.f32.mrb[0].mxu0
      %v1647 = vadd.f32 %v1544, %v1646
      %v1648 = vpop.f32.mrb[0].mxu0
      %v1649 = vadd.f32 %v1546, %v1648
      %v1650 = vpop.f32.mrb[0].mxu0
      %v1651 = vadd.f32 %v1548, %v1650
      %v1652 = vpop.f32.mrb[0].mxu0
      %v1653 = vadd.f32 %v1550, %v1652
      %1654 = vdwg.mxu0
      %1655 = vmatprep.subr.bf16.mxu0 %v1226
      %1656 = vmatpush1.bf16.msra.mxu0 %v1225
      %1657 = vmatprep.subr.bf16.mxu0 %v1228
      %1658 = vmatpush1.bf16.msra.mxu0 %v1227
      %1659 = vmatprep.subr.bf16.mxu0 %v1230
      %1660 = vmatpush1.bf16.msra.mxu0 %v1229
      %1661 = vmatprep.subr.bf16.mxu0 %v1232
      %1662 = vmatpush1.bf16.msra.mxu0 %v1231
      %1663 = vmatprep.subr.bf16.mxu0 %v1234
      %1664 = vmatpush1.bf16.msra.mxu0 %v1233
      %1665 = vmatprep.subr.bf16.mxu0 %v1236
      %1666 = vmatpush1.bf16.msra.mxu0 %v1235
      %1667 = vmatprep.subr.bf16.mxu0 %v1238
      %1668 = vmatpush1.bf16.msra.mxu0 %v1237
      %1669 = vmatprep.subr.bf16.mxu0 %v1240
      %1670 = vmatpush1.bf16.msra.mxu0 %v1239
      %1671 = vmatprep.subr.bf16.mxu0 %v1242
      %1672 = vmatpush1.bf16.msra.mxu0 %v1241
      %1673 = vmatprep.subr.bf16.mxu0 %v1244
      %1674 = vmatpush1.bf16.msra.mxu0 %v1243
      %1675 = vmatprep.subr.bf16.mxu0 %v1246
      %1676 = vmatpush1.bf16.msra.mxu0 %v1245
      %1677 = vmatprep.subr.bf16.mxu0 %v1248
      %1678 = vmatpush1.bf16.msra.mxu0 %v1247
      %1679 = vmatprep.subr.bf16.mxu0 %v1250
      %1680 = vmatpush1.bf16.msra.mxu0 %v1249
      %1681 = vmatprep.subr.bf16.mxu0 %v1252
      %1682 = vmatpush1.bf16.msra.mxu0 %v1251
      %1683 = vmatprep.subr.bf16.mxu0 %v1254
      %1684 = vmatpush1.bf16.msra.mxu0 %v1253
      %1685 = vmatprep.subr.bf16.mxu0 %v1256
      %1686 = vmatpush1.bf16.msra.mxu0 %v1255
      %1687 = vmatprep.mubr.bf16.mxu0 %v608
      %1688 = vmatmul.mubr.bf16.gmra.mrb[0].mxu0 %v607
      %v1689 = vpop.f32.mrb[0].mxu0
      %v1690 = vadd.f32 %v1587, %v1689
      %v1691 = vpop.f32.mrb[0].mxu0
      %v1692 = vadd.f32 %v1589, %v1691
      %v1693 = vpop.f32.mrb[0].mxu0
      %v1694 = vadd.f32 %v1591, %v1693
      %v1695 = vpop.f32.mrb[0].mxu0
      %v1696 = vadd.f32 %v1593, %v1695
      %1697 = vmatprep.mubr.bf16.mxu0 %v617
      %1698 = vmatmul.mubr.bf16.gmra.mrb[0].mxu0 %v616
      %v1699 = vpop.f32.mrb[0].mxu0
      %v1700 = vadd.f32 %v1597, %v1699
      %v1701 = vpop.f32.mrb[0].mxu0
      %v1702 = vadd.f32 %v1599, %v1701
      %v1703 = vpop.f32.mrb[0].mxu0
      %v1704 = vadd.f32 %v1601, %v1703
      %v1705 = vpop.f32.mrb[0].mxu0
      %v1706 = vadd.f32 %v1603, %v1705
      %1707 = vmatprep.mubr.bf16.mxu0 %v626
      %1708 = vmatmul.mubr.bf16.gmra.mrb[0].mxu0 %v625
      %v1709 = vpop.f32.mrb[0].mxu0
      %v1710 = vadd.f32 %v1607, %v1709
      %v1711 = vpop.f32.mrb[0].mxu0
      %v1712 = vadd.f32 %v1609, %v1711
      %v1713 = vpop.f32.mrb[0].mxu0
      %v1714 = vadd.f32 %v1611, %v1713
      %v1715 = vpop.f32.mrb[0].mxu0
      %v1716 = vadd.f32 %v1613, %v1715
      %1717 = vmatprep.mubr.bf16.mxu0 %v635
      %1718 = vmatmul.mubr.bf16.gmra.mrb[0].mxu0 %v634
      %v1719 = vpop.f32.mrb[0].mxu0
      %v1720 = vadd.f32 %v1617, %v1719
      %v1721 = vpop.f32.mrb[0].mxu0
      %v1722 = vadd.f32 %v1619, %v1721
      %v1723 = vpop.f32.mrb[0].mxu0
      %v1724 = vadd.f32 %v1621, %v1723
      %v1725 = vpop.f32.mrb[0].mxu0
      %v1726 = vadd.f32 %v1623, %v1725
      %1727 = vmatprep.mubr.bf16.mxu0 %v644
      %1728 = vmatmul.mubr.bf16.gmra.mrb[0].mxu0 %v643
      %v1729 = vpop.f32.mrb[0].mxu0
      %v1730 = vadd.f32 %v1627, %v1729
      %v1731 = vpop.f32.mrb[0].mxu0
      %v1732 = vadd.f32 %v1629, %v1731
      %v1733 = vpop.f32.mrb[0].mxu0
      %v1734 = vadd.f32 %v1631, %v1733
      %v1735 = vpop.f32.mrb[0].mxu0
      %v1736 = vadd.f32 %v1633, %v1735
      %1737 = vmatprep.mubr.bf16.mxu0 %v653
      %1738 = vmatmul.mubr.bf16.gmra.mrb[0].mxu0 %v652
      %v1739 = vpop.f32.mrb[0].mxu0
      %v1740 = vadd.f32 %v1637, %v1739
      %v1741 = vpop.f32.mrb[0].mxu0
      %v1742 = vadd.f32 %v1639, %v1741
      %v1743 = vpop.f32.mrb[0].mxu0
      %v1744 = vadd.f32 %v1641, %v1743
      %v1745 = vpop.f32.mrb[0].mxu0
      %v1746 = vadd.f32 %v1643, %v1745
      %1747 = vmatprep.mubr.bf16.mxu0 %v662
      %1748 = vmatmul.mubr.bf16.gmra.mrb[0].mxu0 %v661
      %v1749 = vpop.f32.mrb[0].mxu0
      %v1750 = vadd.f32 %v1647, %v1749
      %v1751 = vpop.f32.mrb[0].mxu0
      %v1752 = vadd.f32 %v1649, %v1751
      %v1753 = vpop.f32.mrb[0].mxu0
      %v1754 = vadd.f32 %v1651, %v1753
      %v1755 = vpop.f32.mrb[0].mxu0
      %v1756 = vadd.f32 %v1653, %v1755
      %1757 = vdwg.mxu0
      %1758 = vmatprep.subr.bf16.mxu0 %v1258
      %1759 = vmatpush1.bf16.msra.mxu0 %v1257
      %1760 = vmatprep.subr.bf16.mxu0 %v1260
      %1761 = vmatpush1.bf16.msra.mxu0 %v1259
      %1762 = vmatprep.subr.bf16.mxu0 %v1262
      %1763 = vmatpush1.bf16.msra.mxu0 %v1261
      %1764 = vmatprep.subr.bf16.mxu0 %v1264
      %1765 = vmatpush1.bf16.msra.mxu0 %v1263
      %1766 = vmatprep.subr.bf16.mxu0 %v1266
      %1767 = vmatpush1.bf16.msra.mxu0 %v1265
      %1768 = vmatprep.subr.bf16.mxu0 %v1268
      %1769 = vmatpush1.bf16.msra.mxu0 %v1267
      %1770 = vmatprep.subr.bf16.mxu0 %v1270
      %1771 = vmatpush1.bf16.msra.mxu0 %v1269
      %1772 = vmatprep.subr.bf16.mxu0 %v1272
      %1773 = vmatpush1.bf16.msra.mxu0 %v1271
      %1774 = vmatprep.subr.bf16.mxu0 %v1274
      %1775 = vmatpush1.bf16.msra.mxu0 %v1273
      %1776 = vmatprep.subr.bf16.mxu0 %v1276
      %1777 = vmatpush1.bf16.msra.mxu0 %v1275
      %1778 = vmatprep.subr.bf16.mxu0 %v1278
      %1779 = vmatpush1.bf16.msra.mxu0 %v1277
      %1780 = vmatprep.subr.bf16.mxu0 %v1280
      %1781 = vmatpush1.bf16.msra.mxu0 %v1279
      %1782 = vmatprep.subr.bf16.mxu0 %v1282
      %1783 = vmatpush1.bf16.msra.mxu0 %v1281
      %1784 = vmatprep.subr.bf16.mxu0 %v1284
      %1785 = vmatpush1.bf16.msra.mxu0 %v1283
      %1786 = vmatprep.subr.bf16.mxu0 %v1286
      %1787 = vmatpush1.bf16.msra.mxu0 %v1285
      %1788 = vmatprep.subr.bf16.mxu0 %v1288
      %1789 = vmatpush1.bf16.msra.mxu0 %v1287
      %1790 = vmatprep.mubr.bf16.mxu0 %v610
      %1791 = vmatmul.mubr.bf16.gmra.mrb[0].mxu0 %v609
      %v1792 = vpop.f32.mrb[0].mxu0
      %v1793 = vadd.f32 %v1690, %v1792
      %v1794 = vpop.f32.mrb[0].mxu0
      %v1795 = vadd.f32 %v1692, %v1794
      %v1796 = vpop.f32.mrb[0].mxu0
      %v1797 = vadd.f32 %v1694, %v1796
      %v1798 = vpop.f32.mrb[0].mxu0
      %v1799 = vadd.f32 %v1696, %v1798
      %1800 = vmatprep.mubr.bf16.mxu0 %v619
      %1801 = vmatmul.mubr.bf16.gmra.mrb[0].mxu0 %v618
      %v1802 = vpop.f32.mrb[0].mxu0
      %v1803 = vadd.f32 %v1700, %v1802
      %v1804 = vpop.f32.mrb[0].mxu0
      %v1805 = vadd.f32 %v1702, %v1804
      %v1806 = vpop.f32.mrb[0].mxu0
      %v1807 = vadd.f32 %v1704, %v1806
      %v1808 = vpop.f32.mrb[0].mxu0
      %v1809 = vadd.f32 %v1706, %v1808
      %1810 = vmatprep.mubr.bf16.mxu0 %v628
      %1811 = vmatmul.mubr.bf16.gmra.mrb[0].mxu0 %v627
      %v1812 = vpop.f32.mrb[0].mxu0
      %v1813 = vadd.f32 %v1710, %v1812
      %v1814 = vpop.f32.mrb[0].mxu0
      %v1815 = vadd.f32 %v1712, %v1814
      %v1816 = vpop.f32.mrb[0].mxu0
      %v1817 = vadd.f32 %v1714, %v1816
      %v1818 = vpop.f32.mrb[0].mxu0
      %v1819 = vadd.f32 %v1716, %v1818
      %1820 = vmatprep.mubr.bf16.mxu0 %v637
      %1821 = vmatmul.mubr.bf16.gmra.mrb[0].mxu0 %v636
      %v1822 = vpop.f32.mrb[0].mxu0
      %v1823 = vadd.f32 %v1720, %v1822
      %v1824 = vpop.f32.mrb[0].mxu0
      %v1825 = vadd.f32 %v1722, %v1824
      %v1826 = vpop.f32.mrb[0].mxu0
      %v1827 = vadd.f32 %v1724, %v1826
      %v1828 = vpop.f32.mrb[0].mxu0
      %v1829 = vadd.f32 %v1726, %v1828
      %1830 = vmatprep.mubr.bf16.mxu0 %v646
      %1831 = vmatmul.mubr.bf16.gmra.mrb[0].mxu0 %v645
      %v1832 = vpop.f32.mrb[0].mxu0
      %v1833 = vadd.f32 %v1730, %v1832
      %v1834 = vpop.f32.mrb[0].mxu0
      %v1835 = vadd.f32 %v1732, %v1834
      %v1836 = vpop.f32.mrb[0].mxu0
      %v1837 = vadd.f32 %v1734, %v1836
      %v1838 = vpop.f32.mrb[0].mxu0
      %v1839 = vadd.f32 %v1736, %v1838
      %1840 = vmatprep.mubr.bf16.mxu0 %v655
      %1841 = vmatmul.mubr.bf16.gmra.mrb[0].mxu0 %v654
      %v1842 = vpop.f32.mrb[0].mxu0
      %v1843 = vadd.f32 %v1740, %v1842
      %v1844 = vpop.f32.mrb[0].mxu0
      %v1845 = vadd.f32 %v1742, %v1844
      %v1846 = vpop.f32.mrb[0].mxu0
      %v1847 = vadd.f32 %v1744, %v1846
      %v1848 = vpop.f32.mrb[0].mxu0
      %v1849 = vadd.f32 %v1746, %v1848
      %1850 = vmatprep.mubr.bf16.mxu0 %v664
      %1851 = vmatmul.mubr.bf16.gmra.mrb[0].mxu0 %v663
      %v1852 = vpop.f32.mrb[0].mxu0
      %v1853 = vadd.f32 %v1750, %v1852
      %v1854 = vpop.f32.mrb[0].mxu0
      %v1855 = vadd.f32 %v1752, %v1854
      %v1856 = vpop.f32.mrb[0].mxu0
      %v1857 = vadd.f32 %v1754, %v1856
      %v1858 = vpop.f32.mrb[0].mxu0
      %v1859 = vadd.f32 %v1756, %v1858
      %1860 = vdwg.mxu0
      %1861 = vmatprep.subr.bf16.mxu0 %v1290
      %1862 = vmatpush1.bf16.msra.mxu0 %v1289
      %1863 = vmatprep.subr.bf16.mxu0 %v1292
      %1864 = vmatpush1.bf16.msra.mxu0 %v1291
      %1865 = vmatprep.subr.bf16.mxu0 %v1294
      %1866 = vmatpush1.bf16.msra.mxu0 %v1293
      %1867 = vmatprep.subr.bf16.mxu0 %v1296
      %1868 = vmatpush1.bf16.msra.mxu0 %v1295
      %1869 = vmatprep.subr.bf16.mxu0 %v1298
      %1870 = vmatpush1.bf16.msra.mxu0 %v1297
      %1871 = vmatprep.subr.bf16.mxu0 %v1300
      %1872 = vmatpush1.bf16.msra.mxu0 %v1299
      %1873 = vmatprep.subr.bf16.mxu0 %v1302
      %1874 = vmatpush1.bf16.msra.mxu0 %v1301
      %1875 = vmatprep.subr.bf16.mxu0 %v1304
      %1876 = vmatpush1.bf16.msra.mxu0 %v1303
      %1877 = vmatprep.subr.bf16.mxu0 0
      %1878 = vmatpush1.bf16.msra.mxu0 0
      %1879 = vmatprep.subr.bf16.mxu0 0
      %1880 = vmatpush1.bf16.msra.mxu0 0
      %1881 = vmatprep.subr.bf16.mxu0 0
      %1882 = vmatpush1.bf16.msra.mxu0 0
      %1883 = vmatprep.subr.bf16.mxu0 0
      %1884 = vmatpush1.bf16.msra.mxu0 0
      %1885 = vmatprep.subr.bf16.mxu0 0
      %1886 = vmatpush1.bf16.msra.mxu0 0
      %1887 = vmatprep.subr.bf16.mxu0 0
      %1888 = vmatpush1.bf16.msra.mxu0 0
      %1889 = vmatprep.subr.bf16.mxu0 0
      %1890 = vmatpush1.bf16.msra.mxu0 0
      %1891 = vmatprep.subr.bf16.mxu0 0
      %1892 = vmatpush1.bf16.msra.mxu0 0
      %1893 = vmatprep.mubr.bf16.mxu0 0
      %1894 = vmatmul.mubr.bf16.gmra.mrb[0].mxu0 %v611
      %v1895 = vpop.f32.mrb[0].mxu0
      %v1896 = vadd.f32 %v1793, %v1895
      %v1897 = vpop.f32.mrb[0].mxu0
      %v1898 = vadd.f32 %v1795, %v1897
      %v1899 = vpop.f32.mrb[0].mxu0
      %v1900 = vadd.f32 %v1797, %v1899
      %v1901 = vpop.f32.mrb[0].mxu0
      %v1902 = vadd.f32 %v1799, %v1901
      %1903 = vmatprep.mubr.bf16.mxu0 0
      %1904 = vmatmul.mubr.bf16.gmra.mrb[0].mxu0 %v620
      %v1905 = vpop.f32.mrb[0].mxu0
      %v1906 = vadd.f32 %v1803, %v1905
      %v1907 = vpop.f32.mrb[0].mxu0
      %v1908 = vadd.f32 %v1805, %v1907
      %v1909 = vpop.f32.mrb[0].mxu0
      %v1910 = vadd.f32 %v1807, %v1909
      %v1911 = vpop.f32.mrb[0].mxu0
      %v1912 = vadd.f32 %v1809, %v1911
      %1913 = vmatprep.mubr.bf16.mxu0 0
      %1914 = vmatmul.mubr.bf16.gmra.mrb[0].mxu0 %v629
      %v1915 = vpop.f32.mrb[0].mxu0
      %v1916 = vadd.f32 %v1813, %v1915
      %v1917 = vpop.f32.mrb[0].mxu0
      %v1918 = vadd.f32 %v1815, %v1917
      %v1919 = vpop.f32.mrb[0].mxu0
      %v1920 = vadd.f32 %v1817, %v1919
      %v1921 = vpop.f32.mrb[0].mxu0
      %v1922 = vadd.f32 %v1819, %v1921
      %1923 = vmatprep.mubr.bf16.mxu0 0
      %1924 = vmatmul.mubr.bf16.gmra.mrb[0].mxu0 %v638
      %v1925 = vpop.f32.mrb[0].mxu0
      %v1926 = vadd.f32 %v1823, %v1925
      %v1927 = vpop.f32.mrb[0].mxu0
      %v1928 = vadd.f32 %v1825, %v1927
      %v1929 = vpop.f32.mrb[0].mxu0
      %v1930 = vadd.f32 %v1827, %v1929
      %v1931 = vpop.f32.mrb[0].mxu0
      %v1932 = vadd.f32 %v1829, %v1931
      %1933 = vmatprep.mubr.bf16.mxu0 0
      %1934 = vmatmul.mubr.bf16.gmra.mrb[0].mxu0 %v647
      %v1935 = vpop.f32.mrb[0].mxu0
      %v1936 = vadd.f32 %v1833, %v1935
      %v1937 = vpop.f32.mrb[0].mxu0
      %v1938 = vadd.f32 %v1835, %v1937
      %v1939 = vpop.f32.mrb[0].mxu0
      %v1940 = vadd.f32 %v1837, %v1939
      %v1941 = vpop.f32.mrb[0].mxu0
      %v1942 = vadd.f32 %v1839, %v1941
      %1943 = vmatprep.mubr.bf16.mxu0 0
      %1944 = vmatmul.mubr.bf16.gmra.mrb[0].mxu0 %v656
      %v1945 = vpop.f32.mrb[0].mxu0
      %v1946 = vadd.f32 %v1843, %v1945
      %v1947 = vpop.f32.mrb[0].mxu0
      %v1948 = vadd.f32 %v1845, %v1947
      %v1949 = vpop.f32.mrb[0].mxu0
      %v1950 = vadd.f32 %v1847, %v1949
      %v1951 = vpop.f32.mrb[0].mxu0
      %v1952 = vadd.f32 %v1849, %v1951
      %1953 = vmatprep.mubr.bf16.mxu0 0
      %1954 = vmatmul.mubr.bf16.gmra.mrb[0].mxu0 %v665
      %v1955 = vpop.f32.mrb[0].mxu0
      %v1956 = vadd.f32 %v1853, %v1955
      %v1957 = vpop.f32.mrb[0].mxu0
      %v1958 = vadd.f32 %v1855, %v1957
      %v1959 = vpop.f32.mrb[0].mxu0
      %v1960 = vadd.f32 %v1857, %v1959
      %v1961 = vpop.f32.mrb[0].mxu0
      %v1962 = vadd.f32 %v1859, %v1961
      %1963 = vdwg.mxu0
      %v1964 = vpack.c.bf16 %v1900, %v1896
      %v1965 = vpack.c.bf16 %v1902, %v1898
      %v1966 = vpack.c.bf16 %v1910, %v1906
      %v1967 = vpack.c.bf16 %v1912, %v1908
      %v1968 = vpack.c.bf16 %v1920, %v1916
      %v1969 = vpack.c.bf16 %v1922, %v1918
      %v1970 = vpack.c.bf16 %v1930, %v1926
      %v1971 = vpack.c.bf16 %v1932, %v1928
      %v1972 = vpack.c.bf16 %v1940, %v1936
      %v1973 = vpack.c.bf16 %v1942, %v1938
      %v1974 = vpack.c.bf16 %v1950, %v1946
      %v1975 = vpack.c.bf16 %v1952, %v1948
      %v1976 = vpack.c.bf16 %v1960, %v1956
      %v1977 = vpack.c.bf16 %v1962, %v1958
      %v1992 = vunpack.c.l.b16 %v1964
      %v1993 = vunpack.c.l.b16 %v1965
      %v1994 = vunpack.c.h.b16 %v1964
      %v1995 = vunpack.c.h.b16 %v1965
      %v1996 = vunpack.c.l.b16 %v1966
      %v1997 = vunpack.c.l.b16 %v1967
      %v1998 = vunpack.c.h.b16 %v1966
      %v1999 = vunpack.c.h.b16 %v1967
      %v2000 = vunpack.c.l.b16 %v1968
      %v2001 = vunpack.c.l.b16 %v1969
      %v2002 = vunpack.c.h.b16 %v1968
      %v2003 = vunpack.c.h.b16 %v1969
      %v2004 = vunpack.c.l.b16 %v1970
      %v2005 = vunpack.c.l.b16 %v1971
      %v2006 = vunpack.c.h.b16 %v1970
      %v2007 = vunpack.c.h.b16 %v1971
      %v2008 = vunpack.c.l.b16 %v1972
      %v2009 = vunpack.c.l.b16 %v1973
      %v2010 = vunpack.c.h.b16 %v1972
      %v2011 = vunpack.c.h.b16 %v1973
      %v2012 = vunpack.c.l.b16 %v1974
      %v2013 = vunpack.c.l.b16 %v1975
      %v2014 = vunpack.c.h.b16 %v1974
      %v2015 = vunpack.c.h.b16 %v1975
      %v2016 = vunpack.c.l.b16 %v1976
      %v2017 = vunpack.c.l.b16 %v1977
      %v2018 = vunpack.c.h.b16 %v1976
      %v2019 = vunpack.c.h.b16 %v1977
      %v2020 = vpack.c.b16 %v1993, %v1992
      %v2021 = vpack.c.b16 %v1995, %v1994
      %v2022 = vpack.c.b16 %v1997, %v1996
      %v2023 = vpack.c.b16 %v1999, %v1998
      %v2024 = vpack.c.b16 %v2001, %v2000
      %v2025 = vpack.c.b16 %v2003, %v2002
      %v2026 = vpack.c.b16 %v2005, %v2004
      %v2027 = vpack.c.b16 %v2007, %v2006
      %v2028 = vpack.c.b16 %v2009, %v2008
      %v2029 = vpack.c.b16 %v2011, %v2010
      %v2030 = vpack.c.b16 %v2013, %v2012
      %v2031 = vpack.c.b16 %v2015, %v2014
      %v2032 = vpack.c.b16 %v2017, %v2016
      %v2033 = vpack.c.b16 %v2019, %v2018
      %2048 = vst [vmem:[%s185] sm:$0xff] %v2020
      %2049 = vst [vmem:[%s185 + $0x8] sm:$0xff] %v2021
      %2050 = vst [vmem:[%s185 + $0x10] sm:$0xff] %v2022
      %2051 = vst [vmem:[%s185 + $0x18] sm:$0xff] %v2023
      %2052 = vst [vmem:[%s185 + $0x20] sm:$0xff] %v2024
      %2053 = vst [vmem:[%s185 + $0x28] sm:$0xff] %v2025
      %2054 = vst [vmem:[%s185 + $0x30] sm:$0xff] %v2026
      %2055 = vst [vmem:[%s185 + $0x38] sm:$0xff] %v2027
      %2056 = vst [vmem:[%s185 + $0x40] sm:$0xff] %v2028
      %2057 = vst [vmem:[%s185 + $0x48] sm:$0xff] %v2029
      %2058 = vst [vmem:[%s185 + $0x50] sm:$0xff] %v2030
      %2059 = vst [vmem:[%s185 + $0x58] sm:$0xff] %v2031
      %2060 = vst [vmem:[%s185 + $0x60] sm:$0xff] %v2032
      %2061 = vst [vmem:[%s185 + $0x68] sm:$0xff] %v2033
      %v2062 = vadd.f32 %v1896, %v1900
      %v2063 = vadd.f32 %v2062, %v1906
      %v2064 = vadd.f32 %v2063, %v1910
      %v2065 = vadd.f32 %v2064, %v1916
      %v2066 = vadd.f32 %v2065, %v1920
      %v2067 = vadd.f32 %v2066, %v1926
      %v2068 = vadd.f32 %v2067, %v1930
      %v2069 = vadd.f32 %v2068, %v1936
      %v2070 = vadd.f32 %v2069, %v1940
      %v2071 = vadd.f32 %v2070, %v1946
      %v2072 = vadd.f32 %v2071, %v1950
      %v2073 = vadd.f32 %v2072, %v1956
      %v2074 = vadd.f32 %v2073, %v1960
      %v2075 = vrot.slane %v2074, 4
      %v2076 = vadd.f32 %v2074, %v2075
      %v2077 = vrot.slane %v2076, 2
      %v2078 = vadd.f32 %v2076, %v2077
      %v2079 = vrot.slane %v2078, 1
      %v2080 = vadd.f32 %v2078, %v2079
      %v2081 = vadd.f32 %v1898, %v1902
      %v2082 = vadd.f32 %v2081, %v1908
      %v2083 = vadd.f32 %v2082, %v1912
      %v2084 = vadd.f32 %v2083, %v1918
      %v2085 = vadd.f32 %v2084, %v1922
      %v2086 = vadd.f32 %v2085, %v1928
      %v2087 = vadd.f32 %v2086, %v1932
      %v2088 = vadd.f32 %v2087, %v1938
      %v2089 = vadd.f32 %v2088, %v1942
      %v2090 = vadd.f32 %v2089, %v1948
      %v2091 = vadd.f32 %v2090, %v1952
      %v2092 = vadd.f32 %v2091, %v1958
      %v2093 = vadd.f32 %v2092, %v1962
      %v2094 = vrot.slane %v2093, 4
      %v2095 = vadd.f32 %v2093, %v2094
      %v2096 = vrot.slane %v2095, 2
      %v2097 = vadd.f32 %v2095, %v2096
      %v2098 = vrot.slane %v2097, 1
      %v2099 = vadd.f32 %v2097, %v2098
      %v2100 = vmul.f32 %v1896, %v1896
      %v2101 = vmul.f32 %v1898, %v1898
      %v2102 = vmul.f32 %v1900, %v1900
      %v2103 = vmul.f32 %v1902, %v1902
      %v2104 = vmul.f32 %v1906, %v1906
      %v2105 = vmul.f32 %v1908, %v1908
      %v2106 = vmul.f32 %v1910, %v1910
      %v2107 = vmul.f32 %v1912, %v1912
      %v2108 = vmul.f32 %v1916, %v1916
      %v2109 = vmul.f32 %v1918, %v1918
      %v2110 = vmul.f32 %v1920, %v1920
      %v2111 = vmul.f32 %v1922, %v1922
      %v2112 = vmul.f32 %v1926, %v1926
      %v2113 = vmul.f32 %v1928, %v1928
      %v2114 = vmul.f32 %v1930, %v1930
      %v2115 = vmul.f32 %v1932, %v1932
      %v2116 = vmul.f32 %v1936, %v1936
      %v2117 = vmul.f32 %v1938, %v1938
      %v2118 = vmul.f32 %v1940, %v1940
      %v2119 = vmul.f32 %v1942, %v1942
      %v2120 = vmul.f32 %v1946, %v1946
      %v2121 = vmul.f32 %v1948, %v1948
      %v2122 = vmul.f32 %v1950, %v1950
      %v2123 = vmul.f32 %v1952, %v1952
      %v2124 = vmul.f32 %v1956, %v1956
      %v2125 = vmul.f32 %v1958, %v1958
      %v2126 = vmul.f32 %v1960, %v1960
      %v2127 = vmul.f32 %v1962, %v1962
      %v2128 = vadd.f32 %v2100, %v2102
      %v2129 = vadd.f32 %v2128, %v2104
      %v2130 = vadd.f32 %v2129, %v2106
      %v2131 = vadd.f32 %v2130, %v2108
      %v2132 = vadd.f32 %v2131, %v2110
      %v2133 = vadd.f32 %v2132, %v2112
      %v2134 = vadd.f32 %v2133, %v2114
      %v2135 = vadd.f32 %v2134, %v2116
      %v2136 = vadd.f32 %v2135, %v2118
      %v2137 = vadd.f32 %v2136, %v2120
      %v2138 = vadd.f32 %v2137, %v2122
      %v2139 = vadd.f32 %v2138, %v2124
      %v2140 = vadd.f32 %v2139, %v2126
      %v2141 = vrot.slane %v2140, 4
      %v2142 = vadd.f32 %v2140, %v2141
      %v2143 = vrot.slane %v2142, 2
      %v2144 = vadd.f32 %v2142, %v2143
      %v2145 = vrot.slane %v2144, 1
      %v2146 = vadd.f32 %v2144, %v2145
      %v2147 = vadd.f32 %v2101, %v2103
      %v2148 = vadd.f32 %v2147, %v2105
      %v2149 = vadd.f32 %v2148, %v2107
      %v2150 = vadd.f32 %v2149, %v2109
      %v2151 = vadd.f32 %v2150, %v2111
      %v2152 = vadd.f32 %v2151, %v2113
      %v2153 = vadd.f32 %v2152, %v2115
      %v2154 = vadd.f32 %v2153, %v2117
      %v2155 = vadd.f32 %v2154, %v2119
      %v2156 = vadd.f32 %v2155, %v2121
      %v2157 = vadd.f32 %v2156, %v2123
      %v2158 = vadd.f32 %v2157, %v2125
      %v2159 = vadd.f32 %v2158, %v2127
      %v2160 = vrot.slane %v2159, 4
      %v2161 = vadd.f32 %v2159, %v2160
      %v2162 = vrot.slane %v2161, 2
      %v2163 = vadd.f32 %v2161, %v2162
      %v2164 = vrot.slane %v2163, 1
      %v2165 = vadd.f32 %v2163, %v2164
      %v2166 = vlaneseq
      %v2167 = vshrl.u32 %v2166, 7
      %vm2168 = vcmp.eq.s32.totalorder %v2167, 0
      %v2169 = vsel %vm2168, %v2080, 0.0
      %v2170 = vsel %vm2168, %v2099, 0.0
      %vm2171 = vcmp.eq.s32.totalorder %v2167, 1
      %v2172 = vsel %vm2171, %v2146, 0.0
      %v2173 = vsel %vm2171, %v2165, 0.0
      %v2174 = vadd.f32 %v2169, %v2172
      %v2175 = vadd.f32 %v2170, %v2173
      %2176 = vst [vmem:[%s191] sm:$0xff] %v2174
      %2177 = vst [vmem:[%s191 + $0x8] sm:$0xff] %v2175
      %s2178 = smul.u32 14, %s15
      %p2179 = scmp.lt.s32.totalorder %s2178, 55
      %s2180 = scalar_select %p2179, %s2178, 55
      %s2181 = smul.addr %s2180, 2
      %s2182 = smul.addr %s2181, 4
      %s2183 = scalar_lea.vmem %s2, %s2182
      %p2184 = scmp.lt.s32.totalorder %s15, 3
      %s2185 = scalar_select %p2184, %s15, 3
      %s2186 = smul.addr %s2185, 2
      %s2187 = smul.addr %s2186, 8
      %s2188 = scalar_lea.vmem %s3, %s2187
      // Predicated region
      $region29: #{generator_forward.10} parent=27 // pred_check
        %p2189 = pneg %p80
      $region30: #{generator_forward.10} parent=27 // pred_check_branch
        %2191 = sbr.rel (%p2189) target = $region32
      $region31: #{generator_forward.10} parent=27 // pred_region
        %s2192 = smul.u32 14, %s15
      $region32: #{generator_forward.10} parent=27 // pred_fallthru
        _
      // Predicated region
      $region33: #{generator_forward.10} parent=27 // pred_check
        %p2193 = pneg %p106
      $region34: #{generator_forward.10} parent=27 // pred_check_branch
        %2195 = sbr.rel (%p2193) target = $region36
      $region35: #{generator_forward.10} parent=27 // pred_region
        _
      $region36: #{generator_forward.10} parent=27 // pred_fallthru
        _
    $region28: #{generator_forward.10} parent=5 // pred_fallthru
      _
    %p2196 = scmp.le.s32.totalorder 2, %s10
    // Predicated region
    $region37: #{generator_forward.10} parent=5 // pred_check
      %p2197 = pneg %p2196
    $region38: #{generator_forward.10} parent=5 // pred_check_branch
      %2199 = sbr.rel (%p2197) target = $region40
    $region39: #{generator_forward.10} parent=5 // pred_region
      %s2200 = ssub.s32 %s10, 2
      // Predicated region
      $region41: #{generator_forward.10} parent=39 // pred_check
        %p2201 = pneg %p86
      $region42: #{generator_forward.10} parent=39 // pred_check_branch
        %2203 = sbr.rel (%p2201) target = $region44
      $region43: #{generator_forward.10} parent=39 // pred_region
        %s2204 = smul.u32 14, %s16
        %p2205 = scmp.lt.s32.totalorder %s2204, 55
        %s2206 = scalar_select %p2205, %s2204, 55
        %s2207 = smul.addr %s2206, 2
        %s2208 = smul.addr %s2207, 4
        %s2209 = scalar_lea.vmem %s2, %s2208
      $region44: #{generator_forward.10} parent=39 // pred_fallthru
        _
      // Predicated region
      $region45: #{generator_forward.10} parent=39 // pred_check
        %p2210 = pneg %p112
      $region46: #{generator_forward.10} parent=39 // pred_check_branch
        %2212 = sbr.rel (%p2210) target = $region48
      $region47: #{generator_forward.10} parent=39 // pred_region
        %p2213 = scmp.lt.s32.totalorder %s16, 3
        %s2214 = scalar_select %p2213, %s16, 3
        %s2215 = smul.addr %s2214, 2
        %s2216 = smul.addr %s2215, 8
        %s2217 = scalar_lea.vmem %s3, %s2216
      $region48: #{generator_forward.10} parent=39 // pred_fallthru
        _
    $region40: #{generator_forward.10} parent=5 // pred_fallthru
      _
  $region6: #{generator_forward.10} parent=0 // loop_footer
    %s14 = sadd.s32 1, %s10
  $region7: #{generator_forward.10} parent=0 // loop_footer_branch
    %9 = sbr.rel target = $region3
  $region8: #{generator_forward.10} parent=0 // loop_exit
    _

// kernel: generator_forward.12
$region0: #{generator_forward.12}
  #allocation0 [shape = 'u32[]', space=smem, size = 0x4, offset = 0x4, fixed_abs, tag = 'smem constant byte address 0x4 - core index']
  #allocation1 [shape = 'u32[144,128]{1,0:T(1,128)}', space=vmem, size = 0x12000, scoped, tag = 'internal scratch']
  %s0 = inlined_call_operand.vmem [shape: bf16[1568,576], index: 0, kind: input, shape index: {}]
  %s1 = inlined_call_operand.vmem [shape: bf16[576,128], index: 1, kind: input, shape index: {}]
  %s2 = inlined_call_operand.vmem [shape: bf16[1568,128], index: 2, kind: output, shape index: {0}]
  %s3 = inlined_call_operand.hbm [shape: f32[56,128], index: 3, kind: output, shape index: {1}]
  %4 = xla_tuple %s2, %s3
  %s5 = sld [smem:[#allocation0]]
  $region49: #{generator_forward.12} parent=0
    _
  %s7 = ssub.s32 1, %s5
  %s8 = scalar_select 0, %s7, %s5
  $region1: #{generator_forward.12} parent=0
    #allocation2 [shape = 'u8[8192]{0}', space=vmem, size = 0x2000, scoped, tag = 'output window, operand 1']
    #allocation3 [shape = 's32[2]{0}', space=sflag, size = 0x8, scoped, tag = 'scoped memory for generator_forward.12']
    %9 = vsyncpa [#allocation3], 0
    %s10 = scalar_lea.sflag [#allocation3], 1
    %11 = vsyncpa %s10, 0
    loop: start=0, step=1, limit=9
    $region2: #{generator_forward.12} parent=1 // loop_pre_header
      _
    $region3: #{generator_forward.12} parent=1 // loop_header
      %s13 = sphi 0, %s17
      %p14 = scmp.ge.s32.totalorder %s13, 9
      %s23 = sphi 0, %s25
      %s26 = sphi 0, %s23
      %s27 = sphi 0, %s26
      %s43 = sphi 0, %s27
      %s47 = sphi 0, %s47
      %s49 = sphi 0, %s47
      %s50 = sphi 0, %s49
      %s64 = sphi 0, %s50
      %s70 = sphi 0, %s72
      %s73 = sphi 0, %s70
      %s74 = sphi 0, %s73
      %s90 = sphi 0, %s74
      %s96 = sphi 0, %s98
      %s99 = sphi 0, %s96
      %s100 = sphi 0, %s99
      %s116 = sphi 0, %s100
    $region4: #{generator_forward.12} parent=1 // loop_header_branch
      %16 = sbr.rel (%p14) target = $region8
    $region5: #{generator_forward.12} parent=1 // loop_body
      %s18 = ssub.s32 %s13, 1
      %s19 = ssub.s32 %s13, 2
      %s20 = sadd.s32 %s13, 1
      %s21 = ssub.s32 %s13, %s20
      %p22 = scmp.eq.s32.totalorder %s21, 0
      %s24 = sadd.s32 %s23, 1
      %s25 = scalar_select %p22, %s23, %s24
      %p28 = pneg %p22
      %p29 = scmp.eq.s32.totalorder %s13, 6
      %p30 = por %p28, %p29
      %p31 = scmp.ne.s32.totalorder %s23, %s26
      %p32 = scmp.eq.s32.totalorder %s13, 0
      %p33 = por %p31, %p32
      %p34 = scmp.ne.s32.totalorder %s23, %s26
      %p35 = scmp.eq.s32.totalorder %s18, 6
      %p36 = por %p34, %p35
      %p37 = scmp.ne.s32.totalorder %s26, %s27
      %p38 = scmp.eq.s32.totalorder %s18, 0
      %p39 = por %p37, %p38
      %p40 = scmp.ne.s32.totalorder %s26, %s27
      %p41 = scmp.eq.s32.totalorder %s19, 6
      %p42 = por %p40, %p41
      %p44 = scmp.ne.s32.totalorder %s27, %s43
      %p45 = scmp.eq.s32.totalorder %s19, 0
      %p46 = por %p44, %p45
      %s48 = sadd.s32 %s47, 1
      %p51 = scmp.eq.s32.totalorder %s13, 6
      %p52 = scmp.ne.s32.totalorder %s47, %s49
      %p53 = scmp.eq.s32.totalorder %s13, 0
      %p54 = por %p52, %p53
      %p55 = scmp.ne.s32.totalorder %s47, %s49
      %p56 = scmp.eq.s32.totalorder %s18, 6
      %p57 = por %p55, %p56
      %p58 = scmp.ne.s32.totalorder %s49, %s50
      %p59 = scmp.eq.s32.totalorder %s18, 0
      %p60 = por %p58, %p59
      %p61 = scmp.ne.s32.totalorder %s49, %s50
      %p62 = scmp.eq.s32.totalorder %s19, 6
      %p63 = por %p61, %p62
      %p65 = scmp.ne.s32.totalorder %s50, %s64
      %p66 = scmp.eq.s32.totalorder %s19, 0
      %p67 = por %p65, %p66
      %s68 = ssub.s32 %s13, %s20
      %p69 = scmp.eq.s32.totalorder %s68, 0
      %s71 = sadd.s32 %s70, 1
      %s72 = scalar_select %p69, %s70, %s71
      %p75 = pneg %p69
      %p76 = scmp.eq.s32.totalorder %s13, 6
      %p77 = por %p75, %p76
      %p78 = scmp.ne.s32.totalorder %s70, %s73
      %p79 = scmp.eq.s32.totalorder %s13, 0
      %p80 = por %p78, %p79
      %p81 = scmp.ne.s32.totalorder %s70, %s73
      %p82 = scmp.eq.s32.totalorder %s18, 6
      %p83 = por %p81, %p82
      %p84 = scmp.ne.s32.totalorder %s73, %s74
      %p85 = scmp.eq.s32.totalorder %s18, 0
      %p86 = por %p84, %p85
      %p87 = scmp.ne.s32.totalorder %s73, %s74
      %p88 = scmp.eq.s32.totalorder %s19, 6
      %p89 = por %p87, %p88
      %p91 = scmp.ne.s32.totalorder %s74, %s90
      %p92 = scmp.eq.s32.totalorder %s19, 0
      %p93 = por %p91, %p92
      %s94 = ssub.s32 %s13, %s20
      %p95 = scmp.eq.s32.totalorder %s94, 0
      %s97 = sadd.s32 %s96, 1
      %s98 = scalar_select %p95, %s96, %s97
      %p101 = pneg %p95
      %p102 = scmp.eq.s32.totalorder %s13, 6
      %p103 = por %p101, %p102
      %p104 = scmp.ne.s32.totalorder %s96, %s99
      %p105 = scmp.eq.s32.totalorder %s13, 0
      %p106 = por %p104, %p105
      %p107 = scmp.ne.s32.totalorder %s96, %s99
      %p108 = scmp.eq.s32.totalorder %s18, 6
      %p109 = por %p107, %p108
      %p110 = scmp.ne.s32.totalorder %s99, %s100
      %p111 = scmp.eq.s32.totalorder %s18, 0
      %p112 = por %p110, %p111
      %p113 = scmp.ne.s32.totalorder %s99, %s100
      %p114 = scmp.eq.s32.totalorder %s19, 6
      %p115 = por %p113, %p114
      %p117 = scmp.ne.s32.totalorder %s100, %s116
      %p118 = scmp.eq.s32.totalorder %s19, 0
      %p119 = por %p117, %p118
      %p120 = scmp.le.s32.totalorder 1, %s13
      %p121 = scmp.lt.s32.totalorder %s13, 8
      %p122 = pnand %p120, %p121
      %p123 = pneg %p122
      // Predicated region
      $region9: #{generator_forward.12} parent=5 // pred_check
        _
      $region10: #{generator_forward.12} parent=5 // pred_check_branch
        %125 = sbr.rel (%p122) target = $region12
      $region11: #{generator_forward.12} parent=5 // pred_region
        %s126 = ssub.s32 %s13, 1
        // Predicated region
        $region13: #{generator_forward.12} parent=11 // pred_check
          %p127 = pneg %p60
        $region14: #{generator_forward.12} parent=11 // pred_check_branch
          %129 = sbr.rel (%p127) target = $region16
        $region15: #{generator_forward.12} parent=11 // pred_region
          _
        $region16: #{generator_forward.12} parent=11 // pred_fallthru
          _
      $region12: #{generator_forward.12} parent=5 // pred_fallthru
        _
      %p130 = scmp.lt.s32.totalorder %s13, 7
      // Predicated region
      $region17: #{generator_forward.12} parent=5 // pred_check
        %p131 = pneg %p130
      $region18: #{generator_forward.12} parent=5 // pred_check_branch
        %133 = sbr.rel (%p131) target = $region20
      $region19: #{generator_forward.12} parent=5 // pred_region
        // Predicated region
        $region21: #{generator_forward.12} parent=19 // pred_check
          %p134 = pneg %p33
        $region22: #{generator_forward.12} parent=19 // pred_check_branch
          %136 = sbr.rel (%p134) target = $region24
        $region23: #{generator_forward.12} parent=19 // pred_region
          %s137 = smul.u32 28, %s13
          %p138 = scmp.lt.s32.totalorder %s137, 195
          %s139 = scalar_select %p138, %s137, 195
          %s140 = smul.addr %s139, 5
          %s141 = smul.addr %s140, 4
          %s142 = scalar_lea.vmem %s0, %s141
          %s143 = smul.u32 28, %s13
        $region24: #{generator_forward.12} parent=19 // pred_fallthru
          _
      $region20: #{generator_forward.12} parent=5 // pred_fallthru
        _
      %p144 = scmp.le.s32.totalorder 1, %s13
      %p145 = scmp.lt.s32.totalorder %s13, 8
      %p146 = pnand %p144, %p145
      %p147 = pneg %p146
      // Predicated region
      $region25: #{generator_forward.12} parent=5 // pred_check
        _
      $region26: #{generator_forward.12} parent=5 // pred_check_branch
        %149 = sbr.rel (%p146) target = $region28
      $region27: #{generator_forward.12} parent=5 // pred_region
        %s150 = ssub.s32 %s13, 1
        %s151 = smul.u32 28, %s18
        %p152 = scmp.lt.s32.totalorder %s151, 195
        %s153 = scalar_select %p152, %s151, 195
        %s154 = smul.addr %s153, 5
        %s155 = smul.addr %s154, 4
        %s156 = scalar_lea.vmem %s0, %s155
        %p157 = pneg %p39
        %p158 = pneg %p36
        %p159 = pneg %p60
        %p160 = pneg %p57
        %p161 = pneg %p86
        %p162 = pneg %p83
        %s163 = smul.u32 28, %s18
        %p164 = scmp.lt.s32.totalorder %s163, 195
        %s165 = scalar_select %p164, %s163, 195
        %s166 = smul.addr %s165, 4
        %s167 = scalar_lea.vmem %s2, %s166
        %p168 = pneg %p112
        %p169 = pneg %p109
        %s170 = sand.u32 %s99, 1
        %s171 = scalar_lea.sflag [#allocation3], %s170
        %s172 = sand.u32 %s99, 1
        %s173 = smul.addr %s172, 8
        %s174 = scalar_lea.vmem [#allocation2], %s173
        %s175 = smul.u32 28, %s18
        %p176 = scmp.lt.s32.totalorder %s175, 195
        %s177 = scalar_select %p176, %s175, 195
        %s178 = smul.addr %s177, 5
        %s179 = smul.addr %s178, 4
        %s180 = scalar_lea.vmem %s0, %s179
        %s181 = smul.u32 28, %s18
        %s182 = smul.u32 28, %s18
        %p183 = scmp.lt.s32.totalorder %s182, 195
        %s184 = scalar_select %p183, %s182, 195
        %s185 = smul.addr %s184, 4
        %s186 = scalar_lea.vmem %s2, %s185
        %s187 = smul.u32 28, %s18
        %v189 = vld [vmem:[%s180] sm:$0xff]
        %v190 = vld [vmem:[%s180 + $0x8] sm:$0xff]
        %v191 = vld [vmem:[%s180 + $0x10] sm:$0xf]
        %v192 = vld [vmem:[%s180 + $0x14] sm:$0xff]
        %v193 = vld [vmem:[%s180 + $0x1c] sm:$0xff]
        %v194 = vld [vmem:[%s180 + $0x24] sm:$0xf]
        %v195 = vld [vmem:[%s180 + $0x28] sm:$0xff]
        %v196 = vld [vmem:[%s180 + $0x30] sm:$0xff]
        %v197 = vld [vmem:[%s180 + $0x38] sm:$0xf]
        %v198 = vld [vmem:[%s180 + $0x3c] sm:$0xff]
        %v199 = vld [vmem:[%s180 + $0x44] sm:$0xff]
        %v200 = vld [vmem:[%s180 + $0x4c] sm:$0xf]
        %v201 = vld [vmem:[%s180 + $0x50] sm:$0xff]
        %v202 = vld [vmem:[%s180 + $0x58] sm:$0xff]
        %v203 = vld [vmem:[%s180 + $0x60] sm:$0xf]
        %v204 = vld [vmem:[%s180 + $0x64] sm:$0xff]
        %v205 = vld [vmem:[%s180 + $0x6c] sm:$0xff]
        %v206 = vld [vmem:[%s180 + $0x74] sm:$0xf]
        %v207 = vld [vmem:[%s180 + $0x78] sm:$0xff]
        %v208 = vld [vmem:[%s180 + $0x80] sm:$0xff]
        %v209 = vld [vmem:[%s180 + $0x88] sm:$0xf]
        %v210 = vld [vmem:[%s180 + $0x8c] sm:$0xff]
        %v211 = vld [vmem:[%s180 + $0x94] sm:$0xff]
        %v212 = vld [vmem:[%s180 + $0x9c] sm:$0xf]
        %v213 = vld [vmem:[%s180 + $0xa0] sm:$0xff]
        %v214 = vld [vmem:[%s180 + $0xa8] sm:$0xff]
        %v215 = vld [vmem:[%s180 + $0xb0] sm:$0xf]
        %v216 = vld [vmem:[%s180 + $0xb4] sm:$0xff]
        %v217 = vld [vmem:[%s180 + $0xbc] sm:$0xff]
        %v218 = vld [vmem:[%s180 + $0xc4] sm:$0xf]
        %v219 = vld [vmem:[%s180 + $0xc8] sm:$0xff]
        %v220 = vld [vmem:[%s180 + $0xd0] sm:$0xff]
        %v221 = vld [vmem:[%s180 + $0xd8] sm:$0xf]
        %v222 = vld [vmem:[%s180 + $0xdc] sm:$0xff]
        %v223 = vld [vmem:[%s180 + $0xe4] sm:$0xff]
        %v224 = vld [vmem:[%s180 + $0xec] sm:$0xf]
        %v225 = vld [vmem:[%s180 + $0xf0] sm:$0xff]
        %v226 = vld [vmem:[%s180 + $0xf8] sm:$0xff]
        %v227 = vld [vmem:[%s180 + $0x100] sm:$0xf]
        %v228 = vld [vmem:[%s180 + $0x104] sm:$0xff]
        %v229 = vld [vmem:[%s180 + $0x10c] sm:$0xff]
        %v230 = vld [vmem:[%s180 + $0x114] sm:$0xf]
        %v231 = vld [vmem:[%s180 + $0x118] sm:$0xff]
        %v232 = vld [vmem:[%s180 + $0x120] sm:$0xff]
        %v233 = vld [vmem:[%s180 + $0x128] sm:$0xf]
        %v234 = vld [vmem:[%s180 + $0x12c] sm:$0xff]
        %v235 = vld [vmem:[%s180 + $0x134] sm:$0xff]
        %v236 = vld [vmem:[%s180 + $0x13c] sm:$0xf]
        %v237 = vld [vmem:[%s180 + $0x140] sm:$0xff]
        %v238 = vld [vmem:[%s180 + $0x148] sm:$0xff]
        %v239 = vld [vmem:[%s180 + $0x150] sm:$0xf]
        %v240 = vld [vmem:[%s180 + $0x154] sm:$0xff]
        %v241 = vld [vmem:[%s180 + $0x15c] sm:$0xff]
        %v242 = vld [vmem:[%s180 + $0x164] sm:$0xf]
        %v243 = vld [vmem:[%s180 + $0x168] sm:$0xff]
        %v244 = vld [vmem:[%s180 + $0x170] sm:$0xff]
        %v245 = vld [vmem:[%s180 + $0x178] sm:$0xf]
        %v246 = vld [vmem:[%s180 + $0x17c] sm:$0xff]
        %v247 = vld [vmem:[%s180 + $0x184] sm:$0xff]
        %v248 = vld [vmem:[%s180 + $0x18c] sm:$0xf]
        %v249 = vld [vmem:[%s180 + $0x190] sm:$0xff]
        %v250 = vld [vmem:[%s180 + $0x198] sm:$0xff]
        %v251 = vld [vmem:[%s180 + $0x1a0] sm:$0xf]
        %v252 = vld [vmem:[%s180 + $0x1a4] sm:$0xff]
        %v253 = vld [vmem:[%s180 + $0x1ac] sm:$0xff]
        %v254 = vld [vmem:[%s180 + $0x1b4] sm:$0xf]
        %v255 = vld [vmem:[%s180 + $0x1b8] sm:$0xff]
        %v256 = vld [vmem:[%s180 + $0x1c0] sm:$0xff]
        %v257 = vld [vmem:[%s180 + $0x1c8] sm:$0xf]
        %v258 = vld [vmem:[%s180 + $0x1cc] sm:$0xff]
        %v259 = vld [vmem:[%s180 + $0x1d4] sm:$0xff]
        %v260 = vld [vmem:[%s180 + $0x1dc] sm:$0xf]
        %v261 = vld [vmem:[%s180 + $0x1e0] sm:$0xff]
        %v262 = vld [vmem:[%s180 + $0x1e8] sm:$0xff]
        %v263 = vld [vmem:[%s180 + $0x1f0] sm:$0xf]
        %v264 = vld [vmem:[%s180 + $0x1f4] sm:$0xff]
        %v265 = vld [vmem:[%s180 + $0x1fc] sm:$0xff]
        %v266 = vld [vmem:[%s180 + $0x204] sm:$0xf]
        %v267 = vld [vmem:[%s180 + $0x208] sm:$0xff]
        %v268 = vld [vmem:[%s180 + $0x210] sm:$0xff]
        %v269 = vld [vmem:[%s180 + $0x218] sm:$0xf]
        %v270 = vld [vmem:[%s180 + $0x21c] sm:$0xff]
        %v271 = vld [vmem:[%s180 + $0x224] sm:$0xff]
        %v272 = vld [vmem:[%s180 + $0x22c] sm:$0xf]
        %v273 = vld [vmem:[%s1] sm:$0xf]
        %v274 = vld [vmem:[%s1 + $0x4] sm:$0xf]
        %v275 = vld [vmem:[%s1 + $0x8] sm:$0xf]
        %v276 = vld [vmem:[%s1 + $0xc] sm:$0xf]
        %v277 = vld [vmem:[%s1 + $0x10] sm:$0xf]
        %v278 = vld [vmem:[%s1 + $0x14] sm:$0xf]
        %v279 = vld [vmem:[%s1 + $0x18] sm:$0xf]
        %v280 = vld [vmem:[%s1 + $0x1c] sm:$0xf]
        %v281 = vld [vmem:[%s1 + $0x20] sm:$0xf]
        %v282 = vld [vmem:[%s1 + $0x24] sm:$0xf]
        %v283 = vld [vmem:[%s1 + $0x28] sm:$0xf]
        %v284 = vld [vmem:[%s1 + $0x2c] sm:$0xf]
        %v285 = vld [vmem:[%s1 + $0x30] sm:$0xf]
        %v286 = vld [vmem:[%s1 + $0x34] sm:$0xf]
        %v287 = vld [vmem:[%s1 + $0x38] sm:$0xf]
        %v288 = vld [vmem:[%s1 + $0x3c] sm:$0xf]
        %v289 = vld [vmem:[%s1 + $0x40] sm:$0xf]
        %v290 = vld [vmem:[%s1 + $0x44] sm:$0xf]
        %v291 = vld [vmem:[%s1 + $0x48] sm:$0xf]
        %v292 = vld [vmem:[%s1 + $0x4c] sm:$0xf]
        %v293 = vld [vmem:[%s1 + $0x50] sm:$0xf]
        %v294 = vld [vmem:[%s1 + $0x54] sm:$0xf]
        %v295 = vld [vmem:[%s1 + $0x58] sm:$0xf]
        %v296 = vld [vmem:[%s1 + $0x5c] sm:$0xf]
        %v297 = vld [vmem:[%s1 + $0x60] sm:$0xf]
        %v298 = vld [vmem:[%s1 + $0x64] sm:$0xf]
        %v299 = vld [vmem:[%s1 + $0x68] sm:$0xf]
        %v300 = vld [vmem:[%s1 + $0x6c] sm:$0xf]
        %v301 = vld [vmem:[%s1 + $0x70] sm:$0xf]
        %v302 = vld [vmem:[%s1 + $0x74] sm:$0xf]
        %v303 = vld [vmem:[%s1 + $0x78] sm:$0xf]
        %v304 = vld [vmem:[%s1 + $0x7c] sm:$0xf]
        %v305 = vld [vmem:[%s1 + $0x80] sm:$0xf]
        %v306 = vld [vmem:[%s1 + $0x84] sm:$0xf]
        %v307 = vld [vmem:[%s1 + $0x88] sm:$0xf]
        %v308 = vld [vmem:[%s1 + $0x8c] sm:$0xf]
        %v309 = vld [vmem:[%s1 + $0x90] sm:$0xf]
        %v310 = vld [vmem:[%s1 + $0x94] sm:$0xf]
        %v311 = vld [vmem:[%s1 + $0x98] sm:$0xf]
        %v312 = vld [vmem:[%s1 + $0x9c] sm:$0xf]
        %v313 = vld [vmem:[%s1 + $0xa0] sm:$0xf]
        %v314 = vld [vmem:[%s1 + $0xa4] sm:$0xf]
        %v315 = vld [vmem:[%s1 + $0xa8] sm:$0xf]
        %v316 = vld [vmem:[%s1 + $0xac] sm:$0xf]
        %v317 = vld [vmem:[%s1 + $0xb0] sm:$0xf]
        %v318 = vld [vmem:[%s1 + $0xb4] sm:$0xf]
        %v319 = vld [vmem:[%s1 + $0xb8] sm:$0xf]
        %v320 = vld [vmem:[%s1 + $0xbc] sm:$0xf]
        %v321 = vld [vmem:[%s1 + $0xc0] sm:$0xf]
        %v322 = vld [vmem:[%s1 + $0xc4] sm:$0xf]
        %v323 = vld [vmem:[%s1 + $0xc8] sm:$0xf]
        %v324 = vld [vmem:[%s1 + $0xcc] sm:$0xf]
        %v325 = vld [vmem:[%s1 + $0xd0] sm:$0xf]
        %v326 = vld [vmem:[%s1 + $0xd4] sm:$0xf]
        %v327 = vld [vmem:[%s1 + $0xd8] sm:$0xf]
        %v328 = vld [vmem:[%s1 + $0xdc] sm:$0xf]
        %v329 = vld [vmem:[%s1 + $0xe0] sm:$0xf]
        %v330 = vld [vmem:[%s1 + $0xe4] sm:$0xf]
        %v331 = vld [vmem:[%s1 + $0xe8] sm:$0xf]
        %v332 = vld [vmem:[%s1 + $0xec] sm:$0xf]
        %v333 = vld [vmem:[%s1 + $0xf0] sm:$0xf]
        %v334 = vld [vmem:[%s1 + $0xf4] sm:$0xf]
        %v335 = vld [vmem:[%s1 + $0xf8] sm:$0xf]
        %v336 = vld [vmem:[%s1 + $0xfc] sm:$0xf]
        %v337 = vld [vmem:[%s1 + $0x100] sm:$0xf]
        %v338 = vld [vmem:[%s1 + $0x104] sm:$0xf]
        %v339 = vld [vmem:[%s1 + $0x108] sm:$0xf]
        %v340 = vld [vmem:[%s1 + $0x10c] sm:$0xf]
        %v341 = vld [vmem:[%s1 + $0x110] sm:$0xf]
        %v342 = vld [vmem:[%s1 + $0x114] sm:$0xf]
        %v343 = vld [vmem:[%s1 + $0x118] sm:$0xf]
        %v344 = vld [vmem:[%s1 + $0x11c] sm:$0xf]
        %v429 = vunpack.c.l.b16 %v189
        %v430 = vunpack.c.h.b16 %v189
        %v431 = vunpack.c.l.b16 %v190
        %v432 = vunpack.c.h.b16 %v190
        %v433 = vunpack.c.l.b16 %v191
        %v434 = vunpack.c.l.b16 %v192
        %v435 = vunpack.c.h.b16 %v192
        %v436 = vunpack.c.l.b16 %v193
        %v437 = vunpack.c.h.b16 %v193
        %v438 = vunpack.c.l.b16 %v194
        %v439 = vunpack.c.l.b16 %v195
        %v440 = vunpack.c.h.b16 %v195
        %v441 = vunpack.c.l.b16 %v196
        %v442 = vunpack.c.h.b16 %v196
        %v443 = vunpack.c.l.b16 %v197
        %v444 = vunpack.c.l.b16 %v198
        %v445 = vunpack.c.h.b16 %v198
        %v446 = vunpack.c.l.b16 %v199
        %v447 = vunpack.c.h.b16 %v199
        %v448 = vunpack.c.l.b16 %v200
        %v449 = vunpack.c.l.b16 %v201
        %v450 = vunpack.c.h.b16 %v201
        %v451 = vunpack.c.l.b16 %v202
        %v452 = vunpack.c.h.b16 %v202
        %v453 = vunpack.c.l.b16 %v203
        %v454 = vunpack.c.l.b16 %v204
        %v455 = vunpack.c.h.b16 %v204
        %v456 = vunpack.c.l.b16 %v205
        %v457 = vunpack.c.h.b16 %v205
        %v458 = vunpack.c.l.b16 %v206
        %v459 = vunpack.c.l.b16 %v207
        %v460 = vunpack.c.h.b16 %v207
        %v461 = vunpack.c.l.b16 %v208
        %v462 = vunpack.c.h.b16 %v208
        %v463 = vunpack.c.l.b16 %v209
        %v464 = vunpack.c.l.b16 %v210
        %v465 = vunpack.c.h.b16 %v210
        %v466 = vunpack.c.l.b16 %v211
        %v467 = vunpack.c.h.b16 %v211
        %v468 = vunpack.c.l.b16 %v212
        %v469 = vunpack.c.l.b16 %v213
        %v470 = vunpack.c.h.b16 %v213
        %v471 = vunpack.c.l.b16 %v214
        %v472 = vunpack.c.h.b16 %v214
        %v473 = vunpack.c.l.b16 %v215
        %v474 = vunpack.c.l.b16 %v216
        %v475 = vunpack.c.h.b16 %v216
        %v476 = vunpack.c.l.b16 %v217
        %v477 = vunpack.c.h.b16 %v217
        %v478 = vunpack.c.l.b16 %v218
        %v479 = vunpack.c.l.b16 %v219
        %v480 = vunpack.c.h.b16 %v219
        %v481 = vunpack.c.l.b16 %v220
        %v482 = vunpack.c.h.b16 %v220
        %v483 = vunpack.c.l.b16 %v221
        %v484 = vunpack.c.l.b16 %v222
        %v485 = vunpack.c.h.b16 %v222
        %v486 = vunpack.c.l.b16 %v223
        %v487 = vunpack.c.h.b16 %v223
        %v488 = vunpack.c.l.b16 %v224
        %v489 = vunpack.c.l.b16 %v225
        %v490 = vunpack.c.h.b16 %v225
        %v491 = vunpack.c.l.b16 %v226
        %v492 = vunpack.c.h.b16 %v226
        %v493 = vunpack.c.l.b16 %v227
        %v494 = vunpack.c.l.b16 %v228
        %v495 = vunpack.c.h.b16 %v228
        %v496 = vunpack.c.l.b16 %v229
        %v497 = vunpack.c.h.b16 %v229
        %v498 = vunpack.c.l.b16 %v230
        %v499 = vunpack.c.l.b16 %v231
        %v500 = vunpack.c.h.b16 %v231
        %v501 = vunpack.c.l.b16 %v232
        %v502 = vunpack.c.h.b16 %v232
        %v503 = vunpack.c.l.b16 %v233
        %v504 = vunpack.c.l.b16 %v234
        %v505 = vunpack.c.h.b16 %v234
        %v506 = vunpack.c.l.b16 %v235
        %v507 = vunpack.c.h.b16 %v235
        %v508 = vunpack.c.l.b16 %v236
        %v509 = vunpack.c.l.b16 %v237
        %v510 = vunpack.c.h.b16 %v237
        %v511 = vunpack.c.l.b16 %v238
        %v512 = vunpack.c.h.b16 %v238
        %v513 = vunpack.c.l.b16 %v239
        %v514 = vunpack.c.l.b16 %v240
        %v515 = vunpack.c.h.b16 %v240
        %v516 = vunpack.c.l.b16 %v241
        %v517 = vunpack.c.h.b16 %v241
        %v518 = vunpack.c.l.b16 %v242
        %v519 = vunpack.c.l.b16 %v243
        %v520 = vunpack.c.h.b16 %v243
        %v521 = vunpack.c.l.b16 %v244
        %v522 = vunpack.c.h.b16 %v244
        %v523 = vunpack.c.l.b16 %v245
        %v524 = vunpack.c.l.b16 %v246
        %v525 = vunpack.c.h.b16 %v246
        %v526 = vunpack.c.l.b16 %v247
        %v527 = vunpack.c.h.b16 %v247
        %v528 = vunpack.c.l.b16 %v248
        %v529 = vunpack.c.l.b16 %v249
        %v530 = vunpack.c.h.b16 %v249
        %v531 = vunpack.c.l.b16 %v250
        %v532 = vunpack.c.h.b16 %v250
        %v533 = vunpack.c.l.b16 %v251
        %v534 = vunpack.c.l.b16 %v252
        %v535 = vunpack.c.h.b16 %v252
        %v536 = vunpack.c.l.b16 %v253
        %v537 = vunpack.c.h.b16 %v253
        %v538 = vunpack.c.l.b16 %v254
        %v539 = vunpack.c.l.b16 %v255
        %v540 = vunpack.c.h.b16 %v255
        %v541 = vunpack.c.l.b16 %v256
        %v542 = vunpack.c.h.b16 %v256
        %v543 = vunpack.c.l.b16 %v257
        %v544 = vunpack.c.l.b16 %v258
        %v545 = vunpack.c.h.b16 %v258
        %v546 = vunpack.c.l.b16 %v259
        %v547 = vunpack.c.h.b16 %v259
        %v548 = vunpack.c.l.b16 %v260
        %v549 = vunpack.c.l.b16 %v261
        %v550 = vunpack.c.h.b16 %v261
        %v551 = vunpack.c.l.b16 %v262
        %v552 = vunpack.c.h.b16 %v262
        %v553 = vunpack.c.l.b16 %v263
        %v554 = vunpack.c.l.b16 %v264
        %v555 = vunpack.c.h.b16 %v264
        %v556 = vunpack.c.l.b16 %v265
        %v557 = vunpack.c.h.b16 %v265
        %v558 = vunpack.c.l.b16 %v266
        %v559 = vunpack.c.l.b16 %v267
        %v560 = vunpack.c.h.b16 %v267
        %v561 = vunpack.c.l.b16 %v268
        %v562 = vunpack.c.h.b16 %v268
        %v563 = vunpack.c.l.b16 %v269
        %v564 = vunpack.c.l.b16 %v270
        %v565 = vunpack.c.h.b16 %v270
        %v566 = vunpack.c.l.b16 %v271
        %v567 = vunpack.c.h.b16 %v271
        %v568 = vunpack.c.l.b16 %v272
        %v569 = vpack.c.b16 %v434, %v429
        %v570 = vpack.c.b16 %v435, %v430
        %v571 = vpack.c.b16 %v436, %v431
        %v572 = vpack.c.b16 %v437, %v432
        %v573 = vpack.c.b16 %v438, %v433
        %v574 = vpack.c.b16 %v444, %v439
        %v575 = vpack.c.b16 %v445, %v440
        %v576 = vpack.c.b16 %v446, %v441
        %v577 = vpack.c.b16 %v447, %v442
        %v578 = vpack.c.b16 %v448, %v443
        %v579 = vpack.c.b16 %v454, %v449
        %v580 = vpack.c.b16 %v455, %v450
        %v581 = vpack.c.b16 %v456, %v451
        %v582 = vpack.c.b16 %v457, %v452
        %v583 = vpack.c.b16 %v458, %v453
        %v584 = vpack.c.b16 %v464, %v459
        %v585 = vpack.c.b16 %v465, %v460
        %v586 = vpack.c.b16 %v466, %v461
        %v587 = vpack.c.b16 %v467, %v462
        %v588 = vpack.c.b16 %v468, %v463
        %v589 = vpack.c.b16 %v474, %v469
        %v590 = vpack.c.b16 %v475, %v470
        %v591 = vpack.c.b16 %v476, %v471
        %v592 = vpack.c.b16 %v477, %v472
        %v593 = vpack.c.b16 %v478, %v473
        %v594 = vpack.c.b16 %v484, %v479
        %v595 = vpack.c.b16 %v485, %v480
        %v596 = vpack.c.b16 %v486, %v481
        %v597 = vpack.c.b16 %v487, %v482
        %v598 = vpack.c.b16 %v488, %v483
        %v599 = vpack.c.b16 %v494, %v489
        %v600 = vpack.c.b16 %v495, %v490
        %v601 = vpack.c.b16 %v496, %v491
        %v602 = vpack.c.b16 %v497, %v492
        %v603 = vpack.c.b16 %v498, %v493
        %v604 = vpack.c.b16 %v504, %v499
        %v605 = vpack.c.b16 %v505, %v500
        %v606 = vpack.c.b16 %v506, %v501
        %v607 = vpack.c.b16 %v507, %v502
        %v608 = vpack.c.b16 %v508, %v503
        %v609 = vpack.c.b16 %v514, %v509
        %v610 = vpack.c.b16 %v515, %v510
        %v611 = vpack.c.b16 %v516, %v511
        %v612 = vpack.c.b16 %v517, %v512
        %v613 = vpack.c.b16 %v518, %v513
        %v614 = vpack.c.b16 %v524, %v519
        %v615 = vpack.c.b16 %v525, %v520
        %v616 = vpack.c.b16 %v526, %v521
        %v617 = vpack.c.b16 %v527, %v522
        %v618 = vpack.c.b16 %v528, %v523
        %v619 = vpack.c.b16 %v534, %v529
        %v620 = vpack.c.b16 %v535, %v530
        %v621 = vpack.c.b16 %v536, %v531
        %v622 = vpack.c.b16 %v537, %v532
        %v623 = vpack.c.b16 %v538, %v533
        %v624 = vpack.c.b16 %v544, %v539
        %v625 = vpack.c.b16 %v545, %v540
        %v626 = vpack.c.b16 %v546, %v541
        %v627 = vpack.c.b16 %v547, %v542
        %v628 = vpack.c.b16 %v548, %v543
        %v629 = vpack.c.b16 %v554, %v549
        %v630 = vpack.c.b16 %v555, %v550
        %v631 = vpack.c.b16 %v556, %v551
        %v632 = vpack.c.b16 %v557, %v552
        %v633 = vpack.c.b16 %v558, %v553
        %v634 = vpack.c.b16 %v564, %v559
        %v635 = vpack.c.b16 %v565, %v560
        %v636 = vpack.c.b16 %v566, %v561
        %v637 = vpack.c.b16 %v567, %v562
        %v638 = vpack.c.b16 %v568, %v563
        %v767 = vunpack.c.l.b16 %v273
        %v768 = vunpack.c.l.b16 %v274
        %v769 = vunpack.c.l.b16 %v275
        %v770 = vunpack.c.l.b16 %v276
        %v771 = vunpack.c.l.b16 %v277
        %v772 = vunpack.c.l.b16 %v278
        %v773 = vunpack.c.l.b16 %v279
        %v774 = vunpack.c.l.b16 %v280
        %v775 = vunpack.c.l.b16 %v281
        %v776 = vunpack.c.l.b16 %v282
        %v777 = vunpack.c.l.b16 %v283
        %v778 = vunpack.c.l.b16 %v284
        %v779 = vunpack.c.l.b16 %v285
        %v780 = vunpack.c.l.b16 %v286
        %v781 = vunpack.c.l.b16 %v287
        %v782 = vunpack.c.l.b16 %v288
        %v783 = vunpack.c.l.b16 %v289
        %v784 = vunpack.c.l.b16 %v290
        %v785 = vunpack.c.l.b16 %v291
        %v786 = vunpack.c.l.b16 %v292
        %v787 = vunpack.c.l.b16 %v293
        %v788 = vunpack.c.l.b16 %v294
        %v789 = vunpack.c.l.b16 %v295
        %v790 = vunpack.c.l.b16 %v296
        %v791 = vunpack.c.l.b16 %v297
        %v792 = vunpack.c.l.b16 %v298
        %v793 = vunpack.c.l.b16 %v299
        %v794 = vunpack.c.l.b16 %v300
        %v795 = vunpack.c.l.b16 %v301
        %v796 = vunpack.c.l.b16 %v302
        %v797 = vunpack.c.l.b16 %v303
        %v798 = vunpack.c.l.b16 %v304
        %v799 = vunpack.c.l.b16 %v305
        %v800 = vunpack.c.l.b16 %v306
        %v801 = vunpack.c.l.b16 %v307
        %v802 = vunpack.c.l.b16 %v308
        %v803 = vunpack.c.l.b16 %v309
        %v804 = vunpack.c.l.b16 %v310
        %v805 = vunpack.c.l.b16 %v311
        %v806 = vunpack.c.l.b16 %v312
        %v807 = vunpack.c.l.b16 %v313
        %v808 = vunpack.c.l.b16 %v314
        %v809 = vunpack.c.l.b16 %v315
        %v810 = vunpack.c.l.b16 %v316
        %v811 = vunpack.c.l.b16 %v317
        %v812 = vunpack.c.l.b16 %v318
        %v813 = vunpack.c.l.b16 %v319
        %v814 = vunpack.c.l.b16 %v320
        %v815 = vunpack.c.l.b16 %v321
        %v816 = vunpack.c.l.b16 %v322
        %v817 = vunpack.c.l.b16 %v323
        %v818 = vunpack.c.l.b16 %v324
        %v819 = vunpack.c.l.b16 %v325
        %v820 = vunpack.c.l.b16 %v326
        %v821 = vunpack.c.l.b16 %v327
        %v822 = vunpack.c.l.b16 %v328
        %v823 = vunpack.c.l.b16 %v329
        %v824 = vunpack.c.l.b16 %v330
        %v825 = vunpack.c.l.b16 %v331
        %v826 = vunpack.c.l.b16 %v332
        %v827 = vunpack.c.l.b16 %v333
        %v828 = vunpack.c.l.b16 %v334
        %v829 = vunpack.c.l.b16 %v335
        %v830 = vunpack.c.l.b16 %v336
        %v831 = vunpack.c.l.b16 %v337
        %v832 = vunpack.c.l.b16 %v338
        %v833 = vunpack.c.l.b16 %v339
        %v834 = vunpack.c.l.b16 %v340
        %v835 = vunpack.c.l.b16 %v341
        %v836 = vunpack.c.l.b16 %v342
        %v837 = vunpack.c.l.b16 %v343
        %v838 = vunpack.c.l.b16 %v344
        %v839 = vpack.c.b16 %v768, %v767
        %v840 = vpack.c.b16 %v770, %v769
        %v841 = vpack.c.b16 %v772, %v771
        %v842 = vpack.c.b16 %v774, %v773
        %v843 = vpack.c.b16 %v776, %v775
        %v844 = vpack.c.b16 %v778, %v777
        %v845 = vpack.c.b16 %v780, %v779
        %v846 = vpack.c.b16 %v782, %v781
        %v847 = vpack.c.b16 %v784, %v783
        %v848 = vpack.c.b16 %v786, %v785
        %v849 = vpack.c.b16 %v788, %v787
        %v850 = vpack.c.b16 %v790, %v789
        %v851 = vpack.c.b16 %v792, %v791
        %v852 = vpack.c.b16 %v794, %v793
        %v853 = vpack.c.b16 %v796, %v795
        %v854 = vpack.c.b16 %v798, %v797
        %v855 = vpack.c.b16 %v800, %v799
        %v856 = vpack.c.b16 %v802, %v801
        %v857 = vpack.c.b16 %v804, %v803
        %v858 = vpack.c.b16 %v806, %v805
        %v859 = vpack.c.b16 %v808, %v807
        %v860 = vpack.c.b16 %v810, %v809
        %v861 = vpack.c.b16 %v812, %v811
        %v862 = vpack.c.b16 %v814, %v813
        %v863 = vpack.c.b16 %v816, %v815
        %v864 = vpack.c.b16 %v818, %v817
        %v865 = vpack.c.b16 %v820, %v819
        %v866 = vpack.c.b16 %v822, %v821
        %v867 = vpack.c.b16 %v824, %v823
        %v868 = vpack.c.b16 %v826, %v825
        %v869 = vpack.c.b16 %v828, %v827
        %v870 = vpack.c.b16 %v830, %v829
        %v871 = vpack.c.b16 %v832, %v831
        %v872 = vpack.c.b16 %v834, %v833
        %v873 = vpack.c.b16 %v836, %v835
        %v874 = vpack.c.b16 %v838, %v837
        %vm911 = vcmask 523264
        %v913 = vsel %vm911, %v573, 0
        %v916 = vsel %vm911, %v578, 0
        %v919 = vsel %vm911, %v583, 0
        %v922 = vsel %vm911, %v588, 0
        %v925 = vsel %vm911, %v593, 0
        %v928 = vsel %vm911, %v598, 0
        %v931 = vsel %vm911, %v603, 0
        %v934 = vsel %vm911, %v608, 0
        %v937 = vsel %vm911, %v613, 0
        %v940 = vsel %vm911, %v618, 0
        %v943 = vsel %vm911, %v623, 0
        %v946 = vsel %vm911, %v628, 0
        %v949 = vsel %vm911, %v633, 0
        %v952 = vsel %vm911, %v638, 0
        %954 = vmatprep.subr.bf16.mxu0 0
        %955 = vmatpush1.bf16.msra.mxu0 %v839
        %956 = vmatprep.subr.bf16.mxu0 0
        %957 = vmatpush1.bf16.msra.mxu0 %v840
        %958 = vmatprep.subr.bf16.mxu0 0
        %959 = vmatpush1.bf16.msra.mxu0 %v841
        %960 = vmatprep.subr.bf16.mxu0 0
        %961 = vmatpush1.bf16.msra.mxu0 %v842
        %962 = vmatprep.subr.bf16.mxu0 0
        %963 = vmatpush1.bf16.msra.mxu0 %v843
        %964 = vmatprep.subr.bf16.mxu0 0
        %965 = vmatpush1.bf16.msra.mxu0 %v844
        %966 = vmatprep.subr.bf16.mxu0 0
        %967 = vmatpush1.bf16.msra.mxu0 %v845
        %968 = vmatprep.subr.bf16.mxu0 0
        %969 = vmatpush1.bf16.msra.mxu0 %v846
        %970 = vmatprep.subr.bf16.mxu0 0
        %971 = vmatpush1.bf16.msra.mxu0 %v847
        %972 = vmatprep.subr.bf16.mxu0 0
        %973 = vmatpush1.bf16.msra.mxu0 %v848
        %974 = vmatprep.subr.bf16.mxu0 0
        %975 = vmatpush1.bf16.msra.mxu0 %v849
        %976 = vmatprep.subr.bf16.mxu0 0
        %977 = vmatpush1.bf16.msra.mxu0 %v850
        %978 = vmatprep.subr.bf16.mxu0 0
        %979 = vmatpush1.bf16.msra.mxu0 %v851
        %980 = vmatprep.subr.bf16.mxu0 0
        %981 = vmatpush1.bf16.msra.mxu0 %v852
        %982 = vmatprep.subr.bf16.mxu0 0
        %983 = vmatpush1.bf16.msra.mxu0 %v853
        %984 = vmatprep.subr.bf16.mxu0 0
        %985 = vmatpush1.bf16.msra.mxu0 %v854
        %986 = vmatprep.mubr.bf16.mxu0 %v570
        %987 = vmatmul.mubr.bf16.gmra.mrb[0].mxu0 %v569
        %v988 = vpop.f32.mrb[0].mxu0
        %v989 = vadd.f32 0.0, %v988
        %v990 = vpop.f32.mrb[0].mxu0
        %v991 = vpop.f32.mrb[0].mxu0
        %v992 = vadd.f32 0.0, %v991
        %v993 = vpop.f32.mrb[0].mxu0
        %994 = vmatprep.mubr.bf16.mxu0 %v575
        %995 = vmatmul.mubr.bf16.gmra.mrb[0].mxu0 %v574
        %v996 = vpop.f32.mrb[0].mxu0
        %v997 = vadd.f32 0.0, %v996
        %v998 = vpop.f32.mrb[0].mxu0
        %v999 = vpop.f32.mrb[0].mxu0
        %v1000 = vadd.f32 0.0, %v999
        %v1001 = vpop.f32.mrb[0].mxu0
        %1002 = vmatprep.mubr.bf16.mxu0 %v580
        %1003 = vmatmul.mubr.bf16.gmra.mrb[0].mxu0 %v579
        %v1004 = vpop.f32.mrb[0].mxu0
        %v1005 = vadd.f32 0.0, %v1004
        %v1006 = vpop.f32.mrb[0].mxu0
        %v1007 = vpop.f32.mrb[0].mxu0
        %v1008 = vadd.f32 0.0, %v1007
        %v1009 = vpop.f32.mrb[0].mxu0
        %1010 = vmatprep.mubr.bf16.mxu0 %v585
        %1011 = vmatmul.mubr.bf16.gmra.mrb[0].mxu0 %v584
        %v1012 = vpop.f32.mrb[0].mxu0
        %v1013 = vadd.f32 0.0, %v1012
        %v1014 = vpop.f32.mrb[0].mxu0
        %v1015 = vpop.f32.mrb[0].mxu0
        %v1016 = vadd.f32 0.0, %v1015
        %v1017 = vpop.f32.mrb[0].mxu0
        %1018 = vmatprep.mubr.bf16.mxu0 %v590
        %1019 = vmatmul.mubr.bf16.gmra.mrb[0].mxu0 %v589
        %v1020 = vpop.f32.mrb[0].mxu0
        %v1021 = vadd.f32 0.0, %v1020
        %v1022 = vpop.f32.mrb[0].mxu0
        %v1023 = vpop.f32.mrb[0].mxu0
        %v1024 = vadd.f32 0.0, %v1023
        %v1025 = vpop.f32.mrb[0].mxu0
        %1026 = vmatprep.mubr.bf16.mxu0 %v595
        %1027 = vmatmul.mubr.bf16.gmra.mrb[0].mxu0 %v594
        %v1028 = vpop.f32.mrb[0].mxu0
        %v1029 = vadd.f32 0.0, %v1028
        %v1030 = vpop.f32.mrb[0].mxu0
        %v1031 = vpop.f32.mrb[0].mxu0
        %v1032 = vadd.f32 0.0, %v1031
        %v1033 = vpop.f32.mrb[0].mxu0
        %1034 = vmatprep.mubr.bf16.mxu0 %v600
        %1035 = vmatmul.mubr.bf16.gmra.mrb[0].mxu0 %v599
        %v1036 = vpop.f32.mrb[0].mxu0
        %v1037 = vadd.f32 0.0, %v1036
        %v1038 = vpop.f32.mrb[0].mxu0
        %v1039 = vpop.f32.mrb[0].mxu0
        %v1040 = vadd.f32 0.0, %v1039
        %v1041 = vpop.f32.mrb[0].mxu0
        %1042 = vmatprep.mubr.bf16.mxu0 %v605
        %1043 = vmatmul.mubr.bf16.gmra.mrb[0].mxu0 %v604
        %v1044 = vpop.f32.mrb[0].mxu0
        %v1045 = vadd.f32 0.0, %v1044
        %v1046 = vpop.f32.mrb[0].mxu0
        %v1047 = vpop.f32.mrb[0].mxu0
        %v1048 = vadd.f32 0.0, %v1047
        %v1049 = vpop.f32.mrb[0].mxu0
        %1050 = vmatprep.mubr.bf16.mxu0 %v610
        %1051 = vmatmul.mubr.bf16.gmra.mrb[0].mxu0 %v609
        %v1052 = vpop.f32.mrb[0].mxu0
        %v1053 = vadd.f32 0.0, %v1052
        %v1054 = vpop.f32.mrb[0].mxu0
        %v1055 = vpop.f32.mrb[0].mxu0
        %v1056 = vadd.f32 0.0, %v1055
        %v1057 = vpop.f32.mrb[0].mxu0
        %1058 = vmatprep.mubr.bf16.mxu0 %v615
        %1059 = vmatmul.mubr.bf16.gmra.mrb[0].mxu0 %v614
        %v1060 = vpop.f32.mrb[0].mxu0
        %v1061 = vadd.f32 0.0, %v1060
        %v1062 = vpop.f32.mrb[0].mxu0
        %v1063 = vpop.f32.mrb[0].mxu0
        %v1064 = vadd.f32 0.0, %v1063
        %v1065 = vpop.f32.mrb[0].mxu0
        %1066 = vmatprep.mubr.bf16.mxu0 %v620
        %1067 = vmatmul.mubr.bf16.gmra.mrb[0].mxu0 %v619
        %v1068 = vpop.f32.mrb[0].mxu0
        %v1069 = vadd.f32 0.0, %v1068
        %v1070 = vpop.f32.mrb[0].mxu0
        %v1071 = vpop.f32.mrb[0].mxu0
        %v1072 = vadd.f32 0.0, %v1071
        %v1073 = vpop.f32.mrb[0].mxu0
        %1074 = vmatprep.mubr.bf16.mxu0 %v625
        %1075 = vmatmul.mubr.bf16.gmra.mrb[0].mxu0 %v624
        %v1076 = vpop.f32.mrb[0].mxu0
        %v1077 = vadd.f32 0.0, %v1076
        %v1078 = vpop.f32.mrb[0].mxu0
        %v1079 = vpop.f32.mrb[0].mxu0
        %v1080 = vadd.f32 0.0, %v1079
        %v1081 = vpop.f32.mrb[0].mxu0
        %1082 = vmatprep.mubr.bf16.mxu0 %v630
        %1083 = vmatmul.mubr.bf16.gmra.mrb[0].mxu0 %v629
        %v1084 = vpop.f32.mrb[0].mxu0
        %v1085 = vadd.f32 0.0, %v1084
        %v1086 = vpop.f32.mrb[0].mxu0
        %v1087 = vpop.f32.mrb[0].mxu0
        %v1088 = vadd.f32 0.0, %v1087
        %v1089 = vpop.f32.mrb[0].mxu0
        %1090 = vmatprep.mubr.bf16.mxu0 %v635
        %1091 = vmatmul.mubr.bf16.gmra.mrb[0].mxu0 %v634
        %v1092 = vpop.f32.mrb[0].mxu0
        %v1093 = vadd.f32 0.0, %v1092
        %v1094 = vpop.f32.mrb[0].mxu0
        %v1095 = vpop.f32.mrb[0].mxu0
        %v1096 = vadd.f32 0.0, %v1095
        %v1097 = vpop.f32.mrb[0].mxu0
        %1098 = vdwg.mxu0
        %1099 = vmatprep.subr.bf16.mxu0 0
        %1100 = vmatpush1.bf16.msra.mxu0 %v855
        %1101 = vmatprep.subr.bf16.mxu0 0
        %1102 = vmatpush1.bf16.msra.mxu0 %v856
        %1103 = vmatprep.subr.bf16.mxu0 0
        %1104 = vmatpush1.bf16.msra.mxu0 %v857
        %1105 = vmatprep.subr.bf16.mxu0 0
        %1106 = vmatpush1.bf16.msra.mxu0 %v858
        %1107 = vmatprep.subr.bf16.mxu0 0
        %1108 = vmatpush1.bf16.msra.mxu0 %v859
        %1109 = vmatprep.subr.bf16.mxu0 0
        %1110 = vmatpush1.bf16.msra.mxu0 %v860
        %1111 = vmatprep.subr.bf16.mxu0 0
        %1112 = vmatpush1.bf16.msra.mxu0 %v861
        %1113 = vmatprep.subr.bf16.mxu0 0
        %1114 = vmatpush1.bf16.msra.mxu0 %v862
        %1115 = vmatprep.subr.bf16.mxu0 0
        %1116 = vmatpush1.bf16.msra.mxu0 %v863
        %1117 = vmatprep.subr.bf16.mxu0 0
        %1118 = vmatpush1.bf16.msra.mxu0 %v864
        %1119 = vmatprep.subr.bf16.mxu0 0
        %1120 = vmatpush1.bf16.msra.mxu0 %v865
        %1121 = vmatprep.subr.bf16.mxu0 0
        %1122 = vmatpush1.bf16.msra.mxu0 %v866
        %1123 = vmatprep.subr.bf16.mxu0 0
        %1124 = vmatpush1.bf16.msra.mxu0 %v867
        %1125 = vmatprep.subr.bf16.mxu0 0
        %1126 = vmatpush1.bf16.msra.mxu0 %v868
        %1127 = vmatprep.subr.bf16.mxu0 0
        %1128 = vmatpush1.bf16.msra.mxu0 %v869
        %1129 = vmatprep.subr.bf16.mxu0 0
        %1130 = vmatpush1.bf16.msra.mxu0 %v870
        %1131 = vmatprep.mubr.bf16.mxu0 %v572
        %1132 = vmatmul.mubr.bf16.gmra.mrb[0].mxu0 %v571
        %v1133 = vpop.f32.mrb[0].mxu0
        %v1134 = vadd.f32 %v989, %v1133
        %v1135 = vpop.f32.mrb[0].mxu0
        %v1136 = vpop.f32.mrb[0].mxu0
        %v1137 = vadd.f32 %v992, %v1136
        %v1138 = vpop.f32.mrb[0].mxu0
        %1139 = vmatprep.mubr.bf16.mxu0 %v577
        %1140 = vmatmul.mubr.bf16.gmra.mrb[0].mxu0 %v576
        %v1141 = vpop.f32.mrb[0].mxu0
        %v1142 = vadd.f32 %v997, %v1141
        %v1143 = vpop.f32.mrb[0].mxu0
        %v1144 = vpop.f32.mrb[0].mxu0
        %v1145 = vadd.f32 %v1000, %v1144
        %v1146 = vpop.f32.mrb[0].mxu0
        %1147 = vmatprep.mubr.bf16.mxu0 %v582
        %1148 = vmatmul.mubr.bf16.gmra.mrb[0].mxu0 %v581
        %v1149 = vpop.f32.mrb[0].mxu0
        %v1150 = vadd.f32 %v1005, %v1149
        %v1151 = vpop.f32.mrb[0].mxu0
        %v1152 = vpop.f32.mrb[0].mxu0
        %v1153 = vadd.f32 %v1008, %v1152
        %v1154 = vpop.f32.mrb[0].mxu0
        %1155 = vmatprep.mubr.bf16.mxu0 %v587
        %1156 = vmatmul.mubr.bf16.gmra.mrb[0].mxu0 %v586
        %v1157 = vpop.f32.mrb[0].mxu0
        %v1158 = vadd.f32 %v1013, %v1157
        %v1159 = vpop.f32.mrb[0].mxu0
        %v1160 = vpop.f32.mrb[0].mxu0
        %v1161 = vadd.f32 %v1016, %v1160
        %v1162 = vpop.f32.mrb[0].mxu0
        %1163 = vmatprep.mubr.bf16.mxu0 %v592
        %1164 = vmatmul.mubr.bf16.gmra.mrb[0].mxu0 %v591
        %v1165 = vpop.f32.mrb[0].mxu0
        %v1166 = vadd.f32 %v1021, %v1165
        %v1167 = vpop.f32.mrb[0].mxu0
        %v1168 = vpop.f32.mrb[0].mxu0
        %v1169 = vadd.f32 %v1024, %v1168
        %v1170 = vpop.f32.mrb[0].mxu0
        %1171 = vmatprep.mubr.bf16.mxu0 %v597
        %1172 = vmatmul.mubr.bf16.gmra.mrb[0].mxu0 %v596
        %v1173 = vpop.f32.mrb[0].mxu0
        %v1174 = vadd.f32 %v1029, %v1173
        %v1175 = vpop.f32.mrb[0].mxu0
        %v1176 = vpop.f32.mrb[0].mxu0
        %v1177 = vadd.f32 %v1032, %v1176
        %v1178 = vpop.f32.mrb[0].mxu0
        %1179 = vmatprep.mubr.bf16.mxu0 %v602
        %1180 = vmatmul.mubr.bf16.gmra.mrb[0].mxu0 %v601
        %v1181 = vpop.f32.mrb[0].mxu0
        %v1182 = vadd.f32 %v1037, %v1181
        %v1183 = vpop.f32.mrb[0].mxu0
        %v1184 = vpop.f32.mrb[0].mxu0
        %v1185 = vadd.f32 %v1040, %v1184
        %v1186 = vpop.f32.mrb[0].mxu0
        %1187 = vmatprep.mubr.bf16.mxu0 %v607
        %1188 = vmatmul.mubr.bf16.gmra.mrb[0].mxu0 %v606
        %v1189 = vpop.f32.mrb[0].mxu0
        %v1190 = vadd.f32 %v1045, %v1189
        %v1191 = vpop.f32.mrb[0].mxu0
        %v1192 = vpop.f32.mrb[0].mxu0
        %v1193 = vadd.f32 %v1048, %v1192
        %v1194 = vpop.f32.mrb[0].mxu0
        %1195 = vmatprep.mubr.bf16.mxu0 %v612
        %1196 = vmatmul.mubr.bf16.gmra.mrb[0].mxu0 %v611
        %v1197 = vpop.f32.mrb[0].mxu0
        %v1198 = vadd.f32 %v1053, %v1197
        %v1199 = vpop.f32.mrb[0].mxu0
        %v1200 = vpop.f32.mrb[0].mxu0
        %v1201 = vadd.f32 %v1056, %v1200
        %v1202 = vpop.f32.mrb[0].mxu0
        %1203 = vmatprep.mubr.bf16.mxu0 %v617
        %1204 = vmatmul.mubr.bf16.gmra.mrb[0].mxu0 %v616
        %v1205 = vpop.f32.mrb[0].mxu0
        %v1206 = vadd.f32 %v1061, %v1205
        %v1207 = vpop.f32.mrb[0].mxu0
        %v1208 = vpop.f32.mrb[0].mxu0
        %v1209 = vadd.f32 %v1064, %v1208
        %v1210 = vpop.f32.mrb[0].mxu0
        %1211 = vmatprep.mubr.bf16.mxu0 %v622
        %1212 = vmatmul.mubr.bf16.gmra.mrb[0].mxu0 %v621
        %v1213 = vpop.f32.mrb[0].mxu0
        %v1214 = vadd.f32 %v1069, %v1213
        %v1215 = vpop.f32.mrb[0].mxu0
        %v1216 = vpop.f32.mrb[0].mxu0
        %v1217 = vadd.f32 %v1072, %v1216
        %v1218 = vpop.f32.mrb[0].mxu0
        %1219 = vmatprep.mubr.bf16.mxu0 %v627
        %1220 = vmatmul.mubr.bf16.gmra.mrb[0].mxu0 %v626
        %v1221 = vpop.f32.mrb[0].mxu0
        %v1222 = vadd.f32 %v1077, %v1221
        %v1223 = vpop.f32.mrb[0].mxu0
        %v1224 = vpop.f32.mrb[0].mxu0
        %v1225 = vadd.f32 %v1080, %v1224
        %v1226 = vpop.f32.mrb[0].mxu0
        %1227 = vmatprep.mubr.bf16.mxu0 %v632
        %1228 = vmatmul.mubr.bf16.gmra.mrb[0].mxu0 %v631
        %v1229 = vpop.f32.mrb[0].mxu0
        %v1230 = vadd.f32 %v1085, %v1229
        %v1231 = vpop.f32.mrb[0].mxu0
        %v1232 = vpop.f32.mrb[0].mxu0
        %v1233 = vadd.f32 %v1088, %v1232
        %v1234 = vpop.f32.mrb[0].mxu0
        %1235 = vmatprep.mubr.bf16.mxu0 %v637
        %1236 = vmatmul.mubr.bf16.gmra.mrb[0].mxu0 %v636
        %v1237 = vpop.f32.mrb[0].mxu0
        %v1238 = vadd.f32 %v1093, %v1237
        %v1239 = vpop.f32.mrb[0].mxu0
        %v1240 = vpop.f32.mrb[0].mxu0
        %v1241 = vadd.f32 %v1096, %v1240
        %v1242 = vpop.f32.mrb[0].mxu0
        %1243 = vdwg.mxu0
        %1244 = vmatprep.subr.bf16.mxu0 0
        %1245 = vmatpush1.bf16.msra.mxu0 %v871
        %1246 = vmatprep.subr.bf16.mxu0 0
        %1247 = vmatpush1.bf16.msra.mxu0 %v872
        %1248 = vmatprep.subr.bf16.mxu0 0
        %1249 = vmatpush1.bf16.msra.mxu0 %v873
        %1250 = vmatprep.subr.bf16.mxu0 0
        %1251 = vmatpush1.bf16.msra.mxu0 %v874
        %1252 = vmatprep.subr.bf16.mxu0 0
        %1253 = vmatpush1.bf16.msra.mxu0 0
        %1254 = vmatprep.subr.bf16.mxu0 0
        %1255 = vmatpush1.bf16.msra.mxu0 0
        %1256 = vmatprep.subr.bf16.mxu0 0
        %1257 = vmatpush1.bf16.msra.mxu0 0
        %1258 = vmatprep.subr.bf16.mxu0 0
        %1259 = vmatpush1.bf16.msra.mxu0 0
        %1260 = vmatprep.subr.bf16.mxu0 0
        %1261 = vmatpush1.bf16.msra.mxu0 0
        %1262 = vmatprep.subr.bf16.mxu0 0
        %1263 = vmatpush1.bf16.msra.mxu0 0
        %1264 = vmatprep.subr.bf16.mxu0 0
        %1265 = vmatpush1.bf16.msra.mxu0 0
        %1266 = vmatprep.subr.bf16.mxu0 0
        %1267 = vmatpush1.bf16.msra.mxu0 0
        %1268 = vmatprep.subr.bf16.mxu0 0
        %1269 = vmatpush1.bf16.msra.mxu0 0
        %1270 = vmatprep.subr.bf16.mxu0 0
        %1271 = vmatpush1.bf16.msra.mxu0 0
        %1272 = vmatprep.subr.bf16.mxu0 0
        %1273 = vmatpush1.bf16.msra.mxu0 0
        %1274 = vmatprep.subr.bf16.mxu0 0
        %1275 = vmatpush1.bf16.msra.mxu0 0
        %1276 = vmatprep.mubr.bf16.mxu0 0
        %1277 = vmatmul.mubr.bf16.gmra.mrb[0].mxu0 %v913
        %v1278 = vpop.f32.mrb[0].mxu0
        %v1279 = vadd.f32 %v1134, %v1278
        %v1280 = vpop.f32.mrb[0].mxu0
        %v1281 = vpop.f32.mrb[0].mxu0
        %v1282 = vadd.f32 %v1137, %v1281
        %v1283 = vpop.f32.mrb[0].mxu0
        %1284 = vmatprep.mubr.bf16.mxu0 0
        %1285 = vmatmul.mubr.bf16.gmra.mrb[0].mxu0 %v916
        %v1286 = vpop.f32.mrb[0].mxu0
        %v1287 = vadd.f32 %v1142, %v1286
        %v1288 = vpop.f32.mrb[0].mxu0
        %v1289 = vpop.f32.mrb[0].mxu0
        %v1290 = vadd.f32 %v1145, %v1289
        %v1291 = vpop.f32.mrb[0].mxu0
        %1292 = vmatprep.mubr.bf16.mxu0 0
        %1293 = vmatmul.mubr.bf16.gmra.mrb[0].mxu0 %v919
        %v1294 = vpop.f32.mrb[0].mxu0
        %v1295 = vadd.f32 %v1150, %v1294
        %v1296 = vpop.f32.mrb[0].mxu0
        %v1297 = vpop.f32.mrb[0].mxu0
        %v1298 = vadd.f32 %v1153, %v1297
        %v1299 = vpop.f32.mrb[0].mxu0
        %1300 = vmatprep.mubr.bf16.mxu0 0
        %1301 = vmatmul.mubr.bf16.gmra.mrb[0].mxu0 %v922
        %v1302 = vpop.f32.mrb[0].mxu0
        %v1303 = vadd.f32 %v1158, %v1302
        %v1304 = vpop.f32.mrb[0].mxu0
        %v1305 = vpop.f32.mrb[0].mxu0
        %v1306 = vadd.f32 %v1161, %v1305
        %v1307 = vpop.f32.mrb[0].mxu0
        %1308 = vmatprep.mubr.bf16.mxu0 0
        %1309 = vmatmul.mubr.bf16.gmra.mrb[0].mxu0 %v925
        %v1310 = vpop.f32.mrb[0].mxu0
        %v1311 = vadd.f32 %v1166, %v1310
        %v1312 = vpop.f32.mrb[0].mxu0
        %v1313 = vpop.f32.mrb[0].mxu0
        %v1314 = vadd.f32 %v1169, %v1313
        %v1315 = vpop.f32.mrb[0].mxu0
        %1316 = vmatprep.mubr.bf16.mxu0 0
        %1317 = vmatmul.mubr.bf16.gmra.mrb[0].mxu0 %v928
        %v1318 = vpop.f32.mrb[0].mxu0
        %v1319 = vadd.f32 %v1174, %v1318
        %v1320 = vpop.f32.mrb[0].mxu0
        %v1321 = vpop.f32.mrb[0].mxu0
        %v1322 = vadd.f32 %v1177, %v1321
        %v1323 = vpop.f32.mrb[0].mxu0
        %1324 = vmatprep.mubr.bf16.mxu0 0
        %1325 = vmatmul.mubr.bf16.gmra.mrb[0].mxu0 %v931
        %v1326 = vpop.f32.mrb[0].mxu0
        %v1327 = vadd.f32 %v1182, %v1326
        %v1328 = vpop.f32.mrb[0].mxu0
        %v1329 = vpop.f32.mrb[0].mxu0
        %v1330 = vadd.f32 %v1185, %v1329
        %v1331 = vpop.f32.mrb[0].mxu0
        %1332 = vmatprep.mubr.bf16.mxu0 0
        %1333 = vmatmul.mubr.bf16.gmra.mrb[0].mxu0 %v934
        %v1334 = vpop.f32.mrb[0].mxu0
        %v1335 = vadd.f32 %v1190, %v1334
        %v1336 = vpop.f32.mrb[0].mxu0
        %v1337 = vpop.f32.mrb[0].mxu0
        %v1338 = vadd.f32 %v1193, %v1337
        %v1339 = vpop.f32.mrb[0].mxu0
        %1340 = vmatprep.mubr.bf16.mxu0 0
        %1341 = vmatmul.mubr.bf16.gmra.mrb[0].mxu0 %v937
        %v1342 = vpop.f32.mrb[0].mxu0
        %v1343 = vadd.f32 %v1198, %v1342
        %v1344 = vpop.f32.mrb[0].mxu0
        %v1345 = vpop.f32.mrb[0].mxu0
        %v1346 = vadd.f32 %v1201, %v1345
        %v1347 = vpop.f32.mrb[0].mxu0
        %1348 = vmatprep.mubr.bf16.mxu0 0
        %1349 = vmatmul.mubr.bf16.gmra.mrb[0].mxu0 %v940
        %v1350 = vpop.f32.mrb[0].mxu0
        %v1351 = vadd.f32 %v1206, %v1350
        %v1352 = vpop.f32.mrb[0].mxu0
        %v1353 = vpop.f32.mrb[0].mxu0
        %v1354 = vadd.f32 %v1209, %v1353
        %v1355 = vpop.f32.mrb[0].mxu0
        %1356 = vmatprep.mubr.bf16.mxu0 0
        %1357 = vmatmul.mubr.bf16.gmra.mrb[0].mxu0 %v943
        %v1358 = vpop.f32.mrb[0].mxu0
        %v1359 = vadd.f32 %v1214, %v1358
        %v1360 = vpop.f32.mrb[0].mxu0
        %v1361 = vpop.f32.mrb[0].mxu0
        %v1362 = vadd.f32 %v1217, %v1361
        %v1363 = vpop.f32.mrb[0].mxu0
        %1364 = vmatprep.mubr.bf16.mxu0 0
        %1365 = vmatmul.mubr.bf16.gmra.mrb[0].mxu0 %v946
        %v1366 = vpop.f32.mrb[0].mxu0
        %v1367 = vadd.f32 %v1222, %v1366
        %v1368 = vpop.f32.mrb[0].mxu0
        %v1369 = vpop.f32.mrb[0].mxu0
        %v1370 = vadd.f32 %v1225, %v1369
        %v1371 = vpop.f32.mrb[0].mxu0
        %1372 = vmatprep.mubr.bf16.mxu0 0
        %1373 = vmatmul.mubr.bf16.gmra.mrb[0].mxu0 %v949
        %v1374 = vpop.f32.mrb[0].mxu0
        %v1375 = vadd.f32 %v1230, %v1374
        %v1376 = vpop.f32.mrb[0].mxu0
        %v1377 = vpop.f32.mrb[0].mxu0
        %v1378 = vadd.f32 %v1233, %v1377
        %v1379 = vpop.f32.mrb[0].mxu0
        %1380 = vmatprep.mubr.bf16.mxu0 0
        %1381 = vmatmul.mubr.bf16.gmra.mrb[0].mxu0 %v952
        %v1382 = vpop.f32.mrb[0].mxu0
        %v1383 = vadd.f32 %v1238, %v1382
        %v1384 = vpop.f32.mrb[0].mxu0
        %v1385 = vpop.f32.mrb[0].mxu0
        %v1386 = vadd.f32 %v1241, %v1385
        %v1387 = vpop.f32.mrb[0].mxu0
        %1388 = vdwg.mxu0
        %v1389 = vpack.c.bf16 %v1282, %v1279
        %v1390 = vpack.c.bf16 %v1290, %v1287
        %v1391 = vpack.c.bf16 %v1298, %v1295
        %v1392 = vpack.c.bf16 %v1306, %v1303
        %v1393 = vpack.c.bf16 %v1314, %v1311
        %v1394 = vpack.c.bf16 %v1322, %v1319
        %v1395 = vpack.c.bf16 %v1330, %v1327
        %v1396 = vpack.c.bf16 %v1338, %v1335
        %v1397 = vpack.c.bf16 %v1346, %v1343
        %v1398 = vpack.c.bf16 %v1354, %v1351
        %v1399 = vpack.c.bf16 %v1362, %v1359
        %v1400 = vpack.c.bf16 %v1370, %v1367
        %v1401 = vpack.c.bf16 %v1378, %v1375
        %v1402 = vpack.c.bf16 %v1386, %v1383
        %v1417 = vunpack.c.l.b16 %v1389
        %v1418 = vunpack.c.h.b16 %v1389
        %v1419 = vunpack.c.l.b16 %v1390
        %v1420 = vunpack.c.h.b16 %v1390
        %v1421 = vunpack.c.l.b16 %v1391
        %v1422 = vunpack.c.h.b16 %v1391
        %v1423 = vunpack.c.l.b16 %v1392
        %v1424 = vunpack.c.h.b16 %v1392
        %v1425 = vunpack.c.l.b16 %v1393
        %v1426 = vunpack.c.h.b16 %v1393
        %v1427 = vunpack.c.l.b16 %v1394
        %v1428 = vunpack.c.h.b16 %v1394
        %v1429 = vunpack.c.l.b16 %v1395
        %v1430 = vunpack.c.h.b16 %v1395
        %v1431 = vunpack.c.l.b16 %v1396
        %v1432 = vunpack.c.h.b16 %v1396
        %v1433 = vunpack.c.l.b16 %v1397
        %v1434 = vunpack.c.h.b16 %v1397
        %v1435 = vunpack.c.l.b16 %v1398
        %v1436 = vunpack.c.h.b16 %v1398
        %v1437 = vunpack.c.l.b16 %v1399
        %v1438 = vunpack.c.h.b16 %v1399
        %v1439 = vunpack.c.l.b16 %v1400
        %v1440 = vunpack.c.h.b16 %v1400
        %v1441 = vunpack.c.l.b16 %v1401
        %v1442 = vunpack.c.h.b16 %v1401
        %v1443 = vunpack.c.l.b16 %v1402
        %v1444 = vunpack.c.h.b16 %v1402
        %v1445 = vpack.c.b16 %v1417, %v1417
        %v1446 = vpack.c.b16 %v1418, %v1418
        %v1447 = vpack.c.b16 %v1419, %v1419
        %v1448 = vpack.c.b16 %v1420, %v1420
        %v1449 = vpack.c.b16 %v1421, %v1421
        %v1450 = vpack.c.b16 %v1422, %v1422
        %v1451 = vpack.c.b16 %v1423, %v1423
        %v1452 = vpack.c.b16 %v1424, %v1424
        %v1453 = vpack.c.b16 %v1425, %v1425
        %v1454 = vpack.c.b16 %v1426, %v1426
        %v1455 = vpack.c.b16 %v1427, %v1427
        %v1456 = vpack.c.b16 %v1428, %v1428
        %v1457 = vpack.c.b16 %v1429, %v1429
        %v1458 = vpack.c.b16 %v1430, %v1430
        %v1459 = vpack.c.b16 %v1431, %v1431
        %v1460 = vpack.c.b16 %v1432, %v1432
        %v1461 = vpack.c.b16 %v1433, %v1433
        %v1462 = vpack.c.b16 %v1434, %v1434
        %v1463 = vpack.c.b16 %v1435, %v1435
        %v1464 = vpack.c.b16 %v1436, %v1436
        %v1465 = vpack.c.b16 %v1437, %v1437
        %v1466 = vpack.c.b16 %v1438, %v1438
        %v1467 = vpack.c.b16 %v1439, %v1439
        %v1468 = vpack.c.b16 %v1440, %v1440
        %v1469 = vpack.c.b16 %v1441, %v1441
        %v1470 = vpack.c.b16 %v1442, %v1442
        %v1471 = vpack.c.b16 %v1443, %v1443
        %v1472 = vpack.c.b16 %v1444, %v1444
        %1501 = vst [vmem:[%s186] sm:$0xf] %v1445
        %1502 = vst [vmem:[%s186 + $0x4] sm:$0xf] %v1446
        %1503 = vst [vmem:[%s186 + $0x8] sm:$0xf] %v1447
        %1504 = vst [vmem:[%s186 + $0xc] sm:$0xf] %v1448
        %1505 = vst [vmem:[%s186 + $0x10] sm:$0xf] %v1449
        %1506 = vst [vmem:[%s186 + $0x14] sm:$0xf] %v1450
        %1507 = vst [vmem:[%s186 + $0x18] sm:$0xf] %v1451
        %1508 = vst [vmem:[%s186 + $0x1c] sm:$0xf] %v1452
        %1509 = vst [vmem:[%s186 + $0x20] sm:$0xf] %v1453
        %1510 = vst [vmem:[%s186 + $0x24] sm:$0xf] %v1454
        %1511 = vst [vmem:[%s186 + $0x28] sm:$0xf] %v1455
        %1512 = vst [vmem:[%s186 + $0x2c] sm:$0xf] %v1456
        %1513 = vst [vmem:[%s186 + $0x30] sm:$0xf] %v1457
        %1514 = vst [vmem:[%s186 + $0x34] sm:$0xf] %v1458
        %1515 = vst [vmem:[%s186 + $0x38] sm:$0xf] %v1459
        %1516 = vst [vmem:[%s186 + $0x3c] sm:$0xf] %v1460
        %1517 = vst [vmem:[%s186 + $0x40] sm:$0xf] %v1461
        %1518 = vst [vmem:[%s186 + $0x44] sm:$0xf] %v1462
        %1519 = vst [vmem:[%s186 + $0x48] sm:$0xf] %v1463
        %1520 = vst [vmem:[%s186 + $0x4c] sm:$0xf] %v1464
        %1521 = vst [vmem:[%s186 + $0x50] sm:$0xf] %v1465
        %1522 = vst [vmem:[%s186 + $0x54] sm:$0xf] %v1466
        %1523 = vst [vmem:[%s186 + $0x58] sm:$0xf] %v1467
        %1524 = vst [vmem:[%s186 + $0x5c] sm:$0xf] %v1468
        %1525 = vst [vmem:[%s186 + $0x60] sm:$0xf] %v1469
        %1526 = vst [vmem:[%s186 + $0x64] sm:$0xf] %v1470
        %1527 = vst [vmem:[%s186 + $0x68] sm:$0xf] %v1471
        %1528 = vst [vmem:[%s186 + $0x6c] sm:$0xf] %v1472
        %v1529 = vadd.f32 %v1279, %v1282
        %v1530 = vadd.f32 %v1529, %v1287
        %v1531 = vadd.f32 %v1530, %v1290
        %v1532 = vadd.f32 %v1531, %v1295
        %v1533 = vadd.f32 %v1532, %v1298
        %v1534 = vadd.f32 %v1533, %v1303
        %v1535 = vadd.f32 %v1534, %v1306
        %v1536 = vadd.f32 %v1535, %v1311
        %v1537 = vadd.f32 %v1536, %v1314
        %v1538 = vadd.f32 %v1537, %v1319
        %v1539 = vadd.f32 %v1538, %v1322
        %v1540 = vadd.f32 %v1539, %v1327
        %v1541 = vadd.f32 %v1540, %v1330
        %v1542 = vadd.f32 %v1541, %v1335
        %v1543 = vadd.f32 %v1542, %v1338
        %v1544 = vadd.f32 %v1543, %v1343
        %v1545 = vadd.f32 %v1544, %v1346
        %v1546 = vadd.f32 %v1545, %v1351
        %v1547 = vadd.f32 %v1546, %v1354
        %v1548 = vadd.f32 %v1547, %v1359
        %v1549 = vadd.f32 %v1548, %v1362
        %v1550 = vadd.f32 %v1549, %v1367
        %v1551 = vadd.f32 %v1550, %v1370
        %v1552 = vadd.f32 %v1551, %v1375
        %v1553 = vadd.f32 %v1552, %v1378
        %v1554 = vadd.f32 %v1553, %v1383
        %v1555 = vadd.f32 %v1554, %v1386
        %v1556 = vrot.slane %v1555, 4
        %v1557 = vadd.f32 %v1555, %v1556
        %v1558 = vrot.slane %v1557, 2
        %v1559 = vadd.f32 %v1557, %v1558
        %v1560 = vrot.slane %v1559, 1
        %v1561 = vadd.f32 %v1559, %v1560
        %v1562 = vmul.f32 %v1279, %v1279
        %v1563 = vmul.f32 %v1282, %v1282
        %v1564 = vmul.f32 %v1287, %v1287
        %v1565 = vmul.f32 %v1290, %v1290
        %v1566 = vmul.f32 %v1295, %v1295
        %v1567 = vmul.f32 %v1298, %v1298
        %v1568 = vmul.f32 %v1303, %v1303
        %v1569 = vmul.f32 %v1306, %v1306
        %v1570 = vmul.f32 %v1311, %v1311
        %v1571 = vmul.f32 %v1314, %v1314
        %v1572 = vmul.f32 %v1319, %v1319
        %v1573 = vmul.f32 %v1322, %v1322
        %v1574 = vmul.f32 %v1327, %v1327
        %v1575 = vmul.f32 %v1330, %v1330
        %v1576 = vmul.f32 %v1335, %v1335
        %v1577 = vmul.f32 %v1338, %v1338
        %v1578 = vmul.f32 %v1343, %v1343
        %v1579 = vmul.f32 %v1346, %v1346
        %v1580 = vmul.f32 %v1351, %v1351
        %v1581 = vmul.f32 %v1354, %v1354
        %v1582 = vmul.f32 %v1359, %v1359
        %v1583 = vmul.f32 %v1362, %v1362
        %v1584 = vmul.f32 %v1367, %v1367
        %v1585 = vmul.f32 %v1370, %v1370
        %v1586 = vmul.f32 %v1375, %v1375
        %v1587 = vmul.f32 %v1378, %v1378
        %v1588 = vmul.f32 %v1383, %v1383
        %v1589 = vmul.f32 %v1386, %v1386
        %v1590 = vadd.f32 %v1562, %v1563
        %v1591 = vadd.f32 %v1590, %v1564
        %v1592 = vadd.f32 %v1591, %v1565
        %v1593 = vadd.f32 %v1592, %v1566
        %v1594 = vadd.f32 %v1593, %v1567
        %v1595 = vadd.f32 %v1594, %v1568
        %v1596 = vadd.f32 %v1595, %v1569
        %v1597 = vadd.f32 %v1596, %v1570
        %v1598 = vadd.f32 %v1597, %v1571
        %v1599 = vadd.f32 %v1598, %v1572
        %v1600 = vadd.f32 %v1599, %v1573
        %v1601 = vadd.f32 %v1600, %v1574
        %v1602 = vadd.f32 %v1601, %v1575
        %v1603 = vadd.f32 %v1602, %v1576
        %v1604 = vadd.f32 %v1603, %v1577
        %v1605 = vadd.f32 %v1604, %v1578
        %v1606 = vadd.f32 %v1605, %v1579
        %v1607 = vadd.f32 %v1606, %v1580
        %v1608 = vadd.f32 %v1607, %v1581
        %v1609 = vadd.f32 %v1608, %v1582
        %v1610 = vadd.f32 %v1609, %v1583
        %v1611 = vadd.f32 %v1610, %v1584
        %v1612 = vadd.f32 %v1611, %v1585
        %v1613 = vadd.f32 %v1612, %v1586
        %v1614 = vadd.f32 %v1613, %v1587
        %v1615 = vadd.f32 %v1614, %v1588
        %v1616 = vadd.f32 %v1615, %v1589
        %v1617 = vrot.slane %v1616, 4
        %v1618 = vadd.f32 %v1616, %v1617
        %v1619 = vrot.slane %v1618, 2
        %v1620 = vadd.f32 %v1618, %v1619
        %v1621 = vrot.slane %v1620, 1
        %v1622 = vadd.f32 %v1620, %v1621
        %v1623 = vlaneseq
        %v1624 = vshrl.u32 %v1623, 7
        %vm1625 = vcmp.eq.s32.totalorder %v1624, 0
        %v1626 = vsel %vm1625, %v1561, 0.0
        %vm1627 = vcmp.eq.s32.totalorder %v1624, 1
        %v1628 = vsel %vm1627, %v1622, 0.0
        %v1629 = vadd.f32 %v1626, %v1628
        %1630 = vst [vmem:[%s174] sm:$0xff] %v1629
        %s1631 = smul.u32 28, %s18
        %p1632 = scmp.lt.s32.totalorder %s1631, 195
        %s1633 = scalar_select %p1632, %s1631, 195
        %s1634 = smul.addr %s1633, 4
        %s1635 = scalar_lea.vmem %s2, %s1634
        %s1636 = sand.u32 %s99, 1
        %s1637 = scalar_lea.sflag [#allocation3], %s1636
        %s1638 = sand.u32 %s99, 1
        %s1639 = smul.addr %s1638, 8
        %s1640 = scalar_lea.vmem [#allocation2], %s1639
        // Predicated region
        $region29: #{generator_forward.12} parent=27 // pred_check
          %p1641 = pneg %p83
        $region30: #{generator_forward.12} parent=27 // pred_check_branch
          %1643 = sbr.rel (%p1641) target = $region32
        $region31: #{generator_forward.12} parent=27 // pred_region
          %s1644 = smul.u32 28, %s18
        $region32: #{generator_forward.12} parent=27 // pred_fallthru
          _
        // Predicated region
        $region33: #{generator_forward.12} parent=27 // pred_check
          %p1645 = pneg %p109
        $region34: #{generator_forward.12} parent=27 // pred_check_branch
          %1647 = sbr.rel (%p1645) target = $region36
        $region35: #{generator_forward.12} parent=27 // pred_region
          %s1649 = ssub.s32 128, 128
          %1650 = vsyncadd %s1637, %s1649
          %s1651 = smul.addr %s18, 128
          %s1652 = scalar_lea.hbm %s3, %s1651
          %s1654 = sshll.u32 %s1640, 4
          %s1655 = int_to_ptr.vmem [resolvable:$true] %s1654
          %1657 = dma.vmem_to_hbm [thread:$0]  %s1655, 128, %s1652, %s1637
        $region36: #{generator_forward.12} parent=27 // pred_fallthru
          _
      $region28: #{generator_forward.12} parent=5 // pred_fallthru
        _
      %p1658 = scmp.le.s32.totalorder 2, %s13
      // Predicated region
      $region37: #{generator_forward.12} parent=5 // pred_check
        %p1659 = pneg %p1658
      $region38: #{generator_forward.12} parent=5 // pred_check_branch
        %1661 = sbr.rel (%p1659) target = $region40
      $region39: #{generator_forward.12} parent=5 // pred_region
        %s1662 = ssub.s32 %s13, 2
        // Predicated region
        $region41: #{generator_forward.12} parent=39 // pred_check
          %p1663 = pneg %p89
        $region42: #{generator_forward.12} parent=39 // pred_check_branch
          %1665 = sbr.rel (%p1663) target = $region44
        $region43: #{generator_forward.12} parent=39 // pred_region
          %s1666 = smul.u32 28, %s19
          %p1667 = scmp.lt.s32.totalorder %s1666, 195
          %s1668 = scalar_select %p1667, %s1666, 195
          %s1669 = smul.addr %s1668, 4
          %s1670 = scalar_lea.vmem %s2, %s1669
        $region44: #{generator_forward.12} parent=39 // pred_fallthru
          _
        // Predicated region
        $region45: #{generator_forward.12} parent=39 // pred_check
          %p1671 = pneg %p115
        $region46: #{generator_forward.12} parent=39 // pred_check_branch
          %1673 = sbr.rel (%p1671) target = $region48
        $region47: #{generator_forward.12} parent=39 // pred_region
          %s1674 = sand.u32 %s100, 1
          %s1675 = scalar_lea.sflag [#allocation3], %s1674
          %s1676 = sand.u32 %s100, 1
          %s1677 = smul.addr %s1676, 8
          %s1678 = scalar_lea.vmem [#allocation2], %s1677
          %1679 = dma.done %s1675, 128
        $region48: #{generator_forward.12} parent=39 // pred_fallthru
          _
      $region40: #{generator_forward.12} parent=5 // pred_fallthru
        _
    $region6: #{generator_forward.12} parent=1 // loop_footer
      %s17 = sadd.s32 1, %s13
    $region7: #{generator_forward.12} parent=1 // loop_footer_branch
      %12 = sbr.rel target = $region3
    $region8: #{generator_forward.12} parent=1 // loop_exit
      _
    %1680 = vsyncpa [#allocation3], 1
    %s1681 = scalar_lea.sflag [#allocation3], 1
    %1682 = vsyncpa %s1681, 1

// kernel: generator_forward.13
$region0: #{generator_forward.13}
  #allocation0 [shape = 'u32[]', space=smem, size = 0x4, offset = 0x4, fixed_abs, tag = 'smem constant byte address 0x4 - core index']
  #allocation1 [shape = 'u32[144,128]{1,0:T(1,128)}', space=vmem, size = 0x12000, scoped, tag = 'internal scratch']
  %s0 = inlined_call_operand.vmem [shape: bf16[1568,128], index: 0, kind: input, shape index: {}]
  %s1 = inlined_call_operand.vmem [shape: f32[1,128], index: 1, kind: input, shape index: {}]
  %s2 = inlined_call_operand.vmem [shape: f32[1,128], index: 2, kind: input, shape index: {}]
  %s3 = inlined_call_operand.vmem [shape: bf16[1568,128], index: 3, kind: output, shape index: {}]
  %s4 = sld [smem:[#allocation0]]
  $region45: #{generator_forward.13} parent=0
    _
  %s6 = ssub.s32 1, %s4
  %s7 = scalar_select 0, %s6, %s4
  loop: start=0, step=1, limit=9
  $region2: #{generator_forward.13} parent=0 // loop_pre_header
    _
  $region3: #{generator_forward.13} parent=0 // loop_header
    %s9 = sphi 0, %s13
    %p10 = scmp.ge.s32.totalorder %s9, 9
    %s19 = sphi 0, %s21
    %s22 = sphi 0, %s19
    %s23 = sphi 0, %s22
    %s39 = sphi 0, %s23
    %s43 = sphi 0, %s43
    %s45 = sphi 0, %s43
    %s46 = sphi 0, %s45
    %s60 = sphi 0, %s46
    %s64 = sphi 0, %s64
    %s66 = sphi 0, %s64
    %s67 = sphi 0, %s66
    %s81 = sphi 0, %s67
    %s87 = sphi 0, %s89
    %s90 = sphi 0, %s87
    %s91 = sphi 0, %s90
    %s107 = sphi 0, %s91
  $region4: #{generator_forward.13} parent=0 // loop_header_branch
    %12 = sbr.rel (%p10) target = $region8
  $region5: #{generator_forward.13} parent=0 // loop_body
    %s14 = ssub.s32 %s9, 1
    %s15 = ssub.s32 %s9, 2
    %s16 = sadd.s32 %s9, 1
    %s17 = ssub.s32 %s9, %s16
    %p18 = scmp.eq.s32.totalorder %s17, 0
    %s20 = sadd.s32 %s19, 1
    %s21 = scalar_select %p18, %s19, %s20
    %p24 = pneg %p18
    %p25 = scmp.eq.s32.totalorder %s9, 6
    %p26 = por %p24, %p25
    %p27 = scmp.ne.s32.totalorder %s19, %s22
    %p28 = scmp.eq.s32.totalorder %s9, 0
    %p29 = por %p27, %p28
    %p30 = scmp.ne.s32.totalorder %s19, %s22
    %p31 = scmp.eq.s32.totalorder %s14, 6
    %p32 = por %p30, %p31
    %p33 = scmp.ne.s32.totalorder %s22, %s23
    %p34 = scmp.eq.s32.totalorder %s14, 0
    %p35 = por %p33, %p34
    %p36 = scmp.ne.s32.totalorder %s22, %s23
    %p37 = scmp.eq.s32.totalorder %s15, 6
    %p38 = por %p36, %p37
    %p40 = scmp.ne.s32.totalorder %s23, %s39
    %p41 = scmp.eq.s32.totalorder %s15, 0
    %p42 = por %p40, %p41
    %s44 = sadd.s32 %s43, 1
    %p47 = scmp.eq.s32.totalorder %s9, 6
    %p48 = scmp.ne.s32.totalorder %s43, %s45
    %p49 = scmp.eq.s32.totalorder %s9, 0
    %p50 = por %p48, %p49
    %p51 = scmp.ne.s32.totalorder %s43, %s45
    %p52 = scmp.eq.s32.totalorder %s14, 6
    %p53 = por %p51, %p52
    %p54 = scmp.ne.s32.totalorder %s45, %s46
    %p55 = scmp.eq.s32.totalorder %s14, 0
    %p56 = por %p54, %p55
    %p57 = scmp.ne.s32.totalorder %s45, %s46
    %p58 = scmp.eq.s32.totalorder %s15, 6
    %p59 = por %p57, %p58
    %p61 = scmp.ne.s32.totalorder %s46, %s60
    %p62 = scmp.eq.s32.totalorder %s15, 0
    %p63 = por %p61, %p62
    %s65 = sadd.s32 %s64, 1
    %p68 = scmp.eq.s32.totalorder %s9, 6
    %p69 = scmp.ne.s32.totalorder %s64, %s66
    %p70 = scmp.eq.s32.totalorder %s9, 0
    %p71 = por %p69, %p70
    %p72 = scmp.ne.s32.totalorder %s64, %s66
    %p73 = scmp.eq.s32.totalorder %s14, 6
    %p74 = por %p72, %p73
    %p75 = scmp.ne.s32.totalorder %s66, %s67
    %p76 = scmp.eq.s32.totalorder %s14, 0
    %p77 = por %p75, %p76
    %p78 = scmp.ne.s32.totalorder %s66, %s67
    %p79 = scmp.eq.s32.totalorder %s15, 6
    %p80 = por %p78, %p79
    %p82 = scmp.ne.s32.totalorder %s67, %s81
    %p83 = scmp.eq.s32.totalorder %s15, 0
    %p84 = por %p82, %p83
    %s85 = ssub.s32 %s9, %s16
    %p86 = scmp.eq.s32.totalorder %s85, 0
    %s88 = sadd.s32 %s87, 1
    %s89 = scalar_select %p86, %s87, %s88
    %p92 = pneg %p86
    %p93 = scmp.eq.s32.totalorder %s9, 6
    %p94 = por %p92, %p93
    %p95 = scmp.ne.s32.totalorder %s87, %s90
    %p96 = scmp.eq.s32.totalorder %s9, 0
    %p97 = por %p95, %p96
    %p98 = scmp.ne.s32.totalorder %s87, %s90
    %p99 = scmp.eq.s32.totalorder %s14, 6
    %p100 = por %p98, %p99
    %p101 = scmp.ne.s32.totalorder %s90, %s91
    %p102 = scmp.eq.s32.totalorder %s14, 0
    %p103 = por %p101, %p102
    %p104 = scmp.ne.s32.totalorder %s90, %s91
    %p105 = scmp.eq.s32.totalorder %s15, 6
    %p106 = por %p104, %p105
    %p108 = scmp.ne.s32.totalorder %s91, %s107
    %p109 = scmp.eq.s32.totalorder %s15, 0
    %p110 = por %p108, %p109
    %p111 = scmp.le.s32.totalorder 1, %s9
    %p112 = scmp.lt.s32.totalorder %s9, 8
    %p113 = pnand %p111, %p112
    %p114 = pneg %p113
    // Predicated region
    $region9: #{generator_forward.13} parent=5 // pred_check
      _
    $region10: #{generator_forward.13} parent=5 // pred_check_branch
      %116 = sbr.rel (%p113) target = $region12
    $region11: #{generator_forward.13} parent=5 // pred_region
      %s117 = ssub.s32 %s9, 1
      // Predicated region
      $region13: #{generator_forward.13} parent=11 // pred_check
        %p118 = pneg %p56
      $region14: #{generator_forward.13} parent=11 // pred_check_branch
        %120 = sbr.rel (%p118) target = $region16
      $region15: #{generator_forward.13} parent=11 // pred_region
        _
      $region16: #{generator_forward.13} parent=11 // pred_fallthru
        _
      // Predicated region
      $region17: #{generator_forward.13} parent=11 // pred_check
        %p121 = pneg %p77
      $region18: #{generator_forward.13} parent=11 // pred_check_branch
        %123 = sbr.rel (%p121) target = $region20
      $region19: #{generator_forward.13} parent=11 // pred_region
        _
      $region20: #{generator_forward.13} parent=11 // pred_fallthru
        _
    $region12: #{generator_forward.13} parent=5 // pred_fallthru
      _
    %p124 = scmp.lt.s32.totalorder %s9, 7
    // Predicated region
    $region21: #{generator_forward.13} parent=5 // pred_check
      %p125 = pneg %p124
    $region22: #{generator_forward.13} parent=5 // pred_check_branch
      %127 = sbr.rel (%p125) target = $region24
    $region23: #{generator_forward.13} parent=5 // pred_region
      // Predicated region
      $region25: #{generator_forward.13} parent=23 // pred_check
        %p128 = pneg %p29
      $region26: #{generator_forward.13} parent=23 // pred_check_branch
        %130 = sbr.rel (%p128) target = $region28
      $region27: #{generator_forward.13} parent=23 // pred_region
        %s131 = smul.u32 28, %s9
        %p132 = scmp.lt.s32.totalorder %s131, 195
        %s133 = scalar_select %p132, %s131, 195
        %s134 = smul.addr %s133, 4
        %s135 = scalar_lea.vmem %s0, %s134
        %s136 = smul.u32 28, %s9
      $region28: #{generator_forward.13} parent=23 // pred_fallthru
        _
    $region24: #{generator_forward.13} parent=5 // pred_fallthru
      _
    %p137 = scmp.le.s32.totalorder 1, %s9
    %p138 = scmp.lt.s32.totalorder %s9, 8
    %p139 = pnand %p137, %p138
    %p140 = pneg %p139
    // Predicated region
    $region29: #{generator_forward.13} parent=5 // pred_check
      _
    $region30: #{generator_forward.13} parent=5 // pred_check_branch
      %142 = sbr.rel (%p139) target = $region32
    $region31: #{generator_forward.13} parent=5 // pred_region
      %s143 = ssub.s32 %s9, 1
      %s144 = smul.u32 28, %s14
      %p145 = scmp.lt.s32.totalorder %s144, 195
      %s146 = scalar_select %p145, %s144, 195
      %s147 = smul.addr %s146, 4
      %s148 = scalar_lea.vmem %s0, %s147
      %p149 = pneg %p35
      %p150 = pneg %p32
      %p151 = pneg %p56
      %p152 = pneg %p53
      %p153 = pneg %p77
      %p154 = pneg %p74
      %p155 = pneg %p103
      %p156 = pneg %p100
      %s157 = smul.u32 28, %s14
      %p158 = scmp.lt.s32.totalorder %s157, 195
      %s159 = scalar_select %p158, %s157, 195
      %s160 = smul.addr %s159, 4
      %s161 = scalar_lea.vmem %s3, %s160
      %s162 = smul.u32 28, %s14
      %p163 = scmp.lt.s32.totalorder %s162, 195
      %s164 = scalar_select %p163, %s162, 195
      %s165 = smul.addr %s164, 4
      %s166 = scalar_lea.vmem %s0, %s165
      %s167 = smul.u32 28, %s14
      %s168 = smul.u32 28, %s14
      %p169 = scmp.lt.s32.totalorder %s168, 195
      %s170 = scalar_select %p169, %s168, 195
      %s171 = smul.addr %s170, 4
      %s172 = scalar_lea.vmem %s3, %s171
      %s173 = smul.u32 28, %s14
      %v174 = vld [vmem:[%s166] sm:$0xf]
      %v175 = vld [vmem:[%s166 + $0x4] sm:$0xf]
      %v176 = vld [vmem:[%s166 + $0x8] sm:$0xf]
      %v177 = vld [vmem:[%s166 + $0xc] sm:$0xf]
      %v178 = vld [vmem:[%s166 + $0x10] sm:$0xf]
      %v179 = vld [vmem:[%s166 + $0x14] sm:$0xf]
      %v180 = vld [vmem:[%s166 + $0x18] sm:$0xf]
      %v181 = vld [vmem:[%s166 + $0x1c] sm:$0xf]
      %v182 = vld [vmem:[%s166 + $0x20] sm:$0xf]
      %v183 = vld [vmem:[%s166 + $0x24] sm:$0xf]
      %v184 = vld [vmem:[%s166 + $0x28] sm:$0xf]
      %v185 = vld [vmem:[%s166 + $0x2c] sm:$0xf]
      %v186 = vld [vmem:[%s166 + $0x30] sm:$0xf]
      %v187 = vld [vmem:[%s166 + $0x34] sm:$0xf]
      %v188 = vld [vmem:[%s166 + $0x38] sm:$0xf]
      %v189 = vld [vmem:[%s166 + $0x3c] sm:$0xf]
      %v190 = vld [vmem:[%s166 + $0x40] sm:$0xf]
      %v191 = vld [vmem:[%s166 + $0x44] sm:$0xf]
      %v192 = vld [vmem:[%s166 + $0x48] sm:$0xf]
      %v193 = vld [vmem:[%s166 + $0x4c] sm:$0xf]
      %v194 = vld [vmem:[%s166 + $0x50] sm:$0xf]
      %v195 = vld [vmem:[%s166 + $0x54] sm:$0xf]
      %v196 = vld [vmem:[%s166 + $0x58] sm:$0xf]
      %v197 = vld [vmem:[%s166 + $0x5c] sm:$0xf]
      %v198 = vld [vmem:[%s166 + $0x60] sm:$0xf]
      %v199 = vld [vmem:[%s166 + $0x64] sm:$0xf]
      %v200 = vld [vmem:[%s166 + $0x68] sm:$0xf]
      %v201 = vld [vmem:[%s166 + $0x6c] sm:$0xf]
      %v202 = vunpack.c.l.bf16 %v174
      %v203 = vunpack.c.l.bf16 %v175
      %v204 = vunpack.c.l.bf16 %v176
      %v205 = vunpack.c.l.bf16 %v177
      %v206 = vunpack.c.l.bf16 %v178
      %v207 = vunpack.c.l.bf16 %v179
      %v208 = vunpack.c.l.bf16 %v180
      %v209 = vunpack.c.l.bf16 %v181
      %v210 = vunpack.c.l.bf16 %v182
      %v211 = vunpack.c.l.bf16 %v183
      %v212 = vunpack.c.l.bf16 %v184
      %v213 = vunpack.c.l.bf16 %v185
      %v214 = vunpack.c.l.bf16 %v186
      %v215 = vunpack.c.l.bf16 %v187
      %v216 = vunpack.c.l.bf16 %v188
      %v217 = vunpack.c.l.bf16 %v189
      %v218 = vunpack.c.l.bf16 %v190
      %v219 = vunpack.c.l.bf16 %v191
      %v220 = vunpack.c.l.bf16 %v192
      %v221 = vunpack.c.l.bf16 %v193
      %v222 = vunpack.c.l.bf16 %v194
      %v223 = vunpack.c.l.bf16 %v195
      %v224 = vunpack.c.l.bf16 %v196
      %v225 = vunpack.c.l.bf16 %v197
      %v226 = vunpack.c.l.bf16 %v198
      %v227 = vunpack.c.l.bf16 %v199
      %v228 = vunpack.c.l.bf16 %v200
      %v229 = vunpack.c.l.bf16 %v201
      %v230 = vld [vmem:[%s1] sm:$0x1]
      %v232 = vlaneseq
      %v233 = vshrl.u32 %v232, 7
      %v234 = vsub.s32 0, %v233
      %v235 = vrot.slane %v230, %v234
      %v237 = vmul.f32 %v202, %v235
      %v238 = vmul.f32 %v203, %v235
      %v239 = vmul.f32 %v204, %v235
      %v240 = vmul.f32 %v205, %v235
      %v241 = vmul.f32 %v206, %v235
      %v242 = vmul.f32 %v207, %v235
      %v243 = vmul.f32 %v208, %v235
      %v244 = vmul.f32 %v209, %v235
      %v245 = vmul.f32 %v210, %v235
      %v246 = vmul.f32 %v211, %v235
      %v247 = vmul.f32 %v212, %v235
      %v248 = vmul.f32 %v213, %v235
      %v249 = vmul.f32 %v214, %v235
      %v250 = vmul.f32 %v215, %v235
      %v251 = vmul.f32 %v216, %v235
      %v252 = vmul.f32 %v217, %v235
      %v253 = vmul.f32 %v218, %v235
      %v254 = vmul.f32 %v219, %v235
      %v255 = vmul.f32 %v220, %v235
      %v256 = vmul.f32 %v221, %v235
      %v257 = vmul.f32 %v222, %v235
      %v258 = vmul.f32 %v223, %v235
      %v259 = vmul.f32 %v224, %v235
      %v260 = vmul.f32 %v225, %v235
      %v261 = vmul.f32 %v226, %v235
      %v262 = vmul.f32 %v227, %v235
      %v263 = vmul.f32 %v228, %v235
      %v264 = vmul.f32 %v229, %v235
      %v265 = vld [vmem:[%s2] sm:$0x1]
      %v267 = vlaneseq
      %v268 = vshrl.u32 %v267, 7
      %v269 = vsub.s32 0, %v268
      %v270 = vrot.slane %v265, %v269
      %v272 = vadd.f32 %v237, %v270
      %v273 = vadd.f32 %v238, %v270
      %v274 = vadd.f32 %v239, %v270
      %v275 = vadd.f32 %v240, %v270
      %v276 = vadd.f32 %v241, %v270
      %v277 = vadd.f32 %v242, %v270
      %v278 = vadd.f32 %v243, %v270
      %v279 = vadd.f32 %v244, %v270
      %v280 = vadd.f32 %v245, %v270
      %v281 = vadd.f32 %v246, %v270
      %v282 = vadd.f32 %v247, %v270
      %v283 = vadd.f32 %v248, %v270
      %v284 = vadd.f32 %v249, %v270
      %v285 = vadd.f32 %v250, %v270
      %v286 = vadd.f32 %v251, %v270
      %v287 = vadd.f32 %v252, %v270
      %v288 = vadd.f32 %v253, %v270
      %v289 = vadd.f32 %v254, %v270
      %v290 = vadd.f32 %v255, %v270
      %v291 = vadd.f32 %v256, %v270
      %v292 = vadd.f32 %v257, %v270
      %v293 = vadd.f32 %v258, %v270
      %v294 = vadd.f32 %v259, %v270
      %v295 = vadd.f32 %v260, %v270
      %v296 = vadd.f32 %v261, %v270
      %v297 = vadd.f32 %v262, %v270
      %v298 = vadd.f32 %v263, %v270
      %v299 = vadd.f32 %v264, %v270
      %v300 = vtanh.pop %v272
      %v301 = vtanh.pop %v273
      %v302 = vtanh.pop %v274
      %v303 = vtanh.pop %v275
      %v304 = vtanh.pop %v276
      %v305 = vtanh.pop %v277
      %v306 = vtanh.pop %v278
      %v307 = vtanh.pop %v279
      %v308 = vtanh.pop %v280
      %v309 = vtanh.pop %v281
      %v310 = vtanh.pop %v282
      %v311 = vtanh.pop %v283
      %v312 = vtanh.pop %v284
      %v313 = vtanh.pop %v285
      %v314 = vtanh.pop %v286
      %v315 = vtanh.pop %v287
      %v316 = vtanh.pop %v288
      %v317 = vtanh.pop %v289
      %v318 = vtanh.pop %v290
      %v319 = vtanh.pop %v291
      %v320 = vtanh.pop %v292
      %v321 = vtanh.pop %v293
      %v322 = vtanh.pop %v294
      %v323 = vtanh.pop %v295
      %v324 = vtanh.pop %v296
      %v325 = vtanh.pop %v297
      %v326 = vtanh.pop %v298
      %v327 = vtanh.pop %v299
      %v328 = vpack.c.bf16 %v301, %v300
      %v329 = vpack.c.bf16 %v303, %v302
      %v330 = vpack.c.bf16 %v305, %v304
      %v331 = vpack.c.bf16 %v307, %v306
      %v332 = vpack.c.bf16 %v309, %v308
      %v333 = vpack.c.bf16 %v311, %v310
      %v334 = vpack.c.bf16 %v313, %v312
      %v335 = vpack.c.bf16 %v315, %v314
      %v336 = vpack.c.bf16 %v317, %v316
      %v337 = vpack.c.bf16 %v319, %v318
      %v338 = vpack.c.bf16 %v321, %v320
      %v339 = vpack.c.bf16 %v323, %v322
      %v340 = vpack.c.bf16 %v325, %v324
      %v341 = vpack.c.bf16 %v327, %v326
      %v356 = vunpack.c.l.b16 %v328
      %v357 = vunpack.c.h.b16 %v328
      %v358 = vunpack.c.l.b16 %v329
      %v359 = vunpack.c.h.b16 %v329
      %v360 = vunpack.c.l.b16 %v330
      %v361 = vunpack.c.h.b16 %v330
      %v362 = vunpack.c.l.b16 %v331
      %v363 = vunpack.c.h.b16 %v331
      %v364 = vunpack.c.l.b16 %v332
      %v365 = vunpack.c.h.b16 %v332
      %v366 = vunpack.c.l.b16 %v333
      %v367 = vunpack.c.h.b16 %v333
      %v368 = vunpack.c.l.b16 %v334
      %v369 = vunpack.c.h.b16 %v334
      %v370 = vunpack.c.l.b16 %v335
      %v371 = vunpack.c.h.b16 %v335
      %v372 = vunpack.c.l.b16 %v336
      %v373 = vunpack.c.h.b16 %v336
      %v374 = vunpack.c.l.b16 %v337
      %v375 = vunpack.c.h.b16 %v337
      %v376 = vunpack.c.l.b16 %v338
      %v377 = vunpack.c.h.b16 %v338
      %v378 = vunpack.c.l.b16 %v339
      %v379 = vunpack.c.h.b16 %v339
      %v380 = vunpack.c.l.b16 %v340
      %v381 = vunpack.c.h.b16 %v340
      %v382 = vunpack.c.l.b16 %v341
      %v383 = vunpack.c.h.b16 %v341
      %v384 = vpack.c.b16 %v356, %v356
      %v385 = vpack.c.b16 %v357, %v357
      %v386 = vpack.c.b16 %v358, %v358
      %v387 = vpack.c.b16 %v359, %v359
      %v388 = vpack.c.b16 %v360, %v360
      %v389 = vpack.c.b16 %v361, %v361
      %v390 = vpack.c.b16 %v362, %v362
      %v391 = vpack.c.b16 %v363, %v363
      %v392 = vpack.c.b16 %v364, %v364
      %v393 = vpack.c.b16 %v365, %v365
      %v394 = vpack.c.b16 %v366, %v366
      %v395 = vpack.c.b16 %v367, %v367
      %v396 = vpack.c.b16 %v368, %v368
      %v397 = vpack.c.b16 %v369, %v369
      %v398 = vpack.c.b16 %v370, %v370
      %v399 = vpack.c.b16 %v371, %v371
      %v400 = vpack.c.b16 %v372, %v372
      %v401 = vpack.c.b16 %v373, %v373
      %v402 = vpack.c.b16 %v374, %v374
      %v403 = vpack.c.b16 %v375, %v375
      %v404 = vpack.c.b16 %v376, %v376
      %v405 = vpack.c.b16 %v377, %v377
      %v406 = vpack.c.b16 %v378, %v378
      %v407 = vpack.c.b16 %v379, %v379
      %v408 = vpack.c.b16 %v380, %v380
      %v409 = vpack.c.b16 %v381, %v381
      %v410 = vpack.c.b16 %v382, %v382
      %v411 = vpack.c.b16 %v383, %v383
      %440 = vst [vmem:[%s172] sm:$0xf] %v384
      %441 = vst [vmem:[%s172 + $0x4] sm:$0xf] %v385
      %442 = vst [vmem:[%s172 + $0x8] sm:$0xf] %v386
      %443 = vst [vmem:[%s172 + $0xc] sm:$0xf] %v387
      %444 = vst [vmem:[%s172 + $0x10] sm:$0xf] %v388
      %445 = vst [vmem:[%s172 + $0x14] sm:$0xf] %v389
      %446 = vst [vmem:[%s172 + $0x18] sm:$0xf] %v390
      %447 = vst [vmem:[%s172 + $0x1c] sm:$0xf] %v391
      %448 = vst [vmem:[%s172 + $0x20] sm:$0xf] %v392
      %449 = vst [vmem:[%s172 + $0x24] sm:$0xf] %v393
      %450 = vst [vmem:[%s172 + $0x28] sm:$0xf] %v394
      %451 = vst [vmem:[%s172 + $0x2c] sm:$0xf] %v395
      %452 = vst [vmem:[%s172 + $0x30] sm:$0xf] %v396
      %453 = vst [vmem:[%s172 + $0x34] sm:$0xf] %v397
      %454 = vst [vmem:[%s172 + $0x38] sm:$0xf] %v398
      %455 = vst [vmem:[%s172 + $0x3c] sm:$0xf] %v399
      %456 = vst [vmem:[%s172 + $0x40] sm:$0xf] %v400
      %457 = vst [vmem:[%s172 + $0x44] sm:$0xf] %v401
      %458 = vst [vmem:[%s172 + $0x48] sm:$0xf] %v402
      %459 = vst [vmem:[%s172 + $0x4c] sm:$0xf] %v403
      %460 = vst [vmem:[%s172 + $0x50] sm:$0xf] %v404
      %461 = vst [vmem:[%s172 + $0x54] sm:$0xf] %v405
      %462 = vst [vmem:[%s172 + $0x58] sm:$0xf] %v406
      %463 = vst [vmem:[%s172 + $0x5c] sm:$0xf] %v407
      %464 = vst [vmem:[%s172 + $0x60] sm:$0xf] %v408
      %465 = vst [vmem:[%s172 + $0x64] sm:$0xf] %v409
      %466 = vst [vmem:[%s172 + $0x68] sm:$0xf] %v410
      %467 = vst [vmem:[%s172 + $0x6c] sm:$0xf] %v411
      %s468 = smul.u32 28, %s14
      %p469 = scmp.lt.s32.totalorder %s468, 195
      %s470 = scalar_select %p469, %s468, 195
      %s471 = smul.addr %s470, 4
      %s472 = scalar_lea.vmem %s3, %s471
      // Predicated region
      $region33: #{generator_forward.13} parent=31 // pred_check
        %p473 = pneg %p100
      $region34: #{generator_forward.13} parent=31 // pred_check_branch
        %475 = sbr.rel (%p473) target = $region36
      $region35: #{generator_forward.13} parent=31 // pred_region
        %s476 = smul.u32 28, %s14
      $region36: #{generator_forward.13} parent=31 // pred_fallthru
        _
    $region32: #{generator_forward.13} parent=5 // pred_fallthru
      _
    %p477 = scmp.le.s32.totalorder 2, %s9
    // Predicated region
    $region37: #{generator_forward.13} parent=5 // pred_check
      %p478 = pneg %p477
    $region38: #{generator_forward.13} parent=5 // pred_check_branch
      %480 = sbr.rel (%p478) target = $region40
    $region39: #{generator_forward.13} parent=5 // pred_region
      %s481 = ssub.s32 %s9, 2
      // Predicated region
      $region41: #{generator_forward.13} parent=39 // pred_check
        %p482 = pneg %p106
      $region42: #{generator_forward.13} parent=39 // pred_check_branch
        %484 = sbr.rel (%p482) target = $region44
      $region43: #{generator_forward.13} parent=39 // pred_region
        %s485 = smul.u32 28, %s15
        %p486 = scmp.lt.s32.totalorder %s485, 195
        %s487 = scalar_select %p486, %s485, 195
        %s488 = smul.addr %s487, 4
        %s489 = scalar_lea.vmem %s3, %s488
      $region44: #{generator_forward.13} parent=39 // pred_fallthru
        _
    $region40: #{generator_forward.13} parent=5 // pred_fallthru
      _
  $region6: #{generator_forward.13} parent=0 // loop_footer
    %s13 = sadd.s32 1, %s9
  $region7: #{generator_forward.13} parent=0 // loop_footer_branch
    %8 = sbr.rel target = $region3
  $region8: #{generator_forward.13} parent=0 // loop_exit
    _

</llo_original>
